<compile_context>
chip_gen: v7x
topology: tpu7x:2x2x1
jax: 0.10.0
libtpu: 0.0.40
codegen_flags: <defaults>
</compile_context>

<pallas_src>
import jax
import jax.numpy as jnp
from jax import lax
from jax.experimental import pallas as pl
from jax.experimental.pallas import tpu as pltpu

EPS = 1e-5
LANES = 128        # channel padding target: one full lane tile
WPAD_L = 8         # left zero band of the padded scratch (sublane aligned)
WPAD_R = 8         # right zero band


def _bn_scale_shift(h, gamma, beta):
    """BatchNorm2d (training mode, biased variance) as a per-channel scale/shift.

    h: (M, C) f32 slab with M = N*H*W.  Two-pass f32 statistics (mean, then
    variance of centered values).  Returns (scale, shift) with
    bn(h) == h * scale + shift, so the apply stays one fused VPU pass.
    """
    m = h.shape[0]
    mean = jnp.sum(h, axis=0, keepdims=True) * (1.0 / m)
    cen = h - mean
    var = jnp.sum(cen * cen, axis=0, keepdims=True) * (1.0 / m)
    scale = gamma * lax.rsqrt(var + EPS)
    shift = beta - mean * scale
    return scale, shift


def _conv3x3_acc(pad_ref, w_ref, n, h, w, cp):
    """3x3 'same' conv as 9 accumulating bf16 matmuls (f32 accumulation).

    pad_ref holds the zero-bordered input (data at rows [1:h+1], cols
    [WPAD_L:WPAD_L+w]).  Each (dy, dx) tap window is read from the scratch,
    cast to bf16 and contracted against that tap's (cp, cp) bf16 weight on the
    MXU; partial products accumulate in f32.  No im2col buffer is materialized.
    """
    m = n * h * w
    acc = None
    for dy in range(3):
        for dx in range(3):
            x0 = WPAD_L - 1 + dx
            win = pad_ref[:, dy:dy + h, x0:x0 + w, :]            # (n, h, w, cp) f32
            lhs = win.reshape(m, cp).astype(jnp.bfloat16)        # bf16 MXU LHS
            part = jnp.dot(lhs, w_ref[dy * 3 + dx],
                           preferred_element_type=jnp.float32)   # (m, cp) f32
            acc = part if acc is None else acc + part
    return acc


def residual_block_kernel(x_ref, w1_ref, g1_ref, b1_ref, w2_ref, g2_ref, b2_ref,
                          out_ref, pad_ref):
    n, h, w, cp = x_ref.shape
    m = n * h * w
    wp = pad_ref.shape[2]                    # = WPAD_L + w + WPAD_R

    # Zero only the border bands of the shared padded scratch, once for both
    # convs (aligned stores; the interior is rewritten before each conv).
    pad_ref[:, 0:1, :, :] = jnp.zeros((n, 1, wp, cp), jnp.float32)
    pad_ref[:, h + 1:h + 2, :, :] = jnp.zeros((n, 1, wp, cp), jnp.float32)
    pad_ref[:, :, 0:WPAD_L, :] = jnp.zeros((n, h + 2, WPAD_L, cp), jnp.float32)
    pad_ref[:, :, WPAD_L + w:WPAD_L + w + WPAD_R, :] = (
        jnp.zeros((n, h + 2, WPAD_R, cp), jnp.float32))

    # ---- conv1: 9 accumulating bf16 matmuls straight from the scratch ----
    pad_ref[:, 1:h + 1, WPAD_L:WPAD_L + w, :] = x_ref[...]        # aligned write
    h1 = _conv3x3_acc(pad_ref, w1_ref, n, h, w, cp)

    # ---- bn1 (batch stats) fused with ReLU: one scale/shift pass ----
    sc1, sh1 = _bn_scale_shift(h1, g1_ref[...], b1_ref[...])
    h1 = jnp.maximum(h1 * sc1 + sh1, 0.0)

    # ---- conv2: reuse the same zero-bordered scratch ----
    pad_ref[:, 1:h + 1, WPAD_L:WPAD_L + w, :] = h1.reshape(n, h, w, cp)
    h2 = _conv3x3_acc(pad_ref, w2_ref, n, h, w, cp)

    # ---- bn2 fused with the f32 residual add (aligned full read) + ReLU ----
    sc2, sh2 = _bn_scale_shift(h2, g2_ref[...], b2_ref[...])
    out = jnp.maximum(h2 * sc2 + sh2 + x_ref[...].reshape(m, cp), 0.0)
    out_ref[...] = out.reshape(n, h, w, cp).astype(out_ref.dtype)


@jax.jit
def residual_block(x_nchw, w1, g1, b1, w2, g2, b2):
    """ResidualBlock forward (stride=1, downsample=None, BN in training mode).

    x_nchw: (N, C, H, W).  w*: (3, 3, Cin, Cout) HWIO (PyTorch OIHW weights map
    via w.transpose(2, 3, 1, 0)).  g*, b*: (C,)-broadcastable.
    """
    n, c, hh, ww = x_nchw.shape
    cp = LANES
    assert c <= cp, "channel count must fit one lane tile for this kernel"

    x_nhwc = jnp.transpose(x_nchw, (0, 2, 3, 1)).astype(jnp.float32)
    x_p = jnp.pad(x_nhwc, ((0, 0), (0, 0), (0, 0), (0, cp - c)))   # lane-dense

    def prep_w(wk):  # (3,3,C,C) HWIO -> (9, cp, cp) bf16, tap k = dy*3 + dx
        wk = jnp.pad(wk.astype(jnp.float32),
                     ((0, 0), (0, 0), (0, cp - c), (0, cp - c)))    # zero cin/cout pad
        return wk.reshape(9, cp, cp).astype(jnp.bfloat16)

    def prep_v(v):   # gamma/beta -> (1, cp) f32, padded with zeros
        v = jnp.reshape(v.astype(jnp.float32), (-1,))
        return jnp.pad(v, (0, cp - c)).reshape(1, cp)

    vmem = pl.BlockSpec(memory_space=pltpu.MemorySpace.VMEM)
    wp_total = WPAD_L + ww + WPAD_R

    out_nhwc = pl.pallas_call(
        residual_block_kernel,
        out_shape=jax.ShapeDtypeStruct((n, hh, ww, cp), jnp.float32),
        in_specs=[vmem] * 7,
        out_specs=vmem,
        scratch_shapes=[
            pltpu.VMEM((n, hh + 2, wp_total, cp), jnp.float32),   # zero-bordered conv input
        ],
        compiler_params=pltpu.CompilerParams(
            vmem_limit_bytes=32 * 1024 * 1024),
    )(x_p, prep_w(w1), prep_v(g1), prep_v(b1), prep_w(w2), prep_v(g2), prep_v(b2))

    return jnp.transpose(out_nhwc[..., :c], (0, 3, 1, 2)).astype(x_nchw.dtype)


def _reference(x_nchw, w1, g1, b1, w2, g2, b2):
    """Pure-JAX f32 reference (XLA conv, training-mode BN) for correctness."""
    x = jnp.transpose(x_nchw, (0, 2, 3, 1)).astype(jnp.float32)

    def conv(inp, wk):
        return lax.conv_general_dilated(
            inp, wk.astype(jnp.float32), (1, 1), "SAME",
            dimension_numbers=("NHWC", "HWIO", "NHWC"))

    def bn(t, gamma, beta):
        mean = jnp.mean(t, axis=(0, 1, 2), keepdims=True)
        var = jnp.mean((t - mean) ** 2, axis=(0, 1, 2), keepdims=True)
        return ((t - mean) * lax.rsqrt(var + EPS) * gamma.reshape(1, 1, 1, -1)
                + beta.reshape(1, 1, 1, -1))

    h = jnp.maximum(bn(conv(x, w1), g1, b1), 0.0)
    o = jnp.maximum(bn(conv(h, w2), g2, b2) + x, 0.0)
    return jnp.transpose(o, (0, 3, 1, 2)).astype(x_nchw.dtype)


if __name__ == "__main__":
    key = jax.random.PRNGKey(0)
    N, C, H, W = 2, 4, 16, 16   # in_channels == out_channels == 4, stride=1

    k = jax.random.split(key, 7)
    x = jax.random.normal(k[0], (N, C, H, W), jnp.float32)
    # conv weights in HWIO layout (kh, kw, cin, cout)
    w1 = jax.random.normal(k[1], (3, 3, C, C), jnp.float32) * 0.1
    w2 = jax.random.normal(k[2], (3, 3, C, C), jnp.float32) * 0.1
    # BatchNorm affine params (deterministic, non-trivial)
    g1 = 1.0 + 0.1 * jax.random.normal(k[3], (C,), jnp.float32)
    b1 = 0.1 * jax.random.normal(k[4], (C,), jnp.float32)
    g2 = 1.0 + 0.1 * jax.random.normal(k[5], (C,), jnp.float32)
    b2 = 0.1 * jax.random.normal(k[6], (C,), jnp.float32)

    out = jax.block_until_ready(residual_block(x, w1, g1, b1, w2, g2, b2))
    ref = _reference(x, w1, g1, b1, w2, g2, b2)

    assert out.shape == (N, C, H, W)
    # bf16 MXU operands (f32 accumulation / f32 BN+residual) => tolerance is
    # looser than the pure-f32 variant; real layout/tap bugs produce O(1) errors.
    assert jnp.allclose(out, ref, atol=5e-2, rtol=5e-2), "mismatch vs reference"

    print("KERNEL_OK")
</pallas_src>

<mosaic_0001>
module attributes {stable_mosaic.version = 11 : i64} {
  func.func @residual_block_kernel(%arg0: memref<2x16x16x128xf32, #tpu.memory_space<vmem>>, %arg1: memref<9x128x128xbf16, #tpu.memory_space<vmem>>, %arg2: memref<1x128xf32, #tpu.memory_space<vmem>>, %arg3: memref<1x128xf32, #tpu.memory_space<vmem>>, %arg4: memref<9x128x128xbf16, #tpu.memory_space<vmem>>, %arg5: memref<1x128xf32, #tpu.memory_space<vmem>>, %arg6: memref<1x128xf32, #tpu.memory_space<vmem>>, %arg7: memref<2x16x16x128xf32, #tpu.memory_space<vmem>>, %arg8: memref<2x18x32x128xf32, #tpu.memory_space<vmem>>) attributes {dimension_semantics = [], scalar_prefetch = 0 : i64, scratch_operands = 1 : i64, tpu.core_type = #tpu.core_type<tc>} {
    %cst = arith.constant 0.000000e+00 : f32
    %0 = vector.broadcast %cst : f32 to vector<2x1x32x128xf32>
    %c0 = arith.constant 0 : index
    %c0_0 = arith.constant 0 : index
    %c0_1 = arith.constant 0 : index
    %c0_2 = arith.constant 0 : index
    %1 = vector.load %arg8[%c0, %c0_0, %c0_1, %c0_2] : memref<2x18x32x128xf32, #tpu.memory_space<vmem>>, vector<2x1x32x128xf32>
    tpu.vector_store %arg8[%c0, %c0_0, %c0_1, %c0_2], %0 {strides = array<i32>} : memref<2x18x32x128xf32, #tpu.memory_space<vmem>>, vector<2x1x32x128xf32>,
    %cst_3 = arith.constant 0.000000e+00 : f32
    %2 = vector.broadcast %cst_3 : f32 to vector<2x1x32x128xf32>
    %c0_4 = arith.constant 0 : index
    %c17 = arith.constant 17 : index
    %c0_5 = arith.constant 0 : index
    %c0_6 = arith.constant 0 : index
    %3 = vector.load %arg8[%c0_4, %c17, %c0_5, %c0_6] : memref<2x18x32x128xf32, #tpu.memory_space<vmem>>, vector<2x1x32x128xf32>
    tpu.vector_store %arg8[%c0_4, %c17, %c0_5, %c0_6], %2 {strides = array<i32>} : memref<2x18x32x128xf32, #tpu.memory_space<vmem>>, vector<2x1x32x128xf32>,
    %cst_7 = arith.constant 0.000000e+00 : f32
    %4 = vector.broadcast %cst_7 : f32 to vector<2x18x8x128xf32>
    %c0_8 = arith.constant 0 : index
    %c0_9 = arith.constant 0 : index
    %c0_10 = arith.constant 0 : index
    %c0_11 = arith.constant 0 : index
    %5 = vector.load %arg8[%c0_8, %c0_9, %c0_10, %c0_11] : memref<2x18x32x128xf32, #tpu.memory_space<vmem>>, vector<2x18x8x128xf32>
    tpu.vector_store %arg8[%c0_8, %c0_9, %c0_10, %c0_11], %4 {strides = array<i32>} : memref<2x18x32x128xf32, #tpu.memory_space<vmem>>, vector<2x18x8x128xf32>,
    %cst_12 = arith.constant 0.000000e+00 : f32
    %6 = vector.broadcast %cst_12 : f32 to vector<2x18x8x128xf32>
    %c0_13 = arith.constant 0 : index
    %c0_14 = arith.constant 0 : index
    %c24 = arith.constant 24 : index
    %c0_15 = arith.constant 0 : index
    %7 = vector.load %arg8[%c0_13, %c0_14, %c24, %c0_15] : memref<2x18x32x128xf32, #tpu.memory_space<vmem>>, vector<2x18x8x128xf32>
    tpu.vector_store %arg8[%c0_13, %c0_14, %c24, %c0_15], %6 {strides = array<i32>} : memref<2x18x32x128xf32, #tpu.memory_space<vmem>>, vector<2x18x8x128xf32>,
    %c0_16 = arith.constant 0 : index
    %c0_17 = arith.constant 0 : index
    %c0_18 = arith.constant 0 : index
    %c0_19 = arith.constant 0 : index
    %8 = vector.load %arg0[%c0_16, %c0_17, %c0_18, %c0_19] : memref<2x16x16x128xf32, #tpu.memory_space<vmem>>, vector<2x16x16x128xf32>
    %c0_20 = arith.constant 0 : index
    %c1 = arith.constant 1 : index
    %c8 = arith.constant 8 : index
    %c0_21 = arith.constant 0 : index
    %9 = vector.load %arg8[%c0_20, %c1, %c8, %c0_21] : memref<2x18x32x128xf32, #tpu.memory_space<vmem>>, vector<2x16x16x128xf32>
    tpu.vector_store %arg8[%c0_20, %c1, %c8, %c0_21], %8 {strides = array<i32>} : memref<2x18x32x128xf32, #tpu.memory_space<vmem>>, vector<2x16x16x128xf32>,
    %c0_22 = arith.constant 0 : index
    %c0_23 = arith.constant 0 : index
    %c7 = arith.constant 7 : index
    %c0_24 = arith.constant 0 : index
    %10 = vector.load %arg8[%c0_22, %c0_23, %c7, %c0_24] : memref<2x18x32x128xf32, #tpu.memory_space<vmem>>, vector<2x16x16x128xf32>
    %11 = vector.shape_cast %10 : vector<2x16x16x128xf32> to vector<512x128xf32>
    %12 = arith.truncf %11 : vector<512x128xf32> to vector<512x128xbf16>
    %c0_25 = arith.constant 0 : index
    %c0_26 = arith.constant 0 : index
    %c0_27 = arith.constant 0 : index
    %13 = vector.load %arg1[%c0_25, %c0_26, %c0_27] : memref<9x128x128xbf16, #tpu.memory_space<vmem>>, vector<1x128x128xbf16>
    %14 = vector.shape_cast %13 : vector<1x128x128xbf16> to vector<128x128xbf16>
    %cst_28 = arith.constant dense<0.000000e+00> : vector<512x128xf32>
    %15 = tpu.matmul %12, %14, %cst_28 {dimension_numbers = #tpu.dot_dimension_numbers<[1], [0], [0], [1], [0, 0, 1, 1], [], []>} : vector<512x128xbf16>, vector<128x128xbf16>, vector<512x128xf32> -> vector<512x128xf32>
    %c0_29 = arith.constant 0 : index
    %c0_30 = arith.constant 0 : index
    %c8_31 = arith.constant 8 : index
    %c0_32 = arith.constant 0 : index
    %16 = vector.load %arg8[%c0_29, %c0_30, %c8_31, %c0_32] : memref<2x18x32x128xf32, #tpu.memory_space<vmem>>, vector<2x16x16x128xf32>
    %17 = vector.shape_cast %16 : vector<2x16x16x128xf32> to vector<512x128xf32>
    %18 = arith.truncf %17 : vector<512x128xf32> to vector<512x128xbf16>
    %c1_33 = arith.constant 1 : index
    %c0_34 = arith.constant 0 : index
    %c0_35 = arith.constant 0 : index
    %19 = vector.load %arg1[%c1_33, %c0_34, %c0_35] : memref<9x128x128xbf16, #tpu.memory_space<vmem>>, vector<1x128x128xbf16>
    %20 = vector.shape_cast %19 : vector<1x128x128xbf16> to vector<128x128xbf16>
    %cst_36 = arith.constant dense<0.000000e+00> : vector<512x128xf32>
    %21 = tpu.matmul %18, %20, %cst_36 {dimension_numbers = #tpu.dot_dimension_numbers<[1], [0], [0], [1], [0, 0, 1, 1], [], []>} : vector<512x128xbf16>, vector<128x128xbf16>, vector<512x128xf32> -> vector<512x128xf32>
    %22 = arith.addf %15, %21 : vector<512x128xf32>
    %c0_37 = arith.constant 0 : index
    %c0_38 = arith.constant 0 : index
    %c9 = arith.constant 9 : index
    %c0_39 = arith.constant 0 : index
    %23 = vector.load %arg8[%c0_37, %c0_38, %c9, %c0_39] : memref<2x18x32x128xf32, #tpu.memory_space<vmem>>, vector<2x16x16x128xf32>
    %24 = vector.shape_cast %23 : vector<2x16x16x128xf32> to vector<512x128xf32>
    %25 = arith.truncf %24 : vector<512x128xf32> to vector<512x128xbf16>
    %c2 = arith.constant 2 : index
    %c0_40 = arith.constant 0 : index
    %c0_41 = arith.constant 0 : index
    %26 = vector.load %arg1[%c2, %c0_40, %c0_41] : memref<9x128x128xbf16, #tpu.memory_space<vmem>>, vector<1x128x128xbf16>
    %27 = vector.shape_cast %26 : vector<1x128x128xbf16> to vector<128x128xbf16>
    %cst_42 = arith.constant dense<0.000000e+00> : vector<512x128xf32>
    %28 = tpu.matmul %25, %27, %cst_42 {dimension_numbers = #tpu.dot_dimension_numbers<[1], [0], [0], [1], [0, 0, 1, 1], [], []>} : vector<512x128xbf16>, vector<128x128xbf16>, vector<512x128xf32> -> vector<512x128xf32>
    %29 = arith.addf %22, %28 : vector<512x128xf32>
    %c0_43 = arith.constant 0 : index
    %c1_44 = arith.constant 1 : index
    %c7_45 = arith.constant 7 : index
    %c0_46 = arith.constant 0 : index
    %30 = vector.load %arg8[%c0_43, %c1_44, %c7_45, %c0_46] : memref<2x18x32x128xf32, #tpu.memory_space<vmem>>, vector<2x16x16x128xf32>
    %31 = vector.shape_cast %30 : vector<2x16x16x128xf32> to vector<512x128xf32>
    %32 = arith.truncf %31 : vector<512x128xf32> to vector<512x128xbf16>
    %c3 = arith.constant 3 : index
    %c0_47 = arith.constant 0 : index
    %c0_48 = arith.constant 0 : index
    %33 = vector.load %arg1[%c3, %c0_47, %c0_48] : memref<9x128x128xbf16, #tpu.memory_space<vmem>>, vector<1x128x128xbf16>
    %34 = vector.shape_cast %33 : vector<1x128x128xbf16> to vector<128x128xbf16>
    %cst_49 = arith.constant dense<0.000000e+00> : vector<512x128xf32>
    %35 = tpu.matmul %32, %34, %cst_49 {dimension_numbers = #tpu.dot_dimension_numbers<[1], [0], [0], [1], [0, 0, 1, 1], [], []>} : vector<512x128xbf16>, vector<128x128xbf16>, vector<512x128xf32> -> vector<512x128xf32>
    %36 = arith.addf %29, %35 : vector<512x128xf32>
    %c0_50 = arith.constant 0 : index
    %c1_51 = arith.constant 1 : index
    %c8_52 = arith.constant 8 : index
    %c0_53 = arith.constant 0 : index
    %37 = vector.load %arg8[%c0_50, %c1_51, %c8_52, %c0_53] : memref<2x18x32x128xf32, #tpu.memory_space<vmem>>, vector<2x16x16x128xf32>
    %38 = vector.shape_cast %37 : vector<2x16x16x128xf32> to vector<512x128xf32>
    %39 = arith.truncf %38 : vector<512x128xf32> to vector<512x128xbf16>
    %c4 = arith.constant 4 : index
    %c0_54 = arith.constant 0 : index
    %c0_55 = arith.constant 0 : index
    %40 = vector.load %arg1[%c4, %c0_54, %c0_55] : memref<9x128x128xbf16, #tpu.memory_space<vmem>>, vector<1x128x128xbf16>
    %41 = vector.shape_cast %40 : vector<1x128x128xbf16> to vector<128x128xbf16>
    %cst_56 = arith.constant dense<0.000000e+00> : vector<512x128xf32>
    %42 = tpu.matmul %39, %41, %cst_56 {dimension_numbers = #tpu.dot_dimension_numbers<[1], [0], [0], [1], [0, 0, 1, 1], [], []>} : vector<512x128xbf16>, vector<128x128xbf16>, vector<512x128xf32> -> vector<512x128xf32>
    %43 = arith.addf %36, %42 : vector<512x128xf32>
    %c0_57 = arith.constant 0 : index
    %c1_58 = arith.constant 1 : index
    %c9_59 = arith.constant 9 : index
    %c0_60 = arith.constant 0 : index
    %44 = vector.load %arg8[%c0_57, %c1_58, %c9_59, %c0_60] : memref<2x18x32x128xf32, #tpu.memory_space<vmem>>, vector<2x16x16x128xf32>
    %45 = vector.shape_cast %44 : vector<2x16x16x128xf32> to vector<512x128xf32>
    %46 = arith.truncf %45 : vector<512x128xf32> to vector<512x128xbf16>
    %c5 = arith.constant 5 : index
    %c0_61 = arith.constant 0 : index
    %c0_62 = arith.constant 0 : index
    %47 = vector.load %arg1[%c5, %c0_61, %c0_62] : memref<9x128x128xbf16, #tpu.memory_space<vmem>>, vector<1x128x128xbf16>
    %48 = vector.shape_cast %47 : vector<1x128x128xbf16> to vector<128x128xbf16>
    %cst_63 = arith.constant dense<0.000000e+00> : vector<512x128xf32>
    %49 = tpu.matmul %46, %48, %cst_63 {dimension_numbers = #tpu.dot_dimension_numbers<[1], [0], [0], [1], [0, 0, 1, 1], [], []>} : vector<512x128xbf16>, vector<128x128xbf16>, vector<512x128xf32> -> vector<512x128xf32>
    %50 = arith.addf %43, %49 : vector<512x128xf32>
    %c0_64 = arith.constant 0 : index
    %c2_65 = arith.constant 2 : index
    %c7_66 = arith.constant 7 : index
    %c0_67 = arith.constant 0 : index
    %51 = vector.load %arg8[%c0_64, %c2_65, %c7_66, %c0_67] : memref<2x18x32x128xf32, #tpu.memory_space<vmem>>, vector<2x16x16x128xf32>
    %52 = vector.shape_cast %51 : vector<2x16x16x128xf32> to vector<512x128xf32>
    %53 = arith.truncf %52 : vector<512x128xf32> to vector<512x128xbf16>
    %c6 = arith.constant 6 : index
    %c0_68 = arith.constant 0 : index
    %c0_69 = arith.constant 0 : index
    %54 = vector.load %arg1[%c6, %c0_68, %c0_69] : memref<9x128x128xbf16, #tpu.memory_space<vmem>>, vector<1x128x128xbf16>
    %55 = vector.shape_cast %54 : vector<1x128x128xbf16> to vector<128x128xbf16>
    %cst_70 = arith.constant dense<0.000000e+00> : vector<512x128xf32>
    %56 = tpu.matmul %53, %55, %cst_70 {dimension_numbers = #tpu.dot_dimension_numbers<[1], [0], [0], [1], [0, 0, 1, 1], [], []>} : vector<512x128xbf16>, vector<128x128xbf16>, vector<512x128xf32> -> vector<512x128xf32>
    %57 = arith.addf %50, %56 : vector<512x128xf32>
    %c0_71 = arith.constant 0 : index
    %c2_72 = arith.constant 2 : index
    %c8_73 = arith.constant 8 : index
    %c0_74 = arith.constant 0 : index
    %58 = vector.load %arg8[%c0_71, %c2_72, %c8_73, %c0_74] : memref<2x18x32x128xf32, #tpu.memory_space<vmem>>, vector<2x16x16x128xf32>
    %59 = vector.shape_cast %58 : vector<2x16x16x128xf32> to vector<512x128xf32>
    %60 = arith.truncf %59 : vector<512x128xf32> to vector<512x128xbf16>
    %c7_75 = arith.constant 7 : index
    %c0_76 = arith.constant 0 : index
    %c0_77 = arith.constant 0 : index
    %61 = vector.load %arg1[%c7_75, %c0_76, %c0_77] : memref<9x128x128xbf16, #tpu.memory_space<vmem>>, vector<1x128x128xbf16>
    %62 = vector.shape_cast %61 : vector<1x128x128xbf16> to vector<128x128xbf16>
    %cst_78 = arith.constant dense<0.000000e+00> : vector<512x128xf32>
    %63 = tpu.matmul %60, %62, %cst_78 {dimension_numbers = #tpu.dot_dimension_numbers<[1], [0], [0], [1], [0, 0, 1, 1], [], []>} : vector<512x128xbf16>, vector<128x128xbf16>, vector<512x128xf32> -> vector<512x128xf32>
    %64 = arith.addf %57, %63 : vector<512x128xf32>
    %c0_79 = arith.constant 0 : index
    %c2_80 = arith.constant 2 : index
    %c9_81 = arith.constant 9 : index
    %c0_82 = arith.constant 0 : index
    %65 = vector.load %arg8[%c0_79, %c2_80, %c9_81, %c0_82] : memref<2x18x32x128xf32, #tpu.memory_space<vmem>>, vector<2x16x16x128xf32>
    %66 = vector.shape_cast %65 : vector<2x16x16x128xf32> to vector<512x128xf32>
    %67 = arith.truncf %66 : vector<512x128xf32> to vector<512x128xbf16>
    %c8_83 = arith.constant 8 : index
    %c0_84 = arith.constant 0 : index
    %c0_85 = arith.constant 0 : index
    %68 = vector.load %arg1[%c8_83, %c0_84, %c0_85] : memref<9x128x128xbf16, #tpu.memory_space<vmem>>, vector<1x128x128xbf16>
    %69 = vector.shape_cast %68 : vector<1x128x128xbf16> to vector<128x128xbf16>
    %cst_86 = arith.constant dense<0.000000e+00> : vector<512x128xf32>
    %70 = tpu.matmul %67, %69, %cst_86 {dimension_numbers = #tpu.dot_dimension_numbers<[1], [0], [0], [1], [0, 0, 1, 1], [], []>} : vector<512x128xbf16>, vector<128x128xbf16>, vector<512x128xf32> -> vector<512x128xf32>
    %71 = arith.addf %64, %70 : vector<512x128xf32>
    %c0_87 = arith.constant 0 : index
    %c0_88 = arith.constant 0 : index
    %72 = vector.load %arg2[%c0_87, %c0_88] : memref<1x128xf32, #tpu.memory_space<vmem>>, vector<1x128xf32>
    %c0_89 = arith.constant 0 : index
    %c0_90 = arith.constant 0 : index
    %73 = vector.load %arg3[%c0_89, %c0_90] : memref<1x128xf32, #tpu.memory_space<vmem>>, vector<1x128xf32>
    %cst_91 = arith.constant dense<0.000000e+00> : vector<128xf32>
    %74 = vector.multi_reduction <add>, %71, %cst_91 [0] : vector<512x128xf32> to vector<128xf32>
    %75 = vector.shape_cast %74 : vector<128xf32> to vector<1x128xf32>
    %cst_92 = arith.constant 0.001953125 : f32
    %76 = vector.broadcast %cst_92 : f32 to vector<1x128xf32>
    %77 = arith.mulf %75, %76 : vector<1x128xf32>
    %78 = vector.broadcast %77 : vector<1x128xf32> to vector<512x128xf32>
    %79 = arith.subf %71, %78 : vector<512x128xf32>
    %80 = arith.mulf %79, %79 : vector<512x128xf32>
    %cst_93 = arith.constant dense<0.000000e+00> : vector<128xf32>
    %81 = vector.multi_reduction <add>, %80, %cst_93 [0] : vector<512x128xf32> to vector<128xf32>
    %82 = vector.shape_cast %81 : vector<128xf32> to vector<1x128xf32>
    %cst_94 = arith.constant 0.001953125 : f32
    %83 = vector.broadcast %cst_94 : f32 to vector<1x128xf32>
    %84 = arith.mulf %82, %83 : vector<1x128xf32>
    %cst_95 = arith.constant 9.99999974E-6 : f32
    %85 = vector.broadcast %cst_95 : f32 to vector<1x128xf32>
    %86 = arith.addf %84, %85 : vector<1x128xf32>
    %87 = math.rsqrt %86 : vector<1x128xf32>
    %88 = arith.mulf %72, %87 : vector<1x128xf32>
    %89 = arith.mulf %77, %88 : vector<1x128xf32>
    %90 = arith.subf %73, %89 : vector<1x128xf32>
    %91 = vector.broadcast %88 : vector<1x128xf32> to vector<512x128xf32>
    %92 = arith.mulf %71, %91 : vector<512x128xf32>
    %93 = vector.broadcast %90 : vector<1x128xf32> to vector<512x128xf32>
    %94 = arith.addf %92, %93 : vector<512x128xf32>
    %cst_96 = arith.constant 0.000000e+00 : f32
    %95 = vector.broadcast %cst_96 : f32 to vector<512x128xf32>
    %96 = arith.maximumf %94, %95 : vector<512x128xf32>
    %97 = vector.shape_cast %96 : vector<512x128xf32> to vector<2x16x16x128xf32>
    %c0_97 = arith.constant 0 : index
    %c1_98 = arith.constant 1 : index
    %c8_99 = arith.constant 8 : index
    %c0_100 = arith.constant 0 : index
    %98 = vector.load %arg8[%c0_97, %c1_98, %c8_99, %c0_100] : memref<2x18x32x128xf32, #tpu.memory_space<vmem>>, vector<2x16x16x128xf32>
    tpu.vector_store %arg8[%c0_97, %c1_98, %c8_99, %c0_100], %97 {strides = array<i32>} : memref<2x18x32x128xf32, #tpu.memory_space<vmem>>, vector<2x16x16x128xf32>,
    %c0_101 = arith.constant 0 : index
    %c0_102 = arith.constant 0 : index
    %c7_103 = arith.constant 7 : index
    %c0_104 = arith.constant 0 : index
    %99 = vector.load %arg8[%c0_101, %c0_102, %c7_103, %c0_104] : memref<2x18x32x128xf32, #tpu.memory_space<vmem>>, vector<2x16x16x128xf32>
    %100 = vector.shape_cast %99 : vector<2x16x16x128xf32> to vector<512x128xf32>
    %101 = arith.truncf %100 : vector<512x128xf32> to vector<512x128xbf16>
    %c0_105 = arith.constant 0 : index
    %c0_106 = arith.constant 0 : index
    %c0_107 = arith.constant 0 : index
    %102 = vector.load %arg4[%c0_105, %c0_106, %c0_107] : memref<9x128x128xbf16, #tpu.memory_space<vmem>>, vector<1x128x128xbf16>
    %103 = vector.shape_cast %102 : vector<1x128x128xbf16> to vector<128x128xbf16>
    %cst_108 = arith.constant dense<0.000000e+00> : vector<512x128xf32>
    %104 = tpu.matmul %101, %103, %cst_108 {dimension_numbers = #tpu.dot_dimension_numbers<[1], [0], [0], [1], [0, 0, 1, 1], [], []>} : vector<512x128xbf16>, vector<128x128xbf16>, vector<512x128xf32> -> vector<512x128xf32>
    %c0_109 = arith.constant 0 : index
    %c0_110 = arith.constant 0 : index
    %c8_111 = arith.constant 8 : index
    %c0_112 = arith.constant 0 : index
    %105 = vector.load %arg8[%c0_109, %c0_110, %c8_111, %c0_112] : memref<2x18x32x128xf32, #tpu.memory_space<vmem>>, vector<2x16x16x128xf32>
    %106 = vector.shape_cast %105 : vector<2x16x16x128xf32> to vector<512x128xf32>
    %107 = arith.truncf %106 : vector<512x128xf32> to vector<512x128xbf16>
    %c1_113 = arith.constant 1 : index
    %c0_114 = arith.constant 0 : index
    %c0_115 = arith.constant 0 : index
    %108 = vector.load %arg4[%c1_113, %c0_114, %c0_115] : memref<9x128x128xbf16, #tpu.memory_space<vmem>>, vector<1x128x128xbf16>
    %109 = vector.shape_cast %108 : vector<1x128x128xbf16> to vector<128x128xbf16>
    %cst_116 = arith.constant dense<0.000000e+00> : vector<512x128xf32>
    %110 = tpu.matmul %107, %109, %cst_116 {dimension_numbers = #tpu.dot_dimension_numbers<[1], [0], [0], [1], [0, 0, 1, 1], [], []>} : vector<512x128xbf16>, vector<128x128xbf16>, vector<512x128xf32> -> vector<512x128xf32>
    %111 = arith.addf %104, %110 : vector<512x128xf32>
    %c0_117 = arith.constant 0 : index
    %c0_118 = arith.constant 0 : index
    %c9_119 = arith.constant 9 : index
    %c0_120 = arith.constant 0 : index
    %112 = vector.load %arg8[%c0_117, %c0_118, %c9_119, %c0_120] : memref<2x18x32x128xf32, #tpu.memory_space<vmem>>, vector<2x16x16x128xf32>
    %113 = vector.shape_cast %112 : vector<2x16x16x128xf32> to vector<512x128xf32>
    %114 = arith.truncf %113 : vector<512x128xf32> to vector<512x128xbf16>
    %c2_121 = arith.constant 2 : index
    %c0_122 = arith.constant 0 : index
    %c0_123 = arith.constant 0 : index
    %115 = vector.load %arg4[%c2_121, %c0_122, %c0_123] : memref<9x128x128xbf16, #tpu.memory_space<vmem>>, vector<1x128x128xbf16>
    %116 = vector.shape_cast %115 : vector<1x128x128xbf16> to vector<128x128xbf16>
    %cst_124 = arith.constant dense<0.000000e+00> : vector<512x128xf32>
    %117 = tpu.matmul %114, %116, %cst_124 {dimension_numbers = #tpu.dot_dimension_numbers<[1], [0], [0], [1], [0, 0, 1, 1], [], []>} : vector<512x128xbf16>, vector<128x128xbf16>, vector<512x128xf32> -> vector<512x128xf32>
    %118 = arith.addf %111, %117 : vector<512x128xf32>
    %c0_125 = arith.constant 0 : index
    %c1_126 = arith.constant 1 : index
    %c7_127 = arith.constant 7 : index
    %c0_128 = arith.constant 0 : index
    %119 = vector.load %arg8[%c0_125, %c1_126, %c7_127, %c0_128] : memref<2x18x32x128xf32, #tpu.memory_space<vmem>>, vector<2x16x16x128xf32>
    %120 = vector.shape_cast %119 : vector<2x16x16x128xf32> to vector<512x128xf32>
    %121 = arith.truncf %120 : vector<512x128xf32> to vector<512x128xbf16>
    %c3_129 = arith.constant 3 : index
    %c0_130 = arith.constant 0 : index
    %c0_131 = arith.constant 0 : index
    %122 = vector.load %arg4[%c3_129, %c0_130, %c0_131] : memref<9x128x128xbf16, #tpu.memory_space<vmem>>, vector<1x128x128xbf16>
    %123 = vector.shape_cast %122 : vector<1x128x128xbf16> to vector<128x128xbf16>
    %cst_132 = arith.constant dense<0.000000e+00> : vector<512x128xf32>
    %124 = tpu.matmul %121, %123, %cst_132 {dimension_numbers = #tpu.dot_dimension_numbers<[1], [0], [0], [1], [0, 0, 1, 1], [], []>} : vector<512x128xbf16>, vector<128x128xbf16>, vector<512x128xf32> -> vector<512x128xf32>
    %125 = arith.addf %118, %124 : vector<512x128xf32>
    %c0_133 = arith.constant 0 : index
    %c1_134 = arith.constant 1 : index
    %c8_135 = arith.constant 8 : index
    %c0_136 = arith.constant 0 : index
    %126 = vector.load %arg8[%c0_133, %c1_134, %c8_135, %c0_136] : memref<2x18x32x128xf32, #tpu.memory_space<vmem>>, vector<2x16x16x128xf32>
    %127 = vector.shape_cast %126 : vector<2x16x16x128xf32> to vector<512x128xf32>
    %128 = arith.truncf %127 : vector<512x128xf32> to vector<512x128xbf16>
    %c4_137 = arith.constant 4 : index
    %c0_138 = arith.constant 0 : index
    %c0_139 = arith.constant 0 : index
    %129 = vector.load %arg4[%c4_137, %c0_138, %c0_139] : memref<9x128x128xbf16, #tpu.memory_space<vmem>>, vector<1x128x128xbf16>
    %130 = vector.shape_cast %129 : vector<1x128x128xbf16> to vector<128x128xbf16>
    %cst_140 = arith.constant dense<0.000000e+00> : vector<512x128xf32>
    %131 = tpu.matmul %128, %130, %cst_140 {dimension_numbers = #tpu.dot_dimension_numbers<[1], [0], [0], [1], [0, 0, 1, 1], [], []>} : vector<512x128xbf16>, vector<128x128xbf16>, vector<512x128xf32> -> vector<512x128xf32>
    %132 = arith.addf %125, %131 : vector<512x128xf32>
    %c0_141 = arith.constant 0 : index
    %c1_142 = arith.constant 1 : index
    %c9_143 = arith.constant 9 : index
    %c0_144 = arith.constant 0 : index
    %133 = vector.load %arg8[%c0_141, %c1_142, %c9_143, %c0_144] : memref<2x18x32x128xf32, #tpu.memory_space<vmem>>, vector<2x16x16x128xf32>
    %134 = vector.shape_cast %133 : vector<2x16x16x128xf32> to vector<512x128xf32>
    %135 = arith.truncf %134 : vector<512x128xf32> to vector<512x128xbf16>
    %c5_145 = arith.constant 5 : index
    %c0_146 = arith.constant 0 : index
    %c0_147 = arith.constant 0 : index
    %136 = vector.load %arg4[%c5_145, %c0_146, %c0_147] : memref<9x128x128xbf16, #tpu.memory_space<vmem>>, vector<1x128x128xbf16>
    %137 = vector.shape_cast %136 : vector<1x128x128xbf16> to vector<128x128xbf16>
    %cst_148 = arith.constant dense<0.000000e+00> : vector<512x128xf32>
    %138 = tpu.matmul %135, %137, %cst_148 {dimension_numbers = #tpu.dot_dimension_numbers<[1], [0], [0], [1], [0, 0, 1, 1], [], []>} : vector<512x128xbf16>, vector<128x128xbf16>, vector<512x128xf32> -> vector<512x128xf32>
    %139 = arith.addf %132, %138 : vector<512x128xf32>
    %c0_149 = arith.constant 0 : index
    %c2_150 = arith.constant 2 : index
    %c7_151 = arith.constant 7 : index
    %c0_152 = arith.constant 0 : index
    %140 = vector.load %arg8[%c0_149, %c2_150, %c7_151, %c0_152] : memref<2x18x32x128xf32, #tpu.memory_space<vmem>>, vector<2x16x16x128xf32>
    %141 = vector.shape_cast %140 : vector<2x16x16x128xf32> to vector<512x128xf32>
    %142 = arith.truncf %141 : vector<512x128xf32> to vector<512x128xbf16>
    %c6_153 = arith.constant 6 : index
    %c0_154 = arith.constant 0 : index
    %c0_155 = arith.constant 0 : index
    %143 = vector.load %arg4[%c6_153, %c0_154, %c0_155] : memref<9x128x128xbf16, #tpu.memory_space<vmem>>, vector<1x128x128xbf16>
    %144 = vector.shape_cast %143 : vector<1x128x128xbf16> to vector<128x128xbf16>
    %cst_156 = arith.constant dense<0.000000e+00> : vector<512x128xf32>
    %145 = tpu.matmul %142, %144, %cst_156 {dimension_numbers = #tpu.dot_dimension_numbers<[1], [0], [0], [1], [0, 0, 1, 1], [], []>} : vector<512x128xbf16>, vector<128x128xbf16>, vector<512x128xf32> -> vector<512x128xf32>
    %146 = arith.addf %139, %145 : vector<512x128xf32>
    %c0_157 = arith.constant 0 : index
    %c2_158 = arith.constant 2 : index
    %c8_159 = arith.constant 8 : index
    %c0_160 = arith.constant 0 : index
    %147 = vector.load %arg8[%c0_157, %c2_158, %c8_159, %c0_160] : memref<2x18x32x128xf32, #tpu.memory_space<vmem>>, vector<2x16x16x128xf32>
    %148 = vector.shape_cast %147 : vector<2x16x16x128xf32> to vector<512x128xf32>
    %149 = arith.truncf %148 : vector<512x128xf32> to vector<512x128xbf16>
    %c7_161 = arith.constant 7 : index
    %c0_162 = arith.constant 0 : index
    %c0_163 = arith.constant 0 : index
    %150 = vector.load %arg4[%c7_161, %c0_162, %c0_163] : memref<9x128x128xbf16, #tpu.memory_space<vmem>>, vector<1x128x128xbf16>
    %151 = vector.shape_cast %150 : vector<1x128x128xbf16> to vector<128x128xbf16>
    %cst_164 = arith.constant dense<0.000000e+00> : vector<512x128xf32>
    %152 = tpu.matmul %149, %151, %cst_164 {dimension_numbers = #tpu.dot_dimension_numbers<[1], [0], [0], [1], [0, 0, 1, 1], [], []>} : vector<512x128xbf16>, vector<128x128xbf16>, vector<512x128xf32> -> vector<512x128xf32>
    %153 = arith.addf %146, %152 : vector<512x128xf32>
    %c0_165 = arith.constant 0 : index
    %c2_166 = arith.constant 2 : index
    %c9_167 = arith.constant 9 : index
    %c0_168 = arith.constant 0 : index
    %154 = vector.load %arg8[%c0_165, %c2_166, %c9_167, %c0_168] : memref<2x18x32x128xf32, #tpu.memory_space<vmem>>, vector<2x16x16x128xf32>
    %155 = vector.shape_cast %154 : vector<2x16x16x128xf32> to vector<512x128xf32>
    %156 = arith.truncf %155 : vector<512x128xf32> to vector<512x128xbf16>
    %c8_169 = arith.constant 8 : index
    %c0_170 = arith.constant 0 : index
    %c0_171 = arith.constant 0 : index
    %157 = vector.load %arg4[%c8_169, %c0_170, %c0_171] : memref<9x128x128xbf16, #tpu.memory_space<vmem>>, vector<1x128x128xbf16>
    %158 = vector.shape_cast %157 : vector<1x128x128xbf16> to vector<128x128xbf16>
    %cst_172 = arith.constant dense<0.000000e+00> : vector<512x128xf32>
    %159 = tpu.matmul %156, %158, %cst_172 {dimension_numbers = #tpu.dot_dimension_numbers<[1], [0], [0], [1], [0, 0, 1, 1], [], []>} : vector<512x128xbf16>, vector<128x128xbf16>, vector<512x128xf32> -> vector<512x128xf32>
    %160 = arith.addf %153, %159 : vector<512x128xf32>
    %c0_173 = arith.constant 0 : index
    %c0_174 = arith.constant 0 : index
    %161 = vector.load %arg5[%c0_173, %c0_174] : memref<1x128xf32, #tpu.memory_space<vmem>>, vector<1x128xf32>
    %c0_175 = arith.constant 0 : index
    %c0_176 = arith.constant 0 : index
    %162 = vector.load %arg6[%c0_175, %c0_176] : memref<1x128xf32, #tpu.memory_space<vmem>>, vector<1x128xf32>
    %cst_177 = arith.constant dense<0.000000e+00> : vector<128xf32>
    %163 = vector.multi_reduction <add>, %160, %cst_177 [0] : vector<512x128xf32> to vector<128xf32>
    %164 = vector.shape_cast %163 : vector<128xf32> to vector<1x128xf32>
    %cst_178 = arith.constant 0.001953125 : f32
    %165 = vector.broadcast %cst_178 : f32 to vector<1x128xf32>
    %166 = arith.mulf %164, %165 : vector<1x128xf32>
    %167 = vector.broadcast %166 : vector<1x128xf32> to vector<512x128xf32>
    %168 = arith.subf %160, %167 : vector<512x128xf32>
    %169 = arith.mulf %168, %168 : vector<512x128xf32>
    %cst_179 = arith.constant dense<0.000000e+00> : vector<128xf32>
    %170 = vector.multi_reduction <add>, %169, %cst_179 [0] : vector<512x128xf32> to vector<128xf32>
    %171 = vector.shape_cast %170 : vector<128xf32> to vector<1x128xf32>
    %cst_180 = arith.constant 0.001953125 : f32
    %172 = vector.broadcast %cst_180 : f32 to vector<1x128xf32>
    %173 = arith.mulf %171, %172 : vector<1x128xf32>
    %cst_181 = arith.constant 9.99999974E-6 : f32
    %174 = vector.broadcast %cst_181 : f32 to vector<1x128xf32>
    %175 = arith.addf %173, %174 : vector<1x128xf32>
    %176 = math.rsqrt %175 : vector<1x128xf32>
    %177 = arith.mulf %161, %176 : vector<1x128xf32>
    %178 = arith.mulf %166, %177 : vector<1x128xf32>
    %179 = arith.subf %162, %178 : vector<1x128xf32>
    %180 = vector.broadcast %177 : vector<1x128xf32> to vector<512x128xf32>
    %181 = arith.mulf %160, %180 : vector<512x128xf32>
    %182 = vector.broadcast %179 : vector<1x128xf32> to vector<512x128xf32>
    %183 = arith.addf %181, %182 : vector<512x128xf32>
    %c0_182 = arith.constant 0 : index
    %c0_183 = arith.constant 0 : index
    %c0_184 = arith.constant 0 : index
    %c0_185 = arith.constant 0 : index
    %184 = vector.load %arg0[%c0_182, %c0_183, %c0_184, %c0_185] : memref<2x16x16x128xf32, #tpu.memory_space<vmem>>, vector<2x16x16x128xf32>
    %185 = vector.shape_cast %184 : vector<2x16x16x128xf32> to vector<512x128xf32>
    %186 = arith.addf %183, %185 : vector<512x128xf32>
    %cst_186 = arith.constant 0.000000e+00 : f32
    %187 = vector.broadcast %cst_186 : f32 to vector<512x128xf32>
    %188 = arith.maximumf %186, %187 : vector<512x128xf32>
    %189 = vector.shape_cast %188 : vector<512x128xf32> to vector<2x16x16x128xf32>
    %c0_187 = arith.constant 0 : index
    %c0_188 = arith.constant 0 : index
    %c0_189 = arith.constant 0 : index
    %c0_190 = arith.constant 0 : index
    %190 = vector.load %arg7[%c0_187, %c0_188, %c0_189, %c0_190] : memref<2x16x16x128xf32, #tpu.memory_space<vmem>>, vector<2x16x16x128xf32>
    tpu.vector_store %arg7[%c0_187, %c0_188, %c0_189, %c0_190], %189 {strides = array<i32>} : memref<2x16x16x128xf32, #tpu.memory_space<vmem>>, vector<2x16x16x128xf32>,
    return
  }
}

</mosaic_0001>

<llo_original>
// kernel: residual_block.1
$region0: #{residual_block.1}
  #allocation0 [shape = 'u32[]', space=smem, size = 0x4, offset = 0x4, fixed_abs, tag = 'smem constant byte address 0x4 - core index']
  #allocation1 [shape = 'u32[144,128]{1,0:T(1,128)}', space=vmem, size = 0x12000, scoped, tag = 'internal scratch']
  #allocation2 [shape = 'f32[2,18,32,128]{3,2,1,0:T(8,128)}', space=vmem, size = 0x90000, scoped, tag = 'scratch operand']
  %s0 = inlined_call_operand.vmem [shape: f32[2,16,16,128], index: 0, kind: input, shape index: {}]
  %s1 = inlined_call_operand.vmem [shape: bf16[9,128,128], index: 1, kind: input, shape index: {}]
  %s2 = inlined_call_operand.vmem [shape: f32[1,128], index: 2, kind: input, shape index: {}]
  %s3 = inlined_call_operand.vmem [shape: f32[1,128], index: 3, kind: input, shape index: {}]
  %s4 = inlined_call_operand.vmem [shape: bf16[9,128,128], index: 4, kind: input, shape index: {}]
  %s5 = inlined_call_operand.vmem [shape: f32[1,128], index: 5, kind: input, shape index: {}]
  %s6 = inlined_call_operand.vmem [shape: f32[1,128], index: 6, kind: input, shape index: {}]
  %s7 = inlined_call_operand.vmem [shape: f32[2,16,16,128], index: 7, kind: output, shape index: {}]
  %s8 = sld [smem:[#allocation0]]
  $region38: #{residual_block.1} parent=0
    _
  %s10 = ssub.s32 1, %s8
  %s11 = scalar_select 0, %s10, %s8
  // Predicated region
  $region2: #{residual_block.1} parent=0 // pred_check
    _
  $region3: #{residual_block.1} parent=0 // pred_check_branch
    %13 = sbr.rel (0) target = $region5
  $region4: #{residual_block.1} parent=0 // pred_region
    _
  $region5: #{residual_block.1} parent=0 // pred_fallthru
    _
  // Predicated region
  $region6: #{residual_block.1} parent=0 // pred_check
    _
  $region7: #{residual_block.1} parent=0 // pred_check_branch
    %15 = sbr.rel (0) target = $region9
  $region8: #{residual_block.1} parent=0 // pred_region
    _
  $region9: #{residual_block.1} parent=0 // pred_fallthru
    _
  // Predicated region
  $region10: #{residual_block.1} parent=0 // pred_check
    _
  $region11: #{residual_block.1} parent=0 // pred_check_branch
    %17 = sbr.rel (0) target = $region13
  $region12: #{residual_block.1} parent=0 // pred_region
    _
  $region13: #{residual_block.1} parent=0 // pred_fallthru
    _
  // Predicated region
  $region14: #{residual_block.1} parent=0 // pred_check
    _
  $region15: #{residual_block.1} parent=0 // pred_check_branch
    %19 = sbr.rel (0) target = $region17
  $region16: #{residual_block.1} parent=0 // pred_region
    _
  $region17: #{residual_block.1} parent=0 // pred_fallthru
    _
  // Predicated region
  $region18: #{residual_block.1} parent=0 // pred_check
    _
  $region19: #{residual_block.1} parent=0 // pred_check_branch
    %21 = sbr.rel (0) target = $region21
  $region20: #{residual_block.1} parent=0 // pred_region
    _
  $region21: #{residual_block.1} parent=0 // pred_fallthru
    _
  // Predicated region
  $region22: #{residual_block.1} parent=0 // pred_check
    _
  $region23: #{residual_block.1} parent=0 // pred_check_branch
    %23 = sbr.rel (0) target = $region25
  $region24: #{residual_block.1} parent=0 // pred_region
    _
  $region25: #{residual_block.1} parent=0 // pred_fallthru
    _
  // Predicated region
  $region26: #{residual_block.1} parent=0 // pred_check
    _
  $region27: #{residual_block.1} parent=0 // pred_check_branch
    %25 = sbr.rel (0) target = $region29
  $region28: #{residual_block.1} parent=0 // pred_region
    _
  $region29: #{residual_block.1} parent=0 // pred_fallthru
    _
  %27 = vst [vmem:[#allocation2] sm:$0xff] 0.0
  %28 = vst [vmem:[#allocation2 + $0x8] sm:$0xff] 0.0
  %29 = vst [vmem:[#allocation2 + $0x10] sm:$0xff] 0.0
  %30 = vst [vmem:[#allocation2 + $0x18] sm:$0xff] 0.0
  %31 = vst [vmem:[#allocation2 + $0x240] sm:$0xff] 0.0
  %32 = vst [vmem:[#allocation2 + $0x248] sm:$0xff] 0.0
  %33 = vst [vmem:[#allocation2 + $0x250] sm:$0xff] 0.0
  %34 = vst [vmem:[#allocation2 + $0x258] sm:$0xff] 0.0
  %s35 = scalar_lea.vmem [#allocation2], 544
  %36 = vst [vmem:[%s35] sm:$0xff] 0.0
  %37 = vst [vmem:[%s35 + $0x8] sm:$0xff] 0.0
  %38 = vst [vmem:[%s35 + $0x10] sm:$0xff] 0.0
  %39 = vst [vmem:[%s35 + $0x18] sm:$0xff] 0.0
  %40 = vst [vmem:[%s35 + $0x240] sm:$0xff] 0.0
  %41 = vst [vmem:[%s35 + $0x248] sm:$0xff] 0.0
  %42 = vst [vmem:[%s35 + $0x250] sm:$0xff] 0.0
  %43 = vst [vmem:[%s35 + $0x258] sm:$0xff] 0.0
  %44 = vst [vmem:[#allocation2] sm:$0xff] 0.0
  %45 = vst [vmem:[#allocation2 + $0x20] sm:$0xff] 0.0
  %46 = vst [vmem:[#allocation2 + $0x40] sm:$0xff] 0.0
  %47 = vst [vmem:[#allocation2 + $0x60] sm:$0xff] 0.0
  %48 = vst [vmem:[#allocation2 + $0x80] sm:$0xff] 0.0
  %49 = vst [vmem:[#allocation2 + $0xa0] sm:$0xff] 0.0
  %50 = vst [vmem:[#allocation2 + $0xc0] sm:$0xff] 0.0
  %51 = vst [vmem:[#allocation2 + $0xe0] sm:$0xff] 0.0
  %52 = vst [vmem:[#allocation2 + $0x100] sm:$0xff] 0.0
  %53 = vst [vmem:[#allocation2 + $0x120] sm:$0xff] 0.0
  %54 = vst [vmem:[#allocation2 + $0x140] sm:$0xff] 0.0
  %55 = vst [vmem:[#allocation2 + $0x160] sm:$0xff] 0.0
  %56 = vst [vmem:[#allocation2 + $0x180] sm:$0xff] 0.0
  %57 = vst [vmem:[#allocation2 + $0x1a0] sm:$0xff] 0.0
  %58 = vst [vmem:[#allocation2 + $0x1c0] sm:$0xff] 0.0
  %59 = vst [vmem:[#allocation2 + $0x1e0] sm:$0xff] 0.0
  %60 = vst [vmem:[#allocation2 + $0x200] sm:$0xff] 0.0
  %61 = vst [vmem:[#allocation2 + $0x220] sm:$0xff] 0.0
  %62 = vst [vmem:[#allocation2 + $0x240] sm:$0xff] 0.0
  %63 = vst [vmem:[#allocation2 + $0x260] sm:$0xff] 0.0
  %64 = vst [vmem:[#allocation2 + $0x280] sm:$0xff] 0.0
  %65 = vst [vmem:[#allocation2 + $0x2a0] sm:$0xff] 0.0
  %66 = vst [vmem:[#allocation2 + $0x2c0] sm:$0xff] 0.0
  %67 = vst [vmem:[#allocation2 + $0x2e0] sm:$0xff] 0.0
  %68 = vst [vmem:[#allocation2 + $0x300] sm:$0xff] 0.0
  %69 = vst [vmem:[#allocation2 + $0x320] sm:$0xff] 0.0
  %70 = vst [vmem:[#allocation2 + $0x340] sm:$0xff] 0.0
  %71 = vst [vmem:[#allocation2 + $0x360] sm:$0xff] 0.0
  %72 = vst [vmem:[#allocation2 + $0x380] sm:$0xff] 0.0
  %73 = vst [vmem:[#allocation2 + $0x3a0] sm:$0xff] 0.0
  %74 = vst [vmem:[#allocation2 + $0x3c0] sm:$0xff] 0.0
  %75 = vst [vmem:[#allocation2 + $0x3e0] sm:$0xff] 0.0
  %76 = vst [vmem:[#allocation2 + $0x400] sm:$0xff] 0.0
  %77 = vst [vmem:[#allocation2 + $0x420] sm:$0xff] 0.0
  %78 = vst [vmem:[#allocation2 + $0x440] sm:$0xff] 0.0
  %79 = vst [vmem:[#allocation2 + $0x460] sm:$0xff] 0.0
  %80 = vst [vmem:[#allocation2 + $0x18] sm:$0xff] 0.0
  %81 = vst [vmem:[#allocation2 + $0x38] sm:$0xff] 0.0
  %82 = vst [vmem:[#allocation2 + $0x58] sm:$0xff] 0.0
  %83 = vst [vmem:[#allocation2 + $0x78] sm:$0xff] 0.0
  %84 = vst [vmem:[#allocation2 + $0x98] sm:$0xff] 0.0
  %85 = vst [vmem:[#allocation2 + $0xb8] sm:$0xff] 0.0
  %86 = vst [vmem:[#allocation2 + $0xd8] sm:$0xff] 0.0
  %87 = vst [vmem:[#allocation2 + $0xf8] sm:$0xff] 0.0
  %88 = vst [vmem:[#allocation2 + $0x118] sm:$0xff] 0.0
  %89 = vst [vmem:[#allocation2 + $0x138] sm:$0xff] 0.0
  %90 = vst [vmem:[#allocation2 + $0x158] sm:$0xff] 0.0
  %91 = vst [vmem:[#allocation2 + $0x178] sm:$0xff] 0.0
  %92 = vst [vmem:[#allocation2 + $0x198] sm:$0xff] 0.0
  %93 = vst [vmem:[#allocation2 + $0x1b8] sm:$0xff] 0.0
  %94 = vst [vmem:[#allocation2 + $0x1d8] sm:$0xff] 0.0
  %95 = vst [vmem:[#allocation2 + $0x1f8] sm:$0xff] 0.0
  %96 = vst [vmem:[#allocation2 + $0x218] sm:$0xff] 0.0
  %97 = vst [vmem:[#allocation2 + $0x238] sm:$0xff] 0.0
  %98 = vst [vmem:[#allocation2 + $0x258] sm:$0xff] 0.0
  %99 = vst [vmem:[#allocation2 + $0x278] sm:$0xff] 0.0
  %100 = vst [vmem:[#allocation2 + $0x298] sm:$0xff] 0.0
  %101 = vst [vmem:[#allocation2 + $0x2b8] sm:$0xff] 0.0
  %102 = vst [vmem:[#allocation2 + $0x2d8] sm:$0xff] 0.0
  %103 = vst [vmem:[#allocation2 + $0x2f8] sm:$0xff] 0.0
  %104 = vst [vmem:[#allocation2 + $0x318] sm:$0xff] 0.0
  %105 = vst [vmem:[#allocation2 + $0x338] sm:$0xff] 0.0
  %106 = vst [vmem:[#allocation2 + $0x358] sm:$0xff] 0.0
  %107 = vst [vmem:[#allocation2 + $0x378] sm:$0xff] 0.0
  %108 = vst [vmem:[#allocation2 + $0x398] sm:$0xff] 0.0
  %109 = vst [vmem:[#allocation2 + $0x3b8] sm:$0xff] 0.0
  %110 = vst [vmem:[#allocation2 + $0x3d8] sm:$0xff] 0.0
  %111 = vst [vmem:[#allocation2 + $0x3f8] sm:$0xff] 0.0
  %112 = vst [vmem:[#allocation2 + $0x418] sm:$0xff] 0.0
  %113 = vst [vmem:[#allocation2 + $0x438] sm:$0xff] 0.0
  %114 = vst [vmem:[#allocation2 + $0x458] sm:$0xff] 0.0
  %115 = vst [vmem:[#allocation2 + $0x478] sm:$0xff] 0.0
  %v116 = vld [vmem:[%s0] sm:$0xff]
  %v117 = vld [vmem:[%s0 + $0x8] sm:$0xff]
  %v118 = vld [vmem:[%s0 + $0x10] sm:$0xff]
  %v119 = vld [vmem:[%s0 + $0x18] sm:$0xff]
  %v120 = vld [vmem:[%s0 + $0x20] sm:$0xff]
  %v121 = vld [vmem:[%s0 + $0x28] sm:$0xff]
  %v122 = vld [vmem:[%s0 + $0x30] sm:$0xff]
  %v123 = vld [vmem:[%s0 + $0x38] sm:$0xff]
  %v124 = vld [vmem:[%s0 + $0x40] sm:$0xff]
  %v125 = vld [vmem:[%s0 + $0x48] sm:$0xff]
  %v126 = vld [vmem:[%s0 + $0x50] sm:$0xff]
  %v127 = vld [vmem:[%s0 + $0x58] sm:$0xff]
  %v128 = vld [vmem:[%s0 + $0x60] sm:$0xff]
  %v129 = vld [vmem:[%s0 + $0x68] sm:$0xff]
  %v130 = vld [vmem:[%s0 + $0x70] sm:$0xff]
  %v131 = vld [vmem:[%s0 + $0x78] sm:$0xff]
  %v132 = vld [vmem:[%s0 + $0x80] sm:$0xff]
  %v133 = vld [vmem:[%s0 + $0x88] sm:$0xff]
  %v134 = vld [vmem:[%s0 + $0x90] sm:$0xff]
  %v135 = vld [vmem:[%s0 + $0x98] sm:$0xff]
  %v136 = vld [vmem:[%s0 + $0xa0] sm:$0xff]
  %v137 = vld [vmem:[%s0 + $0xa8] sm:$0xff]
  %v138 = vld [vmem:[%s0 + $0xb0] sm:$0xff]
  %v139 = vld [vmem:[%s0 + $0xb8] sm:$0xff]
  %v140 = vld [vmem:[%s0 + $0xc0] sm:$0xff]
  %v141 = vld [vmem:[%s0 + $0xc8] sm:$0xff]
  %v142 = vld [vmem:[%s0 + $0xd0] sm:$0xff]
  %v143 = vld [vmem:[%s0 + $0xd8] sm:$0xff]
  %v144 = vld [vmem:[%s0 + $0xe0] sm:$0xff]
  %v145 = vld [vmem:[%s0 + $0xe8] sm:$0xff]
  %v146 = vld [vmem:[%s0 + $0xf0] sm:$0xff]
  %v147 = vld [vmem:[%s0 + $0xf8] sm:$0xff]
  %v148 = vld [vmem:[%s0 + $0x100] sm:$0xff]
  %v149 = vld [vmem:[%s0 + $0x108] sm:$0xff]
  %v150 = vld [vmem:[%s0 + $0x110] sm:$0xff]
  %v151 = vld [vmem:[%s0 + $0x118] sm:$0xff]
  %v152 = vld [vmem:[%s0 + $0x120] sm:$0xff]
  %v153 = vld [vmem:[%s0 + $0x128] sm:$0xff]
  %v154 = vld [vmem:[%s0 + $0x130] sm:$0xff]
  %v155 = vld [vmem:[%s0 + $0x138] sm:$0xff]
  %v156 = vld [vmem:[%s0 + $0x140] sm:$0xff]
  %v157 = vld [vmem:[%s0 + $0x148] sm:$0xff]
  %v158 = vld [vmem:[%s0 + $0x150] sm:$0xff]
  %v159 = vld [vmem:[%s0 + $0x158] sm:$0xff]
  %v160 = vld [vmem:[%s0 + $0x160] sm:$0xff]
  %v161 = vld [vmem:[%s0 + $0x168] sm:$0xff]
  %v162 = vld [vmem:[%s0 + $0x170] sm:$0xff]
  %v163 = vld [vmem:[%s0 + $0x178] sm:$0xff]
  %v164 = vld [vmem:[%s0 + $0x180] sm:$0xff]
  %v165 = vld [vmem:[%s0 + $0x188] sm:$0xff]
  %v166 = vld [vmem:[%s0 + $0x190] sm:$0xff]
  %v167 = vld [vmem:[%s0 + $0x198] sm:$0xff]
  %v168 = vld [vmem:[%s0 + $0x1a0] sm:$0xff]
  %v169 = vld [vmem:[%s0 + $0x1a8] sm:$0xff]
  %v170 = vld [vmem:[%s0 + $0x1b0] sm:$0xff]
  %v171 = vld [vmem:[%s0 + $0x1b8] sm:$0xff]
  %v172 = vld [vmem:[%s0 + $0x1c0] sm:$0xff]
  %v173 = vld [vmem:[%s0 + $0x1c8] sm:$0xff]
  %v174 = vld [vmem:[%s0 + $0x1d0] sm:$0xff]
  %v175 = vld [vmem:[%s0 + $0x1d8] sm:$0xff]
  %v176 = vld [vmem:[%s0 + $0x1e0] sm:$0xff]
  %v177 = vld [vmem:[%s0 + $0x1e8] sm:$0xff]
  %v178 = vld [vmem:[%s0 + $0x1f0] sm:$0xff]
  %v179 = vld [vmem:[%s0 + $0x1f8] sm:$0xff]
  %s180 = scalar_lea.vmem [#allocation2], 32
  %181 = vst [vmem:[%s180 + $0x8] sm:$0xff] %v116
  %182 = vst [vmem:[%s180 + $0x10] sm:$0xff] %v117
  %183 = vst [vmem:[%s180 + $0x28] sm:$0xff] %v118
  %184 = vst [vmem:[%s180 + $0x30] sm:$0xff] %v119
  %185 = vst [vmem:[%s180 + $0x48] sm:$0xff] %v120
  %186 = vst [vmem:[%s180 + $0x50] sm:$0xff] %v121
  %187 = vst [vmem:[%s180 + $0x68] sm:$0xff] %v122
  %188 = vst [vmem:[%s180 + $0x70] sm:$0xff] %v123
  %189 = vst [vmem:[%s180 + $0x88] sm:$0xff] %v124
  %190 = vst [vmem:[%s180 + $0x90] sm:$0xff] %v125
  %191 = vst [vmem:[%s180 + $0xa8] sm:$0xff] %v126
  %192 = vst [vmem:[%s180 + $0xb0] sm:$0xff] %v127
  %193 = vst [vmem:[%s180 + $0xc8] sm:$0xff] %v128
  %194 = vst [vmem:[%s180 + $0xd0] sm:$0xff] %v129
  %195 = vst [vmem:[%s180 + $0xe8] sm:$0xff] %v130
  %196 = vst [vmem:[%s180 + $0xf0] sm:$0xff] %v131
  %197 = vst [vmem:[%s180 + $0x108] sm:$0xff] %v132
  %198 = vst [vmem:[%s180 + $0x110] sm:$0xff] %v133
  %199 = vst [vmem:[%s180 + $0x128] sm:$0xff] %v134
  %200 = vst [vmem:[%s180 + $0x130] sm:$0xff] %v135
  %201 = vst [vmem:[%s180 + $0x148] sm:$0xff] %v136
  %202 = vst [vmem:[%s180 + $0x150] sm:$0xff] %v137
  %203 = vst [vmem:[%s180 + $0x168] sm:$0xff] %v138
  %204 = vst [vmem:[%s180 + $0x170] sm:$0xff] %v139
  %205 = vst [vmem:[%s180 + $0x188] sm:$0xff] %v140
  %206 = vst [vmem:[%s180 + $0x190] sm:$0xff] %v141
  %207 = vst [vmem:[%s180 + $0x1a8] sm:$0xff] %v142
  %208 = vst [vmem:[%s180 + $0x1b0] sm:$0xff] %v143
  %209 = vst [vmem:[%s180 + $0x1c8] sm:$0xff] %v144
  %210 = vst [vmem:[%s180 + $0x1d0] sm:$0xff] %v145
  %211 = vst [vmem:[%s180 + $0x1e8] sm:$0xff] %v146
  %212 = vst [vmem:[%s180 + $0x1f0] sm:$0xff] %v147
  %213 = vst [vmem:[%s180 + $0x248] sm:$0xff] %v148
  %214 = vst [vmem:[%s180 + $0x250] sm:$0xff] %v149
  %215 = vst [vmem:[%s180 + $0x268] sm:$0xff] %v150
  %216 = vst [vmem:[%s180 + $0x270] sm:$0xff] %v151
  %217 = vst [vmem:[%s180 + $0x288] sm:$0xff] %v152
  %218 = vst [vmem:[%s180 + $0x290] sm:$0xff] %v153
  %219 = vst [vmem:[%s180 + $0x2a8] sm:$0xff] %v154
  %220 = vst [vmem:[%s180 + $0x2b0] sm:$0xff] %v155
  %221 = vst [vmem:[%s180 + $0x2c8] sm:$0xff] %v156
  %222 = vst [vmem:[%s180 + $0x2d0] sm:$0xff] %v157
  %223 = vst [vmem:[%s180 + $0x2e8] sm:$0xff] %v158
  %224 = vst [vmem:[%s180 + $0x2f0] sm:$0xff] %v159
  %225 = vst [vmem:[%s180 + $0x308] sm:$0xff] %v160
  %226 = vst [vmem:[%s180 + $0x310] sm:$0xff] %v161
  %227 = vst [vmem:[%s180 + $0x328] sm:$0xff] %v162
  %228 = vst [vmem:[%s180 + $0x330] sm:$0xff] %v163
  %229 = vst [vmem:[%s180 + $0x348] sm:$0xff] %v164
  %230 = vst [vmem:[%s180 + $0x350] sm:$0xff] %v165
  %231 = vst [vmem:[%s180 + $0x368] sm:$0xff] %v166
  %232 = vst [vmem:[%s180 + $0x370] sm:$0xff] %v167
  %233 = vst [vmem:[%s180 + $0x388] sm:$0xff] %v168
  %234 = vst [vmem:[%s180 + $0x390] sm:$0xff] %v169
  %235 = vst [vmem:[%s180 + $0x3a8] sm:$0xff] %v170
  %236 = vst [vmem:[%s180 + $0x3b0] sm:$0xff] %v171
  %237 = vst [vmem:[%s180 + $0x3c8] sm:$0xff] %v172
  %238 = vst [vmem:[%s180 + $0x3d0] sm:$0xff] %v173
  %239 = vst [vmem:[%s180 + $0x3e8] sm:$0xff] %v174
  %240 = vst [vmem:[%s180 + $0x3f0] sm:$0xff] %v175
  %241 = vst [vmem:[%s180 + $0x408] sm:$0xff] %v176
  %242 = vst [vmem:[%s180 + $0x410] sm:$0xff] %v177
  %243 = vst [vmem:[%s180 + $0x428] sm:$0xff] %v178
  %244 = vst [vmem:[%s180 + $0x430] sm:$0xff] %v179
  %v245 = vld [vmem:[#allocation2 + $0x7] sm:$0xff]
  %v246 = vld [vmem:[#allocation2 + $0xf] sm:$0xff]
  %v247 = vld [vmem:[#allocation2 + $0x27] sm:$0xff]
  %v248 = vld [vmem:[#allocation2 + $0x2f] sm:$0xff]
  %v249 = vld [vmem:[#allocation2 + $0x47] sm:$0xff]
  %v250 = vld [vmem:[#allocation2 + $0x4f] sm:$0xff]
  %v251 = vld [vmem:[#allocation2 + $0x67] sm:$0xff]
  %v252 = vld [vmem:[#allocation2 + $0x6f] sm:$0xff]
  %v253 = vld [vmem:[#allocation2 + $0x87] sm:$0xff]
  %v254 = vld [vmem:[#allocation2 + $0x8f] sm:$0xff]
  %v255 = vld [vmem:[#allocation2 + $0xa7] sm:$0xff]
  %v256 = vld [vmem:[#allocation2 + $0xaf] sm:$0xff]
  %v257 = vld [vmem:[#allocation2 + $0xc7] sm:$0xff]
  %v258 = vld [vmem:[#allocation2 + $0xcf] sm:$0xff]
  %v259 = vld [vmem:[#allocation2 + $0xe7] sm:$0xff]
  %v260 = vld [vmem:[#allocation2 + $0xef] sm:$0xff]
  %v261 = vld [vmem:[#allocation2 + $0x107] sm:$0xff]
  %v262 = vld [vmem:[#allocation2 + $0x10f] sm:$0xff]
  %v263 = vld [vmem:[#allocation2 + $0x127] sm:$0xff]
  %v264 = vld [vmem:[#allocation2 + $0x12f] sm:$0xff]
  %v265 = vld [vmem:[#allocation2 + $0x147] sm:$0xff]
  %v266 = vld [vmem:[#allocation2 + $0x14f] sm:$0xff]
  %v267 = vld [vmem:[#allocation2 + $0x167] sm:$0xff]
  %v268 = vld [vmem:[#allocation2 + $0x16f] sm:$0xff]
  %v269 = vld [vmem:[#allocation2 + $0x187] sm:$0xff]
  %v270 = vld [vmem:[#allocation2 + $0x18f] sm:$0xff]
  %v271 = vld [vmem:[#allocation2 + $0x1a7] sm:$0xff]
  %v272 = vld [vmem:[#allocation2 + $0x1af] sm:$0xff]
  %v273 = vld [vmem:[#allocation2 + $0x1c7] sm:$0xff]
  %v274 = vld [vmem:[#allocation2 + $0x1cf] sm:$0xff]
  %v275 = vld [vmem:[#allocation2 + $0x1e7] sm:$0xff]
  %v276 = vld [vmem:[#allocation2 + $0x1ef] sm:$0xff]
  %v277 = vld [vmem:[#allocation2 + $0x247] sm:$0xff]
  %v278 = vld [vmem:[#allocation2 + $0x24f] sm:$0xff]
  %v279 = vld [vmem:[#allocation2 + $0x267] sm:$0xff]
  %v280 = vld [vmem:[#allocation2 + $0x26f] sm:$0xff]
  %v281 = vld [vmem:[#allocation2 + $0x287] sm:$0xff]
  %v282 = vld [vmem:[#allocation2 + $0x28f] sm:$0xff]
  %v283 = vld [vmem:[#allocation2 + $0x2a7] sm:$0xff]
  %v284 = vld [vmem:[#allocation2 + $0x2af] sm:$0xff]
  %v285 = vld [vmem:[#allocation2 + $0x2c7] sm:$0xff]
  %v286 = vld [vmem:[#allocation2 + $0x2cf] sm:$0xff]
  %v287 = vld [vmem:[#allocation2 + $0x2e7] sm:$0xff]
  %v288 = vld [vmem:[#allocation2 + $0x2ef] sm:$0xff]
  %v289 = vld [vmem:[#allocation2 + $0x307] sm:$0xff]
  %v290 = vld [vmem:[#allocation2 + $0x30f] sm:$0xff]
  %v291 = vld [vmem:[#allocation2 + $0x327] sm:$0xff]
  %v292 = vld [vmem:[#allocation2 + $0x32f] sm:$0xff]
  %v293 = vld [vmem:[#allocation2 + $0x347] sm:$0xff]
  %v294 = vld [vmem:[#allocation2 + $0x34f] sm:$0xff]
  %v295 = vld [vmem:[#allocation2 + $0x367] sm:$0xff]
  %v296 = vld [vmem:[#allocation2 + $0x36f] sm:$0xff]
  %v297 = vld [vmem:[#allocation2 + $0x387] sm:$0xff]
  %v298 = vld [vmem:[#allocation2 + $0x38f] sm:$0xff]
  %v299 = vld [vmem:[#allocation2 + $0x3a7] sm:$0xff]
  %v300 = vld [vmem:[#allocation2 + $0x3af] sm:$0xff]
  %v301 = vld [vmem:[#allocation2 + $0x3c7] sm:$0xff]
  %v302 = vld [vmem:[#allocation2 + $0x3cf] sm:$0xff]
  %v303 = vld [vmem:[#allocation2 + $0x3e7] sm:$0xff]
  %v304 = vld [vmem:[#allocation2 + $0x3ef] sm:$0xff]
  %v305 = vld [vmem:[#allocation2 + $0x407] sm:$0xff]
  %v306 = vld [vmem:[#allocation2 + $0x40f] sm:$0xff]
  %v307 = vld [vmem:[#allocation2 + $0x427] sm:$0xff]
  %v308 = vld [vmem:[#allocation2 + $0x42f] sm:$0xff]
  %v309 = vpack.c.bf16 %v246, %v245
  %v310 = vpack.c.bf16 %v248, %v247
  %v311 = vpack.c.bf16 %v250, %v249
  %v312 = vpack.c.bf16 %v252, %v251
  %v313 = vpack.c.bf16 %v254, %v253
  %v314 = vpack.c.bf16 %v256, %v255
  %v315 = vpack.c.bf16 %v258, %v257
  %v316 = vpack.c.bf16 %v260, %v259
  %v317 = vpack.c.bf16 %v262, %v261
  %v318 = vpack.c.bf16 %v264, %v263
  %v319 = vpack.c.bf16 %v266, %v265
  %v320 = vpack.c.bf16 %v268, %v267
  %v321 = vpack.c.bf16 %v270, %v269
  %v322 = vpack.c.bf16 %v272, %v271
  %v323 = vpack.c.bf16 %v274, %v273
  %v324 = vpack.c.bf16 %v276, %v275
  %v325 = vpack.c.bf16 %v278, %v277
  %v326 = vpack.c.bf16 %v280, %v279
  %v327 = vpack.c.bf16 %v282, %v281
  %v328 = vpack.c.bf16 %v284, %v283
  %v329 = vpack.c.bf16 %v286, %v285
  %v330 = vpack.c.bf16 %v288, %v287
  %v331 = vpack.c.bf16 %v290, %v289
  %v332 = vpack.c.bf16 %v292, %v291
  %v333 = vpack.c.bf16 %v294, %v293
  %v334 = vpack.c.bf16 %v296, %v295
  %v335 = vpack.c.bf16 %v298, %v297
  %v336 = vpack.c.bf16 %v300, %v299
  %v337 = vpack.c.bf16 %v302, %v301
  %v338 = vpack.c.bf16 %v304, %v303
  %v339 = vpack.c.bf16 %v306, %v305
  %v340 = vpack.c.bf16 %v308, %v307
  %v341 = vld [vmem:[%s1] sm:$0xf]
  %v342 = vld [vmem:[%s1 + $0x4] sm:$0xf]
  %v343 = vld [vmem:[%s1 + $0x8] sm:$0xf]
  %v344 = vld [vmem:[%s1 + $0xc] sm:$0xf]
  %v345 = vld [vmem:[%s1 + $0x10] sm:$0xf]
  %v346 = vld [vmem:[%s1 + $0x14] sm:$0xf]
  %v347 = vld [vmem:[%s1 + $0x18] sm:$0xf]
  %v348 = vld [vmem:[%s1 + $0x1c] sm:$0xf]
  %v349 = vld [vmem:[%s1 + $0x20] sm:$0xf]
  %v350 = vld [vmem:[%s1 + $0x24] sm:$0xf]
  %v351 = vld [vmem:[%s1 + $0x28] sm:$0xf]
  %v352 = vld [vmem:[%s1 + $0x2c] sm:$0xf]
  %v353 = vld [vmem:[%s1 + $0x30] sm:$0xf]
  %v354 = vld [vmem:[%s1 + $0x34] sm:$0xf]
  %v355 = vld [vmem:[%s1 + $0x38] sm:$0xf]
  %v356 = vld [vmem:[%s1 + $0x3c] sm:$0xf]
  %v357 = vld [vmem:[#allocation2 + $0x8] sm:$0xff]
  %v358 = vld [vmem:[#allocation2 + $0x10] sm:$0xff]
  %v359 = vld [vmem:[#allocation2 + $0x28] sm:$0xff]
  %v360 = vld [vmem:[#allocation2 + $0x30] sm:$0xff]
  %v361 = vld [vmem:[#allocation2 + $0x48] sm:$0xff]
  %v362 = vld [vmem:[#allocation2 + $0x50] sm:$0xff]
  %v363 = vld [vmem:[#allocation2 + $0x68] sm:$0xff]
  %v364 = vld [vmem:[#allocation2 + $0x70] sm:$0xff]
  %v365 = vld [vmem:[#allocation2 + $0x88] sm:$0xff]
  %v366 = vld [vmem:[#allocation2 + $0x90] sm:$0xff]
  %v367 = vld [vmem:[#allocation2 + $0xa8] sm:$0xff]
  %v368 = vld [vmem:[#allocation2 + $0xb0] sm:$0xff]
  %v369 = vld [vmem:[#allocation2 + $0xc8] sm:$0xff]
  %v370 = vld [vmem:[#allocation2 + $0xd0] sm:$0xff]
  %v371 = vld [vmem:[#allocation2 + $0xe8] sm:$0xff]
  %v372 = vld [vmem:[#allocation2 + $0xf0] sm:$0xff]
  %v373 = vld [vmem:[#allocation2 + $0x108] sm:$0xff]
  %v374 = vld [vmem:[#allocation2 + $0x110] sm:$0xff]
  %v375 = vld [vmem:[#allocation2 + $0x128] sm:$0xff]
  %v376 = vld [vmem:[#allocation2 + $0x130] sm:$0xff]
  %v377 = vld [vmem:[#allocation2 + $0x148] sm:$0xff]
  %v378 = vld [vmem:[#allocation2 + $0x150] sm:$0xff]
  %v379 = vld [vmem:[#allocation2 + $0x168] sm:$0xff]
  %v380 = vld [vmem:[#allocation2 + $0x170] sm:$0xff]
  %v381 = vld [vmem:[#allocation2 + $0x188] sm:$0xff]
  %v382 = vld [vmem:[#allocation2 + $0x190] sm:$0xff]
  %v383 = vld [vmem:[#allocation2 + $0x1a8] sm:$0xff]
  %v384 = vld [vmem:[#allocation2 + $0x1b0] sm:$0xff]
  %v385 = vld [vmem:[#allocation2 + $0x1c8] sm:$0xff]
  %v386 = vld [vmem:[#allocation2 + $0x1d0] sm:$0xff]
  %v387 = vld [vmem:[#allocation2 + $0x1e8] sm:$0xff]
  %v388 = vld [vmem:[#allocation2 + $0x1f0] sm:$0xff]
  %v389 = vld [vmem:[#allocation2 + $0x248] sm:$0xff]
  %v390 = vld [vmem:[#allocation2 + $0x250] sm:$0xff]
  %v391 = vld [vmem:[#allocation2 + $0x268] sm:$0xff]
  %v392 = vld [vmem:[#allocation2 + $0x270] sm:$0xff]
  %v393 = vld [vmem:[#allocation2 + $0x288] sm:$0xff]
  %v394 = vld [vmem:[#allocation2 + $0x290] sm:$0xff]
  %v395 = vld [vmem:[#allocation2 + $0x2a8] sm:$0xff]
  %v396 = vld [vmem:[#allocation2 + $0x2b0] sm:$0xff]
  %v397 = vld [vmem:[#allocation2 + $0x2c8] sm:$0xff]
  %v398 = vld [vmem:[#allocation2 + $0x2d0] sm:$0xff]
  %v399 = vld [vmem:[#allocation2 + $0x2e8] sm:$0xff]
  %v400 = vld [vmem:[#allocation2 + $0x2f0] sm:$0xff]
  %v401 = vld [vmem:[#allocation2 + $0x308] sm:$0xff]
  %v402 = vld [vmem:[#allocation2 + $0x310] sm:$0xff]
  %v403 = vld [vmem:[#allocation2 + $0x328] sm:$0xff]
  %v404 = vld [vmem:[#allocation2 + $0x330] sm:$0xff]
  %v405 = vld [vmem:[#allocation2 + $0x348] sm:$0xff]
  %v406 = vld [vmem:[#allocation2 + $0x350] sm:$0xff]
  %v407 = vld [vmem:[#allocation2 + $0x368] sm:$0xff]
  %v408 = vld [vmem:[#allocation2 + $0x370] sm:$0xff]
  %v409 = vld [vmem:[#allocation2 + $0x388] sm:$0xff]
  %v410 = vld [vmem:[#allocation2 + $0x390] sm:$0xff]
  %v411 = vld [vmem:[#allocation2 + $0x3a8] sm:$0xff]
  %v412 = vld [vmem:[#allocation2 + $0x3b0] sm:$0xff]
  %v413 = vld [vmem:[#allocation2 + $0x3c8] sm:$0xff]
  %v414 = vld [vmem:[#allocation2 + $0x3d0] sm:$0xff]
  %v415 = vld [vmem:[#allocation2 + $0x3e8] sm:$0xff]
  %v416 = vld [vmem:[#allocation2 + $0x3f0] sm:$0xff]
  %v417 = vld [vmem:[#allocation2 + $0x408] sm:$0xff]
  %v418 = vld [vmem:[#allocation2 + $0x410] sm:$0xff]
  %v419 = vld [vmem:[#allocation2 + $0x428] sm:$0xff]
  %v420 = vld [vmem:[#allocation2 + $0x430] sm:$0xff]
  %v421 = vpack.c.bf16 %v358, %v357
  %v422 = vpack.c.bf16 %v360, %v359
  %v423 = vpack.c.bf16 %v362, %v361
  %v424 = vpack.c.bf16 %v364, %v363
  %v425 = vpack.c.bf16 %v366, %v365
  %v426 = vpack.c.bf16 %v368, %v367
  %v427 = vpack.c.bf16 %v370, %v369
  %v428 = vpack.c.bf16 %v372, %v371
  %v429 = vpack.c.bf16 %v374, %v373
  %v430 = vpack.c.bf16 %v376, %v375
  %v431 = vpack.c.bf16 %v378, %v377
  %v432 = vpack.c.bf16 %v380, %v379
  %v433 = vpack.c.bf16 %v382, %v381
  %v434 = vpack.c.bf16 %v384, %v383
  %v435 = vpack.c.bf16 %v386, %v385
  %v436 = vpack.c.bf16 %v388, %v387
  %v437 = vpack.c.bf16 %v390, %v389
  %v438 = vpack.c.bf16 %v392, %v391
  %v439 = vpack.c.bf16 %v394, %v393
  %v440 = vpack.c.bf16 %v396, %v395
  %v441 = vpack.c.bf16 %v398, %v397
  %v442 = vpack.c.bf16 %v400, %v399
  %v443 = vpack.c.bf16 %v402, %v401
  %v444 = vpack.c.bf16 %v404, %v403
  %v445 = vpack.c.bf16 %v406, %v405
  %v446 = vpack.c.bf16 %v408, %v407
  %v447 = vpack.c.bf16 %v410, %v409
  %v448 = vpack.c.bf16 %v412, %v411
  %v449 = vpack.c.bf16 %v414, %v413
  %v450 = vpack.c.bf16 %v416, %v415
  %v451 = vpack.c.bf16 %v418, %v417
  %v452 = vpack.c.bf16 %v420, %v419
  %s453 = scalar_lea.vmem %s1, 64
  %v454 = vld [vmem:[%s453] sm:$0xf]
  %v455 = vld [vmem:[%s453 + $0x4] sm:$0xf]
  %v456 = vld [vmem:[%s453 + $0x8] sm:$0xf]
  %v457 = vld [vmem:[%s453 + $0xc] sm:$0xf]
  %v458 = vld [vmem:[%s453 + $0x10] sm:$0xf]
  %v459 = vld [vmem:[%s453 + $0x14] sm:$0xf]
  %v460 = vld [vmem:[%s453 + $0x18] sm:$0xf]
  %v461 = vld [vmem:[%s453 + $0x1c] sm:$0xf]
  %v462 = vld [vmem:[%s453 + $0x20] sm:$0xf]
  %v463 = vld [vmem:[%s453 + $0x24] sm:$0xf]
  %v464 = vld [vmem:[%s453 + $0x28] sm:$0xf]
  %v465 = vld [vmem:[%s453 + $0x2c] sm:$0xf]
  %v466 = vld [vmem:[%s453 + $0x30] sm:$0xf]
  %v467 = vld [vmem:[%s453 + $0x34] sm:$0xf]
  %v468 = vld [vmem:[%s453 + $0x38] sm:$0xf]
  %v469 = vld [vmem:[%s453 + $0x3c] sm:$0xf]
  %v486 = vunpack.c.l.b16 %v454
  %v487 = vunpack.c.l.b16 %v455
  %v488 = vunpack.c.l.b16 %v456
  %v489 = vunpack.c.l.b16 %v457
  %v490 = vunpack.c.l.b16 %v458
  %v491 = vunpack.c.l.b16 %v459
  %v492 = vunpack.c.l.b16 %v460
  %v493 = vunpack.c.l.b16 %v461
  %v494 = vunpack.c.l.b16 %v462
  %v495 = vunpack.c.l.b16 %v463
  %v496 = vunpack.c.l.b16 %v464
  %v497 = vunpack.c.l.b16 %v465
  %v498 = vunpack.c.l.b16 %v466
  %v499 = vunpack.c.l.b16 %v467
  %v500 = vunpack.c.l.b16 %v468
  %v501 = vunpack.c.l.b16 %v469
  %v502 = vpack.c.b16 %v487, %v486
  %v503 = vpack.c.b16 %v489, %v488
  %v504 = vpack.c.b16 %v491, %v490
  %v505 = vpack.c.b16 %v493, %v492
  %v506 = vpack.c.b16 %v495, %v494
  %v507 = vpack.c.b16 %v497, %v496
  %v508 = vpack.c.b16 %v499, %v498
  %v509 = vpack.c.b16 %v501, %v500
  %518 = vmatprep.subr.bf16.mxu0 0
  %519 = vmatpush1.bf16.msra.mxu0 %v502
  %520 = vmatprep.subr.bf16.mxu0 0
  %521 = vmatpush1.bf16.msra.mxu0 %v503
  %522 = vmatprep.subr.bf16.mxu0 0
  %523 = vmatpush1.bf16.msra.mxu0 %v504
  %524 = vmatprep.subr.bf16.mxu0 0
  %525 = vmatpush1.bf16.msra.mxu0 %v505
  %526 = vmatprep.subr.bf16.mxu0 0
  %527 = vmatpush1.bf16.msra.mxu0 %v506
  %528 = vmatprep.subr.bf16.mxu0 0
  %529 = vmatpush1.bf16.msra.mxu0 %v507
  %530 = vmatprep.subr.bf16.mxu0 0
  %531 = vmatpush1.bf16.msra.mxu0 %v508
  %532 = vmatprep.subr.bf16.mxu0 0
  %533 = vmatpush1.bf16.msra.mxu0 %v509
  %534 = vmatprep.subr.bf16.mxu0 0
  %535 = vmatpush1.bf16.msra.mxu0 0
  %536 = vmatprep.subr.bf16.mxu0 0
  %537 = vmatpush1.bf16.msra.mxu0 0
  %538 = vmatprep.subr.bf16.mxu0 0
  %539 = vmatpush1.bf16.msra.mxu0 0
  %540 = vmatprep.subr.bf16.mxu0 0
  %541 = vmatpush1.bf16.msra.mxu0 0
  %542 = vmatprep.subr.bf16.mxu0 0
  %543 = vmatpush1.bf16.msra.mxu0 0
  %544 = vmatprep.subr.bf16.mxu0 0
  %545 = vmatpush1.bf16.msra.mxu0 0
  %546 = vmatprep.subr.bf16.mxu0 0
  %547 = vmatpush1.bf16.msra.mxu0 0
  %548 = vmatprep.subr.bf16.mxu0 0
  %549 = vmatpush1.bf16.msra.mxu0 0
  %550 = vmatprep.mubr.bf16.mxu0 0
  %551 = vmatmul.mubr.bf16.gmra.mrb[0].mxu0 %v421
  %v552 = vpop.f32.mrb[0].mxu0
  %v553 = vadd.f32 0.0, %v552
  %v554 = vpop.f32.mrb[0].mxu0
  %v555 = vpop.f32.mrb[0].mxu0
  %v556 = vadd.f32 0.0, %v555
  %v557 = vpop.f32.mrb[0].mxu0
  %558 = vmatprep.mubr.bf16.mxu0 0
  %559 = vmatmul.mubr.bf16.gmra.mrb[0].mxu0 %v422
  %v560 = vpop.f32.mrb[0].mxu0
  %v561 = vadd.f32 0.0, %v560
  %v562 = vpop.f32.mrb[0].mxu0
  %v563 = vpop.f32.mrb[0].mxu0
  %v564 = vadd.f32 0.0, %v563
  %v565 = vpop.f32.mrb[0].mxu0
  %566 = vmatprep.mubr.bf16.mxu0 0
  %567 = vmatmul.mubr.bf16.gmra.mrb[0].mxu0 %v423
  %v568 = vpop.f32.mrb[0].mxu0
  %v569 = vadd.f32 0.0, %v568
  %v570 = vpop.f32.mrb[0].mxu0
  %v571 = vpop.f32.mrb[0].mxu0
  %v572 = vadd.f32 0.0, %v571
  %v573 = vpop.f32.mrb[0].mxu0
  %574 = vmatprep.mubr.bf16.mxu0 0
  %575 = vmatmul.mubr.bf16.gmra.mrb[0].mxu0 %v424
  %v576 = vpop.f32.mrb[0].mxu0
  %v577 = vadd.f32 0.0, %v576
  %v578 = vpop.f32.mrb[0].mxu0
  %v579 = vpop.f32.mrb[0].mxu0
  %v580 = vadd.f32 0.0, %v579
  %v581 = vpop.f32.mrb[0].mxu0
  %582 = vmatprep.mubr.bf16.mxu0 0
  %583 = vmatmul.mubr.bf16.gmra.mrb[0].mxu0 %v425
  %v584 = vpop.f32.mrb[0].mxu0
  %v585 = vadd.f32 0.0, %v584
  %v586 = vpop.f32.mrb[0].mxu0
  %v587 = vpop.f32.mrb[0].mxu0
  %v588 = vadd.f32 0.0, %v587
  %v589 = vpop.f32.mrb[0].mxu0
  %590 = vmatprep.mubr.bf16.mxu0 0
  %591 = vmatmul.mubr.bf16.gmra.mrb[0].mxu0 %v426
  %v592 = vpop.f32.mrb[0].mxu0
  %v593 = vadd.f32 0.0, %v592
  %v594 = vpop.f32.mrb[0].mxu0
  %v595 = vpop.f32.mrb[0].mxu0
  %v596 = vadd.f32 0.0, %v595
  %v597 = vpop.f32.mrb[0].mxu0
  %598 = vmatprep.mubr.bf16.mxu0 0
  %599 = vmatmul.mubr.bf16.gmra.mrb[0].mxu0 %v427
  %v600 = vpop.f32.mrb[0].mxu0
  %v601 = vadd.f32 0.0, %v600
  %v602 = vpop.f32.mrb[0].mxu0
  %v603 = vpop.f32.mrb[0].mxu0
  %v604 = vadd.f32 0.0, %v603
  %v605 = vpop.f32.mrb[0].mxu0
  %606 = vmatprep.mubr.bf16.mxu0 0
  %607 = vmatmul.mubr.bf16.gmra.mrb[0].mxu0 %v428
  %v608 = vpop.f32.mrb[0].mxu0
  %v609 = vadd.f32 0.0, %v608
  %v610 = vpop.f32.mrb[0].mxu0
  %v611 = vpop.f32.mrb[0].mxu0
  %v612 = vadd.f32 0.0, %v611
  %v613 = vpop.f32.mrb[0].mxu0
  %614 = vmatprep.mubr.bf16.mxu0 0
  %615 = vmatmul.mubr.bf16.gmra.mrb[0].mxu0 %v429
  %v616 = vpop.f32.mrb[0].mxu0
  %v617 = vadd.f32 0.0, %v616
  %v618 = vpop.f32.mrb[0].mxu0
  %v619 = vpop.f32.mrb[0].mxu0
  %v620 = vadd.f32 0.0, %v619
  %v621 = vpop.f32.mrb[0].mxu0
  %622 = vmatprep.mubr.bf16.mxu0 0
  %623 = vmatmul.mubr.bf16.gmra.mrb[0].mxu0 %v430
  %v624 = vpop.f32.mrb[0].mxu0
  %v625 = vadd.f32 0.0, %v624
  %v626 = vpop.f32.mrb[0].mxu0
  %v627 = vpop.f32.mrb[0].mxu0
  %v628 = vadd.f32 0.0, %v627
  %v629 = vpop.f32.mrb[0].mxu0
  %630 = vmatprep.mubr.bf16.mxu0 0
  %631 = vmatmul.mubr.bf16.gmra.mrb[0].mxu0 %v431
  %v632 = vpop.f32.mrb[0].mxu0
  %v633 = vadd.f32 0.0, %v632
  %v634 = vpop.f32.mrb[0].mxu0
  %v635 = vpop.f32.mrb[0].mxu0
  %v636 = vadd.f32 0.0, %v635
  %v637 = vpop.f32.mrb[0].mxu0
  %638 = vmatprep.mubr.bf16.mxu0 0
  %639 = vmatmul.mubr.bf16.gmra.mrb[0].mxu0 %v432
  %v640 = vpop.f32.mrb[0].mxu0
  %v641 = vadd.f32 0.0, %v640
  %v642 = vpop.f32.mrb[0].mxu0
  %v643 = vpop.f32.mrb[0].mxu0
  %v644 = vadd.f32 0.0, %v643
  %v645 = vpop.f32.mrb[0].mxu0
  %646 = vmatprep.mubr.bf16.mxu0 0
  %647 = vmatmul.mubr.bf16.gmra.mrb[0].mxu0 %v433
  %v648 = vpop.f32.mrb[0].mxu0
  %v649 = vadd.f32 0.0, %v648
  %v650 = vpop.f32.mrb[0].mxu0
  %v651 = vpop.f32.mrb[0].mxu0
  %v652 = vadd.f32 0.0, %v651
  %v653 = vpop.f32.mrb[0].mxu0
  %654 = vmatprep.mubr.bf16.mxu0 0
  %655 = vmatmul.mubr.bf16.gmra.mrb[0].mxu0 %v434
  %v656 = vpop.f32.mrb[0].mxu0
  %v657 = vadd.f32 0.0, %v656
  %v658 = vpop.f32.mrb[0].mxu0
  %v659 = vpop.f32.mrb[0].mxu0
  %v660 = vadd.f32 0.0, %v659
  %v661 = vpop.f32.mrb[0].mxu0
  %662 = vmatprep.mubr.bf16.mxu0 0
  %663 = vmatmul.mubr.bf16.gmra.mrb[0].mxu0 %v435
  %v664 = vpop.f32.mrb[0].mxu0
  %v665 = vadd.f32 0.0, %v664
  %v666 = vpop.f32.mrb[0].mxu0
  %v667 = vpop.f32.mrb[0].mxu0
  %v668 = vadd.f32 0.0, %v667
  %v669 = vpop.f32.mrb[0].mxu0
  %670 = vmatprep.mubr.bf16.mxu0 0
  %671 = vmatmul.mubr.bf16.gmra.mrb[0].mxu0 %v436
  %v672 = vpop.f32.mrb[0].mxu0
  %v673 = vadd.f32 0.0, %v672
  %v674 = vpop.f32.mrb[0].mxu0
  %v675 = vpop.f32.mrb[0].mxu0
  %v676 = vadd.f32 0.0, %v675
  %v677 = vpop.f32.mrb[0].mxu0
  %678 = vmatprep.mubr.bf16.mxu0 0
  %679 = vmatmul.mubr.bf16.gmra.mrb[0].mxu0 %v437
  %v680 = vpop.f32.mrb[0].mxu0
  %v681 = vadd.f32 0.0, %v680
  %v682 = vpop.f32.mrb[0].mxu0
  %v683 = vpop.f32.mrb[0].mxu0
  %v684 = vadd.f32 0.0, %v683
  %v685 = vpop.f32.mrb[0].mxu0
  %686 = vmatprep.mubr.bf16.mxu0 0
  %687 = vmatmul.mubr.bf16.gmra.mrb[0].mxu0 %v438
  %v688 = vpop.f32.mrb[0].mxu0
  %v689 = vadd.f32 0.0, %v688
  %v690 = vpop.f32.mrb[0].mxu0
  %v691 = vpop.f32.mrb[0].mxu0
  %v692 = vadd.f32 0.0, %v691
  %v693 = vpop.f32.mrb[0].mxu0
  %694 = vmatprep.mubr.bf16.mxu0 0
  %695 = vmatmul.mubr.bf16.gmra.mrb[0].mxu0 %v439
  %v696 = vpop.f32.mrb[0].mxu0
  %v697 = vadd.f32 0.0, %v696
  %v698 = vpop.f32.mrb[0].mxu0
  %v699 = vpop.f32.mrb[0].mxu0
  %v700 = vadd.f32 0.0, %v699
  %v701 = vpop.f32.mrb[0].mxu0
  %702 = vmatprep.mubr.bf16.mxu0 0
  %703 = vmatmul.mubr.bf16.gmra.mrb[0].mxu0 %v440
  %v704 = vpop.f32.mrb[0].mxu0
  %v705 = vadd.f32 0.0, %v704
  %v706 = vpop.f32.mrb[0].mxu0
  %v707 = vpop.f32.mrb[0].mxu0
  %v708 = vadd.f32 0.0, %v707
  %v709 = vpop.f32.mrb[0].mxu0
  %710 = vmatprep.mubr.bf16.mxu0 0
  %711 = vmatmul.mubr.bf16.gmra.mrb[0].mxu0 %v441
  %v712 = vpop.f32.mrb[0].mxu0
  %v713 = vadd.f32 0.0, %v712
  %v714 = vpop.f32.mrb[0].mxu0
  %v715 = vpop.f32.mrb[0].mxu0
  %v716 = vadd.f32 0.0, %v715
  %v717 = vpop.f32.mrb[0].mxu0
  %718 = vmatprep.mubr.bf16.mxu0 0
  %719 = vmatmul.mubr.bf16.gmra.mrb[0].mxu0 %v442
  %v720 = vpop.f32.mrb[0].mxu0
  %v721 = vadd.f32 0.0, %v720
  %v722 = vpop.f32.mrb[0].mxu0
  %v723 = vpop.f32.mrb[0].mxu0
  %v724 = vadd.f32 0.0, %v723
  %v725 = vpop.f32.mrb[0].mxu0
  %726 = vmatprep.mubr.bf16.mxu0 0
  %727 = vmatmul.mubr.bf16.gmra.mrb[0].mxu0 %v443
  %v728 = vpop.f32.mrb[0].mxu0
  %v729 = vadd.f32 0.0, %v728
  %v730 = vpop.f32.mrb[0].mxu0
  %v731 = vpop.f32.mrb[0].mxu0
  %v732 = vadd.f32 0.0, %v731
  %v733 = vpop.f32.mrb[0].mxu0
  %734 = vmatprep.mubr.bf16.mxu0 0
  %735 = vmatmul.mubr.bf16.gmra.mrb[0].mxu0 %v444
  %v736 = vpop.f32.mrb[0].mxu0
  %v737 = vadd.f32 0.0, %v736
  %v738 = vpop.f32.mrb[0].mxu0
  %v739 = vpop.f32.mrb[0].mxu0
  %v740 = vadd.f32 0.0, %v739
  %v741 = vpop.f32.mrb[0].mxu0
  %742 = vmatprep.mubr.bf16.mxu0 0
  %743 = vmatmul.mubr.bf16.gmra.mrb[0].mxu0 %v445
  %v744 = vpop.f32.mrb[0].mxu0
  %v745 = vadd.f32 0.0, %v744
  %v746 = vpop.f32.mrb[0].mxu0
  %v747 = vpop.f32.mrb[0].mxu0
  %v748 = vadd.f32 0.0, %v747
  %v749 = vpop.f32.mrb[0].mxu0
  %750 = vmatprep.mubr.bf16.mxu0 0
  %751 = vmatmul.mubr.bf16.gmra.mrb[0].mxu0 %v446
  %v752 = vpop.f32.mrb[0].mxu0
  %v753 = vadd.f32 0.0, %v752
  %v754 = vpop.f32.mrb[0].mxu0
  %v755 = vpop.f32.mrb[0].mxu0
  %v756 = vadd.f32 0.0, %v755
  %v757 = vpop.f32.mrb[0].mxu0
  %758 = vmatprep.mubr.bf16.mxu0 0
  %759 = vmatmul.mubr.bf16.gmra.mrb[0].mxu0 %v447
  %v760 = vpop.f32.mrb[0].mxu0
  %v761 = vadd.f32 0.0, %v760
  %v762 = vpop.f32.mrb[0].mxu0
  %v763 = vpop.f32.mrb[0].mxu0
  %v764 = vadd.f32 0.0, %v763
  %v765 = vpop.f32.mrb[0].mxu0
  %766 = vmatprep.mubr.bf16.mxu0 0
  %767 = vmatmul.mubr.bf16.gmra.mrb[0].mxu0 %v448
  %v768 = vpop.f32.mrb[0].mxu0
  %v769 = vadd.f32 0.0, %v768
  %v770 = vpop.f32.mrb[0].mxu0
  %v771 = vpop.f32.mrb[0].mxu0
  %v772 = vadd.f32 0.0, %v771
  %v773 = vpop.f32.mrb[0].mxu0
  %774 = vmatprep.mubr.bf16.mxu0 0
  %775 = vmatmul.mubr.bf16.gmra.mrb[0].mxu0 %v449
  %v776 = vpop.f32.mrb[0].mxu0
  %v777 = vadd.f32 0.0, %v776
  %v778 = vpop.f32.mrb[0].mxu0
  %v779 = vpop.f32.mrb[0].mxu0
  %v780 = vadd.f32 0.0, %v779
  %v781 = vpop.f32.mrb[0].mxu0
  %782 = vmatprep.mubr.bf16.mxu0 0
  %783 = vmatmul.mubr.bf16.gmra.mrb[0].mxu0 %v450
  %v784 = vpop.f32.mrb[0].mxu0
  %v785 = vadd.f32 0.0, %v784
  %v786 = vpop.f32.mrb[0].mxu0
  %v787 = vpop.f32.mrb[0].mxu0
  %v788 = vadd.f32 0.0, %v787
  %v789 = vpop.f32.mrb[0].mxu0
  %790 = vmatprep.mubr.bf16.mxu0 0
  %791 = vmatmul.mubr.bf16.gmra.mrb[0].mxu0 %v451
  %v792 = vpop.f32.mrb[0].mxu0
  %v793 = vadd.f32 0.0, %v792
  %v794 = vpop.f32.mrb[0].mxu0
  %v795 = vpop.f32.mrb[0].mxu0
  %v796 = vadd.f32 0.0, %v795
  %v797 = vpop.f32.mrb[0].mxu0
  %798 = vmatprep.mubr.bf16.mxu0 0
  %799 = vmatmul.mubr.bf16.gmra.mrb[0].mxu0 %v452
  %v800 = vpop.f32.mrb[0].mxu0
  %v801 = vadd.f32 0.0, %v800
  %v802 = vpop.f32.mrb[0].mxu0
  %v803 = vpop.f32.mrb[0].mxu0
  %v804 = vadd.f32 0.0, %v803
  %v805 = vpop.f32.mrb[0].mxu0
  %806 = vdwg.mxu0
  %v823 = vunpack.c.l.b16 %v341
  %v824 = vunpack.c.l.b16 %v342
  %v825 = vunpack.c.l.b16 %v343
  %v826 = vunpack.c.l.b16 %v344
  %v827 = vunpack.c.l.b16 %v345
  %v828 = vunpack.c.l.b16 %v346
  %v829 = vunpack.c.l.b16 %v347
  %v830 = vunpack.c.l.b16 %v348
  %v831 = vunpack.c.l.b16 %v349
  %v832 = vunpack.c.l.b16 %v350
  %v833 = vunpack.c.l.b16 %v351
  %v834 = vunpack.c.l.b16 %v352
  %v835 = vunpack.c.l.b16 %v353
  %v836 = vunpack.c.l.b16 %v354
  %v837 = vunpack.c.l.b16 %v355
  %v838 = vunpack.c.l.b16 %v356
  %v839 = vpack.c.b16 %v824, %v823
  %v840 = vpack.c.b16 %v826, %v825
  %v841 = vpack.c.b16 %v828, %v827
  %v842 = vpack.c.b16 %v830, %v829
  %v843 = vpack.c.b16 %v832, %v831
  %v844 = vpack.c.b16 %v834, %v833
  %v845 = vpack.c.b16 %v836, %v835
  %v846 = vpack.c.b16 %v838, %v837
  %855 = vmatprep.subr.bf16.mxu0 0
  %856 = vmatpush1.bf16.msra.mxu0 %v839
  %857 = vmatprep.subr.bf16.mxu0 0
  %858 = vmatpush1.bf16.msra.mxu0 %v840
  %859 = vmatprep.subr.bf16.mxu0 0
  %860 = vmatpush1.bf16.msra.mxu0 %v841
  %861 = vmatprep.subr.bf16.mxu0 0
  %862 = vmatpush1.bf16.msra.mxu0 %v842
  %863 = vmatprep.subr.bf16.mxu0 0
  %864 = vmatpush1.bf16.msra.mxu0 %v843
  %865 = vmatprep.subr.bf16.mxu0 0
  %866 = vmatpush1.bf16.msra.mxu0 %v844
  %867 = vmatprep.subr.bf16.mxu0 0
  %868 = vmatpush1.bf16.msra.mxu0 %v845
  %869 = vmatprep.subr.bf16.mxu0 0
  %870 = vmatpush1.bf16.msra.mxu0 %v846
  %871 = vmatprep.subr.bf16.mxu0 0
  %872 = vmatpush1.bf16.msra.mxu0 0
  %873 = vmatprep.subr.bf16.mxu0 0
  %874 = vmatpush1.bf16.msra.mxu0 0
  %875 = vmatprep.subr.bf16.mxu0 0
  %876 = vmatpush1.bf16.msra.mxu0 0
  %877 = vmatprep.subr.bf16.mxu0 0
  %878 = vmatpush1.bf16.msra.mxu0 0
  %879 = vmatprep.subr.bf16.mxu0 0
  %880 = vmatpush1.bf16.msra.mxu0 0
  %881 = vmatprep.subr.bf16.mxu0 0
  %882 = vmatpush1.bf16.msra.mxu0 0
  %883 = vmatprep.subr.bf16.mxu0 0
  %884 = vmatpush1.bf16.msra.mxu0 0
  %885 = vmatprep.subr.bf16.mxu0 0
  %886 = vmatpush1.bf16.msra.mxu0 0
  %887 = vmatprep.mubr.bf16.mxu0 0
  %888 = vmatmul.mubr.bf16.gmra.mrb[0].mxu0 %v309
  %v889 = vpop.f32.mrb[0].mxu0
  %v890 = vadd.f32 %v553, %v889
  %v891 = vpop.f32.mrb[0].mxu0
  %v892 = vpop.f32.mrb[0].mxu0
  %v893 = vadd.f32 %v556, %v892
  %v894 = vpop.f32.mrb[0].mxu0
  %895 = vmatprep.mubr.bf16.mxu0 0
  %896 = vmatmul.mubr.bf16.gmra.mrb[0].mxu0 %v310
  %v897 = vpop.f32.mrb[0].mxu0
  %v898 = vadd.f32 %v561, %v897
  %v899 = vpop.f32.mrb[0].mxu0
  %v900 = vpop.f32.mrb[0].mxu0
  %v901 = vadd.f32 %v564, %v900
  %v902 = vpop.f32.mrb[0].mxu0
  %903 = vmatprep.mubr.bf16.mxu0 0
  %904 = vmatmul.mubr.bf16.gmra.mrb[0].mxu0 %v311
  %v905 = vpop.f32.mrb[0].mxu0
  %v906 = vadd.f32 %v569, %v905
  %v907 = vpop.f32.mrb[0].mxu0
  %v908 = vpop.f32.mrb[0].mxu0
  %v909 = vadd.f32 %v572, %v908
  %v910 = vpop.f32.mrb[0].mxu0
  %911 = vmatprep.mubr.bf16.mxu0 0
  %912 = vmatmul.mubr.bf16.gmra.mrb[0].mxu0 %v312
  %v913 = vpop.f32.mrb[0].mxu0
  %v914 = vadd.f32 %v577, %v913
  %v915 = vpop.f32.mrb[0].mxu0
  %v916 = vpop.f32.mrb[0].mxu0
  %v917 = vadd.f32 %v580, %v916
  %v918 = vpop.f32.mrb[0].mxu0
  %919 = vmatprep.mubr.bf16.mxu0 0
  %920 = vmatmul.mubr.bf16.gmra.mrb[0].mxu0 %v313
  %v921 = vpop.f32.mrb[0].mxu0
  %v922 = vadd.f32 %v585, %v921
  %v923 = vpop.f32.mrb[0].mxu0
  %v924 = vpop.f32.mrb[0].mxu0
  %v925 = vadd.f32 %v588, %v924
  %v926 = vpop.f32.mrb[0].mxu0
  %927 = vmatprep.mubr.bf16.mxu0 0
  %928 = vmatmul.mubr.bf16.gmra.mrb[0].mxu0 %v314
  %v929 = vpop.f32.mrb[0].mxu0
  %v930 = vadd.f32 %v593, %v929
  %v931 = vpop.f32.mrb[0].mxu0
  %v932 = vpop.f32.mrb[0].mxu0
  %v933 = vadd.f32 %v596, %v932
  %v934 = vpop.f32.mrb[0].mxu0
  %935 = vmatprep.mubr.bf16.mxu0 0
  %936 = vmatmul.mubr.bf16.gmra.mrb[0].mxu0 %v315
  %v937 = vpop.f32.mrb[0].mxu0
  %v938 = vadd.f32 %v601, %v937
  %v939 = vpop.f32.mrb[0].mxu0
  %v940 = vpop.f32.mrb[0].mxu0
  %v941 = vadd.f32 %v604, %v940
  %v942 = vpop.f32.mrb[0].mxu0
  %943 = vmatprep.mubr.bf16.mxu0 0
  %944 = vmatmul.mubr.bf16.gmra.mrb[0].mxu0 %v316
  %v945 = vpop.f32.mrb[0].mxu0
  %v946 = vadd.f32 %v609, %v945
  %v947 = vpop.f32.mrb[0].mxu0
  %v948 = vpop.f32.mrb[0].mxu0
  %v949 = vadd.f32 %v612, %v948
  %v950 = vpop.f32.mrb[0].mxu0
  %951 = vmatprep.mubr.bf16.mxu0 0
  %952 = vmatmul.mubr.bf16.gmra.mrb[0].mxu0 %v317
  %v953 = vpop.f32.mrb[0].mxu0
  %v954 = vadd.f32 %v617, %v953
  %v955 = vpop.f32.mrb[0].mxu0
  %v956 = vpop.f32.mrb[0].mxu0
  %v957 = vadd.f32 %v620, %v956
  %v958 = vpop.f32.mrb[0].mxu0
  %959 = vmatprep.mubr.bf16.mxu0 0
  %960 = vmatmul.mubr.bf16.gmra.mrb[0].mxu0 %v318
  %v961 = vpop.f32.mrb[0].mxu0
  %v962 = vadd.f32 %v625, %v961
  %v963 = vpop.f32.mrb[0].mxu0
  %v964 = vpop.f32.mrb[0].mxu0
  %v965 = vadd.f32 %v628, %v964
  %v966 = vpop.f32.mrb[0].mxu0
  %967 = vmatprep.mubr.bf16.mxu0 0
  %968 = vmatmul.mubr.bf16.gmra.mrb[0].mxu0 %v319
  %v969 = vpop.f32.mrb[0].mxu0
  %v970 = vadd.f32 %v633, %v969
  %v971 = vpop.f32.mrb[0].mxu0
  %v972 = vpop.f32.mrb[0].mxu0
  %v973 = vadd.f32 %v636, %v972
  %v974 = vpop.f32.mrb[0].mxu0
  %975 = vmatprep.mubr.bf16.mxu0 0
  %976 = vmatmul.mubr.bf16.gmra.mrb[0].mxu0 %v320
  %v977 = vpop.f32.mrb[0].mxu0
  %v978 = vadd.f32 %v641, %v977
  %v979 = vpop.f32.mrb[0].mxu0
  %v980 = vpop.f32.mrb[0].mxu0
  %v981 = vadd.f32 %v644, %v980
  %v982 = vpop.f32.mrb[0].mxu0
  %983 = vmatprep.mubr.bf16.mxu0 0
  %984 = vmatmul.mubr.bf16.gmra.mrb[0].mxu0 %v321
  %v985 = vpop.f32.mrb[0].mxu0
  %v986 = vadd.f32 %v649, %v985
  %v987 = vpop.f32.mrb[0].mxu0
  %v988 = vpop.f32.mrb[0].mxu0
  %v989 = vadd.f32 %v652, %v988
  %v990 = vpop.f32.mrb[0].mxu0
  %991 = vmatprep.mubr.bf16.mxu0 0
  %992 = vmatmul.mubr.bf16.gmra.mrb[0].mxu0 %v322
  %v993 = vpop.f32.mrb[0].mxu0
  %v994 = vadd.f32 %v657, %v993
  %v995 = vpop.f32.mrb[0].mxu0
  %v996 = vpop.f32.mrb[0].mxu0
  %v997 = vadd.f32 %v660, %v996
  %v998 = vpop.f32.mrb[0].mxu0
  %999 = vmatprep.mubr.bf16.mxu0 0
  %1000 = vmatmul.mubr.bf16.gmra.mrb[0].mxu0 %v323
  %v1001 = vpop.f32.mrb[0].mxu0
  %v1002 = vadd.f32 %v665, %v1001
  %v1003 = vpop.f32.mrb[0].mxu0
  %v1004 = vpop.f32.mrb[0].mxu0
  %v1005 = vadd.f32 %v668, %v1004
  %v1006 = vpop.f32.mrb[0].mxu0
  %1007 = vmatprep.mubr.bf16.mxu0 0
  %1008 = vmatmul.mubr.bf16.gmra.mrb[0].mxu0 %v324
  %v1009 = vpop.f32.mrb[0].mxu0
  %v1010 = vadd.f32 %v673, %v1009
  %v1011 = vpop.f32.mrb[0].mxu0
  %v1012 = vpop.f32.mrb[0].mxu0
  %v1013 = vadd.f32 %v676, %v1012
  %v1014 = vpop.f32.mrb[0].mxu0
  %1015 = vmatprep.mubr.bf16.mxu0 0
  %1016 = vmatmul.mubr.bf16.gmra.mrb[0].mxu0 %v325
  %v1017 = vpop.f32.mrb[0].mxu0
  %v1018 = vadd.f32 %v681, %v1017
  %v1019 = vpop.f32.mrb[0].mxu0
  %v1020 = vpop.f32.mrb[0].mxu0
  %v1021 = vadd.f32 %v684, %v1020
  %v1022 = vpop.f32.mrb[0].mxu0
  %1023 = vmatprep.mubr.bf16.mxu0 0
  %1024 = vmatmul.mubr.bf16.gmra.mrb[0].mxu0 %v326
  %v1025 = vpop.f32.mrb[0].mxu0
  %v1026 = vadd.f32 %v689, %v1025
  %v1027 = vpop.f32.mrb[0].mxu0
  %v1028 = vpop.f32.mrb[0].mxu0
  %v1029 = vadd.f32 %v692, %v1028
  %v1030 = vpop.f32.mrb[0].mxu0
  %1031 = vmatprep.mubr.bf16.mxu0 0
  %1032 = vmatmul.mubr.bf16.gmra.mrb[0].mxu0 %v327
  %v1033 = vpop.f32.mrb[0].mxu0
  %v1034 = vadd.f32 %v697, %v1033
  %v1035 = vpop.f32.mrb[0].mxu0
  %v1036 = vpop.f32.mrb[0].mxu0
  %v1037 = vadd.f32 %v700, %v1036
  %v1038 = vpop.f32.mrb[0].mxu0
  %1039 = vmatprep.mubr.bf16.mxu0 0
  %1040 = vmatmul.mubr.bf16.gmra.mrb[0].mxu0 %v328
  %v1041 = vpop.f32.mrb[0].mxu0
  %v1042 = vadd.f32 %v705, %v1041
  %v1043 = vpop.f32.mrb[0].mxu0
  %v1044 = vpop.f32.mrb[0].mxu0
  %v1045 = vadd.f32 %v708, %v1044
  %v1046 = vpop.f32.mrb[0].mxu0
  %1047 = vmatprep.mubr.bf16.mxu0 0
  %1048 = vmatmul.mubr.bf16.gmra.mrb[0].mxu0 %v329
  %v1049 = vpop.f32.mrb[0].mxu0
  %v1050 = vadd.f32 %v713, %v1049
  %v1051 = vpop.f32.mrb[0].mxu0
  %v1052 = vpop.f32.mrb[0].mxu0
  %v1053 = vadd.f32 %v716, %v1052
  %v1054 = vpop.f32.mrb[0].mxu0
  %1055 = vmatprep.mubr.bf16.mxu0 0
  %1056 = vmatmul.mubr.bf16.gmra.mrb[0].mxu0 %v330
  %v1057 = vpop.f32.mrb[0].mxu0
  %v1058 = vadd.f32 %v721, %v1057
  %v1059 = vpop.f32.mrb[0].mxu0
  %v1060 = vpop.f32.mrb[0].mxu0
  %v1061 = vadd.f32 %v724, %v1060
  %v1062 = vpop.f32.mrb[0].mxu0
  %1063 = vmatprep.mubr.bf16.mxu0 0
  %1064 = vmatmul.mubr.bf16.gmra.mrb[0].mxu0 %v331
  %v1065 = vpop.f32.mrb[0].mxu0
  %v1066 = vadd.f32 %v729, %v1065
  %v1067 = vpop.f32.mrb[0].mxu0
  %v1068 = vpop.f32.mrb[0].mxu0
  %v1069 = vadd.f32 %v732, %v1068
  %v1070 = vpop.f32.mrb[0].mxu0
  %1071 = vmatprep.mubr.bf16.mxu0 0
  %1072 = vmatmul.mubr.bf16.gmra.mrb[0].mxu0 %v332
  %v1073 = vpop.f32.mrb[0].mxu0
  %v1074 = vadd.f32 %v737, %v1073
  %v1075 = vpop.f32.mrb[0].mxu0
  %v1076 = vpop.f32.mrb[0].mxu0
  %v1077 = vadd.f32 %v740, %v1076
  %v1078 = vpop.f32.mrb[0].mxu0
  %1079 = vmatprep.mubr.bf16.mxu0 0
  %1080 = vmatmul.mubr.bf16.gmra.mrb[0].mxu0 %v333
  %v1081 = vpop.f32.mrb[0].mxu0
  %v1082 = vadd.f32 %v745, %v1081
  %v1083 = vpop.f32.mrb[0].mxu0
  %v1084 = vpop.f32.mrb[0].mxu0
  %v1085 = vadd.f32 %v748, %v1084
  %v1086 = vpop.f32.mrb[0].mxu0
  %1087 = vmatprep.mubr.bf16.mxu0 0
  %1088 = vmatmul.mubr.bf16.gmra.mrb[0].mxu0 %v334
  %v1089 = vpop.f32.mrb[0].mxu0
  %v1090 = vadd.f32 %v753, %v1089
  %v1091 = vpop.f32.mrb[0].mxu0
  %v1092 = vpop.f32.mrb[0].mxu0
  %v1093 = vadd.f32 %v756, %v1092
  %v1094 = vpop.f32.mrb[0].mxu0
  %1095 = vmatprep.mubr.bf16.mxu0 0
  %1096 = vmatmul.mubr.bf16.gmra.mrb[0].mxu0 %v335
  %v1097 = vpop.f32.mrb[0].mxu0
  %v1098 = vadd.f32 %v761, %v1097
  %v1099 = vpop.f32.mrb[0].mxu0
  %v1100 = vpop.f32.mrb[0].mxu0
  %v1101 = vadd.f32 %v764, %v1100
  %v1102 = vpop.f32.mrb[0].mxu0
  %1103 = vmatprep.mubr.bf16.mxu0 0
  %1104 = vmatmul.mubr.bf16.gmra.mrb[0].mxu0 %v336
  %v1105 = vpop.f32.mrb[0].mxu0
  %v1106 = vadd.f32 %v769, %v1105
  %v1107 = vpop.f32.mrb[0].mxu0
  %v1108 = vpop.f32.mrb[0].mxu0
  %v1109 = vadd.f32 %v772, %v1108
  %v1110 = vpop.f32.mrb[0].mxu0
  %1111 = vmatprep.mubr.bf16.mxu0 0
  %1112 = vmatmul.mubr.bf16.gmra.mrb[0].mxu0 %v337
  %v1113 = vpop.f32.mrb[0].mxu0
  %v1114 = vadd.f32 %v777, %v1113
  %v1115 = vpop.f32.mrb[0].mxu0
  %v1116 = vpop.f32.mrb[0].mxu0
  %v1117 = vadd.f32 %v780, %v1116
  %v1118 = vpop.f32.mrb[0].mxu0
  %1119 = vmatprep.mubr.bf16.mxu0 0
  %1120 = vmatmul.mubr.bf16.gmra.mrb[0].mxu0 %v338
  %v1121 = vpop.f32.mrb[0].mxu0
  %v1122 = vadd.f32 %v785, %v1121
  %v1123 = vpop.f32.mrb[0].mxu0
  %v1124 = vpop.f32.mrb[0].mxu0
  %v1125 = vadd.f32 %v788, %v1124
  %v1126 = vpop.f32.mrb[0].mxu0
  %1127 = vmatprep.mubr.bf16.mxu0 0
  %1128 = vmatmul.mubr.bf16.gmra.mrb[0].mxu0 %v339
  %v1129 = vpop.f32.mrb[0].mxu0
  %v1130 = vadd.f32 %v793, %v1129
  %v1131 = vpop.f32.mrb[0].mxu0
  %v1132 = vpop.f32.mrb[0].mxu0
  %v1133 = vadd.f32 %v796, %v1132
  %v1134 = vpop.f32.mrb[0].mxu0
  %1135 = vmatprep.mubr.bf16.mxu0 0
  %1136 = vmatmul.mubr.bf16.gmra.mrb[0].mxu0 %v340
  %v1137 = vpop.f32.mrb[0].mxu0
  %v1138 = vadd.f32 %v801, %v1137
  %v1139 = vpop.f32.mrb[0].mxu0
  %v1140 = vpop.f32.mrb[0].mxu0
  %v1141 = vadd.f32 %v804, %v1140
  %v1142 = vpop.f32.mrb[0].mxu0
  %1143 = vdwg.mxu0
  %v1144 = vld [vmem:[#allocation2 + $0x9] sm:$0xff]
  %v1145 = vld [vmem:[#allocation2 + $0x11] sm:$0xff]
  %v1146 = vld [vmem:[#allocation2 + $0x29] sm:$0xff]
  %v1147 = vld [vmem:[#allocation2 + $0x31] sm:$0xff]
  %v1148 = vld [vmem:[#allocation2 + $0x49] sm:$0xff]
  %v1149 = vld [vmem:[#allocation2 + $0x51] sm:$0xff]
  %v1150 = vld [vmem:[#allocation2 + $0x69] sm:$0xff]
  %v1151 = vld [vmem:[#allocation2 + $0x71] sm:$0xff]
  %v1152 = vld [vmem:[#allocation2 + $0x89] sm:$0xff]
  %v1153 = vld [vmem:[#allocation2 + $0x91] sm:$0xff]
  %v1154 = vld [vmem:[#allocation2 + $0xa9] sm:$0xff]
  %v1155 = vld [vmem:[#allocation2 + $0xb1] sm:$0xff]
  %v1156 = vld [vmem:[#allocation2 + $0xc9] sm:$0xff]
  %v1157 = vld [vmem:[#allocation2 + $0xd1] sm:$0xff]
  %v1158 = vld [vmem:[#allocation2 + $0xe9] sm:$0xff]
  %v1159 = vld [vmem:[#allocation2 + $0xf1] sm:$0xff]
  %v1160 = vld [vmem:[#allocation2 + $0x109] sm:$0xff]
  %v1161 = vld [vmem:[#allocation2 + $0x111] sm:$0xff]
  %v1162 = vld [vmem:[#allocation2 + $0x129] sm:$0xff]
  %v1163 = vld [vmem:[#allocation2 + $0x131] sm:$0xff]
  %v1164 = vld [vmem:[#allocation2 + $0x149] sm:$0xff]
  %v1165 = vld [vmem:[#allocation2 + $0x151] sm:$0xff]
  %v1166 = vld [vmem:[#allocation2 + $0x169] sm:$0xff]
  %v1167 = vld [vmem:[#allocation2 + $0x171] sm:$0xff]
  %v1168 = vld [vmem:[#allocation2 + $0x189] sm:$0xff]
  %v1169 = vld [vmem:[#allocation2 + $0x191] sm:$0xff]
  %v1170 = vld [vmem:[#allocation2 + $0x1a9] sm:$0xff]
  %v1171 = vld [vmem:[#allocation2 + $0x1b1] sm:$0xff]
  %v1172 = vld [vmem:[#allocation2 + $0x1c9] sm:$0xff]
  %v1173 = vld [vmem:[#allocation2 + $0x1d1] sm:$0xff]
  %v1174 = vld [vmem:[#allocation2 + $0x1e9] sm:$0xff]
  %v1175 = vld [vmem:[#allocation2 + $0x1f1] sm:$0xff]
  %v1176 = vld [vmem:[#allocation2 + $0x249] sm:$0xff]
  %v1177 = vld [vmem:[#allocation2 + $0x251] sm:$0xff]
  %v1178 = vld [vmem:[#allocation2 + $0x269] sm:$0xff]
  %v1179 = vld [vmem:[#allocation2 + $0x271] sm:$0xff]
  %v1180 = vld [vmem:[#allocation2 + $0x289] sm:$0xff]
  %v1181 = vld [vmem:[#allocation2 + $0x291] sm:$0xff]
  %v1182 = vld [vmem:[#allocation2 + $0x2a9] sm:$0xff]
  %v1183 = vld [vmem:[#allocation2 + $0x2b1] sm:$0xff]
  %v1184 = vld [vmem:[#allocation2 + $0x2c9] sm:$0xff]
  %v1185 = vld [vmem:[#allocation2 + $0x2d1] sm:$0xff]
  %v1186 = vld [vmem:[#allocation2 + $0x2e9] sm:$0xff]
  %v1187 = vld [vmem:[#allocation2 + $0x2f1] sm:$0xff]
  %v1188 = vld [vmem:[#allocation2 + $0x309] sm:$0xff]
  %v1189 = vld [vmem:[#allocation2 + $0x311] sm:$0xff]
  %v1190 = vld [vmem:[#allocation2 + $0x329] sm:$0xff]
  %v1191 = vld [vmem:[#allocation2 + $0x331] sm:$0xff]
  %v1192 = vld [vmem:[#allocation2 + $0x349] sm:$0xff]
  %v1193 = vld [vmem:[#allocation2 + $0x351] sm:$0xff]
  %v1194 = vld [vmem:[#allocation2 + $0x369] sm:$0xff]
  %v1195 = vld [vmem:[#allocation2 + $0x371] sm:$0xff]
  %v1196 = vld [vmem:[#allocation2 + $0x389] sm:$0xff]
  %v1197 = vld [vmem:[#allocation2 + $0x391] sm:$0xff]
  %v1198 = vld [vmem:[#allocation2 + $0x3a9] sm:$0xff]
  %v1199 = vld [vmem:[#allocation2 + $0x3b1] sm:$0xff]
  %v1200 = vld [vmem:[#allocation2 + $0x3c9] sm:$0xff]
  %v1201 = vld [vmem:[#allocation2 + $0x3d1] sm:$0xff]
  %v1202 = vld [vmem:[#allocation2 + $0x3e9] sm:$0xff]
  %v1203 = vld [vmem:[#allocation2 + $0x3f1] sm:$0xff]
  %v1204 = vld [vmem:[#allocation2 + $0x409] sm:$0xff]
  %v1205 = vld [vmem:[#allocation2 + $0x411] sm:$0xff]
  %v1206 = vld [vmem:[#allocation2 + $0x429] sm:$0xff]
  %v1207 = vld [vmem:[#allocation2 + $0x431] sm:$0xff]
  %v1208 = vpack.c.bf16 %v1145, %v1144
  %v1209 = vpack.c.bf16 %v1147, %v1146
  %v1210 = vpack.c.bf16 %v1149, %v1148
  %v1211 = vpack.c.bf16 %v1151, %v1150
  %v1212 = vpack.c.bf16 %v1153, %v1152
  %v1213 = vpack.c.bf16 %v1155, %v1154
  %v1214 = vpack.c.bf16 %v1157, %v1156
  %v1215 = vpack.c.bf16 %v1159, %v1158
  %v1216 = vpack.c.bf16 %v1161, %v1160
  %v1217 = vpack.c.bf16 %v1163, %v1162
  %v1218 = vpack.c.bf16 %v1165, %v1164
  %v1219 = vpack.c.bf16 %v1167, %v1166
  %v1220 = vpack.c.bf16 %v1169, %v1168
  %v1221 = vpack.c.bf16 %v1171, %v1170
  %v1222 = vpack.c.bf16 %v1173, %v1172
  %v1223 = vpack.c.bf16 %v1175, %v1174
  %v1224 = vpack.c.bf16 %v1177, %v1176
  %v1225 = vpack.c.bf16 %v1179, %v1178
  %v1226 = vpack.c.bf16 %v1181, %v1180
  %v1227 = vpack.c.bf16 %v1183, %v1182
  %v1228 = vpack.c.bf16 %v1185, %v1184
  %v1229 = vpack.c.bf16 %v1187, %v1186
  %v1230 = vpack.c.bf16 %v1189, %v1188
  %v1231 = vpack.c.bf16 %v1191, %v1190
  %v1232 = vpack.c.bf16 %v1193, %v1192
  %v1233 = vpack.c.bf16 %v1195, %v1194
  %v1234 = vpack.c.bf16 %v1197, %v1196
  %v1235 = vpack.c.bf16 %v1199, %v1198
  %v1236 = vpack.c.bf16 %v1201, %v1200
  %v1237 = vpack.c.bf16 %v1203, %v1202
  %v1238 = vpack.c.bf16 %v1205, %v1204
  %v1239 = vpack.c.bf16 %v1207, %v1206
  %s1240 = scalar_lea.vmem %s1, 128
  %v1241 = vld [vmem:[%s1240] sm:$0xf]
  %v1242 = vld [vmem:[%s1240 + $0x4] sm:$0xf]
  %v1243 = vld [vmem:[%s1240 + $0x8] sm:$0xf]
  %v1244 = vld [vmem:[%s1240 + $0xc] sm:$0xf]
  %v1245 = vld [vmem:[%s1240 + $0x10] sm:$0xf]
  %v1246 = vld [vmem:[%s1240 + $0x14] sm:$0xf]
  %v1247 = vld [vmem:[%s1240 + $0x18] sm:$0xf]
  %v1248 = vld [vmem:[%s1240 + $0x1c] sm:$0xf]
  %v1249 = vld [vmem:[%s1240 + $0x20] sm:$0xf]
  %v1250 = vld [vmem:[%s1240 + $0x24] sm:$0xf]
  %v1251 = vld [vmem:[%s1240 + $0x28] sm:$0xf]
  %v1252 = vld [vmem:[%s1240 + $0x2c] sm:$0xf]
  %v1253 = vld [vmem:[%s1240 + $0x30] sm:$0xf]
  %v1254 = vld [vmem:[%s1240 + $0x34] sm:$0xf]
  %v1255 = vld [vmem:[%s1240 + $0x38] sm:$0xf]
  %v1256 = vld [vmem:[%s1240 + $0x3c] sm:$0xf]
  %v1273 = vunpack.c.l.b16 %v1241
  %v1274 = vunpack.c.l.b16 %v1242
  %v1275 = vunpack.c.l.b16 %v1243
  %v1276 = vunpack.c.l.b16 %v1244
  %v1277 = vunpack.c.l.b16 %v1245
  %v1278 = vunpack.c.l.b16 %v1246
  %v1279 = vunpack.c.l.b16 %v1247
  %v1280 = vunpack.c.l.b16 %v1248
  %v1281 = vunpack.c.l.b16 %v1249
  %v1282 = vunpack.c.l.b16 %v1250
  %v1283 = vunpack.c.l.b16 %v1251
  %v1284 = vunpack.c.l.b16 %v1252
  %v1285 = vunpack.c.l.b16 %v1253
  %v1286 = vunpack.c.l.b16 %v1254
  %v1287 = vunpack.c.l.b16 %v1255
  %v1288 = vunpack.c.l.b16 %v1256
  %v1289 = vpack.c.b16 %v1274, %v1273
  %v1290 = vpack.c.b16 %v1276, %v1275
  %v1291 = vpack.c.b16 %v1278, %v1277
  %v1292 = vpack.c.b16 %v1280, %v1279
  %v1293 = vpack.c.b16 %v1282, %v1281
  %v1294 = vpack.c.b16 %v1284, %v1283
  %v1295 = vpack.c.b16 %v1286, %v1285
  %v1296 = vpack.c.b16 %v1288, %v1287
  %1305 = vmatprep.subr.bf16.mxu0 0
  %1306 = vmatpush1.bf16.msra.mxu0 %v1289
  %1307 = vmatprep.subr.bf16.mxu0 0
  %1308 = vmatpush1.bf16.msra.mxu0 %v1290
  %1309 = vmatprep.subr.bf16.mxu0 0
  %1310 = vmatpush1.bf16.msra.mxu0 %v1291
  %1311 = vmatprep.subr.bf16.mxu0 0
  %1312 = vmatpush1.bf16.msra.mxu0 %v1292
  %1313 = vmatprep.subr.bf16.mxu0 0
  %1314 = vmatpush1.bf16.msra.mxu0 %v1293
  %1315 = vmatprep.subr.bf16.mxu0 0
  %1316 = vmatpush1.bf16.msra.mxu0 %v1294
  %1317 = vmatprep.subr.bf16.mxu0 0
  %1318 = vmatpush1.bf16.msra.mxu0 %v1295
  %1319 = vmatprep.subr.bf16.mxu0 0
  %1320 = vmatpush1.bf16.msra.mxu0 %v1296
  %1321 = vmatprep.subr.bf16.mxu0 0
  %1322 = vmatpush1.bf16.msra.mxu0 0
  %1323 = vmatprep.subr.bf16.mxu0 0
  %1324 = vmatpush1.bf16.msra.mxu0 0
  %1325 = vmatprep.subr.bf16.mxu0 0
  %1326 = vmatpush1.bf16.msra.mxu0 0
  %1327 = vmatprep.subr.bf16.mxu0 0
  %1328 = vmatpush1.bf16.msra.mxu0 0
  %1329 = vmatprep.subr.bf16.mxu0 0
  %1330 = vmatpush1.bf16.msra.mxu0 0
  %1331 = vmatprep.subr.bf16.mxu0 0
  %1332 = vmatpush1.bf16.msra.mxu0 0
  %1333 = vmatprep.subr.bf16.mxu0 0
  %1334 = vmatpush1.bf16.msra.mxu0 0
  %1335 = vmatprep.subr.bf16.mxu0 0
  %1336 = vmatpush1.bf16.msra.mxu0 0
  %1337 = vmatprep.mubr.bf16.mxu0 0
  %1338 = vmatmul.mubr.bf16.gmra.mrb[0].mxu0 %v1208
  %v1339 = vpop.f32.mrb[0].mxu0
  %v1340 = vadd.f32 0.0, %v1339
  %v1341 = vpop.f32.mrb[0].mxu0
  %v1342 = vpop.f32.mrb[0].mxu0
  %v1343 = vadd.f32 0.0, %v1342
  %v1344 = vpop.f32.mrb[0].mxu0
  %1345 = vmatprep.mubr.bf16.mxu0 0
  %1346 = vmatmul.mubr.bf16.gmra.mrb[0].mxu0 %v1209
  %v1347 = vpop.f32.mrb[0].mxu0
  %v1348 = vadd.f32 0.0, %v1347
  %v1349 = vpop.f32.mrb[0].mxu0
  %v1350 = vpop.f32.mrb[0].mxu0
  %v1351 = vadd.f32 0.0, %v1350
  %v1352 = vpop.f32.mrb[0].mxu0
  %1353 = vmatprep.mubr.bf16.mxu0 0
  %1354 = vmatmul.mubr.bf16.gmra.mrb[0].mxu0 %v1210
  %v1355 = vpop.f32.mrb[0].mxu0
  %v1356 = vadd.f32 0.0, %v1355
  %v1357 = vpop.f32.mrb[0].mxu0
  %v1358 = vpop.f32.mrb[0].mxu0
  %v1359 = vadd.f32 0.0, %v1358
  %v1360 = vpop.f32.mrb[0].mxu0
  %1361 = vmatprep.mubr.bf16.mxu0 0
  %1362 = vmatmul.mubr.bf16.gmra.mrb[0].mxu0 %v1211
  %v1363 = vpop.f32.mrb[0].mxu0
  %v1364 = vadd.f32 0.0, %v1363
  %v1365 = vpop.f32.mrb[0].mxu0
  %v1366 = vpop.f32.mrb[0].mxu0
  %v1367 = vadd.f32 0.0, %v1366
  %v1368 = vpop.f32.mrb[0].mxu0
  %1369 = vmatprep.mubr.bf16.mxu0 0
  %1370 = vmatmul.mubr.bf16.gmra.mrb[0].mxu0 %v1212
  %v1371 = vpop.f32.mrb[0].mxu0
  %v1372 = vadd.f32 0.0, %v1371
  %v1373 = vpop.f32.mrb[0].mxu0
  %v1374 = vpop.f32.mrb[0].mxu0
  %v1375 = vadd.f32 0.0, %v1374
  %v1376 = vpop.f32.mrb[0].mxu0
  %1377 = vmatprep.mubr.bf16.mxu0 0
  %1378 = vmatmul.mubr.bf16.gmra.mrb[0].mxu0 %v1213
  %v1379 = vpop.f32.mrb[0].mxu0
  %v1380 = vadd.f32 0.0, %v1379
  %v1381 = vpop.f32.mrb[0].mxu0
  %v1382 = vpop.f32.mrb[0].mxu0
  %v1383 = vadd.f32 0.0, %v1382
  %v1384 = vpop.f32.mrb[0].mxu0
  %1385 = vmatprep.mubr.bf16.mxu0 0
  %1386 = vmatmul.mubr.bf16.gmra.mrb[0].mxu0 %v1214
  %v1387 = vpop.f32.mrb[0].mxu0
  %v1388 = vadd.f32 0.0, %v1387
  %v1389 = vpop.f32.mrb[0].mxu0
  %v1390 = vpop.f32.mrb[0].mxu0
  %v1391 = vadd.f32 0.0, %v1390
  %v1392 = vpop.f32.mrb[0].mxu0
  %1393 = vmatprep.mubr.bf16.mxu0 0
  %1394 = vmatmul.mubr.bf16.gmra.mrb[0].mxu0 %v1215
  %v1395 = vpop.f32.mrb[0].mxu0
  %v1396 = vadd.f32 0.0, %v1395
  %v1397 = vpop.f32.mrb[0].mxu0
  %v1398 = vpop.f32.mrb[0].mxu0
  %v1399 = vadd.f32 0.0, %v1398
  %v1400 = vpop.f32.mrb[0].mxu0
  %1401 = vmatprep.mubr.bf16.mxu0 0
  %1402 = vmatmul.mubr.bf16.gmra.mrb[0].mxu0 %v1216
  %v1403 = vpop.f32.mrb[0].mxu0
  %v1404 = vadd.f32 0.0, %v1403
  %v1405 = vpop.f32.mrb[0].mxu0
  %v1406 = vpop.f32.mrb[0].mxu0
  %v1407 = vadd.f32 0.0, %v1406
  %v1408 = vpop.f32.mrb[0].mxu0
  %1409 = vmatprep.mubr.bf16.mxu0 0
  %1410 = vmatmul.mubr.bf16.gmra.mrb[0].mxu0 %v1217
  %v1411 = vpop.f32.mrb[0].mxu0
  %v1412 = vadd.f32 0.0, %v1411
  %v1413 = vpop.f32.mrb[0].mxu0
  %v1414 = vpop.f32.mrb[0].mxu0
  %v1415 = vadd.f32 0.0, %v1414
  %v1416 = vpop.f32.mrb[0].mxu0
  %1417 = vmatprep.mubr.bf16.mxu0 0
  %1418 = vmatmul.mubr.bf16.gmra.mrb[0].mxu0 %v1218
  %v1419 = vpop.f32.mrb[0].mxu0
  %v1420 = vadd.f32 0.0, %v1419
  %v1421 = vpop.f32.mrb[0].mxu0
  %v1422 = vpop.f32.mrb[0].mxu0
  %v1423 = vadd.f32 0.0, %v1422
  %v1424 = vpop.f32.mrb[0].mxu0
  %1425 = vmatprep.mubr.bf16.mxu0 0
  %1426 = vmatmul.mubr.bf16.gmra.mrb[0].mxu0 %v1219
  %v1427 = vpop.f32.mrb[0].mxu0
  %v1428 = vadd.f32 0.0, %v1427
  %v1429 = vpop.f32.mrb[0].mxu0
  %v1430 = vpop.f32.mrb[0].mxu0
  %v1431 = vadd.f32 0.0, %v1430
  %v1432 = vpop.f32.mrb[0].mxu0
  %1433 = vmatprep.mubr.bf16.mxu0 0
  %1434 = vmatmul.mubr.bf16.gmra.mrb[0].mxu0 %v1220
  %v1435 = vpop.f32.mrb[0].mxu0
  %v1436 = vadd.f32 0.0, %v1435
  %v1437 = vpop.f32.mrb[0].mxu0
  %v1438 = vpop.f32.mrb[0].mxu0
  %v1439 = vadd.f32 0.0, %v1438
  %v1440 = vpop.f32.mrb[0].mxu0
  %1441 = vmatprep.mubr.bf16.mxu0 0
  %1442 = vmatmul.mubr.bf16.gmra.mrb[0].mxu0 %v1221
  %v1443 = vpop.f32.mrb[0].mxu0
  %v1444 = vadd.f32 0.0, %v1443
  %v1445 = vpop.f32.mrb[0].mxu0
  %v1446 = vpop.f32.mrb[0].mxu0
  %v1447 = vadd.f32 0.0, %v1446
  %v1448 = vpop.f32.mrb[0].mxu0
  %1449 = vmatprep.mubr.bf16.mxu0 0
  %1450 = vmatmul.mubr.bf16.gmra.mrb[0].mxu0 %v1222
  %v1451 = vpop.f32.mrb[0].mxu0
  %v1452 = vadd.f32 0.0, %v1451
  %v1453 = vpop.f32.mrb[0].mxu0
  %v1454 = vpop.f32.mrb[0].mxu0
  %v1455 = vadd.f32 0.0, %v1454
  %v1456 = vpop.f32.mrb[0].mxu0
  %1457 = vmatprep.mubr.bf16.mxu0 0
  %1458 = vmatmul.mubr.bf16.gmra.mrb[0].mxu0 %v1223
  %v1459 = vpop.f32.mrb[0].mxu0
  %v1460 = vadd.f32 0.0, %v1459
  %v1461 = vpop.f32.mrb[0].mxu0
  %v1462 = vpop.f32.mrb[0].mxu0
  %v1463 = vadd.f32 0.0, %v1462
  %v1464 = vpop.f32.mrb[0].mxu0
  %1465 = vmatprep.mubr.bf16.mxu0 0
  %1466 = vmatmul.mubr.bf16.gmra.mrb[0].mxu0 %v1224
  %v1467 = vpop.f32.mrb[0].mxu0
  %v1468 = vadd.f32 0.0, %v1467
  %v1469 = vpop.f32.mrb[0].mxu0
  %v1470 = vpop.f32.mrb[0].mxu0
  %v1471 = vadd.f32 0.0, %v1470
  %v1472 = vpop.f32.mrb[0].mxu0
  %1473 = vmatprep.mubr.bf16.mxu0 0
  %1474 = vmatmul.mubr.bf16.gmra.mrb[0].mxu0 %v1225
  %v1475 = vpop.f32.mrb[0].mxu0
  %v1476 = vadd.f32 0.0, %v1475
  %v1477 = vpop.f32.mrb[0].mxu0
  %v1478 = vpop.f32.mrb[0].mxu0
  %v1479 = vadd.f32 0.0, %v1478
  %v1480 = vpop.f32.mrb[0].mxu0
  %1481 = vmatprep.mubr.bf16.mxu0 0
  %1482 = vmatmul.mubr.bf16.gmra.mrb[0].mxu0 %v1226
  %v1483 = vpop.f32.mrb[0].mxu0
  %v1484 = vadd.f32 0.0, %v1483
  %v1485 = vpop.f32.mrb[0].mxu0
  %v1486 = vpop.f32.mrb[0].mxu0
  %v1487 = vadd.f32 0.0, %v1486
  %v1488 = vpop.f32.mrb[0].mxu0
  %1489 = vmatprep.mubr.bf16.mxu0 0
  %1490 = vmatmul.mubr.bf16.gmra.mrb[0].mxu0 %v1227
  %v1491 = vpop.f32.mrb[0].mxu0
  %v1492 = vadd.f32 0.0, %v1491
  %v1493 = vpop.f32.mrb[0].mxu0
  %v1494 = vpop.f32.mrb[0].mxu0
  %v1495 = vadd.f32 0.0, %v1494
  %v1496 = vpop.f32.mrb[0].mxu0
  %1497 = vmatprep.mubr.bf16.mxu0 0
  %1498 = vmatmul.mubr.bf16.gmra.mrb[0].mxu0 %v1228
  %v1499 = vpop.f32.mrb[0].mxu0
  %v1500 = vadd.f32 0.0, %v1499
  %v1501 = vpop.f32.mrb[0].mxu0
  %v1502 = vpop.f32.mrb[0].mxu0
  %v1503 = vadd.f32 0.0, %v1502
  %v1504 = vpop.f32.mrb[0].mxu0
  %1505 = vmatprep.mubr.bf16.mxu0 0
  %1506 = vmatmul.mubr.bf16.gmra.mrb[0].mxu0 %v1229
  %v1507 = vpop.f32.mrb[0].mxu0
  %v1508 = vadd.f32 0.0, %v1507
  %v1509 = vpop.f32.mrb[0].mxu0
  %v1510 = vpop.f32.mrb[0].mxu0
  %v1511 = vadd.f32 0.0, %v1510
  %v1512 = vpop.f32.mrb[0].mxu0
  %1513 = vmatprep.mubr.bf16.mxu0 0
  %1514 = vmatmul.mubr.bf16.gmra.mrb[0].mxu0 %v1230
  %v1515 = vpop.f32.mrb[0].mxu0
  %v1516 = vadd.f32 0.0, %v1515
  %v1517 = vpop.f32.mrb[0].mxu0
  %v1518 = vpop.f32.mrb[0].mxu0
  %v1519 = vadd.f32 0.0, %v1518
  %v1520 = vpop.f32.mrb[0].mxu0
  %1521 = vmatprep.mubr.bf16.mxu0 0
  %1522 = vmatmul.mubr.bf16.gmra.mrb[0].mxu0 %v1231
  %v1523 = vpop.f32.mrb[0].mxu0
  %v1524 = vadd.f32 0.0, %v1523
  %v1525 = vpop.f32.mrb[0].mxu0
  %v1526 = vpop.f32.mrb[0].mxu0
  %v1527 = vadd.f32 0.0, %v1526
  %v1528 = vpop.f32.mrb[0].mxu0
  %1529 = vmatprep.mubr.bf16.mxu0 0
  %1530 = vmatmul.mubr.bf16.gmra.mrb[0].mxu0 %v1232
  %v1531 = vpop.f32.mrb[0].mxu0
  %v1532 = vadd.f32 0.0, %v1531
  %v1533 = vpop.f32.mrb[0].mxu0
  %v1534 = vpop.f32.mrb[0].mxu0
  %v1535 = vadd.f32 0.0, %v1534
  %v1536 = vpop.f32.mrb[0].mxu0
  %1537 = vmatprep.mubr.bf16.mxu0 0
  %1538 = vmatmul.mubr.bf16.gmra.mrb[0].mxu0 %v1233
  %v1539 = vpop.f32.mrb[0].mxu0
  %v1540 = vadd.f32 0.0, %v1539
  %v1541 = vpop.f32.mrb[0].mxu0
  %v1542 = vpop.f32.mrb[0].mxu0
  %v1543 = vadd.f32 0.0, %v1542
  %v1544 = vpop.f32.mrb[0].mxu0
  %1545 = vmatprep.mubr.bf16.mxu0 0
  %1546 = vmatmul.mubr.bf16.gmra.mrb[0].mxu0 %v1234
  %v1547 = vpop.f32.mrb[0].mxu0
  %v1548 = vadd.f32 0.0, %v1547
  %v1549 = vpop.f32.mrb[0].mxu0
  %v1550 = vpop.f32.mrb[0].mxu0
  %v1551 = vadd.f32 0.0, %v1550
  %v1552 = vpop.f32.mrb[0].mxu0
  %1553 = vmatprep.mubr.bf16.mxu0 0
  %1554 = vmatmul.mubr.bf16.gmra.mrb[0].mxu0 %v1235
  %v1555 = vpop.f32.mrb[0].mxu0
  %v1556 = vadd.f32 0.0, %v1555
  %v1557 = vpop.f32.mrb[0].mxu0
  %v1558 = vpop.f32.mrb[0].mxu0
  %v1559 = vadd.f32 0.0, %v1558
  %v1560 = vpop.f32.mrb[0].mxu0
  %1561 = vmatprep.mubr.bf16.mxu0 0
  %1562 = vmatmul.mubr.bf16.gmra.mrb[0].mxu0 %v1236
  %v1563 = vpop.f32.mrb[0].mxu0
  %v1564 = vadd.f32 0.0, %v1563
  %v1565 = vpop.f32.mrb[0].mxu0
  %v1566 = vpop.f32.mrb[0].mxu0
  %v1567 = vadd.f32 0.0, %v1566
  %v1568 = vpop.f32.mrb[0].mxu0
  %1569 = vmatprep.mubr.bf16.mxu0 0
  %1570 = vmatmul.mubr.bf16.gmra.mrb[0].mxu0 %v1237
  %v1571 = vpop.f32.mrb[0].mxu0
  %v1572 = vadd.f32 0.0, %v1571
  %v1573 = vpop.f32.mrb[0].mxu0
  %v1574 = vpop.f32.mrb[0].mxu0
  %v1575 = vadd.f32 0.0, %v1574
  %v1576 = vpop.f32.mrb[0].mxu0
  %1577 = vmatprep.mubr.bf16.mxu0 0
  %1578 = vmatmul.mubr.bf16.gmra.mrb[0].mxu0 %v1238
  %v1579 = vpop.f32.mrb[0].mxu0
  %v1580 = vadd.f32 0.0, %v1579
  %v1581 = vpop.f32.mrb[0].mxu0
  %v1582 = vpop.f32.mrb[0].mxu0
  %v1583 = vadd.f32 0.0, %v1582
  %v1584 = vpop.f32.mrb[0].mxu0
  %1585 = vmatprep.mubr.bf16.mxu0 0
  %1586 = vmatmul.mubr.bf16.gmra.mrb[0].mxu0 %v1239
  %v1587 = vpop.f32.mrb[0].mxu0
  %v1588 = vadd.f32 0.0, %v1587
  %v1589 = vpop.f32.mrb[0].mxu0
  %v1590 = vpop.f32.mrb[0].mxu0
  %v1591 = vadd.f32 0.0, %v1590
  %v1592 = vpop.f32.mrb[0].mxu0
  %1593 = vdwg.mxu0
  %v1594 = vadd.f32 %v890, %v1340
  %v1595 = vadd.f32 %v893, %v1343
  %v1596 = vadd.f32 %v898, %v1348
  %v1597 = vadd.f32 %v901, %v1351
  %v1598 = vadd.f32 %v906, %v1356
  %v1599 = vadd.f32 %v909, %v1359
  %v1600 = vadd.f32 %v914, %v1364
  %v1601 = vadd.f32 %v917, %v1367
  %v1602 = vadd.f32 %v922, %v1372
  %v1603 = vadd.f32 %v925, %v1375
  %v1604 = vadd.f32 %v930, %v1380
  %v1605 = vadd.f32 %v933, %v1383
  %v1606 = vadd.f32 %v938, %v1388
  %v1607 = vadd.f32 %v941, %v1391
  %v1608 = vadd.f32 %v946, %v1396
  %v1609 = vadd.f32 %v949, %v1399
  %v1610 = vadd.f32 %v954, %v1404
  %v1611 = vadd.f32 %v957, %v1407
  %v1612 = vadd.f32 %v962, %v1412
  %v1613 = vadd.f32 %v965, %v1415
  %v1614 = vadd.f32 %v970, %v1420
  %v1615 = vadd.f32 %v973, %v1423
  %v1616 = vadd.f32 %v978, %v1428
  %v1617 = vadd.f32 %v981, %v1431
  %v1618 = vadd.f32 %v986, %v1436
  %v1619 = vadd.f32 %v989, %v1439
  %v1620 = vadd.f32 %v994, %v1444
  %v1621 = vadd.f32 %v997, %v1447
  %v1622 = vadd.f32 %v1002, %v1452
  %v1623 = vadd.f32 %v1005, %v1455
  %v1624 = vadd.f32 %v1010, %v1460
  %v1625 = vadd.f32 %v1013, %v1463
  %v1626 = vadd.f32 %v1018, %v1468
  %v1627 = vadd.f32 %v1021, %v1471
  %v1628 = vadd.f32 %v1026, %v1476
  %v1629 = vadd.f32 %v1029, %v1479
  %v1630 = vadd.f32 %v1034, %v1484
  %v1631 = vadd.f32 %v1037, %v1487
  %v1632 = vadd.f32 %v1042, %v1492
  %v1633 = vadd.f32 %v1045, %v1495
  %v1634 = vadd.f32 %v1050, %v1500
  %v1635 = vadd.f32 %v1053, %v1503
  %v1636 = vadd.f32 %v1058, %v1508
  %v1637 = vadd.f32 %v1061, %v1511
  %v1638 = vadd.f32 %v1066, %v1516
  %v1639 = vadd.f32 %v1069, %v1519
  %v1640 = vadd.f32 %v1074, %v1524
  %v1641 = vadd.f32 %v1077, %v1527
  %v1642 = vadd.f32 %v1082, %v1532
  %v1643 = vadd.f32 %v1085, %v1535
  %v1644 = vadd.f32 %v1090, %v1540
  %v1645 = vadd.f32 %v1093, %v1543
  %v1646 = vadd.f32 %v1098, %v1548
  %v1647 = vadd.f32 %v1101, %v1551
  %v1648 = vadd.f32 %v1106, %v1556
  %v1649 = vadd.f32 %v1109, %v1559
  %v1650 = vadd.f32 %v1114, %v1564
  %v1651 = vadd.f32 %v1117, %v1567
  %v1652 = vadd.f32 %v1122, %v1572
  %v1653 = vadd.f32 %v1125, %v1575
  %v1654 = vadd.f32 %v1130, %v1580
  %v1655 = vadd.f32 %v1133, %v1583
  %v1656 = vadd.f32 %v1138, %v1588
  %v1657 = vadd.f32 %v1141, %v1591
  %v1658 = vld [vmem:[%s180 + $0x7] sm:$0xff]
  %v1659 = vld [vmem:[%s180 + $0xf] sm:$0xff]
  %v1660 = vld [vmem:[%s180 + $0x27] sm:$0xff]
  %v1661 = vld [vmem:[%s180 + $0x2f] sm:$0xff]
  %v1662 = vld [vmem:[%s180 + $0x47] sm:$0xff]
  %v1663 = vld [vmem:[%s180 + $0x4f] sm:$0xff]
  %v1664 = vld [vmem:[%s180 + $0x67] sm:$0xff]
  %v1665 = vld [vmem:[%s180 + $0x6f] sm:$0xff]
  %v1666 = vld [vmem:[%s180 + $0x87] sm:$0xff]
  %v1667 = vld [vmem:[%s180 + $0x8f] sm:$0xff]
  %v1668 = vld [vmem:[%s180 + $0xa7] sm:$0xff]
  %v1669 = vld [vmem:[%s180 + $0xaf] sm:$0xff]
  %v1670 = vld [vmem:[%s180 + $0xc7] sm:$0xff]
  %v1671 = vld [vmem:[%s180 + $0xcf] sm:$0xff]
  %v1672 = vld [vmem:[%s180 + $0xe7] sm:$0xff]
  %v1673 = vld [vmem:[%s180 + $0xef] sm:$0xff]
  %v1674 = vld [vmem:[%s180 + $0x107] sm:$0xff]
  %v1675 = vld [vmem:[%s180 + $0x10f] sm:$0xff]
  %v1676 = vld [vmem:[%s180 + $0x127] sm:$0xff]
  %v1677 = vld [vmem:[%s180 + $0x12f] sm:$0xff]
  %v1678 = vld [vmem:[%s180 + $0x147] sm:$0xff]
  %v1679 = vld [vmem:[%s180 + $0x14f] sm:$0xff]
  %v1680 = vld [vmem:[%s180 + $0x167] sm:$0xff]
  %v1681 = vld [vmem:[%s180 + $0x16f] sm:$0xff]
  %v1682 = vld [vmem:[%s180 + $0x187] sm:$0xff]
  %v1683 = vld [vmem:[%s180 + $0x18f] sm:$0xff]
  %v1684 = vld [vmem:[%s180 + $0x1a7] sm:$0xff]
  %v1685 = vld [vmem:[%s180 + $0x1af] sm:$0xff]
  %v1686 = vld [vmem:[%s180 + $0x1c7] sm:$0xff]
  %v1687 = vld [vmem:[%s180 + $0x1cf] sm:$0xff]
  %v1688 = vld [vmem:[%s180 + $0x1e7] sm:$0xff]
  %v1689 = vld [vmem:[%s180 + $0x1ef] sm:$0xff]
  %v1690 = vld [vmem:[%s180 + $0x247] sm:$0xff]
  %v1691 = vld [vmem:[%s180 + $0x24f] sm:$0xff]
  %v1692 = vld [vmem:[%s180 + $0x267] sm:$0xff]
  %v1693 = vld [vmem:[%s180 + $0x26f] sm:$0xff]
  %v1694 = vld [vmem:[%s180 + $0x287] sm:$0xff]
  %v1695 = vld [vmem:[%s180 + $0x28f] sm:$0xff]
  %v1696 = vld [vmem:[%s180 + $0x2a7] sm:$0xff]
  %v1697 = vld [vmem:[%s180 + $0x2af] sm:$0xff]
  %v1698 = vld [vmem:[%s180 + $0x2c7] sm:$0xff]
  %v1699 = vld [vmem:[%s180 + $0x2cf] sm:$0xff]
  %v1700 = vld [vmem:[%s180 + $0x2e7] sm:$0xff]
  %v1701 = vld [vmem:[%s180 + $0x2ef] sm:$0xff]
  %v1702 = vld [vmem:[%s180 + $0x307] sm:$0xff]
  %v1703 = vld [vmem:[%s180 + $0x30f] sm:$0xff]
  %v1704 = vld [vmem:[%s180 + $0x327] sm:$0xff]
  %v1705 = vld [vmem:[%s180 + $0x32f] sm:$0xff]
  %v1706 = vld [vmem:[%s180 + $0x347] sm:$0xff]
  %v1707 = vld [vmem:[%s180 + $0x34f] sm:$0xff]
  %v1708 = vld [vmem:[%s180 + $0x367] sm:$0xff]
  %v1709 = vld [vmem:[%s180 + $0x36f] sm:$0xff]
  %v1710 = vld [vmem:[%s180 + $0x387] sm:$0xff]
  %v1711 = vld [vmem:[%s180 + $0x38f] sm:$0xff]
  %v1712 = vld [vmem:[%s180 + $0x3a7] sm:$0xff]
  %v1713 = vld [vmem:[%s180 + $0x3af] sm:$0xff]
  %v1714 = vld [vmem:[%s180 + $0x3c7] sm:$0xff]
  %v1715 = vld [vmem:[%s180 + $0x3cf] sm:$0xff]
  %v1716 = vld [vmem:[%s180 + $0x3e7] sm:$0xff]
  %v1717 = vld [vmem:[%s180 + $0x3ef] sm:$0xff]
  %v1718 = vld [vmem:[%s180 + $0x407] sm:$0xff]
  %v1719 = vld [vmem:[%s180 + $0x40f] sm:$0xff]
  %v1720 = vld [vmem:[%s180 + $0x427] sm:$0xff]
  %v1721 = vld [vmem:[%s180 + $0x42f] sm:$0xff]
  %v1722 = vpack.c.bf16 %v1659, %v1658
  %v1723 = vpack.c.bf16 %v1661, %v1660
  %v1724 = vpack.c.bf16 %v1663, %v1662
  %v1725 = vpack.c.bf16 %v1665, %v1664
  %v1726 = vpack.c.bf16 %v1667, %v1666
  %v1727 = vpack.c.bf16 %v1669, %v1668
  %v1728 = vpack.c.bf16 %v1671, %v1670
  %v1729 = vpack.c.bf16 %v1673, %v1672
  %v1730 = vpack.c.bf16 %v1675, %v1674
  %v1731 = vpack.c.bf16 %v1677, %v1676
  %v1732 = vpack.c.bf16 %v1679, %v1678
  %v1733 = vpack.c.bf16 %v1681, %v1680
  %v1734 = vpack.c.bf16 %v1683, %v1682
  %v1735 = vpack.c.bf16 %v1685, %v1684
  %v1736 = vpack.c.bf16 %v1687, %v1686
  %v1737 = vpack.c.bf16 %v1689, %v1688
  %v1738 = vpack.c.bf16 %v1691, %v1690
  %v1739 = vpack.c.bf16 %v1693, %v1692
  %v1740 = vpack.c.bf16 %v1695, %v1694
  %v1741 = vpack.c.bf16 %v1697, %v1696
  %v1742 = vpack.c.bf16 %v1699, %v1698
  %v1743 = vpack.c.bf16 %v1701, %v1700
  %v1744 = vpack.c.bf16 %v1703, %v1702
  %v1745 = vpack.c.bf16 %v1705, %v1704
  %v1746 = vpack.c.bf16 %v1707, %v1706
  %v1747 = vpack.c.bf16 %v1709, %v1708
  %v1748 = vpack.c.bf16 %v1711, %v1710
  %v1749 = vpack.c.bf16 %v1713, %v1712
  %v1750 = vpack.c.bf16 %v1715, %v1714
  %v1751 = vpack.c.bf16 %v1717, %v1716
  %v1752 = vpack.c.bf16 %v1719, %v1718
  %v1753 = vpack.c.bf16 %v1721, %v1720
  %s1754 = scalar_lea.vmem %s1, 192
  %v1755 = vld [vmem:[%s1754] sm:$0xf]
  %v1756 = vld [vmem:[%s1754 + $0x4] sm:$0xf]
  %v1757 = vld [vmem:[%s1754 + $0x8] sm:$0xf]
  %v1758 = vld [vmem:[%s1754 + $0xc] sm:$0xf]
  %v1759 = vld [vmem:[%s1754 + $0x10] sm:$0xf]
  %v1760 = vld [vmem:[%s1754 + $0x14] sm:$0xf]
  %v1761 = vld [vmem:[%s1754 + $0x18] sm:$0xf]
  %v1762 = vld [vmem:[%s1754 + $0x1c] sm:$0xf]
  %v1763 = vld [vmem:[%s1754 + $0x20] sm:$0xf]
  %v1764 = vld [vmem:[%s1754 + $0x24] sm:$0xf]
  %v1765 = vld [vmem:[%s1754 + $0x28] sm:$0xf]
  %v1766 = vld [vmem:[%s1754 + $0x2c] sm:$0xf]
  %v1767 = vld [vmem:[%s1754 + $0x30] sm:$0xf]
  %v1768 = vld [vmem:[%s1754 + $0x34] sm:$0xf]
  %v1769 = vld [vmem:[%s1754 + $0x38] sm:$0xf]
  %v1770 = vld [vmem:[%s1754 + $0x3c] sm:$0xf]
  %v1787 = vunpack.c.l.b16 %v1755
  %v1788 = vunpack.c.l.b16 %v1756
  %v1789 = vunpack.c.l.b16 %v1757
  %v1790 = vunpack.c.l.b16 %v1758
  %v1791 = vunpack.c.l.b16 %v1759
  %v1792 = vunpack.c.l.b16 %v1760
  %v1793 = vunpack.c.l.b16 %v1761
  %v1794 = vunpack.c.l.b16 %v1762
  %v1795 = vunpack.c.l.b16 %v1763
  %v1796 = vunpack.c.l.b16 %v1764
  %v1797 = vunpack.c.l.b16 %v1765
  %v1798 = vunpack.c.l.b16 %v1766
  %v1799 = vunpack.c.l.b16 %v1767
  %v1800 = vunpack.c.l.b16 %v1768
  %v1801 = vunpack.c.l.b16 %v1769
  %v1802 = vunpack.c.l.b16 %v1770
  %v1803 = vpack.c.b16 %v1788, %v1787
  %v1804 = vpack.c.b16 %v1790, %v1789
  %v1805 = vpack.c.b16 %v1792, %v1791
  %v1806 = vpack.c.b16 %v1794, %v1793
  %v1807 = vpack.c.b16 %v1796, %v1795
  %v1808 = vpack.c.b16 %v1798, %v1797
  %v1809 = vpack.c.b16 %v1800, %v1799
  %v1810 = vpack.c.b16 %v1802, %v1801
  %1819 = vmatprep.subr.bf16.mxu0 0
  %1820 = vmatpush1.bf16.msra.mxu0 %v1803
  %1821 = vmatprep.subr.bf16.mxu0 0
  %1822 = vmatpush1.bf16.msra.mxu0 %v1804
  %1823 = vmatprep.subr.bf16.mxu0 0
  %1824 = vmatpush1.bf16.msra.mxu0 %v1805
  %1825 = vmatprep.subr.bf16.mxu0 0
  %1826 = vmatpush1.bf16.msra.mxu0 %v1806
  %1827 = vmatprep.subr.bf16.mxu0 0
  %1828 = vmatpush1.bf16.msra.mxu0 %v1807
  %1829 = vmatprep.subr.bf16.mxu0 0
  %1830 = vmatpush1.bf16.msra.mxu0 %v1808
  %1831 = vmatprep.subr.bf16.mxu0 0
  %1832 = vmatpush1.bf16.msra.mxu0 %v1809
  %1833 = vmatprep.subr.bf16.mxu0 0
  %1834 = vmatpush1.bf16.msra.mxu0 %v1810
  %1835 = vmatprep.subr.bf16.mxu0 0
  %1836 = vmatpush1.bf16.msra.mxu0 0
  %1837 = vmatprep.subr.bf16.mxu0 0
  %1838 = vmatpush1.bf16.msra.mxu0 0
  %1839 = vmatprep.subr.bf16.mxu0 0
  %1840 = vmatpush1.bf16.msra.mxu0 0
  %1841 = vmatprep.subr.bf16.mxu0 0
  %1842 = vmatpush1.bf16.msra.mxu0 0
  %1843 = vmatprep.subr.bf16.mxu0 0
  %1844 = vmatpush1.bf16.msra.mxu0 0
  %1845 = vmatprep.subr.bf16.mxu0 0
  %1846 = vmatpush1.bf16.msra.mxu0 0
  %1847 = vmatprep.subr.bf16.mxu0 0
  %1848 = vmatpush1.bf16.msra.mxu0 0
  %1849 = vmatprep.subr.bf16.mxu0 0
  %1850 = vmatpush1.bf16.msra.mxu0 0
  %1851 = vmatprep.mubr.bf16.mxu0 0
  %1852 = vmatmul.mubr.bf16.gmra.mrb[0].mxu0 %v1722
  %v1853 = vpop.f32.mrb[0].mxu0
  %v1854 = vadd.f32 0.0, %v1853
  %v1855 = vpop.f32.mrb[0].mxu0
  %v1856 = vpop.f32.mrb[0].mxu0
  %v1857 = vadd.f32 0.0, %v1856
  %v1858 = vpop.f32.mrb[0].mxu0
  %1859 = vmatprep.mubr.bf16.mxu0 0
  %1860 = vmatmul.mubr.bf16.gmra.mrb[0].mxu0 %v1723
  %v1861 = vpop.f32.mrb[0].mxu0
  %v1862 = vadd.f32 0.0, %v1861
  %v1863 = vpop.f32.mrb[0].mxu0
  %v1864 = vpop.f32.mrb[0].mxu0
  %v1865 = vadd.f32 0.0, %v1864
  %v1866 = vpop.f32.mrb[0].mxu0
  %1867 = vmatprep.mubr.bf16.mxu0 0
  %1868 = vmatmul.mubr.bf16.gmra.mrb[0].mxu0 %v1724
  %v1869 = vpop.f32.mrb[0].mxu0
  %v1870 = vadd.f32 0.0, %v1869
  %v1871 = vpop.f32.mrb[0].mxu0
  %v1872 = vpop.f32.mrb[0].mxu0
  %v1873 = vadd.f32 0.0, %v1872
  %v1874 = vpop.f32.mrb[0].mxu0
  %1875 = vmatprep.mubr.bf16.mxu0 0
  %1876 = vmatmul.mubr.bf16.gmra.mrb[0].mxu0 %v1725
  %v1877 = vpop.f32.mrb[0].mxu0
  %v1878 = vadd.f32 0.0, %v1877
  %v1879 = vpop.f32.mrb[0].mxu0
  %v1880 = vpop.f32.mrb[0].mxu0
  %v1881 = vadd.f32 0.0, %v1880
  %v1882 = vpop.f32.mrb[0].mxu0
  %1883 = vmatprep.mubr.bf16.mxu0 0
  %1884 = vmatmul.mubr.bf16.gmra.mrb[0].mxu0 %v1726
  %v1885 = vpop.f32.mrb[0].mxu0
  %v1886 = vadd.f32 0.0, %v1885
  %v1887 = vpop.f32.mrb[0].mxu0
  %v1888 = vpop.f32.mrb[0].mxu0
  %v1889 = vadd.f32 0.0, %v1888
  %v1890 = vpop.f32.mrb[0].mxu0
  %1891 = vmatprep.mubr.bf16.mxu0 0
  %1892 = vmatmul.mubr.bf16.gmra.mrb[0].mxu0 %v1727
  %v1893 = vpop.f32.mrb[0].mxu0
  %v1894 = vadd.f32 0.0, %v1893
  %v1895 = vpop.f32.mrb[0].mxu0
  %v1896 = vpop.f32.mrb[0].mxu0
  %v1897 = vadd.f32 0.0, %v1896
  %v1898 = vpop.f32.mrb[0].mxu0
  %1899 = vmatprep.mubr.bf16.mxu0 0
  %1900 = vmatmul.mubr.bf16.gmra.mrb[0].mxu0 %v1728
  %v1901 = vpop.f32.mrb[0].mxu0
  %v1902 = vadd.f32 0.0, %v1901
  %v1903 = vpop.f32.mrb[0].mxu0
  %v1904 = vpop.f32.mrb[0].mxu0
  %v1905 = vadd.f32 0.0, %v1904
  %v1906 = vpop.f32.mrb[0].mxu0
  %1907 = vmatprep.mubr.bf16.mxu0 0
  %1908 = vmatmul.mubr.bf16.gmra.mrb[0].mxu0 %v1729
  %v1909 = vpop.f32.mrb[0].mxu0
  %v1910 = vadd.f32 0.0, %v1909
  %v1911 = vpop.f32.mrb[0].mxu0
  %v1912 = vpop.f32.mrb[0].mxu0
  %v1913 = vadd.f32 0.0, %v1912
  %v1914 = vpop.f32.mrb[0].mxu0
  %1915 = vmatprep.mubr.bf16.mxu0 0
  %1916 = vmatmul.mubr.bf16.gmra.mrb[0].mxu0 %v1730
  %v1917 = vpop.f32.mrb[0].mxu0
  %v1918 = vadd.f32 0.0, %v1917
  %v1919 = vpop.f32.mrb[0].mxu0
  %v1920 = vpop.f32.mrb[0].mxu0
  %v1921 = vadd.f32 0.0, %v1920
  %v1922 = vpop.f32.mrb[0].mxu0
  %1923 = vmatprep.mubr.bf16.mxu0 0
  %1924 = vmatmul.mubr.bf16.gmra.mrb[0].mxu0 %v1731
  %v1925 = vpop.f32.mrb[0].mxu0
  %v1926 = vadd.f32 0.0, %v1925
  %v1927 = vpop.f32.mrb[0].mxu0
  %v1928 = vpop.f32.mrb[0].mxu0
  %v1929 = vadd.f32 0.0, %v1928
  %v1930 = vpop.f32.mrb[0].mxu0
  %1931 = vmatprep.mubr.bf16.mxu0 0
  %1932 = vmatmul.mubr.bf16.gmra.mrb[0].mxu0 %v1732
  %v1933 = vpop.f32.mrb[0].mxu0
  %v1934 = vadd.f32 0.0, %v1933
  %v1935 = vpop.f32.mrb[0].mxu0
  %v1936 = vpop.f32.mrb[0].mxu0
  %v1937 = vadd.f32 0.0, %v1936
  %v1938 = vpop.f32.mrb[0].mxu0
  %1939 = vmatprep.mubr.bf16.mxu0 0
  %1940 = vmatmul.mubr.bf16.gmra.mrb[0].mxu0 %v1733
  %v1941 = vpop.f32.mrb[0].mxu0
  %v1942 = vadd.f32 0.0, %v1941
  %v1943 = vpop.f32.mrb[0].mxu0
  %v1944 = vpop.f32.mrb[0].mxu0
  %v1945 = vadd.f32 0.0, %v1944
  %v1946 = vpop.f32.mrb[0].mxu0
  %1947 = vmatprep.mubr.bf16.mxu0 0
  %1948 = vmatmul.mubr.bf16.gmra.mrb[0].mxu0 %v1734
  %v1949 = vpop.f32.mrb[0].mxu0
  %v1950 = vadd.f32 0.0, %v1949
  %v1951 = vpop.f32.mrb[0].mxu0
  %v1952 = vpop.f32.mrb[0].mxu0
  %v1953 = vadd.f32 0.0, %v1952
  %v1954 = vpop.f32.mrb[0].mxu0
  %1955 = vmatprep.mubr.bf16.mxu0 0
  %1956 = vmatmul.mubr.bf16.gmra.mrb[0].mxu0 %v1735
  %v1957 = vpop.f32.mrb[0].mxu0
  %v1958 = vadd.f32 0.0, %v1957
  %v1959 = vpop.f32.mrb[0].mxu0
  %v1960 = vpop.f32.mrb[0].mxu0
  %v1961 = vadd.f32 0.0, %v1960
  %v1962 = vpop.f32.mrb[0].mxu0
  %1963 = vmatprep.mubr.bf16.mxu0 0
  %1964 = vmatmul.mubr.bf16.gmra.mrb[0].mxu0 %v1736
  %v1965 = vpop.f32.mrb[0].mxu0
  %v1966 = vadd.f32 0.0, %v1965
  %v1967 = vpop.f32.mrb[0].mxu0
  %v1968 = vpop.f32.mrb[0].mxu0
  %v1969 = vadd.f32 0.0, %v1968
  %v1970 = vpop.f32.mrb[0].mxu0
  %1971 = vmatprep.mubr.bf16.mxu0 0
  %1972 = vmatmul.mubr.bf16.gmra.mrb[0].mxu0 %v1737
  %v1973 = vpop.f32.mrb[0].mxu0
  %v1974 = vadd.f32 0.0, %v1973
  %v1975 = vpop.f32.mrb[0].mxu0
  %v1976 = vpop.f32.mrb[0].mxu0
  %v1977 = vadd.f32 0.0, %v1976
  %v1978 = vpop.f32.mrb[0].mxu0
  %1979 = vmatprep.mubr.bf16.mxu0 0
  %1980 = vmatmul.mubr.bf16.gmra.mrb[0].mxu0 %v1738
  %v1981 = vpop.f32.mrb[0].mxu0
  %v1982 = vadd.f32 0.0, %v1981
  %v1983 = vpop.f32.mrb[0].mxu0
  %v1984 = vpop.f32.mrb[0].mxu0
  %v1985 = vadd.f32 0.0, %v1984
  %v1986 = vpop.f32.mrb[0].mxu0
  %1987 = vmatprep.mubr.bf16.mxu0 0
  %1988 = vmatmul.mubr.bf16.gmra.mrb[0].mxu0 %v1739
  %v1989 = vpop.f32.mrb[0].mxu0
  %v1990 = vadd.f32 0.0, %v1989
  %v1991 = vpop.f32.mrb[0].mxu0
  %v1992 = vpop.f32.mrb[0].mxu0
  %v1993 = vadd.f32 0.0, %v1992
  %v1994 = vpop.f32.mrb[0].mxu0
  %1995 = vmatprep.mubr.bf16.mxu0 0
  %1996 = vmatmul.mubr.bf16.gmra.mrb[0].mxu0 %v1740
  %v1997 = vpop.f32.mrb[0].mxu0
  %v1998 = vadd.f32 0.0, %v1997
  %v1999 = vpop.f32.mrb[0].mxu0
  %v2000 = vpop.f32.mrb[0].mxu0
  %v2001 = vadd.f32 0.0, %v2000
  %v2002 = vpop.f32.mrb[0].mxu0
  %2003 = vmatprep.mubr.bf16.mxu0 0
  %2004 = vmatmul.mubr.bf16.gmra.mrb[0].mxu0 %v1741
  %v2005 = vpop.f32.mrb[0].mxu0
  %v2006 = vadd.f32 0.0, %v2005
  %v2007 = vpop.f32.mrb[0].mxu0
  %v2008 = vpop.f32.mrb[0].mxu0
  %v2009 = vadd.f32 0.0, %v2008
  %v2010 = vpop.f32.mrb[0].mxu0
  %2011 = vmatprep.mubr.bf16.mxu0 0
  %2012 = vmatmul.mubr.bf16.gmra.mrb[0].mxu0 %v1742
  %v2013 = vpop.f32.mrb[0].mxu0
  %v2014 = vadd.f32 0.0, %v2013
  %v2015 = vpop.f32.mrb[0].mxu0
  %v2016 = vpop.f32.mrb[0].mxu0
  %v2017 = vadd.f32 0.0, %v2016
  %v2018 = vpop.f32.mrb[0].mxu0
  %2019 = vmatprep.mubr.bf16.mxu0 0
  %2020 = vmatmul.mubr.bf16.gmra.mrb[0].mxu0 %v1743
  %v2021 = vpop.f32.mrb[0].mxu0
  %v2022 = vadd.f32 0.0, %v2021
  %v2023 = vpop.f32.mrb[0].mxu0
  %v2024 = vpop.f32.mrb[0].mxu0
  %v2025 = vadd.f32 0.0, %v2024
  %v2026 = vpop.f32.mrb[0].mxu0
  %2027 = vmatprep.mubr.bf16.mxu0 0
  %2028 = vmatmul.mubr.bf16.gmra.mrb[0].mxu0 %v1744
  %v2029 = vpop.f32.mrb[0].mxu0
  %v2030 = vadd.f32 0.0, %v2029
  %v2031 = vpop.f32.mrb[0].mxu0
  %v2032 = vpop.f32.mrb[0].mxu0
  %v2033 = vadd.f32 0.0, %v2032
  %v2034 = vpop.f32.mrb[0].mxu0
  %2035 = vmatprep.mubr.bf16.mxu0 0
  %2036 = vmatmul.mubr.bf16.gmra.mrb[0].mxu0 %v1745
  %v2037 = vpop.f32.mrb[0].mxu0
  %v2038 = vadd.f32 0.0, %v2037
  %v2039 = vpop.f32.mrb[0].mxu0
  %v2040 = vpop.f32.mrb[0].mxu0
  %v2041 = vadd.f32 0.0, %v2040
  %v2042 = vpop.f32.mrb[0].mxu0
  %2043 = vmatprep.mubr.bf16.mxu0 0
  %2044 = vmatmul.mubr.bf16.gmra.mrb[0].mxu0 %v1746
  %v2045 = vpop.f32.mrb[0].mxu0
  %v2046 = vadd.f32 0.0, %v2045
  %v2047 = vpop.f32.mrb[0].mxu0
  %v2048 = vpop.f32.mrb[0].mxu0
  %v2049 = vadd.f32 0.0, %v2048
  %v2050 = vpop.f32.mrb[0].mxu0
  %2051 = vmatprep.mubr.bf16.mxu0 0
  %2052 = vmatmul.mubr.bf16.gmra.mrb[0].mxu0 %v1747
  %v2053 = vpop.f32.mrb[0].mxu0
  %v2054 = vadd.f32 0.0, %v2053
  %v2055 = vpop.f32.mrb[0].mxu0
  %v2056 = vpop.f32.mrb[0].mxu0
  %v2057 = vadd.f32 0.0, %v2056
  %v2058 = vpop.f32.mrb[0].mxu0
  %2059 = vmatprep.mubr.bf16.mxu0 0
  %2060 = vmatmul.mubr.bf16.gmra.mrb[0].mxu0 %v1748
  %v2061 = vpop.f32.mrb[0].mxu0
  %v2062 = vadd.f32 0.0, %v2061
  %v2063 = vpop.f32.mrb[0].mxu0
  %v2064 = vpop.f32.mrb[0].mxu0
  %v2065 = vadd.f32 0.0, %v2064
  %v2066 = vpop.f32.mrb[0].mxu0
  %2067 = vmatprep.mubr.bf16.mxu0 0
  %2068 = vmatmul.mubr.bf16.gmra.mrb[0].mxu0 %v1749
  %v2069 = vpop.f32.mrb[0].mxu0
  %v2070 = vadd.f32 0.0, %v2069
  %v2071 = vpop.f32.mrb[0].mxu0
  %v2072 = vpop.f32.mrb[0].mxu0
  %v2073 = vadd.f32 0.0, %v2072
  %v2074 = vpop.f32.mrb[0].mxu0
  %2075 = vmatprep.mubr.bf16.mxu0 0
  %2076 = vmatmul.mubr.bf16.gmra.mrb[0].mxu0 %v1750
  %v2077 = vpop.f32.mrb[0].mxu0
  %v2078 = vadd.f32 0.0, %v2077
  %v2079 = vpop.f32.mrb[0].mxu0
  %v2080 = vpop.f32.mrb[0].mxu0
  %v2081 = vadd.f32 0.0, %v2080
  %v2082 = vpop.f32.mrb[0].mxu0
  %2083 = vmatprep.mubr.bf16.mxu0 0
  %2084 = vmatmul.mubr.bf16.gmra.mrb[0].mxu0 %v1751
  %v2085 = vpop.f32.mrb[0].mxu0
  %v2086 = vadd.f32 0.0, %v2085
  %v2087 = vpop.f32.mrb[0].mxu0
  %v2088 = vpop.f32.mrb[0].mxu0
  %v2089 = vadd.f32 0.0, %v2088
  %v2090 = vpop.f32.mrb[0].mxu0
  %2091 = vmatprep.mubr.bf16.mxu0 0
  %2092 = vmatmul.mubr.bf16.gmra.mrb[0].mxu0 %v1752
  %v2093 = vpop.f32.mrb[0].mxu0
  %v2094 = vadd.f32 0.0, %v2093
  %v2095 = vpop.f32.mrb[0].mxu0
  %v2096 = vpop.f32.mrb[0].mxu0
  %v2097 = vadd.f32 0.0, %v2096
  %v2098 = vpop.f32.mrb[0].mxu0
  %2099 = vmatprep.mubr.bf16.mxu0 0
  %2100 = vmatmul.mubr.bf16.gmra.mrb[0].mxu0 %v1753
  %v2101 = vpop.f32.mrb[0].mxu0
  %v2102 = vadd.f32 0.0, %v2101
  %v2103 = vpop.f32.mrb[0].mxu0
  %v2104 = vpop.f32.mrb[0].mxu0
  %v2105 = vadd.f32 0.0, %v2104
  %v2106 = vpop.f32.mrb[0].mxu0
  %2107 = vdwg.mxu0
  %v2108 = vadd.f32 %v1594, %v1854
  %v2109 = vadd.f32 %v1595, %v1857
  %v2110 = vadd.f32 %v1596, %v1862
  %v2111 = vadd.f32 %v1597, %v1865
  %v2112 = vadd.f32 %v1598, %v1870
  %v2113 = vadd.f32 %v1599, %v1873
  %v2114 = vadd.f32 %v1600, %v1878
  %v2115 = vadd.f32 %v1601, %v1881
  %v2116 = vadd.f32 %v1602, %v1886
  %v2117 = vadd.f32 %v1603, %v1889
  %v2118 = vadd.f32 %v1604, %v1894
  %v2119 = vadd.f32 %v1605, %v1897
  %v2120 = vadd.f32 %v1606, %v1902
  %v2121 = vadd.f32 %v1607, %v1905
  %v2122 = vadd.f32 %v1608, %v1910
  %v2123 = vadd.f32 %v1609, %v1913
  %v2124 = vadd.f32 %v1610, %v1918
  %v2125 = vadd.f32 %v1611, %v1921
  %v2126 = vadd.f32 %v1612, %v1926
  %v2127 = vadd.f32 %v1613, %v1929
  %v2128 = vadd.f32 %v1614, %v1934
  %v2129 = vadd.f32 %v1615, %v1937
  %v2130 = vadd.f32 %v1616, %v1942
  %v2131 = vadd.f32 %v1617, %v1945
  %v2132 = vadd.f32 %v1618, %v1950
  %v2133 = vadd.f32 %v1619, %v1953
  %v2134 = vadd.f32 %v1620, %v1958
  %v2135 = vadd.f32 %v1621, %v1961
  %v2136 = vadd.f32 %v1622, %v1966
  %v2137 = vadd.f32 %v1623, %v1969
  %v2138 = vadd.f32 %v1624, %v1974
  %v2139 = vadd.f32 %v1625, %v1977
  %v2140 = vadd.f32 %v1626, %v1982
  %v2141 = vadd.f32 %v1627, %v1985
  %v2142 = vadd.f32 %v1628, %v1990
  %v2143 = vadd.f32 %v1629, %v1993
  %v2144 = vadd.f32 %v1630, %v1998
  %v2145 = vadd.f32 %v1631, %v2001
  %v2146 = vadd.f32 %v1632, %v2006
  %v2147 = vadd.f32 %v1633, %v2009
  %v2148 = vadd.f32 %v1634, %v2014
  %v2149 = vadd.f32 %v1635, %v2017
  %v2150 = vadd.f32 %v1636, %v2022
  %v2151 = vadd.f32 %v1637, %v2025
  %v2152 = vadd.f32 %v1638, %v2030
  %v2153 = vadd.f32 %v1639, %v2033
  %v2154 = vadd.f32 %v1640, %v2038
  %v2155 = vadd.f32 %v1641, %v2041
  %v2156 = vadd.f32 %v1642, %v2046
  %v2157 = vadd.f32 %v1643, %v2049
  %v2158 = vadd.f32 %v1644, %v2054
  %v2159 = vadd.f32 %v1645, %v2057
  %v2160 = vadd.f32 %v1646, %v2062
  %v2161 = vadd.f32 %v1647, %v2065
  %v2162 = vadd.f32 %v1648, %v2070
  %v2163 = vadd.f32 %v1649, %v2073
  %v2164 = vadd.f32 %v1650, %v2078
  %v2165 = vadd.f32 %v1651, %v2081
  %v2166 = vadd.f32 %v1652, %v2086
  %v2167 = vadd.f32 %v1653, %v2089
  %v2168 = vadd.f32 %v1654, %v2094
  %v2169 = vadd.f32 %v1655, %v2097
  %v2170 = vadd.f32 %v1656, %v2102
  %v2171 = vadd.f32 %v1657, %v2105
  %v2172 = vld [vmem:[%s180 + $0x8] sm:$0xff]
  %v2173 = vld [vmem:[%s180 + $0x10] sm:$0xff]
  %v2174 = vld [vmem:[%s180 + $0x28] sm:$0xff]
  %v2175 = vld [vmem:[%s180 + $0x30] sm:$0xff]
  %v2176 = vld [vmem:[%s180 + $0x48] sm:$0xff]
  %v2177 = vld [vmem:[%s180 + $0x50] sm:$0xff]
  %v2178 = vld [vmem:[%s180 + $0x68] sm:$0xff]
  %v2179 = vld [vmem:[%s180 + $0x70] sm:$0xff]
  %v2180 = vld [vmem:[%s180 + $0x88] sm:$0xff]
  %v2181 = vld [vmem:[%s180 + $0x90] sm:$0xff]
  %v2182 = vld [vmem:[%s180 + $0xa8] sm:$0xff]
  %v2183 = vld [vmem:[%s180 + $0xb0] sm:$0xff]
  %v2184 = vld [vmem:[%s180 + $0xc8] sm:$0xff]
  %v2185 = vld [vmem:[%s180 + $0xd0] sm:$0xff]
  %v2186 = vld [vmem:[%s180 + $0xe8] sm:$0xff]
  %v2187 = vld [vmem:[%s180 + $0xf0] sm:$0xff]
  %v2188 = vld [vmem:[%s180 + $0x108] sm:$0xff]
  %v2189 = vld [vmem:[%s180 + $0x110] sm:$0xff]
  %v2190 = vld [vmem:[%s180 + $0x128] sm:$0xff]
  %v2191 = vld [vmem:[%s180 + $0x130] sm:$0xff]
  %v2192 = vld [vmem:[%s180 + $0x148] sm:$0xff]
  %v2193 = vld [vmem:[%s180 + $0x150] sm:$0xff]
  %v2194 = vld [vmem:[%s180 + $0x168] sm:$0xff]
  %v2195 = vld [vmem:[%s180 + $0x170] sm:$0xff]
  %v2196 = vld [vmem:[%s180 + $0x188] sm:$0xff]
  %v2197 = vld [vmem:[%s180 + $0x190] sm:$0xff]
  %v2198 = vld [vmem:[%s180 + $0x1a8] sm:$0xff]
  %v2199 = vld [vmem:[%s180 + $0x1b0] sm:$0xff]
  %v2200 = vld [vmem:[%s180 + $0x1c8] sm:$0xff]
  %v2201 = vld [vmem:[%s180 + $0x1d0] sm:$0xff]
  %v2202 = vld [vmem:[%s180 + $0x1e8] sm:$0xff]
  %v2203 = vld [vmem:[%s180 + $0x1f0] sm:$0xff]
  %v2204 = vld [vmem:[%s180 + $0x248] sm:$0xff]
  %v2205 = vld [vmem:[%s180 + $0x250] sm:$0xff]
  %v2206 = vld [vmem:[%s180 + $0x268] sm:$0xff]
  %v2207 = vld [vmem:[%s180 + $0x270] sm:$0xff]
  %v2208 = vld [vmem:[%s180 + $0x288] sm:$0xff]
  %v2209 = vld [vmem:[%s180 + $0x290] sm:$0xff]
  %v2210 = vld [vmem:[%s180 + $0x2a8] sm:$0xff]
  %v2211 = vld [vmem:[%s180 + $0x2b0] sm:$0xff]
  %v2212 = vld [vmem:[%s180 + $0x2c8] sm:$0xff]
  %v2213 = vld [vmem:[%s180 + $0x2d0] sm:$0xff]
  %v2214 = vld [vmem:[%s180 + $0x2e8] sm:$0xff]
  %v2215 = vld [vmem:[%s180 + $0x2f0] sm:$0xff]
  %v2216 = vld [vmem:[%s180 + $0x308] sm:$0xff]
  %v2217 = vld [vmem:[%s180 + $0x310] sm:$0xff]
  %v2218 = vld [vmem:[%s180 + $0x328] sm:$0xff]
  %v2219 = vld [vmem:[%s180 + $0x330] sm:$0xff]
  %v2220 = vld [vmem:[%s180 + $0x348] sm:$0xff]
  %v2221 = vld [vmem:[%s180 + $0x350] sm:$0xff]
  %v2222 = vld [vmem:[%s180 + $0x368] sm:$0xff]
  %v2223 = vld [vmem:[%s180 + $0x370] sm:$0xff]
  %v2224 = vld [vmem:[%s180 + $0x388] sm:$0xff]
  %v2225 = vld [vmem:[%s180 + $0x390] sm:$0xff]
  %v2226 = vld [vmem:[%s180 + $0x3a8] sm:$0xff]
  %v2227 = vld [vmem:[%s180 + $0x3b0] sm:$0xff]
  %v2228 = vld [vmem:[%s180 + $0x3c8] sm:$0xff]
  %v2229 = vld [vmem:[%s180 + $0x3d0] sm:$0xff]
  %v2230 = vld [vmem:[%s180 + $0x3e8] sm:$0xff]
  %v2231 = vld [vmem:[%s180 + $0x3f0] sm:$0xff]
  %v2232 = vld [vmem:[%s180 + $0x408] sm:$0xff]
  %v2233 = vld [vmem:[%s180 + $0x410] sm:$0xff]
  %v2234 = vld [vmem:[%s180 + $0x428] sm:$0xff]
  %v2235 = vld [vmem:[%s180 + $0x430] sm:$0xff]
  %v2236 = vpack.c.bf16 %v2173, %v2172
  %v2237 = vpack.c.bf16 %v2175, %v2174
  %v2238 = vpack.c.bf16 %v2177, %v2176
  %v2239 = vpack.c.bf16 %v2179, %v2178
  %v2240 = vpack.c.bf16 %v2181, %v2180
  %v2241 = vpack.c.bf16 %v2183, %v2182
  %v2242 = vpack.c.bf16 %v2185, %v2184
  %v2243 = vpack.c.bf16 %v2187, %v2186
  %v2244 = vpack.c.bf16 %v2189, %v2188
  %v2245 = vpack.c.bf16 %v2191, %v2190
  %v2246 = vpack.c.bf16 %v2193, %v2192
  %v2247 = vpack.c.bf16 %v2195, %v2194
  %v2248 = vpack.c.bf16 %v2197, %v2196
  %v2249 = vpack.c.bf16 %v2199, %v2198
  %v2250 = vpack.c.bf16 %v2201, %v2200
  %v2251 = vpack.c.bf16 %v2203, %v2202
  %v2252 = vpack.c.bf16 %v2205, %v2204
  %v2253 = vpack.c.bf16 %v2207, %v2206
  %v2254 = vpack.c.bf16 %v2209, %v2208
  %v2255 = vpack.c.bf16 %v2211, %v2210
  %v2256 = vpack.c.bf16 %v2213, %v2212
  %v2257 = vpack.c.bf16 %v2215, %v2214
  %v2258 = vpack.c.bf16 %v2217, %v2216
  %v2259 = vpack.c.bf16 %v2219, %v2218
  %v2260 = vpack.c.bf16 %v2221, %v2220
  %v2261 = vpack.c.bf16 %v2223, %v2222
  %v2262 = vpack.c.bf16 %v2225, %v2224
  %v2263 = vpack.c.bf16 %v2227, %v2226
  %v2264 = vpack.c.bf16 %v2229, %v2228
  %v2265 = vpack.c.bf16 %v2231, %v2230
  %v2266 = vpack.c.bf16 %v2233, %v2232
  %v2267 = vpack.c.bf16 %v2235, %v2234
  %s2268 = scalar_lea.vmem %s1, 256
  %v2269 = vld [vmem:[%s2268] sm:$0xf]
  %v2270 = vld [vmem:[%s2268 + $0x4] sm:$0xf]
  %v2271 = vld [vmem:[%s2268 + $0x8] sm:$0xf]
  %v2272 = vld [vmem:[%s2268 + $0xc] sm:$0xf]
  %v2273 = vld [vmem:[%s2268 + $0x10] sm:$0xf]
  %v2274 = vld [vmem:[%s2268 + $0x14] sm:$0xf]
  %v2275 = vld [vmem:[%s2268 + $0x18] sm:$0xf]
  %v2276 = vld [vmem:[%s2268 + $0x1c] sm:$0xf]
  %v2277 = vld [vmem:[%s2268 + $0x20] sm:$0xf]
  %v2278 = vld [vmem:[%s2268 + $0x24] sm:$0xf]
  %v2279 = vld [vmem:[%s2268 + $0x28] sm:$0xf]
  %v2280 = vld [vmem:[%s2268 + $0x2c] sm:$0xf]
  %v2281 = vld [vmem:[%s2268 + $0x30] sm:$0xf]
  %v2282 = vld [vmem:[%s2268 + $0x34] sm:$0xf]
  %v2283 = vld [vmem:[%s2268 + $0x38] sm:$0xf]
  %v2284 = vld [vmem:[%s2268 + $0x3c] sm:$0xf]
  %v2301 = vunpack.c.l.b16 %v2269
  %v2302 = vunpack.c.l.b16 %v2270
  %v2303 = vunpack.c.l.b16 %v2271
  %v2304 = vunpack.c.l.b16 %v2272
  %v2305 = vunpack.c.l.b16 %v2273
  %v2306 = vunpack.c.l.b16 %v2274
  %v2307 = vunpack.c.l.b16 %v2275
  %v2308 = vunpack.c.l.b16 %v2276
  %v2309 = vunpack.c.l.b16 %v2277
  %v2310 = vunpack.c.l.b16 %v2278
  %v2311 = vunpack.c.l.b16 %v2279
  %v2312 = vunpack.c.l.b16 %v2280
  %v2313 = vunpack.c.l.b16 %v2281
  %v2314 = vunpack.c.l.b16 %v2282
  %v2315 = vunpack.c.l.b16 %v2283
  %v2316 = vunpack.c.l.b16 %v2284
  %v2317 = vpack.c.b16 %v2302, %v2301
  %v2318 = vpack.c.b16 %v2304, %v2303
  %v2319 = vpack.c.b16 %v2306, %v2305
  %v2320 = vpack.c.b16 %v2308, %v2307
  %v2321 = vpack.c.b16 %v2310, %v2309
  %v2322 = vpack.c.b16 %v2312, %v2311
  %v2323 = vpack.c.b16 %v2314, %v2313
  %v2324 = vpack.c.b16 %v2316, %v2315
  %2333 = vmatprep.subr.bf16.mxu0 0
  %2334 = vmatpush1.bf16.msra.mxu0 %v2317
  %2335 = vmatprep.subr.bf16.mxu0 0
  %2336 = vmatpush1.bf16.msra.mxu0 %v2318
  %2337 = vmatprep.subr.bf16.mxu0 0
  %2338 = vmatpush1.bf16.msra.mxu0 %v2319
  %2339 = vmatprep.subr.bf16.mxu0 0
  %2340 = vmatpush1.bf16.msra.mxu0 %v2320
  %2341 = vmatprep.subr.bf16.mxu0 0
  %2342 = vmatpush1.bf16.msra.mxu0 %v2321
  %2343 = vmatprep.subr.bf16.mxu0 0
  %2344 = vmatpush1.bf16.msra.mxu0 %v2322
  %2345 = vmatprep.subr.bf16.mxu0 0
  %2346 = vmatpush1.bf16.msra.mxu0 %v2323
  %2347 = vmatprep.subr.bf16.mxu0 0
  %2348 = vmatpush1.bf16.msra.mxu0 %v2324
  %2349 = vmatprep.subr.bf16.mxu0 0
  %2350 = vmatpush1.bf16.msra.mxu0 0
  %2351 = vmatprep.subr.bf16.mxu0 0
  %2352 = vmatpush1.bf16.msra.mxu0 0
  %2353 = vmatprep.subr.bf16.mxu0 0
  %2354 = vmatpush1.bf16.msra.mxu0 0
  %2355 = vmatprep.subr.bf16.mxu0 0
  %2356 = vmatpush1.bf16.msra.mxu0 0
  %2357 = vmatprep.subr.bf16.mxu0 0
  %2358 = vmatpush1.bf16.msra.mxu0 0
  %2359 = vmatprep.subr.bf16.mxu0 0
  %2360 = vmatpush1.bf16.msra.mxu0 0
  %2361 = vmatprep.subr.bf16.mxu0 0
  %2362 = vmatpush1.bf16.msra.mxu0 0
  %2363 = vmatprep.subr.bf16.mxu0 0
  %2364 = vmatpush1.bf16.msra.mxu0 0
  %2365 = vmatprep.mubr.bf16.mxu0 0
  %2366 = vmatmul.mubr.bf16.gmra.mrb[0].mxu0 %v2236
  %v2367 = vpop.f32.mrb[0].mxu0
  %v2368 = vadd.f32 0.0, %v2367
  %v2369 = vpop.f32.mrb[0].mxu0
  %v2370 = vpop.f32.mrb[0].mxu0
  %v2371 = vadd.f32 0.0, %v2370
  %v2372 = vpop.f32.mrb[0].mxu0
  %2373 = vmatprep.mubr.bf16.mxu0 0
  %2374 = vmatmul.mubr.bf16.gmra.mrb[0].mxu0 %v2237
  %v2375 = vpop.f32.mrb[0].mxu0
  %v2376 = vadd.f32 0.0, %v2375
  %v2377 = vpop.f32.mrb[0].mxu0
  %v2378 = vpop.f32.mrb[0].mxu0
  %v2379 = vadd.f32 0.0, %v2378
  %v2380 = vpop.f32.mrb[0].mxu0
  %2381 = vmatprep.mubr.bf16.mxu0 0
  %2382 = vmatmul.mubr.bf16.gmra.mrb[0].mxu0 %v2238
  %v2383 = vpop.f32.mrb[0].mxu0
  %v2384 = vadd.f32 0.0, %v2383
  %v2385 = vpop.f32.mrb[0].mxu0
  %v2386 = vpop.f32.mrb[0].mxu0
  %v2387 = vadd.f32 0.0, %v2386
  %v2388 = vpop.f32.mrb[0].mxu0
  %2389 = vmatprep.mubr.bf16.mxu0 0
  %2390 = vmatmul.mubr.bf16.gmra.mrb[0].mxu0 %v2239
  %v2391 = vpop.f32.mrb[0].mxu0
  %v2392 = vadd.f32 0.0, %v2391
  %v2393 = vpop.f32.mrb[0].mxu0
  %v2394 = vpop.f32.mrb[0].mxu0
  %v2395 = vadd.f32 0.0, %v2394
  %v2396 = vpop.f32.mrb[0].mxu0
  %2397 = vmatprep.mubr.bf16.mxu0 0
  %2398 = vmatmul.mubr.bf16.gmra.mrb[0].mxu0 %v2240
  %v2399 = vpop.f32.mrb[0].mxu0
  %v2400 = vadd.f32 0.0, %v2399
  %v2401 = vpop.f32.mrb[0].mxu0
  %v2402 = vpop.f32.mrb[0].mxu0
  %v2403 = vadd.f32 0.0, %v2402
  %v2404 = vpop.f32.mrb[0].mxu0
  %2405 = vmatprep.mubr.bf16.mxu0 0
  %2406 = vmatmul.mubr.bf16.gmra.mrb[0].mxu0 %v2241
  %v2407 = vpop.f32.mrb[0].mxu0
  %v2408 = vadd.f32 0.0, %v2407
  %v2409 = vpop.f32.mrb[0].mxu0
  %v2410 = vpop.f32.mrb[0].mxu0
  %v2411 = vadd.f32 0.0, %v2410
  %v2412 = vpop.f32.mrb[0].mxu0
  %2413 = vmatprep.mubr.bf16.mxu0 0
  %2414 = vmatmul.mubr.bf16.gmra.mrb[0].mxu0 %v2242
  %v2415 = vpop.f32.mrb[0].mxu0
  %v2416 = vadd.f32 0.0, %v2415
  %v2417 = vpop.f32.mrb[0].mxu0
  %v2418 = vpop.f32.mrb[0].mxu0
  %v2419 = vadd.f32 0.0, %v2418
  %v2420 = vpop.f32.mrb[0].mxu0
  %2421 = vmatprep.mubr.bf16.mxu0 0
  %2422 = vmatmul.mubr.bf16.gmra.mrb[0].mxu0 %v2243
  %v2423 = vpop.f32.mrb[0].mxu0
  %v2424 = vadd.f32 0.0, %v2423
  %v2425 = vpop.f32.mrb[0].mxu0
  %v2426 = vpop.f32.mrb[0].mxu0
  %v2427 = vadd.f32 0.0, %v2426
  %v2428 = vpop.f32.mrb[0].mxu0
  %2429 = vmatprep.mubr.bf16.mxu0 0
  %2430 = vmatmul.mubr.bf16.gmra.mrb[0].mxu0 %v2244
  %v2431 = vpop.f32.mrb[0].mxu0
  %v2432 = vadd.f32 0.0, %v2431
  %v2433 = vpop.f32.mrb[0].mxu0
  %v2434 = vpop.f32.mrb[0].mxu0
  %v2435 = vadd.f32 0.0, %v2434
  %v2436 = vpop.f32.mrb[0].mxu0
  %2437 = vmatprep.mubr.bf16.mxu0 0
  %2438 = vmatmul.mubr.bf16.gmra.mrb[0].mxu0 %v2245
  %v2439 = vpop.f32.mrb[0].mxu0
  %v2440 = vadd.f32 0.0, %v2439
  %v2441 = vpop.f32.mrb[0].mxu0
  %v2442 = vpop.f32.mrb[0].mxu0
  %v2443 = vadd.f32 0.0, %v2442
  %v2444 = vpop.f32.mrb[0].mxu0
  %2445 = vmatprep.mubr.bf16.mxu0 0
  %2446 = vmatmul.mubr.bf16.gmra.mrb[0].mxu0 %v2246
  %v2447 = vpop.f32.mrb[0].mxu0
  %v2448 = vadd.f32 0.0, %v2447
  %v2449 = vpop.f32.mrb[0].mxu0
  %v2450 = vpop.f32.mrb[0].mxu0
  %v2451 = vadd.f32 0.0, %v2450
  %v2452 = vpop.f32.mrb[0].mxu0
  %2453 = vmatprep.mubr.bf16.mxu0 0
  %2454 = vmatmul.mubr.bf16.gmra.mrb[0].mxu0 %v2247
  %v2455 = vpop.f32.mrb[0].mxu0
  %v2456 = vadd.f32 0.0, %v2455
  %v2457 = vpop.f32.mrb[0].mxu0
  %v2458 = vpop.f32.mrb[0].mxu0
  %v2459 = vadd.f32 0.0, %v2458
  %v2460 = vpop.f32.mrb[0].mxu0
  %2461 = vmatprep.mubr.bf16.mxu0 0
  %2462 = vmatmul.mubr.bf16.gmra.mrb[0].mxu0 %v2248
  %v2463 = vpop.f32.mrb[0].mxu0
  %v2464 = vadd.f32 0.0, %v2463
  %v2465 = vpop.f32.mrb[0].mxu0
  %v2466 = vpop.f32.mrb[0].mxu0
  %v2467 = vadd.f32 0.0, %v2466
  %v2468 = vpop.f32.mrb[0].mxu0
  %2469 = vmatprep.mubr.bf16.mxu0 0
  %2470 = vmatmul.mubr.bf16.gmra.mrb[0].mxu0 %v2249
  %v2471 = vpop.f32.mrb[0].mxu0
  %v2472 = vadd.f32 0.0, %v2471
  %v2473 = vpop.f32.mrb[0].mxu0
  %v2474 = vpop.f32.mrb[0].mxu0
  %v2475 = vadd.f32 0.0, %v2474
  %v2476 = vpop.f32.mrb[0].mxu0
  %2477 = vmatprep.mubr.bf16.mxu0 0
  %2478 = vmatmul.mubr.bf16.gmra.mrb[0].mxu0 %v2250
  %v2479 = vpop.f32.mrb[0].mxu0
  %v2480 = vadd.f32 0.0, %v2479
  %v2481 = vpop.f32.mrb[0].mxu0
  %v2482 = vpop.f32.mrb[0].mxu0
  %v2483 = vadd.f32 0.0, %v2482
  %v2484 = vpop.f32.mrb[0].mxu0
  %2485 = vmatprep.mubr.bf16.mxu0 0
  %2486 = vmatmul.mubr.bf16.gmra.mrb[0].mxu0 %v2251
  %v2487 = vpop.f32.mrb[0].mxu0
  %v2488 = vadd.f32 0.0, %v2487
  %v2489 = vpop.f32.mrb[0].mxu0
  %v2490 = vpop.f32.mrb[0].mxu0
  %v2491 = vadd.f32 0.0, %v2490
  %v2492 = vpop.f32.mrb[0].mxu0
  %2493 = vmatprep.mubr.bf16.mxu0 0
  %2494 = vmatmul.mubr.bf16.gmra.mrb[0].mxu0 %v2252
  %v2495 = vpop.f32.mrb[0].mxu0
  %v2496 = vadd.f32 0.0, %v2495
  %v2497 = vpop.f32.mrb[0].mxu0
  %v2498 = vpop.f32.mrb[0].mxu0
  %v2499 = vadd.f32 0.0, %v2498
  %v2500 = vpop.f32.mrb[0].mxu0
  %2501 = vmatprep.mubr.bf16.mxu0 0
  %2502 = vmatmul.mubr.bf16.gmra.mrb[0].mxu0 %v2253
  %v2503 = vpop.f32.mrb[0].mxu0
  %v2504 = vadd.f32 0.0, %v2503
  %v2505 = vpop.f32.mrb[0].mxu0
  %v2506 = vpop.f32.mrb[0].mxu0
  %v2507 = vadd.f32 0.0, %v2506
  %v2508 = vpop.f32.mrb[0].mxu0
  %2509 = vmatprep.mubr.bf16.mxu0 0
  %2510 = vmatmul.mubr.bf16.gmra.mrb[0].mxu0 %v2254
  %v2511 = vpop.f32.mrb[0].mxu0
  %v2512 = vadd.f32 0.0, %v2511
  %v2513 = vpop.f32.mrb[0].mxu0
  %v2514 = vpop.f32.mrb[0].mxu0
  %v2515 = vadd.f32 0.0, %v2514
  %v2516 = vpop.f32.mrb[0].mxu0
  %2517 = vmatprep.mubr.bf16.mxu0 0
  %2518 = vmatmul.mubr.bf16.gmra.mrb[0].mxu0 %v2255
  %v2519 = vpop.f32.mrb[0].mxu0
  %v2520 = vadd.f32 0.0, %v2519
  %v2521 = vpop.f32.mrb[0].mxu0
  %v2522 = vpop.f32.mrb[0].mxu0
  %v2523 = vadd.f32 0.0, %v2522
  %v2524 = vpop.f32.mrb[0].mxu0
  %2525 = vmatprep.mubr.bf16.mxu0 0
  %2526 = vmatmul.mubr.bf16.gmra.mrb[0].mxu0 %v2256
  %v2527 = vpop.f32.mrb[0].mxu0
  %v2528 = vadd.f32 0.0, %v2527
  %v2529 = vpop.f32.mrb[0].mxu0
  %v2530 = vpop.f32.mrb[0].mxu0
  %v2531 = vadd.f32 0.0, %v2530
  %v2532 = vpop.f32.mrb[0].mxu0
  %2533 = vmatprep.mubr.bf16.mxu0 0
  %2534 = vmatmul.mubr.bf16.gmra.mrb[0].mxu0 %v2257
  %v2535 = vpop.f32.mrb[0].mxu0
  %v2536 = vadd.f32 0.0, %v2535
  %v2537 = vpop.f32.mrb[0].mxu0
  %v2538 = vpop.f32.mrb[0].mxu0
  %v2539 = vadd.f32 0.0, %v2538
  %v2540 = vpop.f32.mrb[0].mxu0
  %2541 = vmatprep.mubr.bf16.mxu0 0
  %2542 = vmatmul.mubr.bf16.gmra.mrb[0].mxu0 %v2258
  %v2543 = vpop.f32.mrb[0].mxu0
  %v2544 = vadd.f32 0.0, %v2543
  %v2545 = vpop.f32.mrb[0].mxu0
  %v2546 = vpop.f32.mrb[0].mxu0
  %v2547 = vadd.f32 0.0, %v2546
  %v2548 = vpop.f32.mrb[0].mxu0
  %2549 = vmatprep.mubr.bf16.mxu0 0
  %2550 = vmatmul.mubr.bf16.gmra.mrb[0].mxu0 %v2259
  %v2551 = vpop.f32.mrb[0].mxu0
  %v2552 = vadd.f32 0.0, %v2551
  %v2553 = vpop.f32.mrb[0].mxu0
  %v2554 = vpop.f32.mrb[0].mxu0
  %v2555 = vadd.f32 0.0, %v2554
  %v2556 = vpop.f32.mrb[0].mxu0
  %2557 = vmatprep.mubr.bf16.mxu0 0
  %2558 = vmatmul.mubr.bf16.gmra.mrb[0].mxu0 %v2260
  %v2559 = vpop.f32.mrb[0].mxu0
  %v2560 = vadd.f32 0.0, %v2559
  %v2561 = vpop.f32.mrb[0].mxu0
  %v2562 = vpop.f32.mrb[0].mxu0
  %v2563 = vadd.f32 0.0, %v2562
  %v2564 = vpop.f32.mrb[0].mxu0
  %2565 = vmatprep.mubr.bf16.mxu0 0
  %2566 = vmatmul.mubr.bf16.gmra.mrb[0].mxu0 %v2261
  %v2567 = vpop.f32.mrb[0].mxu0
  %v2568 = vadd.f32 0.0, %v2567
  %v2569 = vpop.f32.mrb[0].mxu0
  %v2570 = vpop.f32.mrb[0].mxu0
  %v2571 = vadd.f32 0.0, %v2570
  %v2572 = vpop.f32.mrb[0].mxu0
  %2573 = vmatprep.mubr.bf16.mxu0 0
  %2574 = vmatmul.mubr.bf16.gmra.mrb[0].mxu0 %v2262
  %v2575 = vpop.f32.mrb[0].mxu0
  %v2576 = vadd.f32 0.0, %v2575
  %v2577 = vpop.f32.mrb[0].mxu0
  %v2578 = vpop.f32.mrb[0].mxu0
  %v2579 = vadd.f32 0.0, %v2578
  %v2580 = vpop.f32.mrb[0].mxu0
  %2581 = vmatprep.mubr.bf16.mxu0 0
  %2582 = vmatmul.mubr.bf16.gmra.mrb[0].mxu0 %v2263
  %v2583 = vpop.f32.mrb[0].mxu0
  %v2584 = vadd.f32 0.0, %v2583
  %v2585 = vpop.f32.mrb[0].mxu0
  %v2586 = vpop.f32.mrb[0].mxu0
  %v2587 = vadd.f32 0.0, %v2586
  %v2588 = vpop.f32.mrb[0].mxu0
  %2589 = vmatprep.mubr.bf16.mxu0 0
  %2590 = vmatmul.mubr.bf16.gmra.mrb[0].mxu0 %v2264
  %v2591 = vpop.f32.mrb[0].mxu0
  %v2592 = vadd.f32 0.0, %v2591
  %v2593 = vpop.f32.mrb[0].mxu0
  %v2594 = vpop.f32.mrb[0].mxu0
  %v2595 = vadd.f32 0.0, %v2594
  %v2596 = vpop.f32.mrb[0].mxu0
  %2597 = vmatprep.mubr.bf16.mxu0 0
  %2598 = vmatmul.mubr.bf16.gmra.mrb[0].mxu0 %v2265
  %v2599 = vpop.f32.mrb[0].mxu0
  %v2600 = vadd.f32 0.0, %v2599
  %v2601 = vpop.f32.mrb[0].mxu0
  %v2602 = vpop.f32.mrb[0].mxu0
  %v2603 = vadd.f32 0.0, %v2602
  %v2604 = vpop.f32.mrb[0].mxu0
  %2605 = vmatprep.mubr.bf16.mxu0 0
  %2606 = vmatmul.mubr.bf16.gmra.mrb[0].mxu0 %v2266
  %v2607 = vpop.f32.mrb[0].mxu0
  %v2608 = vadd.f32 0.0, %v2607
  %v2609 = vpop.f32.mrb[0].mxu0
  %v2610 = vpop.f32.mrb[0].mxu0
  %v2611 = vadd.f32 0.0, %v2610
  %v2612 = vpop.f32.mrb[0].mxu0
  %2613 = vmatprep.mubr.bf16.mxu0 0
  %2614 = vmatmul.mubr.bf16.gmra.mrb[0].mxu0 %v2267
  %v2615 = vpop.f32.mrb[0].mxu0
  %v2616 = vadd.f32 0.0, %v2615
  %v2617 = vpop.f32.mrb[0].mxu0
  %v2618 = vpop.f32.mrb[0].mxu0
  %v2619 = vadd.f32 0.0, %v2618
  %v2620 = vpop.f32.mrb[0].mxu0
  %2621 = vdwg.mxu0
  %v2622 = vadd.f32 %v2108, %v2368
  %v2623 = vadd.f32 %v2109, %v2371
  %v2624 = vadd.f32 %v2110, %v2376
  %v2625 = vadd.f32 %v2111, %v2379
  %v2626 = vadd.f32 %v2112, %v2384
  %v2627 = vadd.f32 %v2113, %v2387
  %v2628 = vadd.f32 %v2114, %v2392
  %v2629 = vadd.f32 %v2115, %v2395
  %v2630 = vadd.f32 %v2116, %v2400
  %v2631 = vadd.f32 %v2117, %v2403
  %v2632 = vadd.f32 %v2118, %v2408
  %v2633 = vadd.f32 %v2119, %v2411
  %v2634 = vadd.f32 %v2120, %v2416
  %v2635 = vadd.f32 %v2121, %v2419
  %v2636 = vadd.f32 %v2122, %v2424
  %v2637 = vadd.f32 %v2123, %v2427
  %v2638 = vadd.f32 %v2124, %v2432
  %v2639 = vadd.f32 %v2125, %v2435
  %v2640 = vadd.f32 %v2126, %v2440
  %v2641 = vadd.f32 %v2127, %v2443
  %v2642 = vadd.f32 %v2128, %v2448
  %v2643 = vadd.f32 %v2129, %v2451
  %v2644 = vadd.f32 %v2130, %v2456
  %v2645 = vadd.f32 %v2131, %v2459
  %v2646 = vadd.f32 %v2132, %v2464
  %v2647 = vadd.f32 %v2133, %v2467
  %v2648 = vadd.f32 %v2134, %v2472
  %v2649 = vadd.f32 %v2135, %v2475
  %v2650 = vadd.f32 %v2136, %v2480
  %v2651 = vadd.f32 %v2137, %v2483
  %v2652 = vadd.f32 %v2138, %v2488
  %v2653 = vadd.f32 %v2139, %v2491
  %v2654 = vadd.f32 %v2140, %v2496
  %v2655 = vadd.f32 %v2141, %v2499
  %v2656 = vadd.f32 %v2142, %v2504
  %v2657 = vadd.f32 %v2143, %v2507
  %v2658 = vadd.f32 %v2144, %v2512
  %v2659 = vadd.f32 %v2145, %v2515
  %v2660 = vadd.f32 %v2146, %v2520
  %v2661 = vadd.f32 %v2147, %v2523
  %v2662 = vadd.f32 %v2148, %v2528
  %v2663 = vadd.f32 %v2149, %v2531
  %v2664 = vadd.f32 %v2150, %v2536
  %v2665 = vadd.f32 %v2151, %v2539
  %v2666 = vadd.f32 %v2152, %v2544
  %v2667 = vadd.f32 %v2153, %v2547
  %v2668 = vadd.f32 %v2154, %v2552
  %v2669 = vadd.f32 %v2155, %v2555
  %v2670 = vadd.f32 %v2156, %v2560
  %v2671 = vadd.f32 %v2157, %v2563
  %v2672 = vadd.f32 %v2158, %v2568
  %v2673 = vadd.f32 %v2159, %v2571
  %v2674 = vadd.f32 %v2160, %v2576
  %v2675 = vadd.f32 %v2161, %v2579
  %v2676 = vadd.f32 %v2162, %v2584
  %v2677 = vadd.f32 %v2163, %v2587
  %v2678 = vadd.f32 %v2164, %v2592
  %v2679 = vadd.f32 %v2165, %v2595
  %v2680 = vadd.f32 %v2166, %v2600
  %v2681 = vadd.f32 %v2167, %v2603
  %v2682 = vadd.f32 %v2168, %v2608
  %v2683 = vadd.f32 %v2169, %v2611
  %v2684 = vadd.f32 %v2170, %v2616
  %v2685 = vadd.f32 %v2171, %v2619
  %v2686 = vld [vmem:[%s180 + $0x9] sm:$0xff]
  %v2687 = vld [vmem:[%s180 + $0x11] sm:$0xff]
  %v2688 = vld [vmem:[%s180 + $0x29] sm:$0xff]
  %v2689 = vld [vmem:[%s180 + $0x31] sm:$0xff]
  %v2690 = vld [vmem:[%s180 + $0x49] sm:$0xff]
  %v2691 = vld [vmem:[%s180 + $0x51] sm:$0xff]
  %v2692 = vld [vmem:[%s180 + $0x69] sm:$0xff]
  %v2693 = vld [vmem:[%s180 + $0x71] sm:$0xff]
  %v2694 = vld [vmem:[%s180 + $0x89] sm:$0xff]
  %v2695 = vld [vmem:[%s180 + $0x91] sm:$0xff]
  %v2696 = vld [vmem:[%s180 + $0xa9] sm:$0xff]
  %v2697 = vld [vmem:[%s180 + $0xb1] sm:$0xff]
  %v2698 = vld [vmem:[%s180 + $0xc9] sm:$0xff]
  %v2699 = vld [vmem:[%s180 + $0xd1] sm:$0xff]
  %v2700 = vld [vmem:[%s180 + $0xe9] sm:$0xff]
  %v2701 = vld [vmem:[%s180 + $0xf1] sm:$0xff]
  %v2702 = vld [vmem:[%s180 + $0x109] sm:$0xff]
  %v2703 = vld [vmem:[%s180 + $0x111] sm:$0xff]
  %v2704 = vld [vmem:[%s180 + $0x129] sm:$0xff]
  %v2705 = vld [vmem:[%s180 + $0x131] sm:$0xff]
  %v2706 = vld [vmem:[%s180 + $0x149] sm:$0xff]
  %v2707 = vld [vmem:[%s180 + $0x151] sm:$0xff]
  %v2708 = vld [vmem:[%s180 + $0x169] sm:$0xff]
  %v2709 = vld [vmem:[%s180 + $0x171] sm:$0xff]
  %v2710 = vld [vmem:[%s180 + $0x189] sm:$0xff]
  %v2711 = vld [vmem:[%s180 + $0x191] sm:$0xff]
  %v2712 = vld [vmem:[%s180 + $0x1a9] sm:$0xff]
  %v2713 = vld [vmem:[%s180 + $0x1b1] sm:$0xff]
  %v2714 = vld [vmem:[%s180 + $0x1c9] sm:$0xff]
  %v2715 = vld [vmem:[%s180 + $0x1d1] sm:$0xff]
  %v2716 = vld [vmem:[%s180 + $0x1e9] sm:$0xff]
  %v2717 = vld [vmem:[%s180 + $0x1f1] sm:$0xff]
  %v2718 = vld [vmem:[%s180 + $0x249] sm:$0xff]
  %v2719 = vld [vmem:[%s180 + $0x251] sm:$0xff]
  %v2720 = vld [vmem:[%s180 + $0x269] sm:$0xff]
  %v2721 = vld [vmem:[%s180 + $0x271] sm:$0xff]
  %v2722 = vld [vmem:[%s180 + $0x289] sm:$0xff]
  %v2723 = vld [vmem:[%s180 + $0x291] sm:$0xff]
  %v2724 = vld [vmem:[%s180 + $0x2a9] sm:$0xff]
  %v2725 = vld [vmem:[%s180 + $0x2b1] sm:$0xff]
  %v2726 = vld [vmem:[%s180 + $0x2c9] sm:$0xff]
  %v2727 = vld [vmem:[%s180 + $0x2d1] sm:$0xff]
  %v2728 = vld [vmem:[%s180 + $0x2e9] sm:$0xff]
  %v2729 = vld [vmem:[%s180 + $0x2f1] sm:$0xff]
  %v2730 = vld [vmem:[%s180 + $0x309] sm:$0xff]
  %v2731 = vld [vmem:[%s180 + $0x311] sm:$0xff]
  %v2732 = vld [vmem:[%s180 + $0x329] sm:$0xff]
  %v2733 = vld [vmem:[%s180 + $0x331] sm:$0xff]
  %v2734 = vld [vmem:[%s180 + $0x349] sm:$0xff]
  %v2735 = vld [vmem:[%s180 + $0x351] sm:$0xff]
  %v2736 = vld [vmem:[%s180 + $0x369] sm:$0xff]
  %v2737 = vld [vmem:[%s180 + $0x371] sm:$0xff]
  %v2738 = vld [vmem:[%s180 + $0x389] sm:$0xff]
  %v2739 = vld [vmem:[%s180 + $0x391] sm:$0xff]
  %v2740 = vld [vmem:[%s180 + $0x3a9] sm:$0xff]
  %v2741 = vld [vmem:[%s180 + $0x3b1] sm:$0xff]
  %v2742 = vld [vmem:[%s180 + $0x3c9] sm:$0xff]
  %v2743 = vld [vmem:[%s180 + $0x3d1] sm:$0xff]
  %v2744 = vld [vmem:[%s180 + $0x3e9] sm:$0xff]
  %v2745 = vld [vmem:[%s180 + $0x3f1] sm:$0xff]
  %v2746 = vld [vmem:[%s180 + $0x409] sm:$0xff]
  %v2747 = vld [vmem:[%s180 + $0x411] sm:$0xff]
  %v2748 = vld [vmem:[%s180 + $0x429] sm:$0xff]
  %v2749 = vld [vmem:[%s180 + $0x431] sm:$0xff]
  %v2750 = vpack.c.bf16 %v2687, %v2686
  %v2751 = vpack.c.bf16 %v2689, %v2688
  %v2752 = vpack.c.bf16 %v2691, %v2690
  %v2753 = vpack.c.bf16 %v2693, %v2692
  %v2754 = vpack.c.bf16 %v2695, %v2694
  %v2755 = vpack.c.bf16 %v2697, %v2696
  %v2756 = vpack.c.bf16 %v2699, %v2698
  %v2757 = vpack.c.bf16 %v2701, %v2700
  %v2758 = vpack.c.bf16 %v2703, %v2702
  %v2759 = vpack.c.bf16 %v2705, %v2704
  %v2760 = vpack.c.bf16 %v2707, %v2706
  %v2761 = vpack.c.bf16 %v2709, %v2708
  %v2762 = vpack.c.bf16 %v2711, %v2710
  %v2763 = vpack.c.bf16 %v2713, %v2712
  %v2764 = vpack.c.bf16 %v2715, %v2714
  %v2765 = vpack.c.bf16 %v2717, %v2716
  %v2766 = vpack.c.bf16 %v2719, %v2718
  %v2767 = vpack.c.bf16 %v2721, %v2720
  %v2768 = vpack.c.bf16 %v2723, %v2722
  %v2769 = vpack.c.bf16 %v2725, %v2724
  %v2770 = vpack.c.bf16 %v2727, %v2726
  %v2771 = vpack.c.bf16 %v2729, %v2728
  %v2772 = vpack.c.bf16 %v2731, %v2730
  %v2773 = vpack.c.bf16 %v2733, %v2732
  %v2774 = vpack.c.bf16 %v2735, %v2734
  %v2775 = vpack.c.bf16 %v2737, %v2736
  %v2776 = vpack.c.bf16 %v2739, %v2738
  %v2777 = vpack.c.bf16 %v2741, %v2740
  %v2778 = vpack.c.bf16 %v2743, %v2742
  %v2779 = vpack.c.bf16 %v2745, %v2744
  %v2780 = vpack.c.bf16 %v2747, %v2746
  %v2781 = vpack.c.bf16 %v2749, %v2748
  %s2782 = scalar_lea.vmem %s1, 320
  %v2783 = vld [vmem:[%s2782] sm:$0xf]
  %v2784 = vld [vmem:[%s2782 + $0x4] sm:$0xf]
  %v2785 = vld [vmem:[%s2782 + $0x8] sm:$0xf]
  %v2786 = vld [vmem:[%s2782 + $0xc] sm:$0xf]
  %v2787 = vld [vmem:[%s2782 + $0x10] sm:$0xf]
  %v2788 = vld [vmem:[%s2782 + $0x14] sm:$0xf]
  %v2789 = vld [vmem:[%s2782 + $0x18] sm:$0xf]
  %v2790 = vld [vmem:[%s2782 + $0x1c] sm:$0xf]
  %v2791 = vld [vmem:[%s2782 + $0x20] sm:$0xf]
  %v2792 = vld [vmem:[%s2782 + $0x24] sm:$0xf]
  %v2793 = vld [vmem:[%s2782 + $0x28] sm:$0xf]
  %v2794 = vld [vmem:[%s2782 + $0x2c] sm:$0xf]
  %v2795 = vld [vmem:[%s2782 + $0x30] sm:$0xf]
  %v2796 = vld [vmem:[%s2782 + $0x34] sm:$0xf]
  %v2797 = vld [vmem:[%s2782 + $0x38] sm:$0xf]
  %v2798 = vld [vmem:[%s2782 + $0x3c] sm:$0xf]
  %v2815 = vunpack.c.l.b16 %v2783
  %v2816 = vunpack.c.l.b16 %v2784
  %v2817 = vunpack.c.l.b16 %v2785
  %v2818 = vunpack.c.l.b16 %v2786
  %v2819 = vunpack.c.l.b16 %v2787
  %v2820 = vunpack.c.l.b16 %v2788
  %v2821 = vunpack.c.l.b16 %v2789
  %v2822 = vunpack.c.l.b16 %v2790
  %v2823 = vunpack.c.l.b16 %v2791
  %v2824 = vunpack.c.l.b16 %v2792
  %v2825 = vunpack.c.l.b16 %v2793
  %v2826 = vunpack.c.l.b16 %v2794
  %v2827 = vunpack.c.l.b16 %v2795
  %v2828 = vunpack.c.l.b16 %v2796
  %v2829 = vunpack.c.l.b16 %v2797
  %v2830 = vunpack.c.l.b16 %v2798
  %v2831 = vpack.c.b16 %v2816, %v2815
  %v2832 = vpack.c.b16 %v2818, %v2817
  %v2833 = vpack.c.b16 %v2820, %v2819
  %v2834 = vpack.c.b16 %v2822, %v2821
  %v2835 = vpack.c.b16 %v2824, %v2823
  %v2836 = vpack.c.b16 %v2826, %v2825
  %v2837 = vpack.c.b16 %v2828, %v2827
  %v2838 = vpack.c.b16 %v2830, %v2829
  %2847 = vmatprep.subr.bf16.mxu0 0
  %2848 = vmatpush1.bf16.msra.mxu0 %v2831
  %2849 = vmatprep.subr.bf16.mxu0 0
  %2850 = vmatpush1.bf16.msra.mxu0 %v2832
  %2851 = vmatprep.subr.bf16.mxu0 0
  %2852 = vmatpush1.bf16.msra.mxu0 %v2833
  %2853 = vmatprep.subr.bf16.mxu0 0
  %2854 = vmatpush1.bf16.msra.mxu0 %v2834
  %2855 = vmatprep.subr.bf16.mxu0 0
  %2856 = vmatpush1.bf16.msra.mxu0 %v2835
  %2857 = vmatprep.subr.bf16.mxu0 0
  %2858 = vmatpush1.bf16.msra.mxu0 %v2836
  %2859 = vmatprep.subr.bf16.mxu0 0
  %2860 = vmatpush1.bf16.msra.mxu0 %v2837
  %2861 = vmatprep.subr.bf16.mxu0 0
  %2862 = vmatpush1.bf16.msra.mxu0 %v2838
  %2863 = vmatprep.subr.bf16.mxu0 0
  %2864 = vmatpush1.bf16.msra.mxu0 0
  %2865 = vmatprep.subr.bf16.mxu0 0
  %2866 = vmatpush1.bf16.msra.mxu0 0
  %2867 = vmatprep.subr.bf16.mxu0 0
  %2868 = vmatpush1.bf16.msra.mxu0 0
  %2869 = vmatprep.subr.bf16.mxu0 0
  %2870 = vmatpush1.bf16.msra.mxu0 0
  %2871 = vmatprep.subr.bf16.mxu0 0
  %2872 = vmatpush1.bf16.msra.mxu0 0
  %2873 = vmatprep.subr.bf16.mxu0 0
  %2874 = vmatpush1.bf16.msra.mxu0 0
  %2875 = vmatprep.subr.bf16.mxu0 0
  %2876 = vmatpush1.bf16.msra.mxu0 0
  %2877 = vmatprep.subr.bf16.mxu0 0
  %2878 = vmatpush1.bf16.msra.mxu0 0
  %2879 = vmatprep.mubr.bf16.mxu0 0
  %2880 = vmatmul.mubr.bf16.gmra.mrb[0].mxu0 %v2750
  %v2881 = vpop.f32.mrb[0].mxu0
  %v2882 = vadd.f32 0.0, %v2881
  %v2883 = vpop.f32.mrb[0].mxu0
  %v2884 = vpop.f32.mrb[0].mxu0
  %v2885 = vadd.f32 0.0, %v2884
  %v2886 = vpop.f32.mrb[0].mxu0
  %2887 = vmatprep.mubr.bf16.mxu0 0
  %2888 = vmatmul.mubr.bf16.gmra.mrb[0].mxu0 %v2751
  %v2889 = vpop.f32.mrb[0].mxu0
  %v2890 = vadd.f32 0.0, %v2889
  %v2891 = vpop.f32.mrb[0].mxu0
  %v2892 = vpop.f32.mrb[0].mxu0
  %v2893 = vadd.f32 0.0, %v2892
  %v2894 = vpop.f32.mrb[0].mxu0
  %2895 = vmatprep.mubr.bf16.mxu0 0
  %2896 = vmatmul.mubr.bf16.gmra.mrb[0].mxu0 %v2752
  %v2897 = vpop.f32.mrb[0].mxu0
  %v2898 = vadd.f32 0.0, %v2897
  %v2899 = vpop.f32.mrb[0].mxu0
  %v2900 = vpop.f32.mrb[0].mxu0
  %v2901 = vadd.f32 0.0, %v2900
  %v2902 = vpop.f32.mrb[0].mxu0
  %2903 = vmatprep.mubr.bf16.mxu0 0
  %2904 = vmatmul.mubr.bf16.gmra.mrb[0].mxu0 %v2753
  %v2905 = vpop.f32.mrb[0].mxu0
  %v2906 = vadd.f32 0.0, %v2905
  %v2907 = vpop.f32.mrb[0].mxu0
  %v2908 = vpop.f32.mrb[0].mxu0
  %v2909 = vadd.f32 0.0, %v2908
  %v2910 = vpop.f32.mrb[0].mxu0
  %2911 = vmatprep.mubr.bf16.mxu0 0
  %2912 = vmatmul.mubr.bf16.gmra.mrb[0].mxu0 %v2754
  %v2913 = vpop.f32.mrb[0].mxu0
  %v2914 = vadd.f32 0.0, %v2913
  %v2915 = vpop.f32.mrb[0].mxu0
  %v2916 = vpop.f32.mrb[0].mxu0
  %v2917 = vadd.f32 0.0, %v2916
  %v2918 = vpop.f32.mrb[0].mxu0
  %2919 = vmatprep.mubr.bf16.mxu0 0
  %2920 = vmatmul.mubr.bf16.gmra.mrb[0].mxu0 %v2755
  %v2921 = vpop.f32.mrb[0].mxu0
  %v2922 = vadd.f32 0.0, %v2921
  %v2923 = vpop.f32.mrb[0].mxu0
  %v2924 = vpop.f32.mrb[0].mxu0
  %v2925 = vadd.f32 0.0, %v2924
  %v2926 = vpop.f32.mrb[0].mxu0
  %2927 = vmatprep.mubr.bf16.mxu0 0
  %2928 = vmatmul.mubr.bf16.gmra.mrb[0].mxu0 %v2756
  %v2929 = vpop.f32.mrb[0].mxu0
  %v2930 = vadd.f32 0.0, %v2929
  %v2931 = vpop.f32.mrb[0].mxu0
  %v2932 = vpop.f32.mrb[0].mxu0
  %v2933 = vadd.f32 0.0, %v2932
  %v2934 = vpop.f32.mrb[0].mxu0
  %2935 = vmatprep.mubr.bf16.mxu0 0
  %2936 = vmatmul.mubr.bf16.gmra.mrb[0].mxu0 %v2757
  %v2937 = vpop.f32.mrb[0].mxu0
  %v2938 = vadd.f32 0.0, %v2937
  %v2939 = vpop.f32.mrb[0].mxu0
  %v2940 = vpop.f32.mrb[0].mxu0
  %v2941 = vadd.f32 0.0, %v2940
  %v2942 = vpop.f32.mrb[0].mxu0
  %2943 = vmatprep.mubr.bf16.mxu0 0
  %2944 = vmatmul.mubr.bf16.gmra.mrb[0].mxu0 %v2758
  %v2945 = vpop.f32.mrb[0].mxu0
  %v2946 = vadd.f32 0.0, %v2945
  %v2947 = vpop.f32.mrb[0].mxu0
  %v2948 = vpop.f32.mrb[0].mxu0
  %v2949 = vadd.f32 0.0, %v2948
  %v2950 = vpop.f32.mrb[0].mxu0
  %2951 = vmatprep.mubr.bf16.mxu0 0
  %2952 = vmatmul.mubr.bf16.gmra.mrb[0].mxu0 %v2759
  %v2953 = vpop.f32.mrb[0].mxu0
  %v2954 = vadd.f32 0.0, %v2953
  %v2955 = vpop.f32.mrb[0].mxu0
  %v2956 = vpop.f32.mrb[0].mxu0
  %v2957 = vadd.f32 0.0, %v2956
  %v2958 = vpop.f32.mrb[0].mxu0
  %2959 = vmatprep.mubr.bf16.mxu0 0
  %2960 = vmatmul.mubr.bf16.gmra.mrb[0].mxu0 %v2760
  %v2961 = vpop.f32.mrb[0].mxu0
  %v2962 = vadd.f32 0.0, %v2961
  %v2963 = vpop.f32.mrb[0].mxu0
  %v2964 = vpop.f32.mrb[0].mxu0
  %v2965 = vadd.f32 0.0, %v2964
  %v2966 = vpop.f32.mrb[0].mxu0
  %2967 = vmatprep.mubr.bf16.mxu0 0
  %2968 = vmatmul.mubr.bf16.gmra.mrb[0].mxu0 %v2761
  %v2969 = vpop.f32.mrb[0].mxu0
  %v2970 = vadd.f32 0.0, %v2969
  %v2971 = vpop.f32.mrb[0].mxu0
  %v2972 = vpop.f32.mrb[0].mxu0
  %v2973 = vadd.f32 0.0, %v2972
  %v2974 = vpop.f32.mrb[0].mxu0
  %2975 = vmatprep.mubr.bf16.mxu0 0
  %2976 = vmatmul.mubr.bf16.gmra.mrb[0].mxu0 %v2762
  %v2977 = vpop.f32.mrb[0].mxu0
  %v2978 = vadd.f32 0.0, %v2977
  %v2979 = vpop.f32.mrb[0].mxu0
  %v2980 = vpop.f32.mrb[0].mxu0
  %v2981 = vadd.f32 0.0, %v2980
  %v2982 = vpop.f32.mrb[0].mxu0
  %2983 = vmatprep.mubr.bf16.mxu0 0
  %2984 = vmatmul.mubr.bf16.gmra.mrb[0].mxu0 %v2763
  %v2985 = vpop.f32.mrb[0].mxu0
  %v2986 = vadd.f32 0.0, %v2985
  %v2987 = vpop.f32.mrb[0].mxu0
  %v2988 = vpop.f32.mrb[0].mxu0
  %v2989 = vadd.f32 0.0, %v2988
  %v2990 = vpop.f32.mrb[0].mxu0
  %2991 = vmatprep.mubr.bf16.mxu0 0
  %2992 = vmatmul.mubr.bf16.gmra.mrb[0].mxu0 %v2764
  %v2993 = vpop.f32.mrb[0].mxu0
  %v2994 = vadd.f32 0.0, %v2993
  %v2995 = vpop.f32.mrb[0].mxu0
  %v2996 = vpop.f32.mrb[0].mxu0
  %v2997 = vadd.f32 0.0, %v2996
  %v2998 = vpop.f32.mrb[0].mxu0
  %2999 = vmatprep.mubr.bf16.mxu0 0
  %3000 = vmatmul.mubr.bf16.gmra.mrb[0].mxu0 %v2765
  %v3001 = vpop.f32.mrb[0].mxu0
  %v3002 = vadd.f32 0.0, %v3001
  %v3003 = vpop.f32.mrb[0].mxu0
  %v3004 = vpop.f32.mrb[0].mxu0
  %v3005 = vadd.f32 0.0, %v3004
  %v3006 = vpop.f32.mrb[0].mxu0
  %3007 = vmatprep.mubr.bf16.mxu0 0
  %3008 = vmatmul.mubr.bf16.gmra.mrb[0].mxu0 %v2766
  %v3009 = vpop.f32.mrb[0].mxu0
  %v3010 = vadd.f32 0.0, %v3009
  %v3011 = vpop.f32.mrb[0].mxu0
  %v3012 = vpop.f32.mrb[0].mxu0
  %v3013 = vadd.f32 0.0, %v3012
  %v3014 = vpop.f32.mrb[0].mxu0
  %3015 = vmatprep.mubr.bf16.mxu0 0
  %3016 = vmatmul.mubr.bf16.gmra.mrb[0].mxu0 %v2767
  %v3017 = vpop.f32.mrb[0].mxu0
  %v3018 = vadd.f32 0.0, %v3017
  %v3019 = vpop.f32.mrb[0].mxu0
  %v3020 = vpop.f32.mrb[0].mxu0
  %v3021 = vadd.f32 0.0, %v3020
  %v3022 = vpop.f32.mrb[0].mxu0
  %3023 = vmatprep.mubr.bf16.mxu0 0
  %3024 = vmatmul.mubr.bf16.gmra.mrb[0].mxu0 %v2768
  %v3025 = vpop.f32.mrb[0].mxu0
  %v3026 = vadd.f32 0.0, %v3025
  %v3027 = vpop.f32.mrb[0].mxu0
  %v3028 = vpop.f32.mrb[0].mxu0
  %v3029 = vadd.f32 0.0, %v3028
  %v3030 = vpop.f32.mrb[0].mxu0
  %3031 = vmatprep.mubr.bf16.mxu0 0
  %3032 = vmatmul.mubr.bf16.gmra.mrb[0].mxu0 %v2769
  %v3033 = vpop.f32.mrb[0].mxu0
  %v3034 = vadd.f32 0.0, %v3033
  %v3035 = vpop.f32.mrb[0].mxu0
  %v3036 = vpop.f32.mrb[0].mxu0
  %v3037 = vadd.f32 0.0, %v3036
  %v3038 = vpop.f32.mrb[0].mxu0
  %3039 = vmatprep.mubr.bf16.mxu0 0
  %3040 = vmatmul.mubr.bf16.gmra.mrb[0].mxu0 %v2770
  %v3041 = vpop.f32.mrb[0].mxu0
  %v3042 = vadd.f32 0.0, %v3041
  %v3043 = vpop.f32.mrb[0].mxu0
  %v3044 = vpop.f32.mrb[0].mxu0
  %v3045 = vadd.f32 0.0, %v3044
  %v3046 = vpop.f32.mrb[0].mxu0
  %3047 = vmatprep.mubr.bf16.mxu0 0
  %3048 = vmatmul.mubr.bf16.gmra.mrb[0].mxu0 %v2771
  %v3049 = vpop.f32.mrb[0].mxu0
  %v3050 = vadd.f32 0.0, %v3049
  %v3051 = vpop.f32.mrb[0].mxu0
  %v3052 = vpop.f32.mrb[0].mxu0
  %v3053 = vadd.f32 0.0, %v3052
  %v3054 = vpop.f32.mrb[0].mxu0
  %3055 = vmatprep.mubr.bf16.mxu0 0
  %3056 = vmatmul.mubr.bf16.gmra.mrb[0].mxu0 %v2772
  %v3057 = vpop.f32.mrb[0].mxu0
  %v3058 = vadd.f32 0.0, %v3057
  %v3059 = vpop.f32.mrb[0].mxu0
  %v3060 = vpop.f32.mrb[0].mxu0
  %v3061 = vadd.f32 0.0, %v3060
  %v3062 = vpop.f32.mrb[0].mxu0
  %3063 = vmatprep.mubr.bf16.mxu0 0
  %3064 = vmatmul.mubr.bf16.gmra.mrb[0].mxu0 %v2773
  %v3065 = vpop.f32.mrb[0].mxu0
  %v3066 = vadd.f32 0.0, %v3065
  %v3067 = vpop.f32.mrb[0].mxu0
  %v3068 = vpop.f32.mrb[0].mxu0
  %v3069 = vadd.f32 0.0, %v3068
  %v3070 = vpop.f32.mrb[0].mxu0
  %3071 = vmatprep.mubr.bf16.mxu0 0
  %3072 = vmatmul.mubr.bf16.gmra.mrb[0].mxu0 %v2774
  %v3073 = vpop.f32.mrb[0].mxu0
  %v3074 = vadd.f32 0.0, %v3073
  %v3075 = vpop.f32.mrb[0].mxu0
  %v3076 = vpop.f32.mrb[0].mxu0
  %v3077 = vadd.f32 0.0, %v3076
  %v3078 = vpop.f32.mrb[0].mxu0
  %3079 = vmatprep.mubr.bf16.mxu0 0
  %3080 = vmatmul.mubr.bf16.gmra.mrb[0].mxu0 %v2775
  %v3081 = vpop.f32.mrb[0].mxu0
  %v3082 = vadd.f32 0.0, %v3081
  %v3083 = vpop.f32.mrb[0].mxu0
  %v3084 = vpop.f32.mrb[0].mxu0
  %v3085 = vadd.f32 0.0, %v3084
  %v3086 = vpop.f32.mrb[0].mxu0
  %3087 = vmatprep.mubr.bf16.mxu0 0
  %3088 = vmatmul.mubr.bf16.gmra.mrb[0].mxu0 %v2776
  %v3089 = vpop.f32.mrb[0].mxu0
  %v3090 = vadd.f32 0.0, %v3089
  %v3091 = vpop.f32.mrb[0].mxu0
  %v3092 = vpop.f32.mrb[0].mxu0
  %v3093 = vadd.f32 0.0, %v3092
  %v3094 = vpop.f32.mrb[0].mxu0
  %3095 = vmatprep.mubr.bf16.mxu0 0
  %3096 = vmatmul.mubr.bf16.gmra.mrb[0].mxu0 %v2777
  %v3097 = vpop.f32.mrb[0].mxu0
  %v3098 = vadd.f32 0.0, %v3097
  %v3099 = vpop.f32.mrb[0].mxu0
  %v3100 = vpop.f32.mrb[0].mxu0
  %v3101 = vadd.f32 0.0, %v3100
  %v3102 = vpop.f32.mrb[0].mxu0
  %3103 = vmatprep.mubr.bf16.mxu0 0
  %3104 = vmatmul.mubr.bf16.gmra.mrb[0].mxu0 %v2778
  %v3105 = vpop.f32.mrb[0].mxu0
  %v3106 = vadd.f32 0.0, %v3105
  %v3107 = vpop.f32.mrb[0].mxu0
  %v3108 = vpop.f32.mrb[0].mxu0
  %v3109 = vadd.f32 0.0, %v3108
  %v3110 = vpop.f32.mrb[0].mxu0
  %3111 = vmatprep.mubr.bf16.mxu0 0
  %3112 = vmatmul.mubr.bf16.gmra.mrb[0].mxu0 %v2779
  %v3113 = vpop.f32.mrb[0].mxu0
  %v3114 = vadd.f32 0.0, %v3113
  %v3115 = vpop.f32.mrb[0].mxu0
  %v3116 = vpop.f32.mrb[0].mxu0
  %v3117 = vadd.f32 0.0, %v3116
  %v3118 = vpop.f32.mrb[0].mxu0
  %3119 = vmatprep.mubr.bf16.mxu0 0
  %3120 = vmatmul.mubr.bf16.gmra.mrb[0].mxu0 %v2780
  %v3121 = vpop.f32.mrb[0].mxu0
  %v3122 = vadd.f32 0.0, %v3121
  %v3123 = vpop.f32.mrb[0].mxu0
  %v3124 = vpop.f32.mrb[0].mxu0
  %v3125 = vadd.f32 0.0, %v3124
  %v3126 = vpop.f32.mrb[0].mxu0
  %3127 = vmatprep.mubr.bf16.mxu0 0
  %3128 = vmatmul.mubr.bf16.gmra.mrb[0].mxu0 %v2781
  %v3129 = vpop.f32.mrb[0].mxu0
  %v3130 = vadd.f32 0.0, %v3129
  %v3131 = vpop.f32.mrb[0].mxu0
  %v3132 = vpop.f32.mrb[0].mxu0
  %v3133 = vadd.f32 0.0, %v3132
  %v3134 = vpop.f32.mrb[0].mxu0
  %3135 = vdwg.mxu0
  %v3136 = vadd.f32 %v2622, %v2882
  %v3137 = vadd.f32 %v2623, %v2885
  %v3138 = vadd.f32 %v2624, %v2890
  %v3139 = vadd.f32 %v2625, %v2893
  %v3140 = vadd.f32 %v2626, %v2898
  %v3141 = vadd.f32 %v2627, %v2901
  %v3142 = vadd.f32 %v2628, %v2906
  %v3143 = vadd.f32 %v2629, %v2909
  %v3144 = vadd.f32 %v2630, %v2914
  %v3145 = vadd.f32 %v2631, %v2917
  %v3146 = vadd.f32 %v2632, %v2922
  %v3147 = vadd.f32 %v2633, %v2925
  %v3148 = vadd.f32 %v2634, %v2930
  %v3149 = vadd.f32 %v2635, %v2933
  %v3150 = vadd.f32 %v2636, %v2938
  %v3151 = vadd.f32 %v2637, %v2941
  %v3152 = vadd.f32 %v2638, %v2946
  %v3153 = vadd.f32 %v2639, %v2949
  %v3154 = vadd.f32 %v2640, %v2954
  %v3155 = vadd.f32 %v2641, %v2957
  %v3156 = vadd.f32 %v2642, %v2962
  %v3157 = vadd.f32 %v2643, %v2965
  %v3158 = vadd.f32 %v2644, %v2970
  %v3159 = vadd.f32 %v2645, %v2973
  %v3160 = vadd.f32 %v2646, %v2978
  %v3161 = vadd.f32 %v2647, %v2981
  %v3162 = vadd.f32 %v2648, %v2986
  %v3163 = vadd.f32 %v2649, %v2989
  %v3164 = vadd.f32 %v2650, %v2994
  %v3165 = vadd.f32 %v2651, %v2997
  %v3166 = vadd.f32 %v2652, %v3002
  %v3167 = vadd.f32 %v2653, %v3005
  %v3168 = vadd.f32 %v2654, %v3010
  %v3169 = vadd.f32 %v2655, %v3013
  %v3170 = vadd.f32 %v2656, %v3018
  %v3171 = vadd.f32 %v2657, %v3021
  %v3172 = vadd.f32 %v2658, %v3026
  %v3173 = vadd.f32 %v2659, %v3029
  %v3174 = vadd.f32 %v2660, %v3034
  %v3175 = vadd.f32 %v2661, %v3037
  %v3176 = vadd.f32 %v2662, %v3042
  %v3177 = vadd.f32 %v2663, %v3045
  %v3178 = vadd.f32 %v2664, %v3050
  %v3179 = vadd.f32 %v2665, %v3053
  %v3180 = vadd.f32 %v2666, %v3058
  %v3181 = vadd.f32 %v2667, %v3061
  %v3182 = vadd.f32 %v2668, %v3066
  %v3183 = vadd.f32 %v2669, %v3069
  %v3184 = vadd.f32 %v2670, %v3074
  %v3185 = vadd.f32 %v2671, %v3077
  %v3186 = vadd.f32 %v2672, %v3082
  %v3187 = vadd.f32 %v2673, %v3085
  %v3188 = vadd.f32 %v2674, %v3090
  %v3189 = vadd.f32 %v2675, %v3093
  %v3190 = vadd.f32 %v2676, %v3098
  %v3191 = vadd.f32 %v2677, %v3101
  %v3192 = vadd.f32 %v2678, %v3106
  %v3193 = vadd.f32 %v2679, %v3109
  %v3194 = vadd.f32 %v2680, %v3114
  %v3195 = vadd.f32 %v2681, %v3117
  %v3196 = vadd.f32 %v2682, %v3122
  %v3197 = vadd.f32 %v2683, %v3125
  %v3198 = vadd.f32 %v2684, %v3130
  %v3199 = vadd.f32 %v2685, %v3133
  %s3200 = scalar_lea.vmem [#allocation2], 64
  %v3201 = vld [vmem:[%s3200 + $0x7] sm:$0xff]
  %v3202 = vld [vmem:[%s3200 + $0xf] sm:$0xff]
  %v3203 = vld [vmem:[%s3200 + $0x27] sm:$0xff]
  %v3204 = vld [vmem:[%s3200 + $0x2f] sm:$0xff]
  %v3205 = vld [vmem:[%s3200 + $0x47] sm:$0xff]
  %v3206 = vld [vmem:[%s3200 + $0x4f] sm:$0xff]
  %v3207 = vld [vmem:[%s3200 + $0x67] sm:$0xff]
  %v3208 = vld [vmem:[%s3200 + $0x6f] sm:$0xff]
  %v3209 = vld [vmem:[%s3200 + $0x87] sm:$0xff]
  %v3210 = vld [vmem:[%s3200 + $0x8f] sm:$0xff]
  %v3211 = vld [vmem:[%s3200 + $0xa7] sm:$0xff]
  %v3212 = vld [vmem:[%s3200 + $0xaf] sm:$0xff]
  %v3213 = vld [vmem:[%s3200 + $0xc7] sm:$0xff]
  %v3214 = vld [vmem:[%s3200 + $0xcf] sm:$0xff]
  %v3215 = vld [vmem:[%s3200 + $0xe7] sm:$0xff]
  %v3216 = vld [vmem:[%s3200 + $0xef] sm:$0xff]
  %v3217 = vld [vmem:[%s3200 + $0x107] sm:$0xff]
  %v3218 = vld [vmem:[%s3200 + $0x10f] sm:$0xff]
  %v3219 = vld [vmem:[%s3200 + $0x127] sm:$0xff]
  %v3220 = vld [vmem:[%s3200 + $0x12f] sm:$0xff]
  %v3221 = vld [vmem:[%s3200 + $0x147] sm:$0xff]
  %v3222 = vld [vmem:[%s3200 + $0x14f] sm:$0xff]
  %v3223 = vld [vmem:[%s3200 + $0x167] sm:$0xff]
  %v3224 = vld [vmem:[%s3200 + $0x16f] sm:$0xff]
  %v3225 = vld [vmem:[%s3200 + $0x187] sm:$0xff]
  %v3226 = vld [vmem:[%s3200 + $0x18f] sm:$0xff]
  %v3227 = vld [vmem:[%s3200 + $0x1a7] sm:$0xff]
  %v3228 = vld [vmem:[%s3200 + $0x1af] sm:$0xff]
  %v3229 = vld [vmem:[%s3200 + $0x1c7] sm:$0xff]
  %v3230 = vld [vmem:[%s3200 + $0x1cf] sm:$0xff]
  %v3231 = vld [vmem:[%s3200 + $0x1e7] sm:$0xff]
  %v3232 = vld [vmem:[%s3200 + $0x1ef] sm:$0xff]
  %v3233 = vld [vmem:[%s3200 + $0x247] sm:$0xff]
  %v3234 = vld [vmem:[%s3200 + $0x24f] sm:$0xff]
  %v3235 = vld [vmem:[%s3200 + $0x267] sm:$0xff]
  %v3236 = vld [vmem:[%s3200 + $0x26f] sm:$0xff]
  %v3237 = vld [vmem:[%s3200 + $0x287] sm:$0xff]
  %v3238 = vld [vmem:[%s3200 + $0x28f] sm:$0xff]
  %v3239 = vld [vmem:[%s3200 + $0x2a7] sm:$0xff]
  %v3240 = vld [vmem:[%s3200 + $0x2af] sm:$0xff]
  %v3241 = vld [vmem:[%s3200 + $0x2c7] sm:$0xff]
  %v3242 = vld [vmem:[%s3200 + $0x2cf] sm:$0xff]
  %v3243 = vld [vmem:[%s3200 + $0x2e7] sm:$0xff]
  %v3244 = vld [vmem:[%s3200 + $0x2ef] sm:$0xff]
  %v3245 = vld [vmem:[%s3200 + $0x307] sm:$0xff]
  %v3246 = vld [vmem:[%s3200 + $0x30f] sm:$0xff]
  %v3247 = vld [vmem:[%s3200 + $0x327] sm:$0xff]
  %v3248 = vld [vmem:[%s3200 + $0x32f] sm:$0xff]
  %v3249 = vld [vmem:[%s3200 + $0x347] sm:$0xff]
  %v3250 = vld [vmem:[%s3200 + $0x34f] sm:$0xff]
  %v3251 = vld [vmem:[%s3200 + $0x367] sm:$0xff]
  %v3252 = vld [vmem:[%s3200 + $0x36f] sm:$0xff]
  %v3253 = vld [vmem:[%s3200 + $0x387] sm:$0xff]
  %v3254 = vld [vmem:[%s3200 + $0x38f] sm:$0xff]
  %v3255 = vld [vmem:[%s3200 + $0x3a7] sm:$0xff]
  %v3256 = vld [vmem:[%s3200 + $0x3af] sm:$0xff]
  %v3257 = vld [vmem:[%s3200 + $0x3c7] sm:$0xff]
  %v3258 = vld [vmem:[%s3200 + $0x3cf] sm:$0xff]
  %v3259 = vld [vmem:[%s3200 + $0x3e7] sm:$0xff]
  %v3260 = vld [vmem:[%s3200 + $0x3ef] sm:$0xff]
  %v3261 = vld [vmem:[%s3200 + $0x407] sm:$0xff]
  %v3262 = vld [vmem:[%s3200 + $0x40f] sm:$0xff]
  %v3263 = vld [vmem:[%s3200 + $0x427] sm:$0xff]
  %v3264 = vld [vmem:[%s3200 + $0x42f] sm:$0xff]
  %v3265 = vpack.c.bf16 %v3202, %v3201
  %v3266 = vpack.c.bf16 %v3204, %v3203
  %v3267 = vpack.c.bf16 %v3206, %v3205
  %v3268 = vpack.c.bf16 %v3208, %v3207
  %v3269 = vpack.c.bf16 %v3210, %v3209
  %v3270 = vpack.c.bf16 %v3212, %v3211
  %v3271 = vpack.c.bf16 %v3214, %v3213
  %v3272 = vpack.c.bf16 %v3216, %v3215
  %v3273 = vpack.c.bf16 %v3218, %v3217
  %v3274 = vpack.c.bf16 %v3220, %v3219
  %v3275 = vpack.c.bf16 %v3222, %v3221
  %v3276 = vpack.c.bf16 %v3224, %v3223
  %v3277 = vpack.c.bf16 %v3226, %v3225
  %v3278 = vpack.c.bf16 %v3228, %v3227
  %v3279 = vpack.c.bf16 %v3230, %v3229
  %v3280 = vpack.c.bf16 %v3232, %v3231
  %v3281 = vpack.c.bf16 %v3234, %v3233
  %v3282 = vpack.c.bf16 %v3236, %v3235
  %v3283 = vpack.c.bf16 %v3238, %v3237
  %v3284 = vpack.c.bf16 %v3240, %v3239
  %v3285 = vpack.c.bf16 %v3242, %v3241
  %v3286 = vpack.c.bf16 %v3244, %v3243
  %v3287 = vpack.c.bf16 %v3246, %v3245
  %v3288 = vpack.c.bf16 %v3248, %v3247
  %v3289 = vpack.c.bf16 %v3250, %v3249
  %v3290 = vpack.c.bf16 %v3252, %v3251
  %v3291 = vpack.c.bf16 %v3254, %v3253
  %v3292 = vpack.c.bf16 %v3256, %v3255
  %v3293 = vpack.c.bf16 %v3258, %v3257
  %v3294 = vpack.c.bf16 %v3260, %v3259
  %v3295 = vpack.c.bf16 %v3262, %v3261
  %v3296 = vpack.c.bf16 %v3264, %v3263
  %s3297 = scalar_lea.vmem %s1, 384
  %v3298 = vld [vmem:[%s3297] sm:$0xf]
  %v3299 = vld [vmem:[%s3297 + $0x4] sm:$0xf]
  %v3300 = vld [vmem:[%s3297 + $0x8] sm:$0xf]
  %v3301 = vld [vmem:[%s3297 + $0xc] sm:$0xf]
  %v3302 = vld [vmem:[%s3297 + $0x10] sm:$0xf]
  %v3303 = vld [vmem:[%s3297 + $0x14] sm:$0xf]
  %v3304 = vld [vmem:[%s3297 + $0x18] sm:$0xf]
  %v3305 = vld [vmem:[%s3297 + $0x1c] sm:$0xf]
  %v3306 = vld [vmem:[%s3297 + $0x20] sm:$0xf]
  %v3307 = vld [vmem:[%s3297 + $0x24] sm:$0xf]
  %v3308 = vld [vmem:[%s3297 + $0x28] sm:$0xf]
  %v3309 = vld [vmem:[%s3297 + $0x2c] sm:$0xf]
  %v3310 = vld [vmem:[%s3297 + $0x30] sm:$0xf]
  %v3311 = vld [vmem:[%s3297 + $0x34] sm:$0xf]
  %v3312 = vld [vmem:[%s3297 + $0x38] sm:$0xf]
  %v3313 = vld [vmem:[%s3297 + $0x3c] sm:$0xf]
  %v3330 = vunpack.c.l.b16 %v3298
  %v3331 = vunpack.c.l.b16 %v3299
  %v3332 = vunpack.c.l.b16 %v3300
  %v3333 = vunpack.c.l.b16 %v3301
  %v3334 = vunpack.c.l.b16 %v3302
  %v3335 = vunpack.c.l.b16 %v3303
  %v3336 = vunpack.c.l.b16 %v3304
  %v3337 = vunpack.c.l.b16 %v3305
  %v3338 = vunpack.c.l.b16 %v3306
  %v3339 = vunpack.c.l.b16 %v3307
  %v3340 = vunpack.c.l.b16 %v3308
  %v3341 = vunpack.c.l.b16 %v3309
  %v3342 = vunpack.c.l.b16 %v3310
  %v3343 = vunpack.c.l.b16 %v3311
  %v3344 = vunpack.c.l.b16 %v3312
  %v3345 = vunpack.c.l.b16 %v3313
  %v3346 = vpack.c.b16 %v3331, %v3330
  %v3347 = vpack.c.b16 %v3333, %v3332
  %v3348 = vpack.c.b16 %v3335, %v3334
  %v3349 = vpack.c.b16 %v3337, %v3336
  %v3350 = vpack.c.b16 %v3339, %v3338
  %v3351 = vpack.c.b16 %v3341, %v3340
  %v3352 = vpack.c.b16 %v3343, %v3342
  %v3353 = vpack.c.b16 %v3345, %v3344
  %3362 = vmatprep.subr.bf16.mxu0 0
  %3363 = vmatpush1.bf16.msra.mxu0 %v3346
  %3364 = vmatprep.subr.bf16.mxu0 0
  %3365 = vmatpush1.bf16.msra.mxu0 %v3347
  %3366 = vmatprep.subr.bf16.mxu0 0
  %3367 = vmatpush1.bf16.msra.mxu0 %v3348
  %3368 = vmatprep.subr.bf16.mxu0 0
  %3369 = vmatpush1.bf16.msra.mxu0 %v3349
  %3370 = vmatprep.subr.bf16.mxu0 0
  %3371 = vmatpush1.bf16.msra.mxu0 %v3350
  %3372 = vmatprep.subr.bf16.mxu0 0
  %3373 = vmatpush1.bf16.msra.mxu0 %v3351
  %3374 = vmatprep.subr.bf16.mxu0 0
  %3375 = vmatpush1.bf16.msra.mxu0 %v3352
  %3376 = vmatprep.subr.bf16.mxu0 0
  %3377 = vmatpush1.bf16.msra.mxu0 %v3353
  %3378 = vmatprep.subr.bf16.mxu0 0
  %3379 = vmatpush1.bf16.msra.mxu0 0
  %3380 = vmatprep.subr.bf16.mxu0 0
  %3381 = vmatpush1.bf16.msra.mxu0 0
  %3382 = vmatprep.subr.bf16.mxu0 0
  %3383 = vmatpush1.bf16.msra.mxu0 0
  %3384 = vmatprep.subr.bf16.mxu0 0
  %3385 = vmatpush1.bf16.msra.mxu0 0
  %3386 = vmatprep.subr.bf16.mxu0 0
  %3387 = vmatpush1.bf16.msra.mxu0 0
  %3388 = vmatprep.subr.bf16.mxu0 0
  %3389 = vmatpush1.bf16.msra.mxu0 0
  %3390 = vmatprep.subr.bf16.mxu0 0
  %3391 = vmatpush1.bf16.msra.mxu0 0
  %3392 = vmatprep.subr.bf16.mxu0 0
  %3393 = vmatpush1.bf16.msra.mxu0 0
  %3394 = vmatprep.mubr.bf16.mxu0 0
  %3395 = vmatmul.mubr.bf16.gmra.mrb[0].mxu0 %v3265
  %v3396 = vpop.f32.mrb[0].mxu0
  %v3397 = vadd.f32 0.0, %v3396
  %v3398 = vpop.f32.mrb[0].mxu0
  %v3399 = vpop.f32.mrb[0].mxu0
  %v3400 = vadd.f32 0.0, %v3399
  %v3401 = vpop.f32.mrb[0].mxu0
  %3402 = vmatprep.mubr.bf16.mxu0 0
  %3403 = vmatmul.mubr.bf16.gmra.mrb[0].mxu0 %v3266
  %v3404 = vpop.f32.mrb[0].mxu0
  %v3405 = vadd.f32 0.0, %v3404
  %v3406 = vpop.f32.mrb[0].mxu0
  %v3407 = vpop.f32.mrb[0].mxu0
  %v3408 = vadd.f32 0.0, %v3407
  %v3409 = vpop.f32.mrb[0].mxu0
  %3410 = vmatprep.mubr.bf16.mxu0 0
  %3411 = vmatmul.mubr.bf16.gmra.mrb[0].mxu0 %v3267
  %v3412 = vpop.f32.mrb[0].mxu0
  %v3413 = vadd.f32 0.0, %v3412
  %v3414 = vpop.f32.mrb[0].mxu0
  %v3415 = vpop.f32.mrb[0].mxu0
  %v3416 = vadd.f32 0.0, %v3415
  %v3417 = vpop.f32.mrb[0].mxu0
  %3418 = vmatprep.mubr.bf16.mxu0 0
  %3419 = vmatmul.mubr.bf16.gmra.mrb[0].mxu0 %v3268
  %v3420 = vpop.f32.mrb[0].mxu0
  %v3421 = vadd.f32 0.0, %v3420
  %v3422 = vpop.f32.mrb[0].mxu0
  %v3423 = vpop.f32.mrb[0].mxu0
  %v3424 = vadd.f32 0.0, %v3423
  %v3425 = vpop.f32.mrb[0].mxu0
  %3426 = vmatprep.mubr.bf16.mxu0 0
  %3427 = vmatmul.mubr.bf16.gmra.mrb[0].mxu0 %v3269
  %v3428 = vpop.f32.mrb[0].mxu0
  %v3429 = vadd.f32 0.0, %v3428
  %v3430 = vpop.f32.mrb[0].mxu0
  %v3431 = vpop.f32.mrb[0].mxu0
  %v3432 = vadd.f32 0.0, %v3431
  %v3433 = vpop.f32.mrb[0].mxu0
  %3434 = vmatprep.mubr.bf16.mxu0 0
  %3435 = vmatmul.mubr.bf16.gmra.mrb[0].mxu0 %v3270
  %v3436 = vpop.f32.mrb[0].mxu0
  %v3437 = vadd.f32 0.0, %v3436
  %v3438 = vpop.f32.mrb[0].mxu0
  %v3439 = vpop.f32.mrb[0].mxu0
  %v3440 = vadd.f32 0.0, %v3439
  %v3441 = vpop.f32.mrb[0].mxu0
  %3442 = vmatprep.mubr.bf16.mxu0 0
  %3443 = vmatmul.mubr.bf16.gmra.mrb[0].mxu0 %v3271
  %v3444 = vpop.f32.mrb[0].mxu0
  %v3445 = vadd.f32 0.0, %v3444
  %v3446 = vpop.f32.mrb[0].mxu0
  %v3447 = vpop.f32.mrb[0].mxu0
  %v3448 = vadd.f32 0.0, %v3447
  %v3449 = vpop.f32.mrb[0].mxu0
  %3450 = vmatprep.mubr.bf16.mxu0 0
  %3451 = vmatmul.mubr.bf16.gmra.mrb[0].mxu0 %v3272
  %v3452 = vpop.f32.mrb[0].mxu0
  %v3453 = vadd.f32 0.0, %v3452
  %v3454 = vpop.f32.mrb[0].mxu0
  %v3455 = vpop.f32.mrb[0].mxu0
  %v3456 = vadd.f32 0.0, %v3455
  %v3457 = vpop.f32.mrb[0].mxu0
  %3458 = vmatprep.mubr.bf16.mxu0 0
  %3459 = vmatmul.mubr.bf16.gmra.mrb[0].mxu0 %v3273
  %v3460 = vpop.f32.mrb[0].mxu0
  %v3461 = vadd.f32 0.0, %v3460
  %v3462 = vpop.f32.mrb[0].mxu0
  %v3463 = vpop.f32.mrb[0].mxu0
  %v3464 = vadd.f32 0.0, %v3463
  %v3465 = vpop.f32.mrb[0].mxu0
  %3466 = vmatprep.mubr.bf16.mxu0 0
  %3467 = vmatmul.mubr.bf16.gmra.mrb[0].mxu0 %v3274
  %v3468 = vpop.f32.mrb[0].mxu0
  %v3469 = vadd.f32 0.0, %v3468
  %v3470 = vpop.f32.mrb[0].mxu0
  %v3471 = vpop.f32.mrb[0].mxu0
  %v3472 = vadd.f32 0.0, %v3471
  %v3473 = vpop.f32.mrb[0].mxu0
  %3474 = vmatprep.mubr.bf16.mxu0 0
  %3475 = vmatmul.mubr.bf16.gmra.mrb[0].mxu0 %v3275
  %v3476 = vpop.f32.mrb[0].mxu0
  %v3477 = vadd.f32 0.0, %v3476
  %v3478 = vpop.f32.mrb[0].mxu0
  %v3479 = vpop.f32.mrb[0].mxu0
  %v3480 = vadd.f32 0.0, %v3479
  %v3481 = vpop.f32.mrb[0].mxu0
  %3482 = vmatprep.mubr.bf16.mxu0 0
  %3483 = vmatmul.mubr.bf16.gmra.mrb[0].mxu0 %v3276
  %v3484 = vpop.f32.mrb[0].mxu0
  %v3485 = vadd.f32 0.0, %v3484
  %v3486 = vpop.f32.mrb[0].mxu0
  %v3487 = vpop.f32.mrb[0].mxu0
  %v3488 = vadd.f32 0.0, %v3487
  %v3489 = vpop.f32.mrb[0].mxu0
  %3490 = vmatprep.mubr.bf16.mxu0 0
  %3491 = vmatmul.mubr.bf16.gmra.mrb[0].mxu0 %v3277
  %v3492 = vpop.f32.mrb[0].mxu0
  %v3493 = vadd.f32 0.0, %v3492
  %v3494 = vpop.f32.mrb[0].mxu0
  %v3495 = vpop.f32.mrb[0].mxu0
  %v3496 = vadd.f32 0.0, %v3495
  %v3497 = vpop.f32.mrb[0].mxu0
  %3498 = vmatprep.mubr.bf16.mxu0 0
  %3499 = vmatmul.mubr.bf16.gmra.mrb[0].mxu0 %v3278
  %v3500 = vpop.f32.mrb[0].mxu0
  %v3501 = vadd.f32 0.0, %v3500
  %v3502 = vpop.f32.mrb[0].mxu0
  %v3503 = vpop.f32.mrb[0].mxu0
  %v3504 = vadd.f32 0.0, %v3503
  %v3505 = vpop.f32.mrb[0].mxu0
  %3506 = vmatprep.mubr.bf16.mxu0 0
  %3507 = vmatmul.mubr.bf16.gmra.mrb[0].mxu0 %v3279
  %v3508 = vpop.f32.mrb[0].mxu0
  %v3509 = vadd.f32 0.0, %v3508
  %v3510 = vpop.f32.mrb[0].mxu0
  %v3511 = vpop.f32.mrb[0].mxu0
  %v3512 = vadd.f32 0.0, %v3511
  %v3513 = vpop.f32.mrb[0].mxu0
  %3514 = vmatprep.mubr.bf16.mxu0 0
  %3515 = vmatmul.mubr.bf16.gmra.mrb[0].mxu0 %v3280
  %v3516 = vpop.f32.mrb[0].mxu0
  %v3517 = vadd.f32 0.0, %v3516
  %v3518 = vpop.f32.mrb[0].mxu0
  %v3519 = vpop.f32.mrb[0].mxu0
  %v3520 = vadd.f32 0.0, %v3519
  %v3521 = vpop.f32.mrb[0].mxu0
  %3522 = vmatprep.mubr.bf16.mxu0 0
  %3523 = vmatmul.mubr.bf16.gmra.mrb[0].mxu0 %v3281
  %v3524 = vpop.f32.mrb[0].mxu0
  %v3525 = vadd.f32 0.0, %v3524
  %v3526 = vpop.f32.mrb[0].mxu0
  %v3527 = vpop.f32.mrb[0].mxu0
  %v3528 = vadd.f32 0.0, %v3527
  %v3529 = vpop.f32.mrb[0].mxu0
  %3530 = vmatprep.mubr.bf16.mxu0 0
  %3531 = vmatmul.mubr.bf16.gmra.mrb[0].mxu0 %v3282
  %v3532 = vpop.f32.mrb[0].mxu0
  %v3533 = vadd.f32 0.0, %v3532
  %v3534 = vpop.f32.mrb[0].mxu0
  %v3535 = vpop.f32.mrb[0].mxu0
  %v3536 = vadd.f32 0.0, %v3535
  %v3537 = vpop.f32.mrb[0].mxu0
  %3538 = vmatprep.mubr.bf16.mxu0 0
  %3539 = vmatmul.mubr.bf16.gmra.mrb[0].mxu0 %v3283
  %v3540 = vpop.f32.mrb[0].mxu0
  %v3541 = vadd.f32 0.0, %v3540
  %v3542 = vpop.f32.mrb[0].mxu0
  %v3543 = vpop.f32.mrb[0].mxu0
  %v3544 = vadd.f32 0.0, %v3543
  %v3545 = vpop.f32.mrb[0].mxu0
  %3546 = vmatprep.mubr.bf16.mxu0 0
  %3547 = vmatmul.mubr.bf16.gmra.mrb[0].mxu0 %v3284
  %v3548 = vpop.f32.mrb[0].mxu0
  %v3549 = vadd.f32 0.0, %v3548
  %v3550 = vpop.f32.mrb[0].mxu0
  %v3551 = vpop.f32.mrb[0].mxu0
  %v3552 = vadd.f32 0.0, %v3551
  %v3553 = vpop.f32.mrb[0].mxu0
  %3554 = vmatprep.mubr.bf16.mxu0 0
  %3555 = vmatmul.mubr.bf16.gmra.mrb[0].mxu0 %v3285
  %v3556 = vpop.f32.mrb[0].mxu0
  %v3557 = vadd.f32 0.0, %v3556
  %v3558 = vpop.f32.mrb[0].mxu0
  %v3559 = vpop.f32.mrb[0].mxu0
  %v3560 = vadd.f32 0.0, %v3559
  %v3561 = vpop.f32.mrb[0].mxu0
  %3562 = vmatprep.mubr.bf16.mxu0 0
  %3563 = vmatmul.mubr.bf16.gmra.mrb[0].mxu0 %v3286
  %v3564 = vpop.f32.mrb[0].mxu0
  %v3565 = vadd.f32 0.0, %v3564
  %v3566 = vpop.f32.mrb[0].mxu0
  %v3567 = vpop.f32.mrb[0].mxu0
  %v3568 = vadd.f32 0.0, %v3567
  %v3569 = vpop.f32.mrb[0].mxu0
  %3570 = vmatprep.mubr.bf16.mxu0 0
  %3571 = vmatmul.mubr.bf16.gmra.mrb[0].mxu0 %v3287
  %v3572 = vpop.f32.mrb[0].mxu0
  %v3573 = vadd.f32 0.0, %v3572
  %v3574 = vpop.f32.mrb[0].mxu0
  %v3575 = vpop.f32.mrb[0].mxu0
  %v3576 = vadd.f32 0.0, %v3575
  %v3577 = vpop.f32.mrb[0].mxu0
  %3578 = vmatprep.mubr.bf16.mxu0 0
  %3579 = vmatmul.mubr.bf16.gmra.mrb[0].mxu0 %v3288
  %v3580 = vpop.f32.mrb[0].mxu0
  %v3581 = vadd.f32 0.0, %v3580
  %v3582 = vpop.f32.mrb[0].mxu0
  %v3583 = vpop.f32.mrb[0].mxu0
  %v3584 = vadd.f32 0.0, %v3583
  %v3585 = vpop.f32.mrb[0].mxu0
  %3586 = vmatprep.mubr.bf16.mxu0 0
  %3587 = vmatmul.mubr.bf16.gmra.mrb[0].mxu0 %v3289
  %v3588 = vpop.f32.mrb[0].mxu0
  %v3589 = vadd.f32 0.0, %v3588
  %v3590 = vpop.f32.mrb[0].mxu0
  %v3591 = vpop.f32.mrb[0].mxu0
  %v3592 = vadd.f32 0.0, %v3591
  %v3593 = vpop.f32.mrb[0].mxu0
  %3594 = vmatprep.mubr.bf16.mxu0 0
  %3595 = vmatmul.mubr.bf16.gmra.mrb[0].mxu0 %v3290
  %v3596 = vpop.f32.mrb[0].mxu0
  %v3597 = vadd.f32 0.0, %v3596
  %v3598 = vpop.f32.mrb[0].mxu0
  %v3599 = vpop.f32.mrb[0].mxu0
  %v3600 = vadd.f32 0.0, %v3599
  %v3601 = vpop.f32.mrb[0].mxu0
  %3602 = vmatprep.mubr.bf16.mxu0 0
  %3603 = vmatmul.mubr.bf16.gmra.mrb[0].mxu0 %v3291
  %v3604 = vpop.f32.mrb[0].mxu0
  %v3605 = vadd.f32 0.0, %v3604
  %v3606 = vpop.f32.mrb[0].mxu0
  %v3607 = vpop.f32.mrb[0].mxu0
  %v3608 = vadd.f32 0.0, %v3607
  %v3609 = vpop.f32.mrb[0].mxu0
  %3610 = vmatprep.mubr.bf16.mxu0 0
  %3611 = vmatmul.mubr.bf16.gmra.mrb[0].mxu0 %v3292
  %v3612 = vpop.f32.mrb[0].mxu0
  %v3613 = vadd.f32 0.0, %v3612
  %v3614 = vpop.f32.mrb[0].mxu0
  %v3615 = vpop.f32.mrb[0].mxu0
  %v3616 = vadd.f32 0.0, %v3615
  %v3617 = vpop.f32.mrb[0].mxu0
  %3618 = vmatprep.mubr.bf16.mxu0 0
  %3619 = vmatmul.mubr.bf16.gmra.mrb[0].mxu0 %v3293
  %v3620 = vpop.f32.mrb[0].mxu0
  %v3621 = vadd.f32 0.0, %v3620
  %v3622 = vpop.f32.mrb[0].mxu0
  %v3623 = vpop.f32.mrb[0].mxu0
  %v3624 = vadd.f32 0.0, %v3623
  %v3625 = vpop.f32.mrb[0].mxu0
  %3626 = vmatprep.mubr.bf16.mxu0 0
  %3627 = vmatmul.mubr.bf16.gmra.mrb[0].mxu0 %v3294
  %v3628 = vpop.f32.mrb[0].mxu0
  %v3629 = vadd.f32 0.0, %v3628
  %v3630 = vpop.f32.mrb[0].mxu0
  %v3631 = vpop.f32.mrb[0].mxu0
  %v3632 = vadd.f32 0.0, %v3631
  %v3633 = vpop.f32.mrb[0].mxu0
  %3634 = vmatprep.mubr.bf16.mxu0 0
  %3635 = vmatmul.mubr.bf16.gmra.mrb[0].mxu0 %v3295
  %v3636 = vpop.f32.mrb[0].mxu0
  %v3637 = vadd.f32 0.0, %v3636
  %v3638 = vpop.f32.mrb[0].mxu0
  %v3639 = vpop.f32.mrb[0].mxu0
  %v3640 = vadd.f32 0.0, %v3639
  %v3641 = vpop.f32.mrb[0].mxu0
  %3642 = vmatprep.mubr.bf16.mxu0 0
  %3643 = vmatmul.mubr.bf16.gmra.mrb[0].mxu0 %v3296
  %v3644 = vpop.f32.mrb[0].mxu0
  %v3645 = vadd.f32 0.0, %v3644
  %v3646 = vpop.f32.mrb[0].mxu0
  %v3647 = vpop.f32.mrb[0].mxu0
  %v3648 = vadd.f32 0.0, %v3647
  %v3649 = vpop.f32.mrb[0].mxu0
  %3650 = vdwg.mxu0
  %v3651 = vadd.f32 %v3136, %v3397
  %v3652 = vadd.f32 %v3137, %v3400
  %v3653 = vadd.f32 %v3138, %v3405
  %v3654 = vadd.f32 %v3139, %v3408
  %v3655 = vadd.f32 %v3140, %v3413
  %v3656 = vadd.f32 %v3141, %v3416
  %v3657 = vadd.f32 %v3142, %v3421
  %v3658 = vadd.f32 %v3143, %v3424
  %v3659 = vadd.f32 %v3144, %v3429
  %v3660 = vadd.f32 %v3145, %v3432
  %v3661 = vadd.f32 %v3146, %v3437
  %v3662 = vadd.f32 %v3147, %v3440
  %v3663 = vadd.f32 %v3148, %v3445
  %v3664 = vadd.f32 %v3149, %v3448
  %v3665 = vadd.f32 %v3150, %v3453
  %v3666 = vadd.f32 %v3151, %v3456
  %v3667 = vadd.f32 %v3152, %v3461
  %v3668 = vadd.f32 %v3153, %v3464
  %v3669 = vadd.f32 %v3154, %v3469
  %v3670 = vadd.f32 %v3155, %v3472
  %v3671 = vadd.f32 %v3156, %v3477
  %v3672 = vadd.f32 %v3157, %v3480
  %v3673 = vadd.f32 %v3158, %v3485
  %v3674 = vadd.f32 %v3159, %v3488
  %v3675 = vadd.f32 %v3160, %v3493
  %v3676 = vadd.f32 %v3161, %v3496
  %v3677 = vadd.f32 %v3162, %v3501
  %v3678 = vadd.f32 %v3163, %v3504
  %v3679 = vadd.f32 %v3164, %v3509
  %v3680 = vadd.f32 %v3165, %v3512
  %v3681 = vadd.f32 %v3166, %v3517
  %v3682 = vadd.f32 %v3167, %v3520
  %v3683 = vadd.f32 %v3168, %v3525
  %v3684 = vadd.f32 %v3169, %v3528
  %v3685 = vadd.f32 %v3170, %v3533
  %v3686 = vadd.f32 %v3171, %v3536
  %v3687 = vadd.f32 %v3172, %v3541
  %v3688 = vadd.f32 %v3173, %v3544
  %v3689 = vadd.f32 %v3174, %v3549
  %v3690 = vadd.f32 %v3175, %v3552
  %v3691 = vadd.f32 %v3176, %v3557
  %v3692 = vadd.f32 %v3177, %v3560
  %v3693 = vadd.f32 %v3178, %v3565
  %v3694 = vadd.f32 %v3179, %v3568
  %v3695 = vadd.f32 %v3180, %v3573
  %v3696 = vadd.f32 %v3181, %v3576
  %v3697 = vadd.f32 %v3182, %v3581
  %v3698 = vadd.f32 %v3183, %v3584
  %v3699 = vadd.f32 %v3184, %v3589
  %v3700 = vadd.f32 %v3185, %v3592
  %v3701 = vadd.f32 %v3186, %v3597
  %v3702 = vadd.f32 %v3187, %v3600
  %v3703 = vadd.f32 %v3188, %v3605
  %v3704 = vadd.f32 %v3189, %v3608
  %v3705 = vadd.f32 %v3190, %v3613
  %v3706 = vadd.f32 %v3191, %v3616
  %v3707 = vadd.f32 %v3192, %v3621
  %v3708 = vadd.f32 %v3193, %v3624
  %v3709 = vadd.f32 %v3194, %v3629
  %v3710 = vadd.f32 %v3195, %v3632
  %v3711 = vadd.f32 %v3196, %v3637
  %v3712 = vadd.f32 %v3197, %v3640
  %v3713 = vadd.f32 %v3198, %v3645
  %v3714 = vadd.f32 %v3199, %v3648
  %v3715 = vld [vmem:[%s3200 + $0x8] sm:$0xff]
  %v3716 = vld [vmem:[%s3200 + $0x10] sm:$0xff]
  %v3717 = vld [vmem:[%s3200 + $0x28] sm:$0xff]
  %v3718 = vld [vmem:[%s3200 + $0x30] sm:$0xff]
  %v3719 = vld [vmem:[%s3200 + $0x48] sm:$0xff]
  %v3720 = vld [vmem:[%s3200 + $0x50] sm:$0xff]
  %v3721 = vld [vmem:[%s3200 + $0x68] sm:$0xff]
  %v3722 = vld [vmem:[%s3200 + $0x70] sm:$0xff]
  %v3723 = vld [vmem:[%s3200 + $0x88] sm:$0xff]
  %v3724 = vld [vmem:[%s3200 + $0x90] sm:$0xff]
  %v3725 = vld [vmem:[%s3200 + $0xa8] sm:$0xff]
  %v3726 = vld [vmem:[%s3200 + $0xb0] sm:$0xff]
  %v3727 = vld [vmem:[%s3200 + $0xc8] sm:$0xff]
  %v3728 = vld [vmem:[%s3200 + $0xd0] sm:$0xff]
  %v3729 = vld [vmem:[%s3200 + $0xe8] sm:$0xff]
  %v3730 = vld [vmem:[%s3200 + $0xf0] sm:$0xff]
  %v3731 = vld [vmem:[%s3200 + $0x108] sm:$0xff]
  %v3732 = vld [vmem:[%s3200 + $0x110] sm:$0xff]
  %v3733 = vld [vmem:[%s3200 + $0x128] sm:$0xff]
  %v3734 = vld [vmem:[%s3200 + $0x130] sm:$0xff]
  %v3735 = vld [vmem:[%s3200 + $0x148] sm:$0xff]
  %v3736 = vld [vmem:[%s3200 + $0x150] sm:$0xff]
  %v3737 = vld [vmem:[%s3200 + $0x168] sm:$0xff]
  %v3738 = vld [vmem:[%s3200 + $0x170] sm:$0xff]
  %v3739 = vld [vmem:[%s3200 + $0x188] sm:$0xff]
  %v3740 = vld [vmem:[%s3200 + $0x190] sm:$0xff]
  %v3741 = vld [vmem:[%s3200 + $0x1a8] sm:$0xff]
  %v3742 = vld [vmem:[%s3200 + $0x1b0] sm:$0xff]
  %v3743 = vld [vmem:[%s3200 + $0x1c8] sm:$0xff]
  %v3744 = vld [vmem:[%s3200 + $0x1d0] sm:$0xff]
  %v3745 = vld [vmem:[%s3200 + $0x1e8] sm:$0xff]
  %v3746 = vld [vmem:[%s3200 + $0x1f0] sm:$0xff]
  %v3747 = vld [vmem:[%s3200 + $0x248] sm:$0xff]
  %v3748 = vld [vmem:[%s3200 + $0x250] sm:$0xff]
  %v3749 = vld [vmem:[%s3200 + $0x268] sm:$0xff]
  %v3750 = vld [vmem:[%s3200 + $0x270] sm:$0xff]
  %v3751 = vld [vmem:[%s3200 + $0x288] sm:$0xff]
  %v3752 = vld [vmem:[%s3200 + $0x290] sm:$0xff]
  %v3753 = vld [vmem:[%s3200 + $0x2a8] sm:$0xff]
  %v3754 = vld [vmem:[%s3200 + $0x2b0] sm:$0xff]
  %v3755 = vld [vmem:[%s3200 + $0x2c8] sm:$0xff]
  %v3756 = vld [vmem:[%s3200 + $0x2d0] sm:$0xff]
  %v3757 = vld [vmem:[%s3200 + $0x2e8] sm:$0xff]
  %v3758 = vld [vmem:[%s3200 + $0x2f0] sm:$0xff]
  %v3759 = vld [vmem:[%s3200 + $0x308] sm:$0xff]
  %v3760 = vld [vmem:[%s3200 + $0x310] sm:$0xff]
  %v3761 = vld [vmem:[%s3200 + $0x328] sm:$0xff]
  %v3762 = vld [vmem:[%s3200 + $0x330] sm:$0xff]
  %v3763 = vld [vmem:[%s3200 + $0x348] sm:$0xff]
  %v3764 = vld [vmem:[%s3200 + $0x350] sm:$0xff]
  %v3765 = vld [vmem:[%s3200 + $0x368] sm:$0xff]
  %v3766 = vld [vmem:[%s3200 + $0x370] sm:$0xff]
  %v3767 = vld [vmem:[%s3200 + $0x388] sm:$0xff]
  %v3768 = vld [vmem:[%s3200 + $0x390] sm:$0xff]
  %v3769 = vld [vmem:[%s3200 + $0x3a8] sm:$0xff]
  %v3770 = vld [vmem:[%s3200 + $0x3b0] sm:$0xff]
  %v3771 = vld [vmem:[%s3200 + $0x3c8] sm:$0xff]
  %v3772 = vld [vmem:[%s3200 + $0x3d0] sm:$0xff]
  %v3773 = vld [vmem:[%s3200 + $0x3e8] sm:$0xff]
  %v3774 = vld [vmem:[%s3200 + $0x3f0] sm:$0xff]
  %v3775 = vld [vmem:[%s3200 + $0x408] sm:$0xff]
  %v3776 = vld [vmem:[%s3200 + $0x410] sm:$0xff]
  %v3777 = vld [vmem:[%s3200 + $0x428] sm:$0xff]
  %v3778 = vld [vmem:[%s3200 + $0x430] sm:$0xff]
  %v3779 = vpack.c.bf16 %v3716, %v3715
  %v3780 = vpack.c.bf16 %v3718, %v3717
  %v3781 = vpack.c.bf16 %v3720, %v3719
  %v3782 = vpack.c.bf16 %v3722, %v3721
  %v3783 = vpack.c.bf16 %v3724, %v3723
  %v3784 = vpack.c.bf16 %v3726, %v3725
  %v3785 = vpack.c.bf16 %v3728, %v3727
  %v3786 = vpack.c.bf16 %v3730, %v3729
  %v3787 = vpack.c.bf16 %v3732, %v3731
  %v3788 = vpack.c.bf16 %v3734, %v3733
  %v3789 = vpack.c.bf16 %v3736, %v3735
  %v3790 = vpack.c.bf16 %v3738, %v3737
  %v3791 = vpack.c.bf16 %v3740, %v3739
  %v3792 = vpack.c.bf16 %v3742, %v3741
  %v3793 = vpack.c.bf16 %v3744, %v3743
  %v3794 = vpack.c.bf16 %v3746, %v3745
  %v3795 = vpack.c.bf16 %v3748, %v3747
  %v3796 = vpack.c.bf16 %v3750, %v3749
  %v3797 = vpack.c.bf16 %v3752, %v3751
  %v3798 = vpack.c.bf16 %v3754, %v3753
  %v3799 = vpack.c.bf16 %v3756, %v3755
  %v3800 = vpack.c.bf16 %v3758, %v3757
  %v3801 = vpack.c.bf16 %v3760, %v3759
  %v3802 = vpack.c.bf16 %v3762, %v3761
  %v3803 = vpack.c.bf16 %v3764, %v3763
  %v3804 = vpack.c.bf16 %v3766, %v3765
  %v3805 = vpack.c.bf16 %v3768, %v3767
  %v3806 = vpack.c.bf16 %v3770, %v3769
  %v3807 = vpack.c.bf16 %v3772, %v3771
  %v3808 = vpack.c.bf16 %v3774, %v3773
  %v3809 = vpack.c.bf16 %v3776, %v3775
  %v3810 = vpack.c.bf16 %v3778, %v3777
  %s3811 = scalar_lea.vmem %s1, 448
  %v3812 = vld [vmem:[%s3811] sm:$0xf]
  %v3813 = vld [vmem:[%s3811 + $0x4] sm:$0xf]
  %v3814 = vld [vmem:[%s3811 + $0x8] sm:$0xf]
  %v3815 = vld [vmem:[%s3811 + $0xc] sm:$0xf]
  %v3816 = vld [vmem:[%s3811 + $0x10] sm:$0xf]
  %v3817 = vld [vmem:[%s3811 + $0x14] sm:$0xf]
  %v3818 = vld [vmem:[%s3811 + $0x18] sm:$0xf]
  %v3819 = vld [vmem:[%s3811 + $0x1c] sm:$0xf]
  %v3820 = vld [vmem:[%s3811 + $0x20] sm:$0xf]
  %v3821 = vld [vmem:[%s3811 + $0x24] sm:$0xf]
  %v3822 = vld [vmem:[%s3811 + $0x28] sm:$0xf]
  %v3823 = vld [vmem:[%s3811 + $0x2c] sm:$0xf]
  %v3824 = vld [vmem:[%s3811 + $0x30] sm:$0xf]
  %v3825 = vld [vmem:[%s3811 + $0x34] sm:$0xf]
  %v3826 = vld [vmem:[%s3811 + $0x38] sm:$0xf]
  %v3827 = vld [vmem:[%s3811 + $0x3c] sm:$0xf]
  %v3844 = vunpack.c.l.b16 %v3812
  %v3845 = vunpack.c.l.b16 %v3813
  %v3846 = vunpack.c.l.b16 %v3814
  %v3847 = vunpack.c.l.b16 %v3815
  %v3848 = vunpack.c.l.b16 %v3816
  %v3849 = vunpack.c.l.b16 %v3817
  %v3850 = vunpack.c.l.b16 %v3818
  %v3851 = vunpack.c.l.b16 %v3819
  %v3852 = vunpack.c.l.b16 %v3820
  %v3853 = vunpack.c.l.b16 %v3821
  %v3854 = vunpack.c.l.b16 %v3822
  %v3855 = vunpack.c.l.b16 %v3823
  %v3856 = vunpack.c.l.b16 %v3824
  %v3857 = vunpack.c.l.b16 %v3825
  %v3858 = vunpack.c.l.b16 %v3826
  %v3859 = vunpack.c.l.b16 %v3827
  %v3860 = vpack.c.b16 %v3845, %v3844
  %v3861 = vpack.c.b16 %v3847, %v3846
  %v3862 = vpack.c.b16 %v3849, %v3848
  %v3863 = vpack.c.b16 %v3851, %v3850
  %v3864 = vpack.c.b16 %v3853, %v3852
  %v3865 = vpack.c.b16 %v3855, %v3854
  %v3866 = vpack.c.b16 %v3857, %v3856
  %v3867 = vpack.c.b16 %v3859, %v3858
  %3876 = vmatprep.subr.bf16.mxu0 0
  %3877 = vmatpush1.bf16.msra.mxu0 %v3860
  %3878 = vmatprep.subr.bf16.mxu0 0
  %3879 = vmatpush1.bf16.msra.mxu0 %v3861
  %3880 = vmatprep.subr.bf16.mxu0 0
  %3881 = vmatpush1.bf16.msra.mxu0 %v3862
  %3882 = vmatprep.subr.bf16.mxu0 0
  %3883 = vmatpush1.bf16.msra.mxu0 %v3863
  %3884 = vmatprep.subr.bf16.mxu0 0
  %3885 = vmatpush1.bf16.msra.mxu0 %v3864
  %3886 = vmatprep.subr.bf16.mxu0 0
  %3887 = vmatpush1.bf16.msra.mxu0 %v3865
  %3888 = vmatprep.subr.bf16.mxu0 0
  %3889 = vmatpush1.bf16.msra.mxu0 %v3866
  %3890 = vmatprep.subr.bf16.mxu0 0
  %3891 = vmatpush1.bf16.msra.mxu0 %v3867
  %3892 = vmatprep.subr.bf16.mxu0 0
  %3893 = vmatpush1.bf16.msra.mxu0 0
  %3894 = vmatprep.subr.bf16.mxu0 0
  %3895 = vmatpush1.bf16.msra.mxu0 0
  %3896 = vmatprep.subr.bf16.mxu0 0
  %3897 = vmatpush1.bf16.msra.mxu0 0
  %3898 = vmatprep.subr.bf16.mxu0 0
  %3899 = vmatpush1.bf16.msra.mxu0 0
  %3900 = vmatprep.subr.bf16.mxu0 0
  %3901 = vmatpush1.bf16.msra.mxu0 0
  %3902 = vmatprep.subr.bf16.mxu0 0
  %3903 = vmatpush1.bf16.msra.mxu0 0
  %3904 = vmatprep.subr.bf16.mxu0 0
  %3905 = vmatpush1.bf16.msra.mxu0 0
  %3906 = vmatprep.subr.bf16.mxu0 0
  %3907 = vmatpush1.bf16.msra.mxu0 0
  %3908 = vmatprep.mubr.bf16.mxu0 0
  %3909 = vmatmul.mubr.bf16.gmra.mrb[0].mxu0 %v3779
  %v3910 = vpop.f32.mrb[0].mxu0
  %v3911 = vadd.f32 0.0, %v3910
  %v3912 = vpop.f32.mrb[0].mxu0
  %v3913 = vpop.f32.mrb[0].mxu0
  %v3914 = vadd.f32 0.0, %v3913
  %v3915 = vpop.f32.mrb[0].mxu0
  %3916 = vmatprep.mubr.bf16.mxu0 0
  %3917 = vmatmul.mubr.bf16.gmra.mrb[0].mxu0 %v3780
  %v3918 = vpop.f32.mrb[0].mxu0
  %v3919 = vadd.f32 0.0, %v3918
  %v3920 = vpop.f32.mrb[0].mxu0
  %v3921 = vpop.f32.mrb[0].mxu0
  %v3922 = vadd.f32 0.0, %v3921
  %v3923 = vpop.f32.mrb[0].mxu0
  %3924 = vmatprep.mubr.bf16.mxu0 0
  %3925 = vmatmul.mubr.bf16.gmra.mrb[0].mxu0 %v3781
  %v3926 = vpop.f32.mrb[0].mxu0
  %v3927 = vadd.f32 0.0, %v3926
  %v3928 = vpop.f32.mrb[0].mxu0
  %v3929 = vpop.f32.mrb[0].mxu0
  %v3930 = vadd.f32 0.0, %v3929
  %v3931 = vpop.f32.mrb[0].mxu0
  %3932 = vmatprep.mubr.bf16.mxu0 0
  %3933 = vmatmul.mubr.bf16.gmra.mrb[0].mxu0 %v3782
  %v3934 = vpop.f32.mrb[0].mxu0
  %v3935 = vadd.f32 0.0, %v3934
  %v3936 = vpop.f32.mrb[0].mxu0
  %v3937 = vpop.f32.mrb[0].mxu0
  %v3938 = vadd.f32 0.0, %v3937
  %v3939 = vpop.f32.mrb[0].mxu0
  %3940 = vmatprep.mubr.bf16.mxu0 0
  %3941 = vmatmul.mubr.bf16.gmra.mrb[0].mxu0 %v3783
  %v3942 = vpop.f32.mrb[0].mxu0
  %v3943 = vadd.f32 0.0, %v3942
  %v3944 = vpop.f32.mrb[0].mxu0
  %v3945 = vpop.f32.mrb[0].mxu0
  %v3946 = vadd.f32 0.0, %v3945
  %v3947 = vpop.f32.mrb[0].mxu0
  %3948 = vmatprep.mubr.bf16.mxu0 0
  %3949 = vmatmul.mubr.bf16.gmra.mrb[0].mxu0 %v3784
  %v3950 = vpop.f32.mrb[0].mxu0
  %v3951 = vadd.f32 0.0, %v3950
  %v3952 = vpop.f32.mrb[0].mxu0
  %v3953 = vpop.f32.mrb[0].mxu0
  %v3954 = vadd.f32 0.0, %v3953
  %v3955 = vpop.f32.mrb[0].mxu0
  %3956 = vmatprep.mubr.bf16.mxu0 0
  %3957 = vmatmul.mubr.bf16.gmra.mrb[0].mxu0 %v3785
  %v3958 = vpop.f32.mrb[0].mxu0
  %v3959 = vadd.f32 0.0, %v3958
  %v3960 = vpop.f32.mrb[0].mxu0
  %v3961 = vpop.f32.mrb[0].mxu0
  %v3962 = vadd.f32 0.0, %v3961
  %v3963 = vpop.f32.mrb[0].mxu0
  %3964 = vmatprep.mubr.bf16.mxu0 0
  %3965 = vmatmul.mubr.bf16.gmra.mrb[0].mxu0 %v3786
  %v3966 = vpop.f32.mrb[0].mxu0
  %v3967 = vadd.f32 0.0, %v3966
  %v3968 = vpop.f32.mrb[0].mxu0
  %v3969 = vpop.f32.mrb[0].mxu0
  %v3970 = vadd.f32 0.0, %v3969
  %v3971 = vpop.f32.mrb[0].mxu0
  %3972 = vmatprep.mubr.bf16.mxu0 0
  %3973 = vmatmul.mubr.bf16.gmra.mrb[0].mxu0 %v3787
  %v3974 = vpop.f32.mrb[0].mxu0
  %v3975 = vadd.f32 0.0, %v3974
  %v3976 = vpop.f32.mrb[0].mxu0
  %v3977 = vpop.f32.mrb[0].mxu0
  %v3978 = vadd.f32 0.0, %v3977
  %v3979 = vpop.f32.mrb[0].mxu0
  %3980 = vmatprep.mubr.bf16.mxu0 0
  %3981 = vmatmul.mubr.bf16.gmra.mrb[0].mxu0 %v3788
  %v3982 = vpop.f32.mrb[0].mxu0
  %v3983 = vadd.f32 0.0, %v3982
  %v3984 = vpop.f32.mrb[0].mxu0
  %v3985 = vpop.f32.mrb[0].mxu0
  %v3986 = vadd.f32 0.0, %v3985
  %v3987 = vpop.f32.mrb[0].mxu0
  %3988 = vmatprep.mubr.bf16.mxu0 0
  %3989 = vmatmul.mubr.bf16.gmra.mrb[0].mxu0 %v3789
  %v3990 = vpop.f32.mrb[0].mxu0
  %v3991 = vadd.f32 0.0, %v3990
  %v3992 = vpop.f32.mrb[0].mxu0
  %v3993 = vpop.f32.mrb[0].mxu0
  %v3994 = vadd.f32 0.0, %v3993
  %v3995 = vpop.f32.mrb[0].mxu0
  %3996 = vmatprep.mubr.bf16.mxu0 0
  %3997 = vmatmul.mubr.bf16.gmra.mrb[0].mxu0 %v3790
  %v3998 = vpop.f32.mrb[0].mxu0
  %v3999 = vadd.f32 0.0, %v3998
  %v4000 = vpop.f32.mrb[0].mxu0
  %v4001 = vpop.f32.mrb[0].mxu0
  %v4002 = vadd.f32 0.0, %v4001
  %v4003 = vpop.f32.mrb[0].mxu0
  %4004 = vmatprep.mubr.bf16.mxu0 0
  %4005 = vmatmul.mubr.bf16.gmra.mrb[0].mxu0 %v3791
  %v4006 = vpop.f32.mrb[0].mxu0
  %v4007 = vadd.f32 0.0, %v4006
  %v4008 = vpop.f32.mrb[0].mxu0
  %v4009 = vpop.f32.mrb[0].mxu0
  %v4010 = vadd.f32 0.0, %v4009
  %v4011 = vpop.f32.mrb[0].mxu0
  %4012 = vmatprep.mubr.bf16.mxu0 0
  %4013 = vmatmul.mubr.bf16.gmra.mrb[0].mxu0 %v3792
  %v4014 = vpop.f32.mrb[0].mxu0
  %v4015 = vadd.f32 0.0, %v4014
  %v4016 = vpop.f32.mrb[0].mxu0
  %v4017 = vpop.f32.mrb[0].mxu0
  %v4018 = vadd.f32 0.0, %v4017
  %v4019 = vpop.f32.mrb[0].mxu0
  %4020 = vmatprep.mubr.bf16.mxu0 0
  %4021 = vmatmul.mubr.bf16.gmra.mrb[0].mxu0 %v3793
  %v4022 = vpop.f32.mrb[0].mxu0
  %v4023 = vadd.f32 0.0, %v4022
  %v4024 = vpop.f32.mrb[0].mxu0
  %v4025 = vpop.f32.mrb[0].mxu0
  %v4026 = vadd.f32 0.0, %v4025
  %v4027 = vpop.f32.mrb[0].mxu0
  %4028 = vmatprep.mubr.bf16.mxu0 0
  %4029 = vmatmul.mubr.bf16.gmra.mrb[0].mxu0 %v3794
  %v4030 = vpop.f32.mrb[0].mxu0
  %v4031 = vadd.f32 0.0, %v4030
  %v4032 = vpop.f32.mrb[0].mxu0
  %v4033 = vpop.f32.mrb[0].mxu0
  %v4034 = vadd.f32 0.0, %v4033
  %v4035 = vpop.f32.mrb[0].mxu0
  %4036 = vmatprep.mubr.bf16.mxu0 0
  %4037 = vmatmul.mubr.bf16.gmra.mrb[0].mxu0 %v3795
  %v4038 = vpop.f32.mrb[0].mxu0
  %v4039 = vadd.f32 0.0, %v4038
  %v4040 = vpop.f32.mrb[0].mxu0
  %v4041 = vpop.f32.mrb[0].mxu0
  %v4042 = vadd.f32 0.0, %v4041
  %v4043 = vpop.f32.mrb[0].mxu0
  %4044 = vmatprep.mubr.bf16.mxu0 0
  %4045 = vmatmul.mubr.bf16.gmra.mrb[0].mxu0 %v3796
  %v4046 = vpop.f32.mrb[0].mxu0
  %v4047 = vadd.f32 0.0, %v4046
  %v4048 = vpop.f32.mrb[0].mxu0
  %v4049 = vpop.f32.mrb[0].mxu0
  %v4050 = vadd.f32 0.0, %v4049
  %v4051 = vpop.f32.mrb[0].mxu0
  %4052 = vmatprep.mubr.bf16.mxu0 0
  %4053 = vmatmul.mubr.bf16.gmra.mrb[0].mxu0 %v3797
  %v4054 = vpop.f32.mrb[0].mxu0
  %v4055 = vadd.f32 0.0, %v4054
  %v4056 = vpop.f32.mrb[0].mxu0
  %v4057 = vpop.f32.mrb[0].mxu0
  %v4058 = vadd.f32 0.0, %v4057
  %v4059 = vpop.f32.mrb[0].mxu0
  %4060 = vmatprep.mubr.bf16.mxu0 0
  %4061 = vmatmul.mubr.bf16.gmra.mrb[0].mxu0 %v3798
  %v4062 = vpop.f32.mrb[0].mxu0
  %v4063 = vadd.f32 0.0, %v4062
  %v4064 = vpop.f32.mrb[0].mxu0
  %v4065 = vpop.f32.mrb[0].mxu0
  %v4066 = vadd.f32 0.0, %v4065
  %v4067 = vpop.f32.mrb[0].mxu0
  %4068 = vmatprep.mubr.bf16.mxu0 0
  %4069 = vmatmul.mubr.bf16.gmra.mrb[0].mxu0 %v3799
  %v4070 = vpop.f32.mrb[0].mxu0
  %v4071 = vadd.f32 0.0, %v4070
  %v4072 = vpop.f32.mrb[0].mxu0
  %v4073 = vpop.f32.mrb[0].mxu0
  %v4074 = vadd.f32 0.0, %v4073
  %v4075 = vpop.f32.mrb[0].mxu0
  %4076 = vmatprep.mubr.bf16.mxu0 0
  %4077 = vmatmul.mubr.bf16.gmra.mrb[0].mxu0 %v3800
  %v4078 = vpop.f32.mrb[0].mxu0
  %v4079 = vadd.f32 0.0, %v4078
  %v4080 = vpop.f32.mrb[0].mxu0
  %v4081 = vpop.f32.mrb[0].mxu0
  %v4082 = vadd.f32 0.0, %v4081
  %v4083 = vpop.f32.mrb[0].mxu0
  %4084 = vmatprep.mubr.bf16.mxu0 0
  %4085 = vmatmul.mubr.bf16.gmra.mrb[0].mxu0 %v3801
  %v4086 = vpop.f32.mrb[0].mxu0
  %v4087 = vadd.f32 0.0, %v4086
  %v4088 = vpop.f32.mrb[0].mxu0
  %v4089 = vpop.f32.mrb[0].mxu0
  %v4090 = vadd.f32 0.0, %v4089
  %v4091 = vpop.f32.mrb[0].mxu0
  %4092 = vmatprep.mubr.bf16.mxu0 0
  %4093 = vmatmul.mubr.bf16.gmra.mrb[0].mxu0 %v3802
  %v4094 = vpop.f32.mrb[0].mxu0
  %v4095 = vadd.f32 0.0, %v4094
  %v4096 = vpop.f32.mrb[0].mxu0
  %v4097 = vpop.f32.mrb[0].mxu0
  %v4098 = vadd.f32 0.0, %v4097
  %v4099 = vpop.f32.mrb[0].mxu0
  %4100 = vmatprep.mubr.bf16.mxu0 0
  %4101 = vmatmul.mubr.bf16.gmra.mrb[0].mxu0 %v3803
  %v4102 = vpop.f32.mrb[0].mxu0
  %v4103 = vadd.f32 0.0, %v4102
  %v4104 = vpop.f32.mrb[0].mxu0
  %v4105 = vpop.f32.mrb[0].mxu0
  %v4106 = vadd.f32 0.0, %v4105
  %v4107 = vpop.f32.mrb[0].mxu0
  %4108 = vmatprep.mubr.bf16.mxu0 0
  %4109 = vmatmul.mubr.bf16.gmra.mrb[0].mxu0 %v3804
  %v4110 = vpop.f32.mrb[0].mxu0
  %v4111 = vadd.f32 0.0, %v4110
  %v4112 = vpop.f32.mrb[0].mxu0
  %v4113 = vpop.f32.mrb[0].mxu0
  %v4114 = vadd.f32 0.0, %v4113
  %v4115 = vpop.f32.mrb[0].mxu0
  %4116 = vmatprep.mubr.bf16.mxu0 0
  %4117 = vmatmul.mubr.bf16.gmra.mrb[0].mxu0 %v3805
  %v4118 = vpop.f32.mrb[0].mxu0
  %v4119 = vadd.f32 0.0, %v4118
  %v4120 = vpop.f32.mrb[0].mxu0
  %v4121 = vpop.f32.mrb[0].mxu0
  %v4122 = vadd.f32 0.0, %v4121
  %v4123 = vpop.f32.mrb[0].mxu0
  %4124 = vmatprep.mubr.bf16.mxu0 0
  %4125 = vmatmul.mubr.bf16.gmra.mrb[0].mxu0 %v3806
  %v4126 = vpop.f32.mrb[0].mxu0
  %v4127 = vadd.f32 0.0, %v4126
  %v4128 = vpop.f32.mrb[0].mxu0
  %v4129 = vpop.f32.mrb[0].mxu0
  %v4130 = vadd.f32 0.0, %v4129
  %v4131 = vpop.f32.mrb[0].mxu0
  %4132 = vmatprep.mubr.bf16.mxu0 0
  %4133 = vmatmul.mubr.bf16.gmra.mrb[0].mxu0 %v3807
  %v4134 = vpop.f32.mrb[0].mxu0
  %v4135 = vadd.f32 0.0, %v4134
  %v4136 = vpop.f32.mrb[0].mxu0
  %v4137 = vpop.f32.mrb[0].mxu0
  %v4138 = vadd.f32 0.0, %v4137
  %v4139 = vpop.f32.mrb[0].mxu0
  %4140 = vmatprep.mubr.bf16.mxu0 0
  %4141 = vmatmul.mubr.bf16.gmra.mrb[0].mxu0 %v3808
  %v4142 = vpop.f32.mrb[0].mxu0
  %v4143 = vadd.f32 0.0, %v4142
  %v4144 = vpop.f32.mrb[0].mxu0
  %v4145 = vpop.f32.mrb[0].mxu0
  %v4146 = vadd.f32 0.0, %v4145
  %v4147 = vpop.f32.mrb[0].mxu0
  %4148 = vmatprep.mubr.bf16.mxu0 0
  %4149 = vmatmul.mubr.bf16.gmra.mrb[0].mxu0 %v3809
  %v4150 = vpop.f32.mrb[0].mxu0
  %v4151 = vadd.f32 0.0, %v4150
  %v4152 = vpop.f32.mrb[0].mxu0
  %v4153 = vpop.f32.mrb[0].mxu0
  %v4154 = vadd.f32 0.0, %v4153
  %v4155 = vpop.f32.mrb[0].mxu0
  %4156 = vmatprep.mubr.bf16.mxu0 0
  %4157 = vmatmul.mubr.bf16.gmra.mrb[0].mxu0 %v3810
  %v4158 = vpop.f32.mrb[0].mxu0
  %v4159 = vadd.f32 0.0, %v4158
  %v4160 = vpop.f32.mrb[0].mxu0
  %v4161 = vpop.f32.mrb[0].mxu0
  %v4162 = vadd.f32 0.0, %v4161
  %v4163 = vpop.f32.mrb[0].mxu0
  %4164 = vdwg.mxu0
  %v4165 = vadd.f32 %v3651, %v3911
  %v4166 = vadd.f32 %v3652, %v3914
  %v4167 = vadd.f32 %v3653, %v3919
  %v4168 = vadd.f32 %v3654, %v3922
  %v4169 = vadd.f32 %v3655, %v3927
  %v4170 = vadd.f32 %v3656, %v3930
  %v4171 = vadd.f32 %v3657, %v3935
  %v4172 = vadd.f32 %v3658, %v3938
  %v4173 = vadd.f32 %v3659, %v3943
  %v4174 = vadd.f32 %v3660, %v3946
  %v4175 = vadd.f32 %v3661, %v3951
  %v4176 = vadd.f32 %v3662, %v3954
  %v4177 = vadd.f32 %v3663, %v3959
  %v4178 = vadd.f32 %v3664, %v3962
  %v4179 = vadd.f32 %v3665, %v3967
  %v4180 = vadd.f32 %v3666, %v3970
  %v4181 = vadd.f32 %v3667, %v3975
  %v4182 = vadd.f32 %v3668, %v3978
  %v4183 = vadd.f32 %v3669, %v3983
  %v4184 = vadd.f32 %v3670, %v3986
  %v4185 = vadd.f32 %v3671, %v3991
  %v4186 = vadd.f32 %v3672, %v3994
  %v4187 = vadd.f32 %v3673, %v3999
  %v4188 = vadd.f32 %v3674, %v4002
  %v4189 = vadd.f32 %v3675, %v4007
  %v4190 = vadd.f32 %v3676, %v4010
  %v4191 = vadd.f32 %v3677, %v4015
  %v4192 = vadd.f32 %v3678, %v4018
  %v4193 = vadd.f32 %v3679, %v4023
  %v4194 = vadd.f32 %v3680, %v4026
  %v4195 = vadd.f32 %v3681, %v4031
  %v4196 = vadd.f32 %v3682, %v4034
  %v4197 = vadd.f32 %v3683, %v4039
  %v4198 = vadd.f32 %v3684, %v4042
  %v4199 = vadd.f32 %v3685, %v4047
  %v4200 = vadd.f32 %v3686, %v4050
  %v4201 = vadd.f32 %v3687, %v4055
  %v4202 = vadd.f32 %v3688, %v4058
  %v4203 = vadd.f32 %v3689, %v4063
  %v4204 = vadd.f32 %v3690, %v4066
  %v4205 = vadd.f32 %v3691, %v4071
  %v4206 = vadd.f32 %v3692, %v4074
  %v4207 = vadd.f32 %v3693, %v4079
  %v4208 = vadd.f32 %v3694, %v4082
  %v4209 = vadd.f32 %v3695, %v4087
  %v4210 = vadd.f32 %v3696, %v4090
  %v4211 = vadd.f32 %v3697, %v4095
  %v4212 = vadd.f32 %v3698, %v4098
  %v4213 = vadd.f32 %v3699, %v4103
  %v4214 = vadd.f32 %v3700, %v4106
  %v4215 = vadd.f32 %v3701, %v4111
  %v4216 = vadd.f32 %v3702, %v4114
  %v4217 = vadd.f32 %v3703, %v4119
  %v4218 = vadd.f32 %v3704, %v4122
  %v4219 = vadd.f32 %v3705, %v4127
  %v4220 = vadd.f32 %v3706, %v4130
  %v4221 = vadd.f32 %v3707, %v4135
  %v4222 = vadd.f32 %v3708, %v4138
  %v4223 = vadd.f32 %v3709, %v4143
  %v4224 = vadd.f32 %v3710, %v4146
  %v4225 = vadd.f32 %v3711, %v4151
  %v4226 = vadd.f32 %v3712, %v4154
  %v4227 = vadd.f32 %v3713, %v4159
  %v4228 = vadd.f32 %v3714, %v4162
  %v4229 = vld [vmem:[%s3200 + $0x9] sm:$0xff]
  %v4230 = vld [vmem:[%s3200 + $0x11] sm:$0xff]
  %v4231 = vld [vmem:[%s3200 + $0x29] sm:$0xff]
  %v4232 = vld [vmem:[%s3200 + $0x31] sm:$0xff]
  %v4233 = vld [vmem:[%s3200 + $0x49] sm:$0xff]
  %v4234 = vld [vmem:[%s3200 + $0x51] sm:$0xff]
  %v4235 = vld [vmem:[%s3200 + $0x69] sm:$0xff]
  %v4236 = vld [vmem:[%s3200 + $0x71] sm:$0xff]
  %v4237 = vld [vmem:[%s3200 + $0x89] sm:$0xff]
  %v4238 = vld [vmem:[%s3200 + $0x91] sm:$0xff]
  %v4239 = vld [vmem:[%s3200 + $0xa9] sm:$0xff]
  %v4240 = vld [vmem:[%s3200 + $0xb1] sm:$0xff]
  %v4241 = vld [vmem:[%s3200 + $0xc9] sm:$0xff]
  %v4242 = vld [vmem:[%s3200 + $0xd1] sm:$0xff]
  %v4243 = vld [vmem:[%s3200 + $0xe9] sm:$0xff]
  %v4244 = vld [vmem:[%s3200 + $0xf1] sm:$0xff]
  %v4245 = vld [vmem:[%s3200 + $0x109] sm:$0xff]
  %v4246 = vld [vmem:[%s3200 + $0x111] sm:$0xff]
  %v4247 = vld [vmem:[%s3200 + $0x129] sm:$0xff]
  %v4248 = vld [vmem:[%s3200 + $0x131] sm:$0xff]
  %v4249 = vld [vmem:[%s3200 + $0x149] sm:$0xff]
  %v4250 = vld [vmem:[%s3200 + $0x151] sm:$0xff]
  %v4251 = vld [vmem:[%s3200 + $0x169] sm:$0xff]
  %v4252 = vld [vmem:[%s3200 + $0x171] sm:$0xff]
  %v4253 = vld [vmem:[%s3200 + $0x189] sm:$0xff]
  %v4254 = vld [vmem:[%s3200 + $0x191] sm:$0xff]
  %v4255 = vld [vmem:[%s3200 + $0x1a9] sm:$0xff]
  %v4256 = vld [vmem:[%s3200 + $0x1b1] sm:$0xff]
  %v4257 = vld [vmem:[%s3200 + $0x1c9] sm:$0xff]
  %v4258 = vld [vmem:[%s3200 + $0x1d1] sm:$0xff]
  %v4259 = vld [vmem:[%s3200 + $0x1e9] sm:$0xff]
  %v4260 = vld [vmem:[%s3200 + $0x1f1] sm:$0xff]
  %v4261 = vld [vmem:[%s3200 + $0x249] sm:$0xff]
  %v4262 = vld [vmem:[%s3200 + $0x251] sm:$0xff]
  %v4263 = vld [vmem:[%s3200 + $0x269] sm:$0xff]
  %v4264 = vld [vmem:[%s3200 + $0x271] sm:$0xff]
  %v4265 = vld [vmem:[%s3200 + $0x289] sm:$0xff]
  %v4266 = vld [vmem:[%s3200 + $0x291] sm:$0xff]
  %v4267 = vld [vmem:[%s3200 + $0x2a9] sm:$0xff]
  %v4268 = vld [vmem:[%s3200 + $0x2b1] sm:$0xff]
  %v4269 = vld [vmem:[%s3200 + $0x2c9] sm:$0xff]
  %v4270 = vld [vmem:[%s3200 + $0x2d1] sm:$0xff]
  %v4271 = vld [vmem:[%s3200 + $0x2e9] sm:$0xff]
  %v4272 = vld [vmem:[%s3200 + $0x2f1] sm:$0xff]
  %v4273 = vld [vmem:[%s3200 + $0x309] sm:$0xff]
  %v4274 = vld [vmem:[%s3200 + $0x311] sm:$0xff]
  %v4275 = vld [vmem:[%s3200 + $0x329] sm:$0xff]
  %v4276 = vld [vmem:[%s3200 + $0x331] sm:$0xff]
  %v4277 = vld [vmem:[%s3200 + $0x349] sm:$0xff]
  %v4278 = vld [vmem:[%s3200 + $0x351] sm:$0xff]
  %v4279 = vld [vmem:[%s3200 + $0x369] sm:$0xff]
  %v4280 = vld [vmem:[%s3200 + $0x371] sm:$0xff]
  %v4281 = vld [vmem:[%s3200 + $0x389] sm:$0xff]
  %v4282 = vld [vmem:[%s3200 + $0x391] sm:$0xff]
  %v4283 = vld [vmem:[%s3200 + $0x3a9] sm:$0xff]
  %v4284 = vld [vmem:[%s3200 + $0x3b1] sm:$0xff]
  %v4285 = vld [vmem:[%s3200 + $0x3c9] sm:$0xff]
  %v4286 = vld [vmem:[%s3200 + $0x3d1] sm:$0xff]
  %v4287 = vld [vmem:[%s3200 + $0x3e9] sm:$0xff]
  %v4288 = vld [vmem:[%s3200 + $0x3f1] sm:$0xff]
  %v4289 = vld [vmem:[%s3200 + $0x409] sm:$0xff]
  %v4290 = vld [vmem:[%s3200 + $0x411] sm:$0xff]
  %v4291 = vld [vmem:[%s3200 + $0x429] sm:$0xff]
  %v4292 = vld [vmem:[%s3200 + $0x431] sm:$0xff]
  %v4293 = vpack.c.bf16 %v4230, %v4229
  %v4294 = vpack.c.bf16 %v4232, %v4231
  %v4295 = vpack.c.bf16 %v4234, %v4233
  %v4296 = vpack.c.bf16 %v4236, %v4235
  %v4297 = vpack.c.bf16 %v4238, %v4237
  %v4298 = vpack.c.bf16 %v4240, %v4239
  %v4299 = vpack.c.bf16 %v4242, %v4241
  %v4300 = vpack.c.bf16 %v4244, %v4243
  %v4301 = vpack.c.bf16 %v4246, %v4245
  %v4302 = vpack.c.bf16 %v4248, %v4247
  %v4303 = vpack.c.bf16 %v4250, %v4249
  %v4304 = vpack.c.bf16 %v4252, %v4251
  %v4305 = vpack.c.bf16 %v4254, %v4253
  %v4306 = vpack.c.bf16 %v4256, %v4255
  %v4307 = vpack.c.bf16 %v4258, %v4257
  %v4308 = vpack.c.bf16 %v4260, %v4259
  %v4309 = vpack.c.bf16 %v4262, %v4261
  %v4310 = vpack.c.bf16 %v4264, %v4263
  %v4311 = vpack.c.bf16 %v4266, %v4265
  %v4312 = vpack.c.bf16 %v4268, %v4267
  %v4313 = vpack.c.bf16 %v4270, %v4269
  %v4314 = vpack.c.bf16 %v4272, %v4271
  %v4315 = vpack.c.bf16 %v4274, %v4273
  %v4316 = vpack.c.bf16 %v4276, %v4275
  %v4317 = vpack.c.bf16 %v4278, %v4277
  %v4318 = vpack.c.bf16 %v4280, %v4279
  %v4319 = vpack.c.bf16 %v4282, %v4281
  %v4320 = vpack.c.bf16 %v4284, %v4283
  %v4321 = vpack.c.bf16 %v4286, %v4285
  %v4322 = vpack.c.bf16 %v4288, %v4287
  %v4323 = vpack.c.bf16 %v4290, %v4289
  %v4324 = vpack.c.bf16 %v4292, %v4291
  %s4325 = scalar_lea.vmem %s1, 512
  %v4326 = vld [vmem:[%s4325] sm:$0xf]
  %v4327 = vld [vmem:[%s4325 + $0x4] sm:$0xf]
  %v4328 = vld [vmem:[%s4325 + $0x8] sm:$0xf]
  %v4329 = vld [vmem:[%s4325 + $0xc] sm:$0xf]
  %v4330 = vld [vmem:[%s4325 + $0x10] sm:$0xf]
  %v4331 = vld [vmem:[%s4325 + $0x14] sm:$0xf]
  %v4332 = vld [vmem:[%s4325 + $0x18] sm:$0xf]
  %v4333 = vld [vmem:[%s4325 + $0x1c] sm:$0xf]
  %v4334 = vld [vmem:[%s4325 + $0x20] sm:$0xf]
  %v4335 = vld [vmem:[%s4325 + $0x24] sm:$0xf]
  %v4336 = vld [vmem:[%s4325 + $0x28] sm:$0xf]
  %v4337 = vld [vmem:[%s4325 + $0x2c] sm:$0xf]
  %v4338 = vld [vmem:[%s4325 + $0x30] sm:$0xf]
  %v4339 = vld [vmem:[%s4325 + $0x34] sm:$0xf]
  %v4340 = vld [vmem:[%s4325 + $0x38] sm:$0xf]
  %v4341 = vld [vmem:[%s4325 + $0x3c] sm:$0xf]
  %v4358 = vunpack.c.l.b16 %v4326
  %v4359 = vunpack.c.l.b16 %v4327
  %v4360 = vunpack.c.l.b16 %v4328
  %v4361 = vunpack.c.l.b16 %v4329
  %v4362 = vunpack.c.l.b16 %v4330
  %v4363 = vunpack.c.l.b16 %v4331
  %v4364 = vunpack.c.l.b16 %v4332
  %v4365 = vunpack.c.l.b16 %v4333
  %v4366 = vunpack.c.l.b16 %v4334
  %v4367 = vunpack.c.l.b16 %v4335
  %v4368 = vunpack.c.l.b16 %v4336
  %v4369 = vunpack.c.l.b16 %v4337
  %v4370 = vunpack.c.l.b16 %v4338
  %v4371 = vunpack.c.l.b16 %v4339
  %v4372 = vunpack.c.l.b16 %v4340
  %v4373 = vunpack.c.l.b16 %v4341
  %v4374 = vpack.c.b16 %v4359, %v4358
  %v4375 = vpack.c.b16 %v4361, %v4360
  %v4376 = vpack.c.b16 %v4363, %v4362
  %v4377 = vpack.c.b16 %v4365, %v4364
  %v4378 = vpack.c.b16 %v4367, %v4366
  %v4379 = vpack.c.b16 %v4369, %v4368
  %v4380 = vpack.c.b16 %v4371, %v4370
  %v4381 = vpack.c.b16 %v4373, %v4372
  %4390 = vmatprep.subr.bf16.mxu0 0
  %4391 = vmatpush1.bf16.msra.mxu0 %v4374
  %4392 = vmatprep.subr.bf16.mxu0 0
  %4393 = vmatpush1.bf16.msra.mxu0 %v4375
  %4394 = vmatprep.subr.bf16.mxu0 0
  %4395 = vmatpush1.bf16.msra.mxu0 %v4376
  %4396 = vmatprep.subr.bf16.mxu0 0
  %4397 = vmatpush1.bf16.msra.mxu0 %v4377
  %4398 = vmatprep.subr.bf16.mxu0 0
  %4399 = vmatpush1.bf16.msra.mxu0 %v4378
  %4400 = vmatprep.subr.bf16.mxu0 0
  %4401 = vmatpush1.bf16.msra.mxu0 %v4379
  %4402 = vmatprep.subr.bf16.mxu0 0
  %4403 = vmatpush1.bf16.msra.mxu0 %v4380
  %4404 = vmatprep.subr.bf16.mxu0 0
  %4405 = vmatpush1.bf16.msra.mxu0 %v4381
  %4406 = vmatprep.subr.bf16.mxu0 0
  %4407 = vmatpush1.bf16.msra.mxu0 0
  %4408 = vmatprep.subr.bf16.mxu0 0
  %4409 = vmatpush1.bf16.msra.mxu0 0
  %4410 = vmatprep.subr.bf16.mxu0 0
  %4411 = vmatpush1.bf16.msra.mxu0 0
  %4412 = vmatprep.subr.bf16.mxu0 0
  %4413 = vmatpush1.bf16.msra.mxu0 0
  %4414 = vmatprep.subr.bf16.mxu0 0
  %4415 = vmatpush1.bf16.msra.mxu0 0
  %4416 = vmatprep.subr.bf16.mxu0 0
  %4417 = vmatpush1.bf16.msra.mxu0 0
  %4418 = vmatprep.subr.bf16.mxu0 0
  %4419 = vmatpush1.bf16.msra.mxu0 0
  %4420 = vmatprep.subr.bf16.mxu0 0
  %4421 = vmatpush1.bf16.msra.mxu0 0
  %4422 = vmatprep.mubr.bf16.mxu0 0
  %4423 = vmatmul.mubr.bf16.gmra.mrb[0].mxu0 %v4293
  %v4424 = vpop.f32.mrb[0].mxu0
  %v4425 = vadd.f32 0.0, %v4424
  %v4426 = vpop.f32.mrb[0].mxu0
  %v4427 = vpop.f32.mrb[0].mxu0
  %v4428 = vadd.f32 0.0, %v4427
  %v4429 = vpop.f32.mrb[0].mxu0
  %4430 = vmatprep.mubr.bf16.mxu0 0
  %4431 = vmatmul.mubr.bf16.gmra.mrb[0].mxu0 %v4294
  %v4432 = vpop.f32.mrb[0].mxu0
  %v4433 = vadd.f32 0.0, %v4432
  %v4434 = vpop.f32.mrb[0].mxu0
  %v4435 = vpop.f32.mrb[0].mxu0
  %v4436 = vadd.f32 0.0, %v4435
  %v4437 = vpop.f32.mrb[0].mxu0
  %4438 = vmatprep.mubr.bf16.mxu0 0
  %4439 = vmatmul.mubr.bf16.gmra.mrb[0].mxu0 %v4295
  %v4440 = vpop.f32.mrb[0].mxu0
  %v4441 = vadd.f32 0.0, %v4440
  %v4442 = vpop.f32.mrb[0].mxu0
  %v4443 = vpop.f32.mrb[0].mxu0
  %v4444 = vadd.f32 0.0, %v4443
  %v4445 = vpop.f32.mrb[0].mxu0
  %4446 = vmatprep.mubr.bf16.mxu0 0
  %4447 = vmatmul.mubr.bf16.gmra.mrb[0].mxu0 %v4296
  %v4448 = vpop.f32.mrb[0].mxu0
  %v4449 = vadd.f32 0.0, %v4448
  %v4450 = vpop.f32.mrb[0].mxu0
  %v4451 = vpop.f32.mrb[0].mxu0
  %v4452 = vadd.f32 0.0, %v4451
  %v4453 = vpop.f32.mrb[0].mxu0
  %4454 = vmatprep.mubr.bf16.mxu0 0
  %4455 = vmatmul.mubr.bf16.gmra.mrb[0].mxu0 %v4297
  %v4456 = vpop.f32.mrb[0].mxu0
  %v4457 = vadd.f32 0.0, %v4456
  %v4458 = vpop.f32.mrb[0].mxu0
  %v4459 = vpop.f32.mrb[0].mxu0
  %v4460 = vadd.f32 0.0, %v4459
  %v4461 = vpop.f32.mrb[0].mxu0
  %4462 = vmatprep.mubr.bf16.mxu0 0
  %4463 = vmatmul.mubr.bf16.gmra.mrb[0].mxu0 %v4298
  %v4464 = vpop.f32.mrb[0].mxu0
  %v4465 = vadd.f32 0.0, %v4464
  %v4466 = vpop.f32.mrb[0].mxu0
  %v4467 = vpop.f32.mrb[0].mxu0
  %v4468 = vadd.f32 0.0, %v4467
  %v4469 = vpop.f32.mrb[0].mxu0
  %4470 = vmatprep.mubr.bf16.mxu0 0
  %4471 = vmatmul.mubr.bf16.gmra.mrb[0].mxu0 %v4299
  %v4472 = vpop.f32.mrb[0].mxu0
  %v4473 = vadd.f32 0.0, %v4472
  %v4474 = vpop.f32.mrb[0].mxu0
  %v4475 = vpop.f32.mrb[0].mxu0
  %v4476 = vadd.f32 0.0, %v4475
  %v4477 = vpop.f32.mrb[0].mxu0
  %4478 = vmatprep.mubr.bf16.mxu0 0
  %4479 = vmatmul.mubr.bf16.gmra.mrb[0].mxu0 %v4300
  %v4480 = vpop.f32.mrb[0].mxu0
  %v4481 = vadd.f32 0.0, %v4480
  %v4482 = vpop.f32.mrb[0].mxu0
  %v4483 = vpop.f32.mrb[0].mxu0
  %v4484 = vadd.f32 0.0, %v4483
  %v4485 = vpop.f32.mrb[0].mxu0
  %4486 = vmatprep.mubr.bf16.mxu0 0
  %4487 = vmatmul.mubr.bf16.gmra.mrb[0].mxu0 %v4301
  %v4488 = vpop.f32.mrb[0].mxu0
  %v4489 = vadd.f32 0.0, %v4488
  %v4490 = vpop.f32.mrb[0].mxu0
  %v4491 = vpop.f32.mrb[0].mxu0
  %v4492 = vadd.f32 0.0, %v4491
  %v4493 = vpop.f32.mrb[0].mxu0
  %4494 = vmatprep.mubr.bf16.mxu0 0
  %4495 = vmatmul.mubr.bf16.gmra.mrb[0].mxu0 %v4302
  %v4496 = vpop.f32.mrb[0].mxu0
  %v4497 = vadd.f32 0.0, %v4496
  %v4498 = vpop.f32.mrb[0].mxu0
  %v4499 = vpop.f32.mrb[0].mxu0
  %v4500 = vadd.f32 0.0, %v4499
  %v4501 = vpop.f32.mrb[0].mxu0
  %4502 = vmatprep.mubr.bf16.mxu0 0
  %4503 = vmatmul.mubr.bf16.gmra.mrb[0].mxu0 %v4303
  %v4504 = vpop.f32.mrb[0].mxu0
  %v4505 = vadd.f32 0.0, %v4504
  %v4506 = vpop.f32.mrb[0].mxu0
  %v4507 = vpop.f32.mrb[0].mxu0
  %v4508 = vadd.f32 0.0, %v4507
  %v4509 = vpop.f32.mrb[0].mxu0
  %4510 = vmatprep.mubr.bf16.mxu0 0
  %4511 = vmatmul.mubr.bf16.gmra.mrb[0].mxu0 %v4304
  %v4512 = vpop.f32.mrb[0].mxu0
  %v4513 = vadd.f32 0.0, %v4512
  %v4514 = vpop.f32.mrb[0].mxu0
  %v4515 = vpop.f32.mrb[0].mxu0
  %v4516 = vadd.f32 0.0, %v4515
  %v4517 = vpop.f32.mrb[0].mxu0
  %4518 = vmatprep.mubr.bf16.mxu0 0
  %4519 = vmatmul.mubr.bf16.gmra.mrb[0].mxu0 %v4305
  %v4520 = vpop.f32.mrb[0].mxu0
  %v4521 = vadd.f32 0.0, %v4520
  %v4522 = vpop.f32.mrb[0].mxu0
  %v4523 = vpop.f32.mrb[0].mxu0
  %v4524 = vadd.f32 0.0, %v4523
  %v4525 = vpop.f32.mrb[0].mxu0
  %4526 = vmatprep.mubr.bf16.mxu0 0
  %4527 = vmatmul.mubr.bf16.gmra.mrb[0].mxu0 %v4306
  %v4528 = vpop.f32.mrb[0].mxu0
  %v4529 = vadd.f32 0.0, %v4528
  %v4530 = vpop.f32.mrb[0].mxu0
  %v4531 = vpop.f32.mrb[0].mxu0
  %v4532 = vadd.f32 0.0, %v4531
  %v4533 = vpop.f32.mrb[0].mxu0
  %4534 = vmatprep.mubr.bf16.mxu0 0
  %4535 = vmatmul.mubr.bf16.gmra.mrb[0].mxu0 %v4307
  %v4536 = vpop.f32.mrb[0].mxu0
  %v4537 = vadd.f32 0.0, %v4536
  %v4538 = vpop.f32.mrb[0].mxu0
  %v4539 = vpop.f32.mrb[0].mxu0
  %v4540 = vadd.f32 0.0, %v4539
  %v4541 = vpop.f32.mrb[0].mxu0
  %4542 = vmatprep.mubr.bf16.mxu0 0
  %4543 = vmatmul.mubr.bf16.gmra.mrb[0].mxu0 %v4308
  %v4544 = vpop.f32.mrb[0].mxu0
  %v4545 = vadd.f32 0.0, %v4544
  %v4546 = vpop.f32.mrb[0].mxu0
  %v4547 = vpop.f32.mrb[0].mxu0
  %v4548 = vadd.f32 0.0, %v4547
  %v4549 = vpop.f32.mrb[0].mxu0
  %4550 = vmatprep.mubr.bf16.mxu0 0
  %4551 = vmatmul.mubr.bf16.gmra.mrb[0].mxu0 %v4309
  %v4552 = vpop.f32.mrb[0].mxu0
  %v4553 = vadd.f32 0.0, %v4552
  %v4554 = vpop.f32.mrb[0].mxu0
  %v4555 = vpop.f32.mrb[0].mxu0
  %v4556 = vadd.f32 0.0, %v4555
  %v4557 = vpop.f32.mrb[0].mxu0
  %4558 = vmatprep.mubr.bf16.mxu0 0
  %4559 = vmatmul.mubr.bf16.gmra.mrb[0].mxu0 %v4310
  %v4560 = vpop.f32.mrb[0].mxu0
  %v4561 = vadd.f32 0.0, %v4560
  %v4562 = vpop.f32.mrb[0].mxu0
  %v4563 = vpop.f32.mrb[0].mxu0
  %v4564 = vadd.f32 0.0, %v4563
  %v4565 = vpop.f32.mrb[0].mxu0
  %4566 = vmatprep.mubr.bf16.mxu0 0
  %4567 = vmatmul.mubr.bf16.gmra.mrb[0].mxu0 %v4311
  %v4568 = vpop.f32.mrb[0].mxu0
  %v4569 = vadd.f32 0.0, %v4568
  %v4570 = vpop.f32.mrb[0].mxu0
  %v4571 = vpop.f32.mrb[0].mxu0
  %v4572 = vadd.f32 0.0, %v4571
  %v4573 = vpop.f32.mrb[0].mxu0
  %4574 = vmatprep.mubr.bf16.mxu0 0
  %4575 = vmatmul.mubr.bf16.gmra.mrb[0].mxu0 %v4312
  %v4576 = vpop.f32.mrb[0].mxu0
  %v4577 = vadd.f32 0.0, %v4576
  %v4578 = vpop.f32.mrb[0].mxu0
  %v4579 = vpop.f32.mrb[0].mxu0
  %v4580 = vadd.f32 0.0, %v4579
  %v4581 = vpop.f32.mrb[0].mxu0
  %4582 = vmatprep.mubr.bf16.mxu0 0
  %4583 = vmatmul.mubr.bf16.gmra.mrb[0].mxu0 %v4313
  %v4584 = vpop.f32.mrb[0].mxu0
  %v4585 = vadd.f32 0.0, %v4584
  %v4586 = vpop.f32.mrb[0].mxu0
  %v4587 = vpop.f32.mrb[0].mxu0
  %v4588 = vadd.f32 0.0, %v4587
  %v4589 = vpop.f32.mrb[0].mxu0
  %4590 = vmatprep.mubr.bf16.mxu0 0
  %4591 = vmatmul.mubr.bf16.gmra.mrb[0].mxu0 %v4314
  %v4592 = vpop.f32.mrb[0].mxu0
  %v4593 = vadd.f32 0.0, %v4592
  %v4594 = vpop.f32.mrb[0].mxu0
  %v4595 = vpop.f32.mrb[0].mxu0
  %v4596 = vadd.f32 0.0, %v4595
  %v4597 = vpop.f32.mrb[0].mxu0
  %4598 = vmatprep.mubr.bf16.mxu0 0
  %4599 = vmatmul.mubr.bf16.gmra.mrb[0].mxu0 %v4315
  %v4600 = vpop.f32.mrb[0].mxu0
  %v4601 = vadd.f32 0.0, %v4600
  %v4602 = vpop.f32.mrb[0].mxu0
  %v4603 = vpop.f32.mrb[0].mxu0
  %v4604 = vadd.f32 0.0, %v4603
  %v4605 = vpop.f32.mrb[0].mxu0
  %4606 = vmatprep.mubr.bf16.mxu0 0
  %4607 = vmatmul.mubr.bf16.gmra.mrb[0].mxu0 %v4316
  %v4608 = vpop.f32.mrb[0].mxu0
  %v4609 = vadd.f32 0.0, %v4608
  %v4610 = vpop.f32.mrb[0].mxu0
  %v4611 = vpop.f32.mrb[0].mxu0
  %v4612 = vadd.f32 0.0, %v4611
  %v4613 = vpop.f32.mrb[0].mxu0
  %4614 = vmatprep.mubr.bf16.mxu0 0
  %4615 = vmatmul.mubr.bf16.gmra.mrb[0].mxu0 %v4317
  %v4616 = vpop.f32.mrb[0].mxu0
  %v4617 = vadd.f32 0.0, %v4616
  %v4618 = vpop.f32.mrb[0].mxu0
  %v4619 = vpop.f32.mrb[0].mxu0
  %v4620 = vadd.f32 0.0, %v4619
  %v4621 = vpop.f32.mrb[0].mxu0
  %4622 = vmatprep.mubr.bf16.mxu0 0
  %4623 = vmatmul.mubr.bf16.gmra.mrb[0].mxu0 %v4318
  %v4624 = vpop.f32.mrb[0].mxu0
  %v4625 = vadd.f32 0.0, %v4624
  %v4626 = vpop.f32.mrb[0].mxu0
  %v4627 = vpop.f32.mrb[0].mxu0
  %v4628 = vadd.f32 0.0, %v4627
  %v4629 = vpop.f32.mrb[0].mxu0
  %4630 = vmatprep.mubr.bf16.mxu0 0
  %4631 = vmatmul.mubr.bf16.gmra.mrb[0].mxu0 %v4319
  %v4632 = vpop.f32.mrb[0].mxu0
  %v4633 = vadd.f32 0.0, %v4632
  %v4634 = vpop.f32.mrb[0].mxu0
  %v4635 = vpop.f32.mrb[0].mxu0
  %v4636 = vadd.f32 0.0, %v4635
  %v4637 = vpop.f32.mrb[0].mxu0
  %4638 = vmatprep.mubr.bf16.mxu0 0
  %4639 = vmatmul.mubr.bf16.gmra.mrb[0].mxu0 %v4320
  %v4640 = vpop.f32.mrb[0].mxu0
  %v4641 = vadd.f32 0.0, %v4640
  %v4642 = vpop.f32.mrb[0].mxu0
  %v4643 = vpop.f32.mrb[0].mxu0
  %v4644 = vadd.f32 0.0, %v4643
  %v4645 = vpop.f32.mrb[0].mxu0
  %4646 = vmatprep.mubr.bf16.mxu0 0
  %4647 = vmatmul.mubr.bf16.gmra.mrb[0].mxu0 %v4321
  %v4648 = vpop.f32.mrb[0].mxu0
  %v4649 = vadd.f32 0.0, %v4648
  %v4650 = vpop.f32.mrb[0].mxu0
  %v4651 = vpop.f32.mrb[0].mxu0
  %v4652 = vadd.f32 0.0, %v4651
  %v4653 = vpop.f32.mrb[0].mxu0
  %4654 = vmatprep.mubr.bf16.mxu0 0
  %4655 = vmatmul.mubr.bf16.gmra.mrb[0].mxu0 %v4322
  %v4656 = vpop.f32.mrb[0].mxu0
  %v4657 = vadd.f32 0.0, %v4656
  %v4658 = vpop.f32.mrb[0].mxu0
  %v4659 = vpop.f32.mrb[0].mxu0
  %v4660 = vadd.f32 0.0, %v4659
  %v4661 = vpop.f32.mrb[0].mxu0
  %4662 = vmatprep.mubr.bf16.mxu0 0
  %4663 = vmatmul.mubr.bf16.gmra.mrb[0].mxu0 %v4323
  %v4664 = vpop.f32.mrb[0].mxu0
  %v4665 = vadd.f32 0.0, %v4664
  %v4666 = vpop.f32.mrb[0].mxu0
  %v4667 = vpop.f32.mrb[0].mxu0
  %v4668 = vadd.f32 0.0, %v4667
  %v4669 = vpop.f32.mrb[0].mxu0
  %4670 = vmatprep.mubr.bf16.mxu0 0
  %4671 = vmatmul.mubr.bf16.gmra.mrb[0].mxu0 %v4324
  %v4672 = vpop.f32.mrb[0].mxu0
  %v4673 = vadd.f32 0.0, %v4672
  %v4674 = vpop.f32.mrb[0].mxu0
  %v4675 = vpop.f32.mrb[0].mxu0
  %v4676 = vadd.f32 0.0, %v4675
  %v4677 = vpop.f32.mrb[0].mxu0
  %4678 = vdwg.mxu0
  %v4679 = vadd.f32 %v4165, %v4425
  %v4680 = vadd.f32 %v4166, %v4428
  %v4681 = vadd.f32 %v4167, %v4433
  %v4682 = vadd.f32 %v4168, %v4436
  %v4683 = vadd.f32 %v4169, %v4441
  %v4684 = vadd.f32 %v4170, %v4444
  %v4685 = vadd.f32 %v4171, %v4449
  %v4686 = vadd.f32 %v4172, %v4452
  %v4687 = vadd.f32 %v4173, %v4457
  %v4688 = vadd.f32 %v4174, %v4460
  %v4689 = vadd.f32 %v4175, %v4465
  %v4690 = vadd.f32 %v4176, %v4468
  %v4691 = vadd.f32 %v4177, %v4473
  %v4692 = vadd.f32 %v4178, %v4476
  %v4693 = vadd.f32 %v4179, %v4481
  %v4694 = vadd.f32 %v4180, %v4484
  %v4695 = vadd.f32 %v4181, %v4489
  %v4696 = vadd.f32 %v4182, %v4492
  %v4697 = vadd.f32 %v4183, %v4497
  %v4698 = vadd.f32 %v4184, %v4500
  %v4699 = vadd.f32 %v4185, %v4505
  %v4700 = vadd.f32 %v4186, %v4508
  %v4701 = vadd.f32 %v4187, %v4513
  %v4702 = vadd.f32 %v4188, %v4516
  %v4703 = vadd.f32 %v4189, %v4521
  %v4704 = vadd.f32 %v4190, %v4524
  %v4705 = vadd.f32 %v4191, %v4529
  %v4706 = vadd.f32 %v4192, %v4532
  %v4707 = vadd.f32 %v4193, %v4537
  %v4708 = vadd.f32 %v4194, %v4540
  %v4709 = vadd.f32 %v4195, %v4545
  %v4710 = vadd.f32 %v4196, %v4548
  %v4711 = vadd.f32 %v4197, %v4553
  %v4712 = vadd.f32 %v4198, %v4556
  %v4713 = vadd.f32 %v4199, %v4561
  %v4714 = vadd.f32 %v4200, %v4564
  %v4715 = vadd.f32 %v4201, %v4569
  %v4716 = vadd.f32 %v4202, %v4572
  %v4717 = vadd.f32 %v4203, %v4577
  %v4718 = vadd.f32 %v4204, %v4580
  %v4719 = vadd.f32 %v4205, %v4585
  %v4720 = vadd.f32 %v4206, %v4588
  %v4721 = vadd.f32 %v4207, %v4593
  %v4722 = vadd.f32 %v4208, %v4596
  %v4723 = vadd.f32 %v4209, %v4601
  %v4724 = vadd.f32 %v4210, %v4604
  %v4725 = vadd.f32 %v4211, %v4609
  %v4726 = vadd.f32 %v4212, %v4612
  %v4727 = vadd.f32 %v4213, %v4617
  %v4728 = vadd.f32 %v4214, %v4620
  %v4729 = vadd.f32 %v4215, %v4625
  %v4730 = vadd.f32 %v4216, %v4628
  %v4731 = vadd.f32 %v4217, %v4633
  %v4732 = vadd.f32 %v4218, %v4636
  %v4733 = vadd.f32 %v4219, %v4641
  %v4734 = vadd.f32 %v4220, %v4644
  %v4735 = vadd.f32 %v4221, %v4649
  %v4736 = vadd.f32 %v4222, %v4652
  %v4737 = vadd.f32 %v4223, %v4657
  %v4738 = vadd.f32 %v4224, %v4660
  %v4739 = vadd.f32 %v4225, %v4665
  %v4740 = vadd.f32 %v4226, %v4668
  %v4741 = vadd.f32 %v4227, %v4673
  %v4742 = vadd.f32 %v4228, %v4676
  %v4743 = vld [vmem:[%s2] sm:$0x1]
  %v4744 = vld [vmem:[%s3] sm:$0x1]
  %v4745 = vadd.f32 %v4679, %v4680
  %v4746 = vadd.f32 %v4745, %v4681
  %v4747 = vadd.f32 %v4746, %v4682
  %v4748 = vadd.f32 %v4747, %v4683
  %v4749 = vadd.f32 %v4748, %v4684
  %v4750 = vadd.f32 %v4749, %v4685
  %v4751 = vadd.f32 %v4750, %v4686
  %v4752 = vadd.f32 %v4751, %v4687
  %v4753 = vadd.f32 %v4752, %v4688
  %v4754 = vadd.f32 %v4753, %v4689
  %v4755 = vadd.f32 %v4754, %v4690
  %v4756 = vadd.f32 %v4755, %v4691
  %v4757 = vadd.f32 %v4756, %v4692
  %v4758 = vadd.f32 %v4757, %v4693
  %v4759 = vadd.f32 %v4758, %v4694
  %v4760 = vadd.f32 %v4759, %v4695
  %v4761 = vadd.f32 %v4760, %v4696
  %v4762 = vadd.f32 %v4761, %v4697
  %v4763 = vadd.f32 %v4762, %v4698
  %v4764 = vadd.f32 %v4763, %v4699
  %v4765 = vadd.f32 %v4764, %v4700
  %v4766 = vadd.f32 %v4765, %v4701
  %v4767 = vadd.f32 %v4766, %v4702
  %v4768 = vadd.f32 %v4767, %v4703
  %v4769 = vadd.f32 %v4768, %v4704
  %v4770 = vadd.f32 %v4769, %v4705
  %v4771 = vadd.f32 %v4770, %v4706
  %v4772 = vadd.f32 %v4771, %v4707
  %v4773 = vadd.f32 %v4772, %v4708
  %v4774 = vadd.f32 %v4773, %v4709
  %v4775 = vadd.f32 %v4774, %v4710
  %v4776 = vadd.f32 %v4775, %v4711
  %v4777 = vadd.f32 %v4776, %v4712
  %v4778 = vadd.f32 %v4777, %v4713
  %v4779 = vadd.f32 %v4778, %v4714
  %v4780 = vadd.f32 %v4779, %v4715
  %v4781 = vadd.f32 %v4780, %v4716
  %v4782 = vadd.f32 %v4781, %v4717
  %v4783 = vadd.f32 %v4782, %v4718
  %v4784 = vadd.f32 %v4783, %v4719
  %v4785 = vadd.f32 %v4784, %v4720
  %v4786 = vadd.f32 %v4785, %v4721
  %v4787 = vadd.f32 %v4786, %v4722
  %v4788 = vadd.f32 %v4787, %v4723
  %v4789 = vadd.f32 %v4788, %v4724
  %v4790 = vadd.f32 %v4789, %v4725
  %v4791 = vadd.f32 %v4790, %v4726
  %v4792 = vadd.f32 %v4791, %v4727
  %v4793 = vadd.f32 %v4792, %v4728
  %v4794 = vadd.f32 %v4793, %v4729
  %v4795 = vadd.f32 %v4794, %v4730
  %v4796 = vadd.f32 %v4795, %v4731
  %v4797 = vadd.f32 %v4796, %v4732
  %v4798 = vadd.f32 %v4797, %v4733
  %v4799 = vadd.f32 %v4798, %v4734
  %v4800 = vadd.f32 %v4799, %v4735
  %v4801 = vadd.f32 %v4800, %v4736
  %v4802 = vadd.f32 %v4801, %v4737
  %v4803 = vadd.f32 %v4802, %v4738
  %v4804 = vadd.f32 %v4803, %v4739
  %v4805 = vadd.f32 %v4804, %v4740
  %v4806 = vadd.f32 %v4805, %v4741
  %v4807 = vadd.f32 %v4806, %v4742
  %v4808 = vrot.slane %v4807, 4
  %v4809 = vadd.f32 %v4807, %v4808
  %v4810 = vrot.slane %v4809, 2
  %v4811 = vadd.f32 %v4809, %v4810
  %v4812 = vrot.slane %v4811, 1
  %v4813 = vadd.f32 %v4811, %v4812
  %v4814 = vmul.f32 %v4813, 0.001953125
  %v4815 = vsub.f32 %v4679, %v4814
  %v4816 = vsub.f32 %v4680, %v4814
  %v4817 = vsub.f32 %v4681, %v4814
  %v4818 = vsub.f32 %v4682, %v4814
  %v4819 = vsub.f32 %v4683, %v4814
  %v4820 = vsub.f32 %v4684, %v4814
  %v4821 = vsub.f32 %v4685, %v4814
  %v4822 = vsub.f32 %v4686, %v4814
  %v4823 = vsub.f32 %v4687, %v4814
  %v4824 = vsub.f32 %v4688, %v4814
  %v4825 = vsub.f32 %v4689, %v4814
  %v4826 = vsub.f32 %v4690, %v4814
  %v4827 = vsub.f32 %v4691, %v4814
  %v4828 = vsub.f32 %v4692, %v4814
  %v4829 = vsub.f32 %v4693, %v4814
  %v4830 = vsub.f32 %v4694, %v4814
  %v4831 = vsub.f32 %v4695, %v4814
  %v4832 = vsub.f32 %v4696, %v4814
  %v4833 = vsub.f32 %v4697, %v4814
  %v4834 = vsub.f32 %v4698, %v4814
  %v4835 = vsub.f32 %v4699, %v4814
  %v4836 = vsub.f32 %v4700, %v4814
  %v4837 = vsub.f32 %v4701, %v4814
  %v4838 = vsub.f32 %v4702, %v4814
  %v4839 = vsub.f32 %v4703, %v4814
  %v4840 = vsub.f32 %v4704, %v4814
  %v4841 = vsub.f32 %v4705, %v4814
  %v4842 = vsub.f32 %v4706, %v4814
  %v4843 = vsub.f32 %v4707, %v4814
  %v4844 = vsub.f32 %v4708, %v4814
  %v4845 = vsub.f32 %v4709, %v4814
  %v4846 = vsub.f32 %v4710, %v4814
  %v4847 = vsub.f32 %v4711, %v4814
  %v4848 = vsub.f32 %v4712, %v4814
  %v4849 = vsub.f32 %v4713, %v4814
  %v4850 = vsub.f32 %v4714, %v4814
  %v4851 = vsub.f32 %v4715, %v4814
  %v4852 = vsub.f32 %v4716, %v4814
  %v4853 = vsub.f32 %v4717, %v4814
  %v4854 = vsub.f32 %v4718, %v4814
  %v4855 = vsub.f32 %v4719, %v4814
  %v4856 = vsub.f32 %v4720, %v4814
  %v4857 = vsub.f32 %v4721, %v4814
  %v4858 = vsub.f32 %v4722, %v4814
  %v4859 = vsub.f32 %v4723, %v4814
  %v4860 = vsub.f32 %v4724, %v4814
  %v4861 = vsub.f32 %v4725, %v4814
  %v4862 = vsub.f32 %v4726, %v4814
  %v4863 = vsub.f32 %v4727, %v4814
  %v4864 = vsub.f32 %v4728, %v4814
  %v4865 = vsub.f32 %v4729, %v4814
  %v4866 = vsub.f32 %v4730, %v4814
  %v4867 = vsub.f32 %v4731, %v4814
  %v4868 = vsub.f32 %v4732, %v4814
  %v4869 = vsub.f32 %v4733, %v4814
  %v4870 = vsub.f32 %v4734, %v4814
  %v4871 = vsub.f32 %v4735, %v4814
  %v4872 = vsub.f32 %v4736, %v4814
  %v4873 = vsub.f32 %v4737, %v4814
  %v4874 = vsub.f32 %v4738, %v4814
  %v4875 = vsub.f32 %v4739, %v4814
  %v4876 = vsub.f32 %v4740, %v4814
  %v4877 = vsub.f32 %v4741, %v4814
  %v4878 = vsub.f32 %v4742, %v4814
  %v4879 = vmul.f32 %v4815, %v4815
  %v4880 = vmul.f32 %v4816, %v4816
  %v4881 = vmul.f32 %v4817, %v4817
  %v4882 = vmul.f32 %v4818, %v4818
  %v4883 = vmul.f32 %v4819, %v4819
  %v4884 = vmul.f32 %v4820, %v4820
  %v4885 = vmul.f32 %v4821, %v4821
  %v4886 = vmul.f32 %v4822, %v4822
  %v4887 = vmul.f32 %v4823, %v4823
  %v4888 = vmul.f32 %v4824, %v4824
  %v4889 = vmul.f32 %v4825, %v4825
  %v4890 = vmul.f32 %v4826, %v4826
  %v4891 = vmul.f32 %v4827, %v4827
  %v4892 = vmul.f32 %v4828, %v4828
  %v4893 = vmul.f32 %v4829, %v4829
  %v4894 = vmul.f32 %v4830, %v4830
  %v4895 = vmul.f32 %v4831, %v4831
  %v4896 = vmul.f32 %v4832, %v4832
  %v4897 = vmul.f32 %v4833, %v4833
  %v4898 = vmul.f32 %v4834, %v4834
  %v4899 = vmul.f32 %v4835, %v4835
  %v4900 = vmul.f32 %v4836, %v4836
  %v4901 = vmul.f32 %v4837, %v4837
  %v4902 = vmul.f32 %v4838, %v4838
  %v4903 = vmul.f32 %v4839, %v4839
  %v4904 = vmul.f32 %v4840, %v4840
  %v4905 = vmul.f32 %v4841, %v4841
  %v4906 = vmul.f32 %v4842, %v4842
  %v4907 = vmul.f32 %v4843, %v4843
  %v4908 = vmul.f32 %v4844, %v4844
  %v4909 = vmul.f32 %v4845, %v4845
  %v4910 = vmul.f32 %v4846, %v4846
  %v4911 = vmul.f32 %v4847, %v4847
  %v4912 = vmul.f32 %v4848, %v4848
  %v4913 = vmul.f32 %v4849, %v4849
  %v4914 = vmul.f32 %v4850, %v4850
  %v4915 = vmul.f32 %v4851, %v4851
  %v4916 = vmul.f32 %v4852, %v4852
  %v4917 = vmul.f32 %v4853, %v4853
  %v4918 = vmul.f32 %v4854, %v4854
  %v4919 = vmul.f32 %v4855, %v4855
  %v4920 = vmul.f32 %v4856, %v4856
  %v4921 = vmul.f32 %v4857, %v4857
  %v4922 = vmul.f32 %v4858, %v4858
  %v4923 = vmul.f32 %v4859, %v4859
  %v4924 = vmul.f32 %v4860, %v4860
  %v4925 = vmul.f32 %v4861, %v4861
  %v4926 = vmul.f32 %v4862, %v4862
  %v4927 = vmul.f32 %v4863, %v4863
  %v4928 = vmul.f32 %v4864, %v4864
  %v4929 = vmul.f32 %v4865, %v4865
  %v4930 = vmul.f32 %v4866, %v4866
  %v4931 = vmul.f32 %v4867, %v4867
  %v4932 = vmul.f32 %v4868, %v4868
  %v4933 = vmul.f32 %v4869, %v4869
  %v4934 = vmul.f32 %v4870, %v4870
  %v4935 = vmul.f32 %v4871, %v4871
  %v4936 = vmul.f32 %v4872, %v4872
  %v4937 = vmul.f32 %v4873, %v4873
  %v4938 = vmul.f32 %v4874, %v4874
  %v4939 = vmul.f32 %v4875, %v4875
  %v4940 = vmul.f32 %v4876, %v4876
  %v4941 = vmul.f32 %v4877, %v4877
  %v4942 = vmul.f32 %v4878, %v4878
  %v4943 = vadd.f32 %v4879, %v4880
  %v4944 = vadd.f32 %v4943, %v4881
  %v4945 = vadd.f32 %v4944, %v4882
  %v4946 = vadd.f32 %v4945, %v4883
  %v4947 = vadd.f32 %v4946, %v4884
  %v4948 = vadd.f32 %v4947, %v4885
  %v4949 = vadd.f32 %v4948, %v4886
  %v4950 = vadd.f32 %v4949, %v4887
  %v4951 = vadd.f32 %v4950, %v4888
  %v4952 = vadd.f32 %v4951, %v4889
  %v4953 = vadd.f32 %v4952, %v4890
  %v4954 = vadd.f32 %v4953, %v4891
  %v4955 = vadd.f32 %v4954, %v4892
  %v4956 = vadd.f32 %v4955, %v4893
  %v4957 = vadd.f32 %v4956, %v4894
  %v4958 = vadd.f32 %v4957, %v4895
  %v4959 = vadd.f32 %v4958, %v4896
  %v4960 = vadd.f32 %v4959, %v4897
  %v4961 = vadd.f32 %v4960, %v4898
  %v4962 = vadd.f32 %v4961, %v4899
  %v4963 = vadd.f32 %v4962, %v4900
  %v4964 = vadd.f32 %v4963, %v4901
  %v4965 = vadd.f32 %v4964, %v4902
  %v4966 = vadd.f32 %v4965, %v4903
  %v4967 = vadd.f32 %v4966, %v4904
  %v4968 = vadd.f32 %v4967, %v4905
  %v4969 = vadd.f32 %v4968, %v4906
  %v4970 = vadd.f32 %v4969, %v4907
  %v4971 = vadd.f32 %v4970, %v4908
  %v4972 = vadd.f32 %v4971, %v4909
  %v4973 = vadd.f32 %v4972, %v4910
  %v4974 = vadd.f32 %v4973, %v4911
  %v4975 = vadd.f32 %v4974, %v4912
  %v4976 = vadd.f32 %v4975, %v4913
  %v4977 = vadd.f32 %v4976, %v4914
  %v4978 = vadd.f32 %v4977, %v4915
  %v4979 = vadd.f32 %v4978, %v4916
  %v4980 = vadd.f32 %v4979, %v4917
  %v4981 = vadd.f32 %v4980, %v4918
  %v4982 = vadd.f32 %v4981, %v4919
  %v4983 = vadd.f32 %v4982, %v4920
  %v4984 = vadd.f32 %v4983, %v4921
  %v4985 = vadd.f32 %v4984, %v4922
  %v4986 = vadd.f32 %v4985, %v4923
  %v4987 = vadd.f32 %v4986, %v4924
  %v4988 = vadd.f32 %v4987, %v4925
  %v4989 = vadd.f32 %v4988, %v4926
  %v4990 = vadd.f32 %v4989, %v4927
  %v4991 = vadd.f32 %v4990, %v4928
  %v4992 = vadd.f32 %v4991, %v4929
  %v4993 = vadd.f32 %v4992, %v4930
  %v4994 = vadd.f32 %v4993, %v4931
  %v4995 = vadd.f32 %v4994, %v4932
  %v4996 = vadd.f32 %v4995, %v4933
  %v4997 = vadd.f32 %v4996, %v4934
  %v4998 = vadd.f32 %v4997, %v4935
  %v4999 = vadd.f32 %v4998, %v4936
  %v5000 = vadd.f32 %v4999, %v4937
  %v5001 = vadd.f32 %v5000, %v4938
  %v5002 = vadd.f32 %v5001, %v4939
  %v5003 = vadd.f32 %v5002, %v4940
  %v5004 = vadd.f32 %v5003, %v4941
  %v5005 = vadd.f32 %v5004, %v4942
  %v5006 = vrot.slane %v5005, 4
  %v5007 = vadd.f32 %v5005, %v5006
  %v5008 = vrot.slane %v5007, 2
  %v5009 = vadd.f32 %v5007, %v5008
  %v5010 = vrot.slane %v5009, 1
  %v5011 = vadd.f32 %v5009, %v5010
  %v5012 = vmul.f32 %v5011, 0.001953125
  %v5013 = vadd.f32 %v5012, 1e-05
  %v5014 = vrsqrt.pop %v5013
  %v5015 = vmul.f32 %v4743, %v5014
  %v5016 = vmul.f32 %v4814, %v5015
  %v5017 = vsub.f32 %v4744, %v5016
  %v5019 = vlaneseq
  %v5020 = vshrl.u32 %v5019, 7
  %v5021 = vsub.s32 0, %v5020
  %v5022 = vrot.slane %v5015, %v5021
  %v5024 = vmul.f32 %v4679, %v5022
  %v5025 = vmul.f32 %v4680, %v5022
  %v5026 = vmul.f32 %v4681, %v5022
  %v5027 = vmul.f32 %v4682, %v5022
  %v5028 = vmul.f32 %v4683, %v5022
  %v5029 = vmul.f32 %v4684, %v5022
  %v5030 = vmul.f32 %v4685, %v5022
  %v5031 = vmul.f32 %v4686, %v5022
  %v5032 = vmul.f32 %v4687, %v5022
  %v5033 = vmul.f32 %v4688, %v5022
  %v5034 = vmul.f32 %v4689, %v5022
  %v5035 = vmul.f32 %v4690, %v5022
  %v5036 = vmul.f32 %v4691, %v5022
  %v5037 = vmul.f32 %v4692, %v5022
  %v5038 = vmul.f32 %v4693, %v5022
  %v5039 = vmul.f32 %v4694, %v5022
  %v5040 = vmul.f32 %v4695, %v5022
  %v5041 = vmul.f32 %v4696, %v5022
  %v5042 = vmul.f32 %v4697, %v5022
  %v5043 = vmul.f32 %v4698, %v5022
  %v5044 = vmul.f32 %v4699, %v5022
  %v5045 = vmul.f32 %v4700, %v5022
  %v5046 = vmul.f32 %v4701, %v5022
  %v5047 = vmul.f32 %v4702, %v5022
  %v5048 = vmul.f32 %v4703, %v5022
  %v5049 = vmul.f32 %v4704, %v5022
  %v5050 = vmul.f32 %v4705, %v5022
  %v5051 = vmul.f32 %v4706, %v5022
  %v5052 = vmul.f32 %v4707, %v5022
  %v5053 = vmul.f32 %v4708, %v5022
  %v5054 = vmul.f32 %v4709, %v5022
  %v5055 = vmul.f32 %v4710, %v5022
  %v5056 = vmul.f32 %v4711, %v5022
  %v5057 = vmul.f32 %v4712, %v5022
  %v5058 = vmul.f32 %v4713, %v5022
  %v5059 = vmul.f32 %v4714, %v5022
  %v5060 = vmul.f32 %v4715, %v5022
  %v5061 = vmul.f32 %v4716, %v5022
  %v5062 = vmul.f32 %v4717, %v5022
  %v5063 = vmul.f32 %v4718, %v5022
  %v5064 = vmul.f32 %v4719, %v5022
  %v5065 = vmul.f32 %v4720, %v5022
  %v5066 = vmul.f32 %v4721, %v5022
  %v5067 = vmul.f32 %v4722, %v5022
  %v5068 = vmul.f32 %v4723, %v5022
  %v5069 = vmul.f32 %v4724, %v5022
  %v5070 = vmul.f32 %v4725, %v5022
  %v5071 = vmul.f32 %v4726, %v5022
  %v5072 = vmul.f32 %v4727, %v5022
  %v5073 = vmul.f32 %v4728, %v5022
  %v5074 = vmul.f32 %v4729, %v5022
  %v5075 = vmul.f32 %v4730, %v5022
  %v5076 = vmul.f32 %v4731, %v5022
  %v5077 = vmul.f32 %v4732, %v5022
  %v5078 = vmul.f32 %v4733, %v5022
  %v5079 = vmul.f32 %v4734, %v5022
  %v5080 = vmul.f32 %v4735, %v5022
  %v5081 = vmul.f32 %v4736, %v5022
  %v5082 = vmul.f32 %v4737, %v5022
  %v5083 = vmul.f32 %v4738, %v5022
  %v5084 = vmul.f32 %v4739, %v5022
  %v5085 = vmul.f32 %v4740, %v5022
  %v5086 = vmul.f32 %v4741, %v5022
  %v5087 = vmul.f32 %v4742, %v5022
  %v5089 = vlaneseq
  %v5090 = vshrl.u32 %v5089, 7
  %v5091 = vsub.s32 0, %v5090
  %v5092 = vrot.slane %v5017, %v5091
  %v5094 = vadd.f32 %v5024, %v5092
  %v5095 = vadd.f32 %v5025, %v5092
  %v5096 = vadd.f32 %v5026, %v5092
  %v5097 = vadd.f32 %v5027, %v5092
  %v5098 = vadd.f32 %v5028, %v5092
  %v5099 = vadd.f32 %v5029, %v5092
  %v5100 = vadd.f32 %v5030, %v5092
  %v5101 = vadd.f32 %v5031, %v5092
  %v5102 = vadd.f32 %v5032, %v5092
  %v5103 = vadd.f32 %v5033, %v5092
  %v5104 = vadd.f32 %v5034, %v5092
  %v5105 = vadd.f32 %v5035, %v5092
  %v5106 = vadd.f32 %v5036, %v5092
  %v5107 = vadd.f32 %v5037, %v5092
  %v5108 = vadd.f32 %v5038, %v5092
  %v5109 = vadd.f32 %v5039, %v5092
  %v5110 = vadd.f32 %v5040, %v5092
  %v5111 = vadd.f32 %v5041, %v5092
  %v5112 = vadd.f32 %v5042, %v5092
  %v5113 = vadd.f32 %v5043, %v5092
  %v5114 = vadd.f32 %v5044, %v5092
  %v5115 = vadd.f32 %v5045, %v5092
  %v5116 = vadd.f32 %v5046, %v5092
  %v5117 = vadd.f32 %v5047, %v5092
  %v5118 = vadd.f32 %v5048, %v5092
  %v5119 = vadd.f32 %v5049, %v5092
  %v5120 = vadd.f32 %v5050, %v5092
  %v5121 = vadd.f32 %v5051, %v5092
  %v5122 = vadd.f32 %v5052, %v5092
  %v5123 = vadd.f32 %v5053, %v5092
  %v5124 = vadd.f32 %v5054, %v5092
  %v5125 = vadd.f32 %v5055, %v5092
  %v5126 = vadd.f32 %v5056, %v5092
  %v5127 = vadd.f32 %v5057, %v5092
  %v5128 = vadd.f32 %v5058, %v5092
  %v5129 = vadd.f32 %v5059, %v5092
  %v5130 = vadd.f32 %v5060, %v5092
  %v5131 = vadd.f32 %v5061, %v5092
  %v5132 = vadd.f32 %v5062, %v5092
  %v5133 = vadd.f32 %v5063, %v5092
  %v5134 = vadd.f32 %v5064, %v5092
  %v5135 = vadd.f32 %v5065, %v5092
  %v5136 = vadd.f32 %v5066, %v5092
  %v5137 = vadd.f32 %v5067, %v5092
  %v5138 = vadd.f32 %v5068, %v5092
  %v5139 = vadd.f32 %v5069, %v5092
  %v5140 = vadd.f32 %v5070, %v5092
  %v5141 = vadd.f32 %v5071, %v5092
  %v5142 = vadd.f32 %v5072, %v5092
  %v5143 = vadd.f32 %v5073, %v5092
  %v5144 = vadd.f32 %v5074, %v5092
  %v5145 = vadd.f32 %v5075, %v5092
  %v5146 = vadd.f32 %v5076, %v5092
  %v5147 = vadd.f32 %v5077, %v5092
  %v5148 = vadd.f32 %v5078, %v5092
  %v5149 = vadd.f32 %v5079, %v5092
  %v5150 = vadd.f32 %v5080, %v5092
  %v5151 = vadd.f32 %v5081, %v5092
  %v5152 = vadd.f32 %v5082, %v5092
  %v5153 = vadd.f32 %v5083, %v5092
  %v5154 = vadd.f32 %v5084, %v5092
  %v5155 = vadd.f32 %v5085, %v5092
  %v5156 = vadd.f32 %v5086, %v5092
  %v5157 = vadd.f32 %v5087, %v5092
  %v5158 = vmax.f32 %v5094, 0.0
  %v5159 = vmax.f32 %v5095, 0.0
  %v5160 = vmax.f32 %v5096, 0.0
  %v5161 = vmax.f32 %v5097, 0.0
  %v5162 = vmax.f32 %v5098, 0.0
  %v5163 = vmax.f32 %v5099, 0.0
  %v5164 = vmax.f32 %v5100, 0.0
  %v5165 = vmax.f32 %v5101, 0.0
  %v5166 = vmax.f32 %v5102, 0.0
  %v5167 = vmax.f32 %v5103, 0.0
  %v5168 = vmax.f32 %v5104, 0.0
  %v5169 = vmax.f32 %v5105, 0.0
  %v5170 = vmax.f32 %v5106, 0.0
  %v5171 = vmax.f32 %v5107, 0.0
  %v5172 = vmax.f32 %v5108, 0.0
  %v5173 = vmax.f32 %v5109, 0.0
  %v5174 = vmax.f32 %v5110, 0.0
  %v5175 = vmax.f32 %v5111, 0.0
  %v5176 = vmax.f32 %v5112, 0.0
  %v5177 = vmax.f32 %v5113, 0.0
  %v5178 = vmax.f32 %v5114, 0.0
  %v5179 = vmax.f32 %v5115, 0.0
  %v5180 = vmax.f32 %v5116, 0.0
  %v5181 = vmax.f32 %v5117, 0.0
  %v5182 = vmax.f32 %v5118, 0.0
  %v5183 = vmax.f32 %v5119, 0.0
  %v5184 = vmax.f32 %v5120, 0.0
  %v5185 = vmax.f32 %v5121, 0.0
  %v5186 = vmax.f32 %v5122, 0.0
  %v5187 = vmax.f32 %v5123, 0.0
  %v5188 = vmax.f32 %v5124, 0.0
  %v5189 = vmax.f32 %v5125, 0.0
  %v5190 = vmax.f32 %v5126, 0.0
  %v5191 = vmax.f32 %v5127, 0.0
  %v5192 = vmax.f32 %v5128, 0.0
  %v5193 = vmax.f32 %v5129, 0.0
  %v5194 = vmax.f32 %v5130, 0.0
  %v5195 = vmax.f32 %v5131, 0.0
  %v5196 = vmax.f32 %v5132, 0.0
  %v5197 = vmax.f32 %v5133, 0.0
  %v5198 = vmax.f32 %v5134, 0.0
  %v5199 = vmax.f32 %v5135, 0.0
  %v5200 = vmax.f32 %v5136, 0.0
  %v5201 = vmax.f32 %v5137, 0.0
  %v5202 = vmax.f32 %v5138, 0.0
  %v5203 = vmax.f32 %v5139, 0.0
  %v5204 = vmax.f32 %v5140, 0.0
  %v5205 = vmax.f32 %v5141, 0.0
  %v5206 = vmax.f32 %v5142, 0.0
  %v5207 = vmax.f32 %v5143, 0.0
  %v5208 = vmax.f32 %v5144, 0.0
  %v5209 = vmax.f32 %v5145, 0.0
  %v5210 = vmax.f32 %v5146, 0.0
  %v5211 = vmax.f32 %v5147, 0.0
  %v5212 = vmax.f32 %v5148, 0.0
  %v5213 = vmax.f32 %v5149, 0.0
  %v5214 = vmax.f32 %v5150, 0.0
  %v5215 = vmax.f32 %v5151, 0.0
  %v5216 = vmax.f32 %v5152, 0.0
  %v5217 = vmax.f32 %v5153, 0.0
  %v5218 = vmax.f32 %v5154, 0.0
  %v5219 = vmax.f32 %v5155, 0.0
  %v5220 = vmax.f32 %v5156, 0.0
  %v5221 = vmax.f32 %v5157, 0.0
  %5222 = vst [vmem:[%s180 + $0x8] sm:$0xff] %v5158
  %5223 = vst [vmem:[%s180 + $0x10] sm:$0xff] %v5159
  %5224 = vst [vmem:[%s180 + $0x28] sm:$0xff] %v5160
  %5225 = vst [vmem:[%s180 + $0x30] sm:$0xff] %v5161
  %5226 = vst [vmem:[%s180 + $0x48] sm:$0xff] %v5162
  %5227 = vst [vmem:[%s180 + $0x50] sm:$0xff] %v5163
  %5228 = vst [vmem:[%s180 + $0x68] sm:$0xff] %v5164
  %5229 = vst [vmem:[%s180 + $0x70] sm:$0xff] %v5165
  %5230 = vst [vmem:[%s180 + $0x88] sm:$0xff] %v5166
  %5231 = vst [vmem:[%s180 + $0x90] sm:$0xff] %v5167
  %5232 = vst [vmem:[%s180 + $0xa8] sm:$0xff] %v5168
  %5233 = vst [vmem:[%s180 + $0xb0] sm:$0xff] %v5169
  %5234 = vst [vmem:[%s180 + $0xc8] sm:$0xff] %v5170
  %5235 = vst [vmem:[%s180 + $0xd0] sm:$0xff] %v5171
  %5236 = vst [vmem:[%s180 + $0xe8] sm:$0xff] %v5172
  %5237 = vst [vmem:[%s180 + $0xf0] sm:$0xff] %v5173
  %5238 = vst [vmem:[%s180 + $0x108] sm:$0xff] %v5174
  %5239 = vst [vmem:[%s180 + $0x110] sm:$0xff] %v5175
  %5240 = vst [vmem:[%s180 + $0x128] sm:$0xff] %v5176
  %5241 = vst [vmem:[%s180 + $0x130] sm:$0xff] %v5177
  %5242 = vst [vmem:[%s180 + $0x148] sm:$0xff] %v5178
  %5243 = vst [vmem:[%s180 + $0x150] sm:$0xff] %v5179
  %5244 = vst [vmem:[%s180 + $0x168] sm:$0xff] %v5180
  %5245 = vst [vmem:[%s180 + $0x170] sm:$0xff] %v5181
  %5246 = vst [vmem:[%s180 + $0x188] sm:$0xff] %v5182
  %5247 = vst [vmem:[%s180 + $0x190] sm:$0xff] %v5183
  %5248 = vst [vmem:[%s180 + $0x1a8] sm:$0xff] %v5184
  %5249 = vst [vmem:[%s180 + $0x1b0] sm:$0xff] %v5185
  %5250 = vst [vmem:[%s180 + $0x1c8] sm:$0xff] %v5186
  %5251 = vst [vmem:[%s180 + $0x1d0] sm:$0xff] %v5187
  %5252 = vst [vmem:[%s180 + $0x1e8] sm:$0xff] %v5188
  %5253 = vst [vmem:[%s180 + $0x1f0] sm:$0xff] %v5189
  %5254 = vst [vmem:[%s180 + $0x248] sm:$0xff] %v5190
  %5255 = vst [vmem:[%s180 + $0x250] sm:$0xff] %v5191
  %5256 = vst [vmem:[%s180 + $0x268] sm:$0xff] %v5192
  %5257 = vst [vmem:[%s180 + $0x270] sm:$0xff] %v5193
  %5258 = vst [vmem:[%s180 + $0x288] sm:$0xff] %v5194
  %5259 = vst [vmem:[%s180 + $0x290] sm:$0xff] %v5195
  %5260 = vst [vmem:[%s180 + $0x2a8] sm:$0xff] %v5196
  %5261 = vst [vmem:[%s180 + $0x2b0] sm:$0xff] %v5197
  %5262 = vst [vmem:[%s180 + $0x2c8] sm:$0xff] %v5198
  %5263 = vst [vmem:[%s180 + $0x2d0] sm:$0xff] %v5199
  %5264 = vst [vmem:[%s180 + $0x2e8] sm:$0xff] %v5200
  %5265 = vst [vmem:[%s180 + $0x2f0] sm:$0xff] %v5201
  %5266 = vst [vmem:[%s180 + $0x308] sm:$0xff] %v5202
  %5267 = vst [vmem:[%s180 + $0x310] sm:$0xff] %v5203
  %5268 = vst [vmem:[%s180 + $0x328] sm:$0xff] %v5204
  %5269 = vst [vmem:[%s180 + $0x330] sm:$0xff] %v5205
  %5270 = vst [vmem:[%s180 + $0x348] sm:$0xff] %v5206
  %5271 = vst [vmem:[%s180 + $0x350] sm:$0xff] %v5207
  %5272 = vst [vmem:[%s180 + $0x368] sm:$0xff] %v5208
  %5273 = vst [vmem:[%s180 + $0x370] sm:$0xff] %v5209
  %5274 = vst [vmem:[%s180 + $0x388] sm:$0xff] %v5210
  %5275 = vst [vmem:[%s180 + $0x390] sm:$0xff] %v5211
  %5276 = vst [vmem:[%s180 + $0x3a8] sm:$0xff] %v5212
  %5277 = vst [vmem:[%s180 + $0x3b0] sm:$0xff] %v5213
  %5278 = vst [vmem:[%s180 + $0x3c8] sm:$0xff] %v5214
  %5279 = vst [vmem:[%s180 + $0x3d0] sm:$0xff] %v5215
  %5280 = vst [vmem:[%s180 + $0x3e8] sm:$0xff] %v5216
  %5281 = vst [vmem:[%s180 + $0x3f0] sm:$0xff] %v5217
  %5282 = vst [vmem:[%s180 + $0x408] sm:$0xff] %v5218
  %5283 = vst [vmem:[%s180 + $0x410] sm:$0xff] %v5219
  %5284 = vst [vmem:[%s180 + $0x428] sm:$0xff] %v5220
  %5285 = vst [vmem:[%s180 + $0x430] sm:$0xff] %v5221
  %v5286 = vld [vmem:[#allocation2 + $0x7] sm:$0xff]
  %v5287 = vld [vmem:[#allocation2 + $0xf] sm:$0xff]
  %v5288 = vld [vmem:[#allocation2 + $0x27] sm:$0xff]
  %v5289 = vld [vmem:[#allocation2 + $0x2f] sm:$0xff]
  %v5290 = vld [vmem:[#allocation2 + $0x47] sm:$0xff]
  %v5291 = vld [vmem:[#allocation2 + $0x4f] sm:$0xff]
  %v5292 = vld [vmem:[#allocation2 + $0x67] sm:$0xff]
  %v5293 = vld [vmem:[#allocation2 + $0x6f] sm:$0xff]
  %v5294 = vld [vmem:[#allocation2 + $0x87] sm:$0xff]
  %v5295 = vld [vmem:[#allocation2 + $0x8f] sm:$0xff]
  %v5296 = vld [vmem:[#allocation2 + $0xa7] sm:$0xff]
  %v5297 = vld [vmem:[#allocation2 + $0xaf] sm:$0xff]
  %v5298 = vld [vmem:[#allocation2 + $0xc7] sm:$0xff]
  %v5299 = vld [vmem:[#allocation2 + $0xcf] sm:$0xff]
  %v5300 = vld [vmem:[#allocation2 + $0xe7] sm:$0xff]
  %v5301 = vld [vmem:[#allocation2 + $0xef] sm:$0xff]
  %v5302 = vld [vmem:[#allocation2 + $0x107] sm:$0xff]
  %v5303 = vld [vmem:[#allocation2 + $0x10f] sm:$0xff]
  %v5304 = vld [vmem:[#allocation2 + $0x127] sm:$0xff]
  %v5305 = vld [vmem:[#allocation2 + $0x12f] sm:$0xff]
  %v5306 = vld [vmem:[#allocation2 + $0x147] sm:$0xff]
  %v5307 = vld [vmem:[#allocation2 + $0x14f] sm:$0xff]
  %v5308 = vld [vmem:[#allocation2 + $0x167] sm:$0xff]
  %v5309 = vld [vmem:[#allocation2 + $0x16f] sm:$0xff]
  %v5310 = vld [vmem:[#allocation2 + $0x187] sm:$0xff]
  %v5311 = vld [vmem:[#allocation2 + $0x18f] sm:$0xff]
  %v5312 = vld [vmem:[#allocation2 + $0x1a7] sm:$0xff]
  %v5313 = vld [vmem:[#allocation2 + $0x1af] sm:$0xff]
  %v5314 = vld [vmem:[#allocation2 + $0x1c7] sm:$0xff]
  %v5315 = vld [vmem:[#allocation2 + $0x1cf] sm:$0xff]
  %v5316 = vld [vmem:[#allocation2 + $0x1e7] sm:$0xff]
  %v5317 = vld [vmem:[#allocation2 + $0x1ef] sm:$0xff]
  %v5318 = vld [vmem:[#allocation2 + $0x247] sm:$0xff]
  %v5319 = vld [vmem:[#allocation2 + $0x24f] sm:$0xff]
  %v5320 = vld [vmem:[#allocation2 + $0x267] sm:$0xff]
  %v5321 = vld [vmem:[#allocation2 + $0x26f] sm:$0xff]
  %v5322 = vld [vmem:[#allocation2 + $0x287] sm:$0xff]
  %v5323 = vld [vmem:[#allocation2 + $0x28f] sm:$0xff]
  %v5324 = vld [vmem:[#allocation2 + $0x2a7] sm:$0xff]
  %v5325 = vld [vmem:[#allocation2 + $0x2af] sm:$0xff]
  %v5326 = vld [vmem:[#allocation2 + $0x2c7] sm:$0xff]
  %v5327 = vld [vmem:[#allocation2 + $0x2cf] sm:$0xff]
  %v5328 = vld [vmem:[#allocation2 + $0x2e7] sm:$0xff]
  %v5329 = vld [vmem:[#allocation2 + $0x2ef] sm:$0xff]
  %v5330 = vld [vmem:[#allocation2 + $0x307] sm:$0xff]
  %v5331 = vld [vmem:[#allocation2 + $0x30f] sm:$0xff]
  %v5332 = vld [vmem:[#allocation2 + $0x327] sm:$0xff]
  %v5333 = vld [vmem:[#allocation2 + $0x32f] sm:$0xff]
  %v5334 = vld [vmem:[#allocation2 + $0x347] sm:$0xff]
  %v5335 = vld [vmem:[#allocation2 + $0x34f] sm:$0xff]
  %v5336 = vld [vmem:[#allocation2 + $0x367] sm:$0xff]
  %v5337 = vld [vmem:[#allocation2 + $0x36f] sm:$0xff]
  %v5338 = vld [vmem:[#allocation2 + $0x387] sm:$0xff]
  %v5339 = vld [vmem:[#allocation2 + $0x38f] sm:$0xff]
  %v5340 = vld [vmem:[#allocation2 + $0x3a7] sm:$0xff]
  %v5341 = vld [vmem:[#allocation2 + $0x3af] sm:$0xff]
  %v5342 = vld [vmem:[#allocation2 + $0x3c7] sm:$0xff]
  %v5343 = vld [vmem:[#allocation2 + $0x3cf] sm:$0xff]
  %v5344 = vld [vmem:[#allocation2 + $0x3e7] sm:$0xff]
  %v5345 = vld [vmem:[#allocation2 + $0x3ef] sm:$0xff]
  %v5346 = vld [vmem:[#allocation2 + $0x407] sm:$0xff]
  %v5347 = vld [vmem:[#allocation2 + $0x40f] sm:$0xff]
  %v5348 = vld [vmem:[#allocation2 + $0x427] sm:$0xff]
  %v5349 = vld [vmem:[#allocation2 + $0x42f] sm:$0xff]
  %v5350 = vpack.c.bf16 %v5287, %v5286
  %v5351 = vpack.c.bf16 %v5289, %v5288
  %v5352 = vpack.c.bf16 %v5291, %v5290
  %v5353 = vpack.c.bf16 %v5293, %v5292
  %v5354 = vpack.c.bf16 %v5295, %v5294
  %v5355 = vpack.c.bf16 %v5297, %v5296
  %v5356 = vpack.c.bf16 %v5299, %v5298
  %v5357 = vpack.c.bf16 %v5301, %v5300
  %v5358 = vpack.c.bf16 %v5303, %v5302
  %v5359 = vpack.c.bf16 %v5305, %v5304
  %v5360 = vpack.c.bf16 %v5307, %v5306
  %v5361 = vpack.c.bf16 %v5309, %v5308
  %v5362 = vpack.c.bf16 %v5311, %v5310
  %v5363 = vpack.c.bf16 %v5313, %v5312
  %v5364 = vpack.c.bf16 %v5315, %v5314
  %v5365 = vpack.c.bf16 %v5317, %v5316
  %v5366 = vpack.c.bf16 %v5319, %v5318
  %v5367 = vpack.c.bf16 %v5321, %v5320
  %v5368 = vpack.c.bf16 %v5323, %v5322
  %v5369 = vpack.c.bf16 %v5325, %v5324
  %v5370 = vpack.c.bf16 %v5327, %v5326
  %v5371 = vpack.c.bf16 %v5329, %v5328
  %v5372 = vpack.c.bf16 %v5331, %v5330
  %v5373 = vpack.c.bf16 %v5333, %v5332
  %v5374 = vpack.c.bf16 %v5335, %v5334
  %v5375 = vpack.c.bf16 %v5337, %v5336
  %v5376 = vpack.c.bf16 %v5339, %v5338
  %v5377 = vpack.c.bf16 %v5341, %v5340
  %v5378 = vpack.c.bf16 %v5343, %v5342
  %v5379 = vpack.c.bf16 %v5345, %v5344
  %v5380 = vpack.c.bf16 %v5347, %v5346
  %v5381 = vpack.c.bf16 %v5349, %v5348
  %v5382 = vld [vmem:[%s4] sm:$0xf]
  %v5383 = vld [vmem:[%s4 + $0x4] sm:$0xf]
  %v5384 = vld [vmem:[%s4 + $0x8] sm:$0xf]
  %v5385 = vld [vmem:[%s4 + $0xc] sm:$0xf]
  %v5386 = vld [vmem:[%s4 + $0x10] sm:$0xf]
  %v5387 = vld [vmem:[%s4 + $0x14] sm:$0xf]
  %v5388 = vld [vmem:[%s4 + $0x18] sm:$0xf]
  %v5389 = vld [vmem:[%s4 + $0x1c] sm:$0xf]
  %v5390 = vld [vmem:[%s4 + $0x20] sm:$0xf]
  %v5391 = vld [vmem:[%s4 + $0x24] sm:$0xf]
  %v5392 = vld [vmem:[%s4 + $0x28] sm:$0xf]
  %v5393 = vld [vmem:[%s4 + $0x2c] sm:$0xf]
  %v5394 = vld [vmem:[%s4 + $0x30] sm:$0xf]
  %v5395 = vld [vmem:[%s4 + $0x34] sm:$0xf]
  %v5396 = vld [vmem:[%s4 + $0x38] sm:$0xf]
  %v5397 = vld [vmem:[%s4 + $0x3c] sm:$0xf]
  %v5398 = vld [vmem:[#allocation2 + $0x8] sm:$0xff]
  %v5399 = vld [vmem:[#allocation2 + $0x10] sm:$0xff]
  %v5400 = vld [vmem:[#allocation2 + $0x28] sm:$0xff]
  %v5401 = vld [vmem:[#allocation2 + $0x30] sm:$0xff]
  %v5402 = vld [vmem:[#allocation2 + $0x48] sm:$0xff]
  %v5403 = vld [vmem:[#allocation2 + $0x50] sm:$0xff]
  %v5404 = vld [vmem:[#allocation2 + $0x68] sm:$0xff]
  %v5405 = vld [vmem:[#allocation2 + $0x70] sm:$0xff]
  %v5406 = vld [vmem:[#allocation2 + $0x88] sm:$0xff]
  %v5407 = vld [vmem:[#allocation2 + $0x90] sm:$0xff]
  %v5408 = vld [vmem:[#allocation2 + $0xa8] sm:$0xff]
  %v5409 = vld [vmem:[#allocation2 + $0xb0] sm:$0xff]
  %v5410 = vld [vmem:[#allocation2 + $0xc8] sm:$0xff]
  %v5411 = vld [vmem:[#allocation2 + $0xd0] sm:$0xff]
  %v5412 = vld [vmem:[#allocation2 + $0xe8] sm:$0xff]
  %v5413 = vld [vmem:[#allocation2 + $0xf0] sm:$0xff]
  %v5414 = vld [vmem:[#allocation2 + $0x108] sm:$0xff]
  %v5415 = vld [vmem:[#allocation2 + $0x110] sm:$0xff]
  %v5416 = vld [vmem:[#allocation2 + $0x128] sm:$0xff]
  %v5417 = vld [vmem:[#allocation2 + $0x130] sm:$0xff]
  %v5418 = vld [vmem:[#allocation2 + $0x148] sm:$0xff]
  %v5419 = vld [vmem:[#allocation2 + $0x150] sm:$0xff]
  %v5420 = vld [vmem:[#allocation2 + $0x168] sm:$0xff]
  %v5421 = vld [vmem:[#allocation2 + $0x170] sm:$0xff]
  %v5422 = vld [vmem:[#allocation2 + $0x188] sm:$0xff]
  %v5423 = vld [vmem:[#allocation2 + $0x190] sm:$0xff]
  %v5424 = vld [vmem:[#allocation2 + $0x1a8] sm:$0xff]
  %v5425 = vld [vmem:[#allocation2 + $0x1b0] sm:$0xff]
  %v5426 = vld [vmem:[#allocation2 + $0x1c8] sm:$0xff]
  %v5427 = vld [vmem:[#allocation2 + $0x1d0] sm:$0xff]
  %v5428 = vld [vmem:[#allocation2 + $0x1e8] sm:$0xff]
  %v5429 = vld [vmem:[#allocation2 + $0x1f0] sm:$0xff]
  %v5430 = vld [vmem:[#allocation2 + $0x248] sm:$0xff]
  %v5431 = vld [vmem:[#allocation2 + $0x250] sm:$0xff]
  %v5432 = vld [vmem:[#allocation2 + $0x268] sm:$0xff]
  %v5433 = vld [vmem:[#allocation2 + $0x270] sm:$0xff]
  %v5434 = vld [vmem:[#allocation2 + $0x288] sm:$0xff]
  %v5435 = vld [vmem:[#allocation2 + $0x290] sm:$0xff]
  %v5436 = vld [vmem:[#allocation2 + $0x2a8] sm:$0xff]
  %v5437 = vld [vmem:[#allocation2 + $0x2b0] sm:$0xff]
  %v5438 = vld [vmem:[#allocation2 + $0x2c8] sm:$0xff]
  %v5439 = vld [vmem:[#allocation2 + $0x2d0] sm:$0xff]
  %v5440 = vld [vmem:[#allocation2 + $0x2e8] sm:$0xff]
  %v5441 = vld [vmem:[#allocation2 + $0x2f0] sm:$0xff]
  %v5442 = vld [vmem:[#allocation2 + $0x308] sm:$0xff]
  %v5443 = vld [vmem:[#allocation2 + $0x310] sm:$0xff]
  %v5444 = vld [vmem:[#allocation2 + $0x328] sm:$0xff]
  %v5445 = vld [vmem:[#allocation2 + $0x330] sm:$0xff]
  %v5446 = vld [vmem:[#allocation2 + $0x348] sm:$0xff]
  %v5447 = vld [vmem:[#allocation2 + $0x350] sm:$0xff]
  %v5448 = vld [vmem:[#allocation2 + $0x368] sm:$0xff]
  %v5449 = vld [vmem:[#allocation2 + $0x370] sm:$0xff]
  %v5450 = vld [vmem:[#allocation2 + $0x388] sm:$0xff]
  %v5451 = vld [vmem:[#allocation2 + $0x390] sm:$0xff]
  %v5452 = vld [vmem:[#allocation2 + $0x3a8] sm:$0xff]
  %v5453 = vld [vmem:[#allocation2 + $0x3b0] sm:$0xff]
  %v5454 = vld [vmem:[#allocation2 + $0x3c8] sm:$0xff]
  %v5455 = vld [vmem:[#allocation2 + $0x3d0] sm:$0xff]
  %v5456 = vld [vmem:[#allocation2 + $0x3e8] sm:$0xff]
  %v5457 = vld [vmem:[#allocation2 + $0x3f0] sm:$0xff]
  %v5458 = vld [vmem:[#allocation2 + $0x408] sm:$0xff]
  %v5459 = vld [vmem:[#allocation2 + $0x410] sm:$0xff]
  %v5460 = vld [vmem:[#allocation2 + $0x428] sm:$0xff]
  %v5461 = vld [vmem:[#allocation2 + $0x430] sm:$0xff]
  %v5462 = vpack.c.bf16 %v5399, %v5398
  %v5463 = vpack.c.bf16 %v5401, %v5400
  %v5464 = vpack.c.bf16 %v5403, %v5402
  %v5465 = vpack.c.bf16 %v5405, %v5404
  %v5466 = vpack.c.bf16 %v5407, %v5406
  %v5467 = vpack.c.bf16 %v5409, %v5408
  %v5468 = vpack.c.bf16 %v5411, %v5410
  %v5469 = vpack.c.bf16 %v5413, %v5412
  %v5470 = vpack.c.bf16 %v5415, %v5414
  %v5471 = vpack.c.bf16 %v5417, %v5416
  %v5472 = vpack.c.bf16 %v5419, %v5418
  %v5473 = vpack.c.bf16 %v5421, %v5420
  %v5474 = vpack.c.bf16 %v5423, %v5422
  %v5475 = vpack.c.bf16 %v5425, %v5424
  %v5476 = vpack.c.bf16 %v5427, %v5426
  %v5477 = vpack.c.bf16 %v5429, %v5428
  %v5478 = vpack.c.bf16 %v5431, %v5430
  %v5479 = vpack.c.bf16 %v5433, %v5432
  %v5480 = vpack.c.bf16 %v5435, %v5434
  %v5481 = vpack.c.bf16 %v5437, %v5436
  %v5482 = vpack.c.bf16 %v5439, %v5438
  %v5483 = vpack.c.bf16 %v5441, %v5440
  %v5484 = vpack.c.bf16 %v5443, %v5442
  %v5485 = vpack.c.bf16 %v5445, %v5444
  %v5486 = vpack.c.bf16 %v5447, %v5446
  %v5487 = vpack.c.bf16 %v5449, %v5448
  %v5488 = vpack.c.bf16 %v5451, %v5450
  %v5489 = vpack.c.bf16 %v5453, %v5452
  %v5490 = vpack.c.bf16 %v5455, %v5454
  %v5491 = vpack.c.bf16 %v5457, %v5456
  %v5492 = vpack.c.bf16 %v5459, %v5458
  %v5493 = vpack.c.bf16 %v5461, %v5460
  %s5494 = scalar_lea.vmem %s4, 64
  %v5495 = vld [vmem:[%s5494] sm:$0xf]
  %v5496 = vld [vmem:[%s5494 + $0x4] sm:$0xf]
  %v5497 = vld [vmem:[%s5494 + $0x8] sm:$0xf]
  %v5498 = vld [vmem:[%s5494 + $0xc] sm:$0xf]
  %v5499 = vld [vmem:[%s5494 + $0x10] sm:$0xf]
  %v5500 = vld [vmem:[%s5494 + $0x14] sm:$0xf]
  %v5501 = vld [vmem:[%s5494 + $0x18] sm:$0xf]
  %v5502 = vld [vmem:[%s5494 + $0x1c] sm:$0xf]
  %v5503 = vld [vmem:[%s5494 + $0x20] sm:$0xf]
  %v5504 = vld [vmem:[%s5494 + $0x24] sm:$0xf]
  %v5505 = vld [vmem:[%s5494 + $0x28] sm:$0xf]
  %v5506 = vld [vmem:[%s5494 + $0x2c] sm:$0xf]
  %v5507 = vld [vmem:[%s5494 + $0x30] sm:$0xf]
  %v5508 = vld [vmem:[%s5494 + $0x34] sm:$0xf]
  %v5509 = vld [vmem:[%s5494 + $0x38] sm:$0xf]
  %v5510 = vld [vmem:[%s5494 + $0x3c] sm:$0xf]
  %v5527 = vunpack.c.l.b16 %v5495
  %v5528 = vunpack.c.l.b16 %v5496
  %v5529 = vunpack.c.l.b16 %v5497
  %v5530 = vunpack.c.l.b16 %v5498
  %v5531 = vunpack.c.l.b16 %v5499
  %v5532 = vunpack.c.l.b16 %v5500
  %v5533 = vunpack.c.l.b16 %v5501
  %v5534 = vunpack.c.l.b16 %v5502
  %v5535 = vunpack.c.l.b16 %v5503
  %v5536 = vunpack.c.l.b16 %v5504
  %v5537 = vunpack.c.l.b16 %v5505
  %v5538 = vunpack.c.l.b16 %v5506
  %v5539 = vunpack.c.l.b16 %v5507
  %v5540 = vunpack.c.l.b16 %v5508
  %v5541 = vunpack.c.l.b16 %v5509
  %v5542 = vunpack.c.l.b16 %v5510
  %v5543 = vpack.c.b16 %v5528, %v5527
  %v5544 = vpack.c.b16 %v5530, %v5529
  %v5545 = vpack.c.b16 %v5532, %v5531
  %v5546 = vpack.c.b16 %v5534, %v5533
  %v5547 = vpack.c.b16 %v5536, %v5535
  %v5548 = vpack.c.b16 %v5538, %v5537
  %v5549 = vpack.c.b16 %v5540, %v5539
  %v5550 = vpack.c.b16 %v5542, %v5541
  %5559 = vmatprep.subr.bf16.mxu0 0
  %5560 = vmatpush1.bf16.msra.mxu0 %v5543
  %5561 = vmatprep.subr.bf16.mxu0 0
  %5562 = vmatpush1.bf16.msra.mxu0 %v5544
  %5563 = vmatprep.subr.bf16.mxu0 0
  %5564 = vmatpush1.bf16.msra.mxu0 %v5545
  %5565 = vmatprep.subr.bf16.mxu0 0
  %5566 = vmatpush1.bf16.msra.mxu0 %v5546
  %5567 = vmatprep.subr.bf16.mxu0 0
  %5568 = vmatpush1.bf16.msra.mxu0 %v5547
  %5569 = vmatprep.subr.bf16.mxu0 0
  %5570 = vmatpush1.bf16.msra.mxu0 %v5548
  %5571 = vmatprep.subr.bf16.mxu0 0
  %5572 = vmatpush1.bf16.msra.mxu0 %v5549
  %5573 = vmatprep.subr.bf16.mxu0 0
  %5574 = vmatpush1.bf16.msra.mxu0 %v5550
  %5575 = vmatprep.subr.bf16.mxu0 0
  %5576 = vmatpush1.bf16.msra.mxu0 0
  %5577 = vmatprep.subr.bf16.mxu0 0
  %5578 = vmatpush1.bf16.msra.mxu0 0
  %5579 = vmatprep.subr.bf16.mxu0 0
  %5580 = vmatpush1.bf16.msra.mxu0 0
  %5581 = vmatprep.subr.bf16.mxu0 0
  %5582 = vmatpush1.bf16.msra.mxu0 0
  %5583 = vmatprep.subr.bf16.mxu0 0
  %5584 = vmatpush1.bf16.msra.mxu0 0
  %5585 = vmatprep.subr.bf16.mxu0 0
  %5586 = vmatpush1.bf16.msra.mxu0 0
  %5587 = vmatprep.subr.bf16.mxu0 0
  %5588 = vmatpush1.bf16.msra.mxu0 0
  %5589 = vmatprep.subr.bf16.mxu0 0
  %5590 = vmatpush1.bf16.msra.mxu0 0
  %5591 = vmatprep.mubr.bf16.mxu0 0
  %5592 = vmatmul.mubr.bf16.gmra.mrb[0].mxu0 %v5462
  %v5593 = vpop.f32.mrb[0].mxu0
  %v5594 = vadd.f32 0.0, %v5593
  %v5595 = vpop.f32.mrb[0].mxu0
  %v5596 = vpop.f32.mrb[0].mxu0
  %v5597 = vadd.f32 0.0, %v5596
  %v5598 = vpop.f32.mrb[0].mxu0
  %5599 = vmatprep.mubr.bf16.mxu0 0
  %5600 = vmatmul.mubr.bf16.gmra.mrb[0].mxu0 %v5463
  %v5601 = vpop.f32.mrb[0].mxu0
  %v5602 = vadd.f32 0.0, %v5601
  %v5603 = vpop.f32.mrb[0].mxu0
  %v5604 = vpop.f32.mrb[0].mxu0
  %v5605 = vadd.f32 0.0, %v5604
  %v5606 = vpop.f32.mrb[0].mxu0
  %5607 = vmatprep.mubr.bf16.mxu0 0
  %5608 = vmatmul.mubr.bf16.gmra.mrb[0].mxu0 %v5464
  %v5609 = vpop.f32.mrb[0].mxu0
  %v5610 = vadd.f32 0.0, %v5609
  %v5611 = vpop.f32.mrb[0].mxu0
  %v5612 = vpop.f32.mrb[0].mxu0
  %v5613 = vadd.f32 0.0, %v5612
  %v5614 = vpop.f32.mrb[0].mxu0
  %5615 = vmatprep.mubr.bf16.mxu0 0
  %5616 = vmatmul.mubr.bf16.gmra.mrb[0].mxu0 %v5465
  %v5617 = vpop.f32.mrb[0].mxu0
  %v5618 = vadd.f32 0.0, %v5617
  %v5619 = vpop.f32.mrb[0].mxu0
  %v5620 = vpop.f32.mrb[0].mxu0
  %v5621 = vadd.f32 0.0, %v5620
  %v5622 = vpop.f32.mrb[0].mxu0
  %5623 = vmatprep.mubr.bf16.mxu0 0
  %5624 = vmatmul.mubr.bf16.gmra.mrb[0].mxu0 %v5466
  %v5625 = vpop.f32.mrb[0].mxu0
  %v5626 = vadd.f32 0.0, %v5625
  %v5627 = vpop.f32.mrb[0].mxu0
  %v5628 = vpop.f32.mrb[0].mxu0
  %v5629 = vadd.f32 0.0, %v5628
  %v5630 = vpop.f32.mrb[0].mxu0
  %5631 = vmatprep.mubr.bf16.mxu0 0
  %5632 = vmatmul.mubr.bf16.gmra.mrb[0].mxu0 %v5467
  %v5633 = vpop.f32.mrb[0].mxu0
  %v5634 = vadd.f32 0.0, %v5633
  %v5635 = vpop.f32.mrb[0].mxu0
  %v5636 = vpop.f32.mrb[0].mxu0
  %v5637 = vadd.f32 0.0, %v5636
  %v5638 = vpop.f32.mrb[0].mxu0
  %5639 = vmatprep.mubr.bf16.mxu0 0
  %5640 = vmatmul.mubr.bf16.gmra.mrb[0].mxu0 %v5468
  %v5641 = vpop.f32.mrb[0].mxu0
  %v5642 = vadd.f32 0.0, %v5641
  %v5643 = vpop.f32.mrb[0].mxu0
  %v5644 = vpop.f32.mrb[0].mxu0
  %v5645 = vadd.f32 0.0, %v5644
  %v5646 = vpop.f32.mrb[0].mxu0
  %5647 = vmatprep.mubr.bf16.mxu0 0
  %5648 = vmatmul.mubr.bf16.gmra.mrb[0].mxu0 %v5469
  %v5649 = vpop.f32.mrb[0].mxu0
  %v5650 = vadd.f32 0.0, %v5649
  %v5651 = vpop.f32.mrb[0].mxu0
  %v5652 = vpop.f32.mrb[0].mxu0
  %v5653 = vadd.f32 0.0, %v5652
  %v5654 = vpop.f32.mrb[0].mxu0
  %5655 = vmatprep.mubr.bf16.mxu0 0
  %5656 = vmatmul.mubr.bf16.gmra.mrb[0].mxu0 %v5470
  %v5657 = vpop.f32.mrb[0].mxu0
  %v5658 = vadd.f32 0.0, %v5657
  %v5659 = vpop.f32.mrb[0].mxu0
  %v5660 = vpop.f32.mrb[0].mxu0
  %v5661 = vadd.f32 0.0, %v5660
  %v5662 = vpop.f32.mrb[0].mxu0
  %5663 = vmatprep.mubr.bf16.mxu0 0
  %5664 = vmatmul.mubr.bf16.gmra.mrb[0].mxu0 %v5471
  %v5665 = vpop.f32.mrb[0].mxu0
  %v5666 = vadd.f32 0.0, %v5665
  %v5667 = vpop.f32.mrb[0].mxu0
  %v5668 = vpop.f32.mrb[0].mxu0
  %v5669 = vadd.f32 0.0, %v5668
  %v5670 = vpop.f32.mrb[0].mxu0
  %5671 = vmatprep.mubr.bf16.mxu0 0
  %5672 = vmatmul.mubr.bf16.gmra.mrb[0].mxu0 %v5472
  %v5673 = vpop.f32.mrb[0].mxu0
  %v5674 = vadd.f32 0.0, %v5673
  %v5675 = vpop.f32.mrb[0].mxu0
  %v5676 = vpop.f32.mrb[0].mxu0
  %v5677 = vadd.f32 0.0, %v5676
  %v5678 = vpop.f32.mrb[0].mxu0
  %5679 = vmatprep.mubr.bf16.mxu0 0
  %5680 = vmatmul.mubr.bf16.gmra.mrb[0].mxu0 %v5473
  %v5681 = vpop.f32.mrb[0].mxu0
  %v5682 = vadd.f32 0.0, %v5681
  %v5683 = vpop.f32.mrb[0].mxu0
  %v5684 = vpop.f32.mrb[0].mxu0
  %v5685 = vadd.f32 0.0, %v5684
  %v5686 = vpop.f32.mrb[0].mxu0
  %5687 = vmatprep.mubr.bf16.mxu0 0
  %5688 = vmatmul.mubr.bf16.gmra.mrb[0].mxu0 %v5474
  %v5689 = vpop.f32.mrb[0].mxu0
  %v5690 = vadd.f32 0.0, %v5689
  %v5691 = vpop.f32.mrb[0].mxu0
  %v5692 = vpop.f32.mrb[0].mxu0
  %v5693 = vadd.f32 0.0, %v5692
  %v5694 = vpop.f32.mrb[0].mxu0
  %5695 = vmatprep.mubr.bf16.mxu0 0
  %5696 = vmatmul.mubr.bf16.gmra.mrb[0].mxu0 %v5475
  %v5697 = vpop.f32.mrb[0].mxu0
  %v5698 = vadd.f32 0.0, %v5697
  %v5699 = vpop.f32.mrb[0].mxu0
  %v5700 = vpop.f32.mrb[0].mxu0
  %v5701 = vadd.f32 0.0, %v5700
  %v5702 = vpop.f32.mrb[0].mxu0
  %5703 = vmatprep.mubr.bf16.mxu0 0
  %5704 = vmatmul.mubr.bf16.gmra.mrb[0].mxu0 %v5476
  %v5705 = vpop.f32.mrb[0].mxu0
  %v5706 = vadd.f32 0.0, %v5705
  %v5707 = vpop.f32.mrb[0].mxu0
  %v5708 = vpop.f32.mrb[0].mxu0
  %v5709 = vadd.f32 0.0, %v5708
  %v5710 = vpop.f32.mrb[0].mxu0
  %5711 = vmatprep.mubr.bf16.mxu0 0
  %5712 = vmatmul.mubr.bf16.gmra.mrb[0].mxu0 %v5477
  %v5713 = vpop.f32.mrb[0].mxu0
  %v5714 = vadd.f32 0.0, %v5713
  %v5715 = vpop.f32.mrb[0].mxu0
  %v5716 = vpop.f32.mrb[0].mxu0
  %v5717 = vadd.f32 0.0, %v5716
  %v5718 = vpop.f32.mrb[0].mxu0
  %5719 = vmatprep.mubr.bf16.mxu0 0
  %5720 = vmatmul.mubr.bf16.gmra.mrb[0].mxu0 %v5478
  %v5721 = vpop.f32.mrb[0].mxu0
  %v5722 = vadd.f32 0.0, %v5721
  %v5723 = vpop.f32.mrb[0].mxu0
  %v5724 = vpop.f32.mrb[0].mxu0
  %v5725 = vadd.f32 0.0, %v5724
  %v5726 = vpop.f32.mrb[0].mxu0
  %5727 = vmatprep.mubr.bf16.mxu0 0
  %5728 = vmatmul.mubr.bf16.gmra.mrb[0].mxu0 %v5479
  %v5729 = vpop.f32.mrb[0].mxu0
  %v5730 = vadd.f32 0.0, %v5729
  %v5731 = vpop.f32.mrb[0].mxu0
  %v5732 = vpop.f32.mrb[0].mxu0
  %v5733 = vadd.f32 0.0, %v5732
  %v5734 = vpop.f32.mrb[0].mxu0
  %5735 = vmatprep.mubr.bf16.mxu0 0
  %5736 = vmatmul.mubr.bf16.gmra.mrb[0].mxu0 %v5480
  %v5737 = vpop.f32.mrb[0].mxu0
  %v5738 = vadd.f32 0.0, %v5737
  %v5739 = vpop.f32.mrb[0].mxu0
  %v5740 = vpop.f32.mrb[0].mxu0
  %v5741 = vadd.f32 0.0, %v5740
  %v5742 = vpop.f32.mrb[0].mxu0
  %5743 = vmatprep.mubr.bf16.mxu0 0
  %5744 = vmatmul.mubr.bf16.gmra.mrb[0].mxu0 %v5481
  %v5745 = vpop.f32.mrb[0].mxu0
  %v5746 = vadd.f32 0.0, %v5745
  %v5747 = vpop.f32.mrb[0].mxu0
  %v5748 = vpop.f32.mrb[0].mxu0
  %v5749 = vadd.f32 0.0, %v5748
  %v5750 = vpop.f32.mrb[0].mxu0
  %5751 = vmatprep.mubr.bf16.mxu0 0
  %5752 = vmatmul.mubr.bf16.gmra.mrb[0].mxu0 %v5482
  %v5753 = vpop.f32.mrb[0].mxu0
  %v5754 = vadd.f32 0.0, %v5753
  %v5755 = vpop.f32.mrb[0].mxu0
  %v5756 = vpop.f32.mrb[0].mxu0
  %v5757 = vadd.f32 0.0, %v5756
  %v5758 = vpop.f32.mrb[0].mxu0
  %5759 = vmatprep.mubr.bf16.mxu0 0
  %5760 = vmatmul.mubr.bf16.gmra.mrb[0].mxu0 %v5483
  %v5761 = vpop.f32.mrb[0].mxu0
  %v5762 = vadd.f32 0.0, %v5761
  %v5763 = vpop.f32.mrb[0].mxu0
  %v5764 = vpop.f32.mrb[0].mxu0
  %v5765 = vadd.f32 0.0, %v5764
  %v5766 = vpop.f32.mrb[0].mxu0
  %5767 = vmatprep.mubr.bf16.mxu0 0
  %5768 = vmatmul.mubr.bf16.gmra.mrb[0].mxu0 %v5484
  %v5769 = vpop.f32.mrb[0].mxu0
  %v5770 = vadd.f32 0.0, %v5769
  %v5771 = vpop.f32.mrb[0].mxu0
  %v5772 = vpop.f32.mrb[0].mxu0
  %v5773 = vadd.f32 0.0, %v5772
  %v5774 = vpop.f32.mrb[0].mxu0
  %5775 = vmatprep.mubr.bf16.mxu0 0
  %5776 = vmatmul.mubr.bf16.gmra.mrb[0].mxu0 %v5485
  %v5777 = vpop.f32.mrb[0].mxu0
  %v5778 = vadd.f32 0.0, %v5777
  %v5779 = vpop.f32.mrb[0].mxu0
  %v5780 = vpop.f32.mrb[0].mxu0
  %v5781 = vadd.f32 0.0, %v5780
  %v5782 = vpop.f32.mrb[0].mxu0
  %5783 = vmatprep.mubr.bf16.mxu0 0
  %5784 = vmatmul.mubr.bf16.gmra.mrb[0].mxu0 %v5486
  %v5785 = vpop.f32.mrb[0].mxu0
  %v5786 = vadd.f32 0.0, %v5785
  %v5787 = vpop.f32.mrb[0].mxu0
  %v5788 = vpop.f32.mrb[0].mxu0
  %v5789 = vadd.f32 0.0, %v5788
  %v5790 = vpop.f32.mrb[0].mxu0
  %5791 = vmatprep.mubr.bf16.mxu0 0
  %5792 = vmatmul.mubr.bf16.gmra.mrb[0].mxu0 %v5487
  %v5793 = vpop.f32.mrb[0].mxu0
  %v5794 = vadd.f32 0.0, %v5793
  %v5795 = vpop.f32.mrb[0].mxu0
  %v5796 = vpop.f32.mrb[0].mxu0
  %v5797 = vadd.f32 0.0, %v5796
  %v5798 = vpop.f32.mrb[0].mxu0
  %5799 = vmatprep.mubr.bf16.mxu0 0
  %5800 = vmatmul.mubr.bf16.gmra.mrb[0].mxu0 %v5488
  %v5801 = vpop.f32.mrb[0].mxu0
  %v5802 = vadd.f32 0.0, %v5801
  %v5803 = vpop.f32.mrb[0].mxu0
  %v5804 = vpop.f32.mrb[0].mxu0
  %v5805 = vadd.f32 0.0, %v5804
  %v5806 = vpop.f32.mrb[0].mxu0
  %5807 = vmatprep.mubr.bf16.mxu0 0
  %5808 = vmatmul.mubr.bf16.gmra.mrb[0].mxu0 %v5489
  %v5809 = vpop.f32.mrb[0].mxu0
  %v5810 = vadd.f32 0.0, %v5809
  %v5811 = vpop.f32.mrb[0].mxu0
  %v5812 = vpop.f32.mrb[0].mxu0
  %v5813 = vadd.f32 0.0, %v5812
  %v5814 = vpop.f32.mrb[0].mxu0
  %5815 = vmatprep.mubr.bf16.mxu0 0
  %5816 = vmatmul.mubr.bf16.gmra.mrb[0].mxu0 %v5490
  %v5817 = vpop.f32.mrb[0].mxu0
  %v5818 = vadd.f32 0.0, %v5817
  %v5819 = vpop.f32.mrb[0].mxu0
  %v5820 = vpop.f32.mrb[0].mxu0
  %v5821 = vadd.f32 0.0, %v5820
  %v5822 = vpop.f32.mrb[0].mxu0
  %5823 = vmatprep.mubr.bf16.mxu0 0
  %5824 = vmatmul.mubr.bf16.gmra.mrb[0].mxu0 %v5491
  %v5825 = vpop.f32.mrb[0].mxu0
  %v5826 = vadd.f32 0.0, %v5825
  %v5827 = vpop.f32.mrb[0].mxu0
  %v5828 = vpop.f32.mrb[0].mxu0
  %v5829 = vadd.f32 0.0, %v5828
  %v5830 = vpop.f32.mrb[0].mxu0
  %5831 = vmatprep.mubr.bf16.mxu0 0
  %5832 = vmatmul.mubr.bf16.gmra.mrb[0].mxu0 %v5492
  %v5833 = vpop.f32.mrb[0].mxu0
  %v5834 = vadd.f32 0.0, %v5833
  %v5835 = vpop.f32.mrb[0].mxu0
  %v5836 = vpop.f32.mrb[0].mxu0
  %v5837 = vadd.f32 0.0, %v5836
  %v5838 = vpop.f32.mrb[0].mxu0
  %5839 = vmatprep.mubr.bf16.mxu0 0
  %5840 = vmatmul.mubr.bf16.gmra.mrb[0].mxu0 %v5493
  %v5841 = vpop.f32.mrb[0].mxu0
  %v5842 = vadd.f32 0.0, %v5841
  %v5843 = vpop.f32.mrb[0].mxu0
  %v5844 = vpop.f32.mrb[0].mxu0
  %v5845 = vadd.f32 0.0, %v5844
  %v5846 = vpop.f32.mrb[0].mxu0
  %5847 = vdwg.mxu0
  %v5864 = vunpack.c.l.b16 %v5382
  %v5865 = vunpack.c.l.b16 %v5383
  %v5866 = vunpack.c.l.b16 %v5384
  %v5867 = vunpack.c.l.b16 %v5385
  %v5868 = vunpack.c.l.b16 %v5386
  %v5869 = vunpack.c.l.b16 %v5387
  %v5870 = vunpack.c.l.b16 %v5388
  %v5871 = vunpack.c.l.b16 %v5389
  %v5872 = vunpack.c.l.b16 %v5390
  %v5873 = vunpack.c.l.b16 %v5391
  %v5874 = vunpack.c.l.b16 %v5392
  %v5875 = vunpack.c.l.b16 %v5393
  %v5876 = vunpack.c.l.b16 %v5394
  %v5877 = vunpack.c.l.b16 %v5395
  %v5878 = vunpack.c.l.b16 %v5396
  %v5879 = vunpack.c.l.b16 %v5397
  %v5880 = vpack.c.b16 %v5865, %v5864
  %v5881 = vpack.c.b16 %v5867, %v5866
  %v5882 = vpack.c.b16 %v5869, %v5868
  %v5883 = vpack.c.b16 %v5871, %v5870
  %v5884 = vpack.c.b16 %v5873, %v5872
  %v5885 = vpack.c.b16 %v5875, %v5874
  %v5886 = vpack.c.b16 %v5877, %v5876
  %v5887 = vpack.c.b16 %v5879, %v5878
  %5896 = vmatprep.subr.bf16.mxu0 0
  %5897 = vmatpush1.bf16.msra.mxu0 %v5880
  %5898 = vmatprep.subr.bf16.mxu0 0
  %5899 = vmatpush1.bf16.msra.mxu0 %v5881
  %5900 = vmatprep.subr.bf16.mxu0 0
  %5901 = vmatpush1.bf16.msra.mxu0 %v5882
  %5902 = vmatprep.subr.bf16.mxu0 0
  %5903 = vmatpush1.bf16.msra.mxu0 %v5883
  %5904 = vmatprep.subr.bf16.mxu0 0
  %5905 = vmatpush1.bf16.msra.mxu0 %v5884
  %5906 = vmatprep.subr.bf16.mxu0 0
  %5907 = vmatpush1.bf16.msra.mxu0 %v5885
  %5908 = vmatprep.subr.bf16.mxu0 0
  %5909 = vmatpush1.bf16.msra.mxu0 %v5886
  %5910 = vmatprep.subr.bf16.mxu0 0
  %5911 = vmatpush1.bf16.msra.mxu0 %v5887
  %5912 = vmatprep.subr.bf16.mxu0 0
  %5913 = vmatpush1.bf16.msra.mxu0 0
  %5914 = vmatprep.subr.bf16.mxu0 0
  %5915 = vmatpush1.bf16.msra.mxu0 0
  %5916 = vmatprep.subr.bf16.mxu0 0
  %5917 = vmatpush1.bf16.msra.mxu0 0
  %5918 = vmatprep.subr.bf16.mxu0 0
  %5919 = vmatpush1.bf16.msra.mxu0 0
  %5920 = vmatprep.subr.bf16.mxu0 0
  %5921 = vmatpush1.bf16.msra.mxu0 0
  %5922 = vmatprep.subr.bf16.mxu0 0
  %5923 = vmatpush1.bf16.msra.mxu0 0
  %5924 = vmatprep.subr.bf16.mxu0 0
  %5925 = vmatpush1.bf16.msra.mxu0 0
  %5926 = vmatprep.subr.bf16.mxu0 0
  %5927 = vmatpush1.bf16.msra.mxu0 0
  %5928 = vmatprep.mubr.bf16.mxu0 0
  %5929 = vmatmul.mubr.bf16.gmra.mrb[0].mxu0 %v5350
  %v5930 = vpop.f32.mrb[0].mxu0
  %v5931 = vadd.f32 %v5594, %v5930
  %v5932 = vpop.f32.mrb[0].mxu0
  %v5933 = vpop.f32.mrb[0].mxu0
  %v5934 = vadd.f32 %v5597, %v5933
  %v5935 = vpop.f32.mrb[0].mxu0
  %5936 = vmatprep.mubr.bf16.mxu0 0
  %5937 = vmatmul.mubr.bf16.gmra.mrb[0].mxu0 %v5351
  %v5938 = vpop.f32.mrb[0].mxu0
  %v5939 = vadd.f32 %v5602, %v5938
  %v5940 = vpop.f32.mrb[0].mxu0
  %v5941 = vpop.f32.mrb[0].mxu0
  %v5942 = vadd.f32 %v5605, %v5941
  %v5943 = vpop.f32.mrb[0].mxu0
  %5944 = vmatprep.mubr.bf16.mxu0 0
  %5945 = vmatmul.mubr.bf16.gmra.mrb[0].mxu0 %v5352
  %v5946 = vpop.f32.mrb[0].mxu0
  %v5947 = vadd.f32 %v5610, %v5946
  %v5948 = vpop.f32.mrb[0].mxu0
  %v5949 = vpop.f32.mrb[0].mxu0
  %v5950 = vadd.f32 %v5613, %v5949
  %v5951 = vpop.f32.mrb[0].mxu0
  %5952 = vmatprep.mubr.bf16.mxu0 0
  %5953 = vmatmul.mubr.bf16.gmra.mrb[0].mxu0 %v5353
  %v5954 = vpop.f32.mrb[0].mxu0
  %v5955 = vadd.f32 %v5618, %v5954
  %v5956 = vpop.f32.mrb[0].mxu0
  %v5957 = vpop.f32.mrb[0].mxu0
  %v5958 = vadd.f32 %v5621, %v5957
  %v5959 = vpop.f32.mrb[0].mxu0
  %5960 = vmatprep.mubr.bf16.mxu0 0
  %5961 = vmatmul.mubr.bf16.gmra.mrb[0].mxu0 %v5354
  %v5962 = vpop.f32.mrb[0].mxu0
  %v5963 = vadd.f32 %v5626, %v5962
  %v5964 = vpop.f32.mrb[0].mxu0
  %v5965 = vpop.f32.mrb[0].mxu0
  %v5966 = vadd.f32 %v5629, %v5965
  %v5967 = vpop.f32.mrb[0].mxu0
  %5968 = vmatprep.mubr.bf16.mxu0 0
  %5969 = vmatmul.mubr.bf16.gmra.mrb[0].mxu0 %v5355
  %v5970 = vpop.f32.mrb[0].mxu0
  %v5971 = vadd.f32 %v5634, %v5970
  %v5972 = vpop.f32.mrb[0].mxu0
  %v5973 = vpop.f32.mrb[0].mxu0
  %v5974 = vadd.f32 %v5637, %v5973
  %v5975 = vpop.f32.mrb[0].mxu0
  %5976 = vmatprep.mubr.bf16.mxu0 0
  %5977 = vmatmul.mubr.bf16.gmra.mrb[0].mxu0 %v5356
  %v5978 = vpop.f32.mrb[0].mxu0
  %v5979 = vadd.f32 %v5642, %v5978
  %v5980 = vpop.f32.mrb[0].mxu0
  %v5981 = vpop.f32.mrb[0].mxu0
  %v5982 = vadd.f32 %v5645, %v5981
  %v5983 = vpop.f32.mrb[0].mxu0
  %5984 = vmatprep.mubr.bf16.mxu0 0
  %5985 = vmatmul.mubr.bf16.gmra.mrb[0].mxu0 %v5357
  %v5986 = vpop.f32.mrb[0].mxu0
  %v5987 = vadd.f32 %v5650, %v5986
  %v5988 = vpop.f32.mrb[0].mxu0
  %v5989 = vpop.f32.mrb[0].mxu0
  %v5990 = vadd.f32 %v5653, %v5989
  %v5991 = vpop.f32.mrb[0].mxu0
  %5992 = vmatprep.mubr.bf16.mxu0 0
  %5993 = vmatmul.mubr.bf16.gmra.mrb[0].mxu0 %v5358
  %v5994 = vpop.f32.mrb[0].mxu0
  %v5995 = vadd.f32 %v5658, %v5994
  %v5996 = vpop.f32.mrb[0].mxu0
  %v5997 = vpop.f32.mrb[0].mxu0
  %v5998 = vadd.f32 %v5661, %v5997
  %v5999 = vpop.f32.mrb[0].mxu0
  %6000 = vmatprep.mubr.bf16.mxu0 0
  %6001 = vmatmul.mubr.bf16.gmra.mrb[0].mxu0 %v5359
  %v6002 = vpop.f32.mrb[0].mxu0
  %v6003 = vadd.f32 %v5666, %v6002
  %v6004 = vpop.f32.mrb[0].mxu0
  %v6005 = vpop.f32.mrb[0].mxu0
  %v6006 = vadd.f32 %v5669, %v6005
  %v6007 = vpop.f32.mrb[0].mxu0
  %6008 = vmatprep.mubr.bf16.mxu0 0
  %6009 = vmatmul.mubr.bf16.gmra.mrb[0].mxu0 %v5360
  %v6010 = vpop.f32.mrb[0].mxu0
  %v6011 = vadd.f32 %v5674, %v6010
  %v6012 = vpop.f32.mrb[0].mxu0
  %v6013 = vpop.f32.mrb[0].mxu0
  %v6014 = vadd.f32 %v5677, %v6013
  %v6015 = vpop.f32.mrb[0].mxu0
  %6016 = vmatprep.mubr.bf16.mxu0 0
  %6017 = vmatmul.mubr.bf16.gmra.mrb[0].mxu0 %v5361
  %v6018 = vpop.f32.mrb[0].mxu0
  %v6019 = vadd.f32 %v5682, %v6018
  %v6020 = vpop.f32.mrb[0].mxu0
  %v6021 = vpop.f32.mrb[0].mxu0
  %v6022 = vadd.f32 %v5685, %v6021
  %v6023 = vpop.f32.mrb[0].mxu0
  %6024 = vmatprep.mubr.bf16.mxu0 0
  %6025 = vmatmul.mubr.bf16.gmra.mrb[0].mxu0 %v5362
  %v6026 = vpop.f32.mrb[0].mxu0
  %v6027 = vadd.f32 %v5690, %v6026
  %v6028 = vpop.f32.mrb[0].mxu0
  %v6029 = vpop.f32.mrb[0].mxu0
  %v6030 = vadd.f32 %v5693, %v6029
  %v6031 = vpop.f32.mrb[0].mxu0
  %6032 = vmatprep.mubr.bf16.mxu0 0
  %6033 = vmatmul.mubr.bf16.gmra.mrb[0].mxu0 %v5363
  %v6034 = vpop.f32.mrb[0].mxu0
  %v6035 = vadd.f32 %v5698, %v6034
  %v6036 = vpop.f32.mrb[0].mxu0
  %v6037 = vpop.f32.mrb[0].mxu0
  %v6038 = vadd.f32 %v5701, %v6037
  %v6039 = vpop.f32.mrb[0].mxu0
  %6040 = vmatprep.mubr.bf16.mxu0 0
  %6041 = vmatmul.mubr.bf16.gmra.mrb[0].mxu0 %v5364
  %v6042 = vpop.f32.mrb[0].mxu0
  %v6043 = vadd.f32 %v5706, %v6042
  %v6044 = vpop.f32.mrb[0].mxu0
  %v6045 = vpop.f32.mrb[0].mxu0
  %v6046 = vadd.f32 %v5709, %v6045
  %v6047 = vpop.f32.mrb[0].mxu0
  %6048 = vmatprep.mubr.bf16.mxu0 0
  %6049 = vmatmul.mubr.bf16.gmra.mrb[0].mxu0 %v5365
  %v6050 = vpop.f32.mrb[0].mxu0
  %v6051 = vadd.f32 %v5714, %v6050
  %v6052 = vpop.f32.mrb[0].mxu0
  %v6053 = vpop.f32.mrb[0].mxu0
  %v6054 = vadd.f32 %v5717, %v6053
  %v6055 = vpop.f32.mrb[0].mxu0
  %6056 = vmatprep.mubr.bf16.mxu0 0
  %6057 = vmatmul.mubr.bf16.gmra.mrb[0].mxu0 %v5366
  %v6058 = vpop.f32.mrb[0].mxu0
  %v6059 = vadd.f32 %v5722, %v6058
  %v6060 = vpop.f32.mrb[0].mxu0
  %v6061 = vpop.f32.mrb[0].mxu0
  %v6062 = vadd.f32 %v5725, %v6061
  %v6063 = vpop.f32.mrb[0].mxu0
  %6064 = vmatprep.mubr.bf16.mxu0 0
  %6065 = vmatmul.mubr.bf16.gmra.mrb[0].mxu0 %v5367
  %v6066 = vpop.f32.mrb[0].mxu0
  %v6067 = vadd.f32 %v5730, %v6066
  %v6068 = vpop.f32.mrb[0].mxu0
  %v6069 = vpop.f32.mrb[0].mxu0
  %v6070 = vadd.f32 %v5733, %v6069
  %v6071 = vpop.f32.mrb[0].mxu0
  %6072 = vmatprep.mubr.bf16.mxu0 0
  %6073 = vmatmul.mubr.bf16.gmra.mrb[0].mxu0 %v5368
  %v6074 = vpop.f32.mrb[0].mxu0
  %v6075 = vadd.f32 %v5738, %v6074
  %v6076 = vpop.f32.mrb[0].mxu0
  %v6077 = vpop.f32.mrb[0].mxu0
  %v6078 = vadd.f32 %v5741, %v6077
  %v6079 = vpop.f32.mrb[0].mxu0
  %6080 = vmatprep.mubr.bf16.mxu0 0
  %6081 = vmatmul.mubr.bf16.gmra.mrb[0].mxu0 %v5369
  %v6082 = vpop.f32.mrb[0].mxu0
  %v6083 = vadd.f32 %v5746, %v6082
  %v6084 = vpop.f32.mrb[0].mxu0
  %v6085 = vpop.f32.mrb[0].mxu0
  %v6086 = vadd.f32 %v5749, %v6085
  %v6087 = vpop.f32.mrb[0].mxu0
  %6088 = vmatprep.mubr.bf16.mxu0 0
  %6089 = vmatmul.mubr.bf16.gmra.mrb[0].mxu0 %v5370
  %v6090 = vpop.f32.mrb[0].mxu0
  %v6091 = vadd.f32 %v5754, %v6090
  %v6092 = vpop.f32.mrb[0].mxu0
  %v6093 = vpop.f32.mrb[0].mxu0
  %v6094 = vadd.f32 %v5757, %v6093
  %v6095 = vpop.f32.mrb[0].mxu0
  %6096 = vmatprep.mubr.bf16.mxu0 0
  %6097 = vmatmul.mubr.bf16.gmra.mrb[0].mxu0 %v5371
  %v6098 = vpop.f32.mrb[0].mxu0
  %v6099 = vadd.f32 %v5762, %v6098
  %v6100 = vpop.f32.mrb[0].mxu0
  %v6101 = vpop.f32.mrb[0].mxu0
  %v6102 = vadd.f32 %v5765, %v6101
  %v6103 = vpop.f32.mrb[0].mxu0
  %6104 = vmatprep.mubr.bf16.mxu0 0
  %6105 = vmatmul.mubr.bf16.gmra.mrb[0].mxu0 %v5372
  %v6106 = vpop.f32.mrb[0].mxu0
  %v6107 = vadd.f32 %v5770, %v6106
  %v6108 = vpop.f32.mrb[0].mxu0
  %v6109 = vpop.f32.mrb[0].mxu0
  %v6110 = vadd.f32 %v5773, %v6109
  %v6111 = vpop.f32.mrb[0].mxu0
  %6112 = vmatprep.mubr.bf16.mxu0 0
  %6113 = vmatmul.mubr.bf16.gmra.mrb[0].mxu0 %v5373
  %v6114 = vpop.f32.mrb[0].mxu0
  %v6115 = vadd.f32 %v5778, %v6114
  %v6116 = vpop.f32.mrb[0].mxu0
  %v6117 = vpop.f32.mrb[0].mxu0
  %v6118 = vadd.f32 %v5781, %v6117
  %v6119 = vpop.f32.mrb[0].mxu0
  %6120 = vmatprep.mubr.bf16.mxu0 0
  %6121 = vmatmul.mubr.bf16.gmra.mrb[0].mxu0 %v5374
  %v6122 = vpop.f32.mrb[0].mxu0
  %v6123 = vadd.f32 %v5786, %v6122
  %v6124 = vpop.f32.mrb[0].mxu0
  %v6125 = vpop.f32.mrb[0].mxu0
  %v6126 = vadd.f32 %v5789, %v6125
  %v6127 = vpop.f32.mrb[0].mxu0
  %6128 = vmatprep.mubr.bf16.mxu0 0
  %6129 = vmatmul.mubr.bf16.gmra.mrb[0].mxu0 %v5375
  %v6130 = vpop.f32.mrb[0].mxu0
  %v6131 = vadd.f32 %v5794, %v6130
  %v6132 = vpop.f32.mrb[0].mxu0
  %v6133 = vpop.f32.mrb[0].mxu0
  %v6134 = vadd.f32 %v5797, %v6133
  %v6135 = vpop.f32.mrb[0].mxu0
  %6136 = vmatprep.mubr.bf16.mxu0 0
  %6137 = vmatmul.mubr.bf16.gmra.mrb[0].mxu0 %v5376
  %v6138 = vpop.f32.mrb[0].mxu0
  %v6139 = vadd.f32 %v5802, %v6138
  %v6140 = vpop.f32.mrb[0].mxu0
  %v6141 = vpop.f32.mrb[0].mxu0
  %v6142 = vadd.f32 %v5805, %v6141
  %v6143 = vpop.f32.mrb[0].mxu0
  %6144 = vmatprep.mubr.bf16.mxu0 0
  %6145 = vmatmul.mubr.bf16.gmra.mrb[0].mxu0 %v5377
  %v6146 = vpop.f32.mrb[0].mxu0
  %v6147 = vadd.f32 %v5810, %v6146
  %v6148 = vpop.f32.mrb[0].mxu0
  %v6149 = vpop.f32.mrb[0].mxu0
  %v6150 = vadd.f32 %v5813, %v6149
  %v6151 = vpop.f32.mrb[0].mxu0
  %6152 = vmatprep.mubr.bf16.mxu0 0
  %6153 = vmatmul.mubr.bf16.gmra.mrb[0].mxu0 %v5378
  %v6154 = vpop.f32.mrb[0].mxu0
  %v6155 = vadd.f32 %v5818, %v6154
  %v6156 = vpop.f32.mrb[0].mxu0
  %v6157 = vpop.f32.mrb[0].mxu0
  %v6158 = vadd.f32 %v5821, %v6157
  %v6159 = vpop.f32.mrb[0].mxu0
  %6160 = vmatprep.mubr.bf16.mxu0 0
  %6161 = vmatmul.mubr.bf16.gmra.mrb[0].mxu0 %v5379
  %v6162 = vpop.f32.mrb[0].mxu0
  %v6163 = vadd.f32 %v5826, %v6162
  %v6164 = vpop.f32.mrb[0].mxu0
  %v6165 = vpop.f32.mrb[0].mxu0
  %v6166 = vadd.f32 %v5829, %v6165
  %v6167 = vpop.f32.mrb[0].mxu0
  %6168 = vmatprep.mubr.bf16.mxu0 0
  %6169 = vmatmul.mubr.bf16.gmra.mrb[0].mxu0 %v5380
  %v6170 = vpop.f32.mrb[0].mxu0
  %v6171 = vadd.f32 %v5834, %v6170
  %v6172 = vpop.f32.mrb[0].mxu0
  %v6173 = vpop.f32.mrb[0].mxu0
  %v6174 = vadd.f32 %v5837, %v6173
  %v6175 = vpop.f32.mrb[0].mxu0
  %6176 = vmatprep.mubr.bf16.mxu0 0
  %6177 = vmatmul.mubr.bf16.gmra.mrb[0].mxu0 %v5381
  %v6178 = vpop.f32.mrb[0].mxu0
  %v6179 = vadd.f32 %v5842, %v6178
  %v6180 = vpop.f32.mrb[0].mxu0
  %v6181 = vpop.f32.mrb[0].mxu0
  %v6182 = vadd.f32 %v5845, %v6181
  %v6183 = vpop.f32.mrb[0].mxu0
  %6184 = vdwg.mxu0
  %v6185 = vld [vmem:[#allocation2 + $0x9] sm:$0xff]
  %v6186 = vld [vmem:[#allocation2 + $0x11] sm:$0xff]
  %v6187 = vld [vmem:[#allocation2 + $0x29] sm:$0xff]
  %v6188 = vld [vmem:[#allocation2 + $0x31] sm:$0xff]
  %v6189 = vld [vmem:[#allocation2 + $0x49] sm:$0xff]
  %v6190 = vld [vmem:[#allocation2 + $0x51] sm:$0xff]
  %v6191 = vld [vmem:[#allocation2 + $0x69] sm:$0xff]
  %v6192 = vld [vmem:[#allocation2 + $0x71] sm:$0xff]
  %v6193 = vld [vmem:[#allocation2 + $0x89] sm:$0xff]
  %v6194 = vld [vmem:[#allocation2 + $0x91] sm:$0xff]
  %v6195 = vld [vmem:[#allocation2 + $0xa9] sm:$0xff]
  %v6196 = vld [vmem:[#allocation2 + $0xb1] sm:$0xff]
  %v6197 = vld [vmem:[#allocation2 + $0xc9] sm:$0xff]
  %v6198 = vld [vmem:[#allocation2 + $0xd1] sm:$0xff]
  %v6199 = vld [vmem:[#allocation2 + $0xe9] sm:$0xff]
  %v6200 = vld [vmem:[#allocation2 + $0xf1] sm:$0xff]
  %v6201 = vld [vmem:[#allocation2 + $0x109] sm:$0xff]
  %v6202 = vld [vmem:[#allocation2 + $0x111] sm:$0xff]
  %v6203 = vld [vmem:[#allocation2 + $0x129] sm:$0xff]
  %v6204 = vld [vmem:[#allocation2 + $0x131] sm:$0xff]
  %v6205 = vld [vmem:[#allocation2 + $0x149] sm:$0xff]
  %v6206 = vld [vmem:[#allocation2 + $0x151] sm:$0xff]
  %v6207 = vld [vmem:[#allocation2 + $0x169] sm:$0xff]
  %v6208 = vld [vmem:[#allocation2 + $0x171] sm:$0xff]
  %v6209 = vld [vmem:[#allocation2 + $0x189] sm:$0xff]
  %v6210 = vld [vmem:[#allocation2 + $0x191] sm:$0xff]
  %v6211 = vld [vmem:[#allocation2 + $0x1a9] sm:$0xff]
  %v6212 = vld [vmem:[#allocation2 + $0x1b1] sm:$0xff]
  %v6213 = vld [vmem:[#allocation2 + $0x1c9] sm:$0xff]
  %v6214 = vld [vmem:[#allocation2 + $0x1d1] sm:$0xff]
  %v6215 = vld [vmem:[#allocation2 + $0x1e9] sm:$0xff]
  %v6216 = vld [vmem:[#allocation2 + $0x1f1] sm:$0xff]
  %v6217 = vld [vmem:[#allocation2 + $0x249] sm:$0xff]
  %v6218 = vld [vmem:[#allocation2 + $0x251] sm:$0xff]
  %v6219 = vld [vmem:[#allocation2 + $0x269] sm:$0xff]
  %v6220 = vld [vmem:[#allocation2 + $0x271] sm:$0xff]
  %v6221 = vld [vmem:[#allocation2 + $0x289] sm:$0xff]
  %v6222 = vld [vmem:[#allocation2 + $0x291] sm:$0xff]
  %v6223 = vld [vmem:[#allocation2 + $0x2a9] sm:$0xff]
  %v6224 = vld [vmem:[#allocation2 + $0x2b1] sm:$0xff]
  %v6225 = vld [vmem:[#allocation2 + $0x2c9] sm:$0xff]
  %v6226 = vld [vmem:[#allocation2 + $0x2d1] sm:$0xff]
  %v6227 = vld [vmem:[#allocation2 + $0x2e9] sm:$0xff]
  %v6228 = vld [vmem:[#allocation2 + $0x2f1] sm:$0xff]
  %v6229 = vld [vmem:[#allocation2 + $0x309] sm:$0xff]
  %v6230 = vld [vmem:[#allocation2 + $0x311] sm:$0xff]
  %v6231 = vld [vmem:[#allocation2 + $0x329] sm:$0xff]
  %v6232 = vld [vmem:[#allocation2 + $0x331] sm:$0xff]
  %v6233 = vld [vmem:[#allocation2 + $0x349] sm:$0xff]
  %v6234 = vld [vmem:[#allocation2 + $0x351] sm:$0xff]
  %v6235 = vld [vmem:[#allocation2 + $0x369] sm:$0xff]
  %v6236 = vld [vmem:[#allocation2 + $0x371] sm:$0xff]
  %v6237 = vld [vmem:[#allocation2 + $0x389] sm:$0xff]
  %v6238 = vld [vmem:[#allocation2 + $0x391] sm:$0xff]
  %v6239 = vld [vmem:[#allocation2 + $0x3a9] sm:$0xff]
  %v6240 = vld [vmem:[#allocation2 + $0x3b1] sm:$0xff]
  %v6241 = vld [vmem:[#allocation2 + $0x3c9] sm:$0xff]
  %v6242 = vld [vmem:[#allocation2 + $0x3d1] sm:$0xff]
  %v6243 = vld [vmem:[#allocation2 + $0x3e9] sm:$0xff]
  %v6244 = vld [vmem:[#allocation2 + $0x3f1] sm:$0xff]
  %v6245 = vld [vmem:[#allocation2 + $0x409] sm:$0xff]
  %v6246 = vld [vmem:[#allocation2 + $0x411] sm:$0xff]
  %v6247 = vld [vmem:[#allocation2 + $0x429] sm:$0xff]
  %v6248 = vld [vmem:[#allocation2 + $0x431] sm:$0xff]
  %v6249 = vpack.c.bf16 %v6186, %v6185
  %v6250 = vpack.c.bf16 %v6188, %v6187
  %v6251 = vpack.c.bf16 %v6190, %v6189
  %v6252 = vpack.c.bf16 %v6192, %v6191
  %v6253 = vpack.c.bf16 %v6194, %v6193
  %v6254 = vpack.c.bf16 %v6196, %v6195
  %v6255 = vpack.c.bf16 %v6198, %v6197
  %v6256 = vpack.c.bf16 %v6200, %v6199
  %v6257 = vpack.c.bf16 %v6202, %v6201
  %v6258 = vpack.c.bf16 %v6204, %v6203
  %v6259 = vpack.c.bf16 %v6206, %v6205
  %v6260 = vpack.c.bf16 %v6208, %v6207
  %v6261 = vpack.c.bf16 %v6210, %v6209
  %v6262 = vpack.c.bf16 %v6212, %v6211
  %v6263 = vpack.c.bf16 %v6214, %v6213
  %v6264 = vpack.c.bf16 %v6216, %v6215
  %v6265 = vpack.c.bf16 %v6218, %v6217
  %v6266 = vpack.c.bf16 %v6220, %v6219
  %v6267 = vpack.c.bf16 %v6222, %v6221
  %v6268 = vpack.c.bf16 %v6224, %v6223
  %v6269 = vpack.c.bf16 %v6226, %v6225
  %v6270 = vpack.c.bf16 %v6228, %v6227
  %v6271 = vpack.c.bf16 %v6230, %v6229
  %v6272 = vpack.c.bf16 %v6232, %v6231
  %v6273 = vpack.c.bf16 %v6234, %v6233
  %v6274 = vpack.c.bf16 %v6236, %v6235
  %v6275 = vpack.c.bf16 %v6238, %v6237
  %v6276 = vpack.c.bf16 %v6240, %v6239
  %v6277 = vpack.c.bf16 %v6242, %v6241
  %v6278 = vpack.c.bf16 %v6244, %v6243
  %v6279 = vpack.c.bf16 %v6246, %v6245
  %v6280 = vpack.c.bf16 %v6248, %v6247
  %s6281 = scalar_lea.vmem %s4, 128
  %v6282 = vld [vmem:[%s6281] sm:$0xf]
  %v6283 = vld [vmem:[%s6281 + $0x4] sm:$0xf]
  %v6284 = vld [vmem:[%s6281 + $0x8] sm:$0xf]
  %v6285 = vld [vmem:[%s6281 + $0xc] sm:$0xf]
  %v6286 = vld [vmem:[%s6281 + $0x10] sm:$0xf]
  %v6287 = vld [vmem:[%s6281 + $0x14] sm:$0xf]
  %v6288 = vld [vmem:[%s6281 + $0x18] sm:$0xf]
  %v6289 = vld [vmem:[%s6281 + $0x1c] sm:$0xf]
  %v6290 = vld [vmem:[%s6281 + $0x20] sm:$0xf]
  %v6291 = vld [vmem:[%s6281 + $0x24] sm:$0xf]
  %v6292 = vld [vmem:[%s6281 + $0x28] sm:$0xf]
  %v6293 = vld [vmem:[%s6281 + $0x2c] sm:$0xf]
  %v6294 = vld [vmem:[%s6281 + $0x30] sm:$0xf]
  %v6295 = vld [vmem:[%s6281 + $0x34] sm:$0xf]
  %v6296 = vld [vmem:[%s6281 + $0x38] sm:$0xf]
  %v6297 = vld [vmem:[%s6281 + $0x3c] sm:$0xf]
  %v6314 = vunpack.c.l.b16 %v6282
  %v6315 = vunpack.c.l.b16 %v6283
  %v6316 = vunpack.c.l.b16 %v6284
  %v6317 = vunpack.c.l.b16 %v6285
  %v6318 = vunpack.c.l.b16 %v6286
  %v6319 = vunpack.c.l.b16 %v6287
  %v6320 = vunpack.c.l.b16 %v6288
  %v6321 = vunpack.c.l.b16 %v6289
  %v6322 = vunpack.c.l.b16 %v6290
  %v6323 = vunpack.c.l.b16 %v6291
  %v6324 = vunpack.c.l.b16 %v6292
  %v6325 = vunpack.c.l.b16 %v6293
  %v6326 = vunpack.c.l.b16 %v6294
  %v6327 = vunpack.c.l.b16 %v6295
  %v6328 = vunpack.c.l.b16 %v6296
  %v6329 = vunpack.c.l.b16 %v6297
  %v6330 = vpack.c.b16 %v6315, %v6314
  %v6331 = vpack.c.b16 %v6317, %v6316
  %v6332 = vpack.c.b16 %v6319, %v6318
  %v6333 = vpack.c.b16 %v6321, %v6320
  %v6334 = vpack.c.b16 %v6323, %v6322
  %v6335 = vpack.c.b16 %v6325, %v6324
  %v6336 = vpack.c.b16 %v6327, %v6326
  %v6337 = vpack.c.b16 %v6329, %v6328
  %6346 = vmatprep.subr.bf16.mxu0 0
  %6347 = vmatpush1.bf16.msra.mxu0 %v6330
  %6348 = vmatprep.subr.bf16.mxu0 0
  %6349 = vmatpush1.bf16.msra.mxu0 %v6331
  %6350 = vmatprep.subr.bf16.mxu0 0
  %6351 = vmatpush1.bf16.msra.mxu0 %v6332
  %6352 = vmatprep.subr.bf16.mxu0 0
  %6353 = vmatpush1.bf16.msra.mxu0 %v6333
  %6354 = vmatprep.subr.bf16.mxu0 0
  %6355 = vmatpush1.bf16.msra.mxu0 %v6334
  %6356 = vmatprep.subr.bf16.mxu0 0
  %6357 = vmatpush1.bf16.msra.mxu0 %v6335
  %6358 = vmatprep.subr.bf16.mxu0 0
  %6359 = vmatpush1.bf16.msra.mxu0 %v6336
  %6360 = vmatprep.subr.bf16.mxu0 0
  %6361 = vmatpush1.bf16.msra.mxu0 %v6337
  %6362 = vmatprep.subr.bf16.mxu0 0
  %6363 = vmatpush1.bf16.msra.mxu0 0
  %6364 = vmatprep.subr.bf16.mxu0 0
  %6365 = vmatpush1.bf16.msra.mxu0 0
  %6366 = vmatprep.subr.bf16.mxu0 0
  %6367 = vmatpush1.bf16.msra.mxu0 0
  %6368 = vmatprep.subr.bf16.mxu0 0
  %6369 = vmatpush1.bf16.msra.mxu0 0
  %6370 = vmatprep.subr.bf16.mxu0 0
  %6371 = vmatpush1.bf16.msra.mxu0 0
  %6372 = vmatprep.subr.bf16.mxu0 0
  %6373 = vmatpush1.bf16.msra.mxu0 0
  %6374 = vmatprep.subr.bf16.mxu0 0
  %6375 = vmatpush1.bf16.msra.mxu0 0
  %6376 = vmatprep.subr.bf16.mxu0 0
  %6377 = vmatpush1.bf16.msra.mxu0 0
  %6378 = vmatprep.mubr.bf16.mxu0 0
  %6379 = vmatmul.mubr.bf16.gmra.mrb[0].mxu0 %v6249
  %v6380 = vpop.f32.mrb[0].mxu0
  %v6381 = vadd.f32 0.0, %v6380
  %v6382 = vpop.f32.mrb[0].mxu0
  %v6383 = vpop.f32.mrb[0].mxu0
  %v6384 = vadd.f32 0.0, %v6383
  %v6385 = vpop.f32.mrb[0].mxu0
  %6386 = vmatprep.mubr.bf16.mxu0 0
  %6387 = vmatmul.mubr.bf16.gmra.mrb[0].mxu0 %v6250
  %v6388 = vpop.f32.mrb[0].mxu0
  %v6389 = vadd.f32 0.0, %v6388
  %v6390 = vpop.f32.mrb[0].mxu0
  %v6391 = vpop.f32.mrb[0].mxu0
  %v6392 = vadd.f32 0.0, %v6391
  %v6393 = vpop.f32.mrb[0].mxu0
  %6394 = vmatprep.mubr.bf16.mxu0 0
  %6395 = vmatmul.mubr.bf16.gmra.mrb[0].mxu0 %v6251
  %v6396 = vpop.f32.mrb[0].mxu0
  %v6397 = vadd.f32 0.0, %v6396
  %v6398 = vpop.f32.mrb[0].mxu0
  %v6399 = vpop.f32.mrb[0].mxu0
  %v6400 = vadd.f32 0.0, %v6399
  %v6401 = vpop.f32.mrb[0].mxu0
  %6402 = vmatprep.mubr.bf16.mxu0 0
  %6403 = vmatmul.mubr.bf16.gmra.mrb[0].mxu0 %v6252
  %v6404 = vpop.f32.mrb[0].mxu0
  %v6405 = vadd.f32 0.0, %v6404
  %v6406 = vpop.f32.mrb[0].mxu0
  %v6407 = vpop.f32.mrb[0].mxu0
  %v6408 = vadd.f32 0.0, %v6407
  %v6409 = vpop.f32.mrb[0].mxu0
  %6410 = vmatprep.mubr.bf16.mxu0 0
  %6411 = vmatmul.mubr.bf16.gmra.mrb[0].mxu0 %v6253
  %v6412 = vpop.f32.mrb[0].mxu0
  %v6413 = vadd.f32 0.0, %v6412
  %v6414 = vpop.f32.mrb[0].mxu0
  %v6415 = vpop.f32.mrb[0].mxu0
  %v6416 = vadd.f32 0.0, %v6415
  %v6417 = vpop.f32.mrb[0].mxu0
  %6418 = vmatprep.mubr.bf16.mxu0 0
  %6419 = vmatmul.mubr.bf16.gmra.mrb[0].mxu0 %v6254
  %v6420 = vpop.f32.mrb[0].mxu0
  %v6421 = vadd.f32 0.0, %v6420
  %v6422 = vpop.f32.mrb[0].mxu0
  %v6423 = vpop.f32.mrb[0].mxu0
  %v6424 = vadd.f32 0.0, %v6423
  %v6425 = vpop.f32.mrb[0].mxu0
  %6426 = vmatprep.mubr.bf16.mxu0 0
  %6427 = vmatmul.mubr.bf16.gmra.mrb[0].mxu0 %v6255
  %v6428 = vpop.f32.mrb[0].mxu0
  %v6429 = vadd.f32 0.0, %v6428
  %v6430 = vpop.f32.mrb[0].mxu0
  %v6431 = vpop.f32.mrb[0].mxu0
  %v6432 = vadd.f32 0.0, %v6431
  %v6433 = vpop.f32.mrb[0].mxu0
  %6434 = vmatprep.mubr.bf16.mxu0 0
  %6435 = vmatmul.mubr.bf16.gmra.mrb[0].mxu0 %v6256
  %v6436 = vpop.f32.mrb[0].mxu0
  %v6437 = vadd.f32 0.0, %v6436
  %v6438 = vpop.f32.mrb[0].mxu0
  %v6439 = vpop.f32.mrb[0].mxu0
  %v6440 = vadd.f32 0.0, %v6439
  %v6441 = vpop.f32.mrb[0].mxu0
  %6442 = vmatprep.mubr.bf16.mxu0 0
  %6443 = vmatmul.mubr.bf16.gmra.mrb[0].mxu0 %v6257
  %v6444 = vpop.f32.mrb[0].mxu0
  %v6445 = vadd.f32 0.0, %v6444
  %v6446 = vpop.f32.mrb[0].mxu0
  %v6447 = vpop.f32.mrb[0].mxu0
  %v6448 = vadd.f32 0.0, %v6447
  %v6449 = vpop.f32.mrb[0].mxu0
  %6450 = vmatprep.mubr.bf16.mxu0 0
  %6451 = vmatmul.mubr.bf16.gmra.mrb[0].mxu0 %v6258
  %v6452 = vpop.f32.mrb[0].mxu0
  %v6453 = vadd.f32 0.0, %v6452
  %v6454 = vpop.f32.mrb[0].mxu0
  %v6455 = vpop.f32.mrb[0].mxu0
  %v6456 = vadd.f32 0.0, %v6455
  %v6457 = vpop.f32.mrb[0].mxu0
  %6458 = vmatprep.mubr.bf16.mxu0 0
  %6459 = vmatmul.mubr.bf16.gmra.mrb[0].mxu0 %v6259
  %v6460 = vpop.f32.mrb[0].mxu0
  %v6461 = vadd.f32 0.0, %v6460
  %v6462 = vpop.f32.mrb[0].mxu0
  %v6463 = vpop.f32.mrb[0].mxu0
  %v6464 = vadd.f32 0.0, %v6463
  %v6465 = vpop.f32.mrb[0].mxu0
  %6466 = vmatprep.mubr.bf16.mxu0 0
  %6467 = vmatmul.mubr.bf16.gmra.mrb[0].mxu0 %v6260
  %v6468 = vpop.f32.mrb[0].mxu0
  %v6469 = vadd.f32 0.0, %v6468
  %v6470 = vpop.f32.mrb[0].mxu0
  %v6471 = vpop.f32.mrb[0].mxu0
  %v6472 = vadd.f32 0.0, %v6471
  %v6473 = vpop.f32.mrb[0].mxu0
  %6474 = vmatprep.mubr.bf16.mxu0 0
  %6475 = vmatmul.mubr.bf16.gmra.mrb[0].mxu0 %v6261
  %v6476 = vpop.f32.mrb[0].mxu0
  %v6477 = vadd.f32 0.0, %v6476
  %v6478 = vpop.f32.mrb[0].mxu0
  %v6479 = vpop.f32.mrb[0].mxu0
  %v6480 = vadd.f32 0.0, %v6479
  %v6481 = vpop.f32.mrb[0].mxu0
  %6482 = vmatprep.mubr.bf16.mxu0 0
  %6483 = vmatmul.mubr.bf16.gmra.mrb[0].mxu0 %v6262
  %v6484 = vpop.f32.mrb[0].mxu0
  %v6485 = vadd.f32 0.0, %v6484
  %v6486 = vpop.f32.mrb[0].mxu0
  %v6487 = vpop.f32.mrb[0].mxu0
  %v6488 = vadd.f32 0.0, %v6487
  %v6489 = vpop.f32.mrb[0].mxu0
  %6490 = vmatprep.mubr.bf16.mxu0 0
  %6491 = vmatmul.mubr.bf16.gmra.mrb[0].mxu0 %v6263
  %v6492 = vpop.f32.mrb[0].mxu0
  %v6493 = vadd.f32 0.0, %v6492
  %v6494 = vpop.f32.mrb[0].mxu0
  %v6495 = vpop.f32.mrb[0].mxu0
  %v6496 = vadd.f32 0.0, %v6495
  %v6497 = vpop.f32.mrb[0].mxu0
  %6498 = vmatprep.mubr.bf16.mxu0 0
  %6499 = vmatmul.mubr.bf16.gmra.mrb[0].mxu0 %v6264
  %v6500 = vpop.f32.mrb[0].mxu0
  %v6501 = vadd.f32 0.0, %v6500
  %v6502 = vpop.f32.mrb[0].mxu0
  %v6503 = vpop.f32.mrb[0].mxu0
  %v6504 = vadd.f32 0.0, %v6503
  %v6505 = vpop.f32.mrb[0].mxu0
  %6506 = vmatprep.mubr.bf16.mxu0 0
  %6507 = vmatmul.mubr.bf16.gmra.mrb[0].mxu0 %v6265
  %v6508 = vpop.f32.mrb[0].mxu0
  %v6509 = vadd.f32 0.0, %v6508
  %v6510 = vpop.f32.mrb[0].mxu0
  %v6511 = vpop.f32.mrb[0].mxu0
  %v6512 = vadd.f32 0.0, %v6511
  %v6513 = vpop.f32.mrb[0].mxu0
  %6514 = vmatprep.mubr.bf16.mxu0 0
  %6515 = vmatmul.mubr.bf16.gmra.mrb[0].mxu0 %v6266
  %v6516 = vpop.f32.mrb[0].mxu0
  %v6517 = vadd.f32 0.0, %v6516
  %v6518 = vpop.f32.mrb[0].mxu0
  %v6519 = vpop.f32.mrb[0].mxu0
  %v6520 = vadd.f32 0.0, %v6519
  %v6521 = vpop.f32.mrb[0].mxu0
  %6522 = vmatprep.mubr.bf16.mxu0 0
  %6523 = vmatmul.mubr.bf16.gmra.mrb[0].mxu0 %v6267
  %v6524 = vpop.f32.mrb[0].mxu0
  %v6525 = vadd.f32 0.0, %v6524
  %v6526 = vpop.f32.mrb[0].mxu0
  %v6527 = vpop.f32.mrb[0].mxu0
  %v6528 = vadd.f32 0.0, %v6527
  %v6529 = vpop.f32.mrb[0].mxu0
  %6530 = vmatprep.mubr.bf16.mxu0 0
  %6531 = vmatmul.mubr.bf16.gmra.mrb[0].mxu0 %v6268
  %v6532 = vpop.f32.mrb[0].mxu0
  %v6533 = vadd.f32 0.0, %v6532
  %v6534 = vpop.f32.mrb[0].mxu0
  %v6535 = vpop.f32.mrb[0].mxu0
  %v6536 = vadd.f32 0.0, %v6535
  %v6537 = vpop.f32.mrb[0].mxu0
  %6538 = vmatprep.mubr.bf16.mxu0 0
  %6539 = vmatmul.mubr.bf16.gmra.mrb[0].mxu0 %v6269
  %v6540 = vpop.f32.mrb[0].mxu0
  %v6541 = vadd.f32 0.0, %v6540
  %v6542 = vpop.f32.mrb[0].mxu0
  %v6543 = vpop.f32.mrb[0].mxu0
  %v6544 = vadd.f32 0.0, %v6543
  %v6545 = vpop.f32.mrb[0].mxu0
  %6546 = vmatprep.mubr.bf16.mxu0 0
  %6547 = vmatmul.mubr.bf16.gmra.mrb[0].mxu0 %v6270
  %v6548 = vpop.f32.mrb[0].mxu0
  %v6549 = vadd.f32 0.0, %v6548
  %v6550 = vpop.f32.mrb[0].mxu0
  %v6551 = vpop.f32.mrb[0].mxu0
  %v6552 = vadd.f32 0.0, %v6551
  %v6553 = vpop.f32.mrb[0].mxu0
  %6554 = vmatprep.mubr.bf16.mxu0 0
  %6555 = vmatmul.mubr.bf16.gmra.mrb[0].mxu0 %v6271
  %v6556 = vpop.f32.mrb[0].mxu0
  %v6557 = vadd.f32 0.0, %v6556
  %v6558 = vpop.f32.mrb[0].mxu0
  %v6559 = vpop.f32.mrb[0].mxu0
  %v6560 = vadd.f32 0.0, %v6559
  %v6561 = vpop.f32.mrb[0].mxu0
  %6562 = vmatprep.mubr.bf16.mxu0 0
  %6563 = vmatmul.mubr.bf16.gmra.mrb[0].mxu0 %v6272
  %v6564 = vpop.f32.mrb[0].mxu0
  %v6565 = vadd.f32 0.0, %v6564
  %v6566 = vpop.f32.mrb[0].mxu0
  %v6567 = vpop.f32.mrb[0].mxu0
  %v6568 = vadd.f32 0.0, %v6567
  %v6569 = vpop.f32.mrb[0].mxu0
  %6570 = vmatprep.mubr.bf16.mxu0 0
  %6571 = vmatmul.mubr.bf16.gmra.mrb[0].mxu0 %v6273
  %v6572 = vpop.f32.mrb[0].mxu0
  %v6573 = vadd.f32 0.0, %v6572
  %v6574 = vpop.f32.mrb[0].mxu0
  %v6575 = vpop.f32.mrb[0].mxu0
  %v6576 = vadd.f32 0.0, %v6575
  %v6577 = vpop.f32.mrb[0].mxu0
  %6578 = vmatprep.mubr.bf16.mxu0 0
  %6579 = vmatmul.mubr.bf16.gmra.mrb[0].mxu0 %v6274
  %v6580 = vpop.f32.mrb[0].mxu0
  %v6581 = vadd.f32 0.0, %v6580
  %v6582 = vpop.f32.mrb[0].mxu0
  %v6583 = vpop.f32.mrb[0].mxu0
  %v6584 = vadd.f32 0.0, %v6583
  %v6585 = vpop.f32.mrb[0].mxu0
  %6586 = vmatprep.mubr.bf16.mxu0 0
  %6587 = vmatmul.mubr.bf16.gmra.mrb[0].mxu0 %v6275
  %v6588 = vpop.f32.mrb[0].mxu0
  %v6589 = vadd.f32 0.0, %v6588
  %v6590 = vpop.f32.mrb[0].mxu0
  %v6591 = vpop.f32.mrb[0].mxu0
  %v6592 = vadd.f32 0.0, %v6591
  %v6593 = vpop.f32.mrb[0].mxu0
  %6594 = vmatprep.mubr.bf16.mxu0 0
  %6595 = vmatmul.mubr.bf16.gmra.mrb[0].mxu0 %v6276
  %v6596 = vpop.f32.mrb[0].mxu0
  %v6597 = vadd.f32 0.0, %v6596
  %v6598 = vpop.f32.mrb[0].mxu0
  %v6599 = vpop.f32.mrb[0].mxu0
  %v6600 = vadd.f32 0.0, %v6599
  %v6601 = vpop.f32.mrb[0].mxu0
  %6602 = vmatprep.mubr.bf16.mxu0 0
  %6603 = vmatmul.mubr.bf16.gmra.mrb[0].mxu0 %v6277
  %v6604 = vpop.f32.mrb[0].mxu0
  %v6605 = vadd.f32 0.0, %v6604
  %v6606 = vpop.f32.mrb[0].mxu0
  %v6607 = vpop.f32.mrb[0].mxu0
  %v6608 = vadd.f32 0.0, %v6607
  %v6609 = vpop.f32.mrb[0].mxu0
  %6610 = vmatprep.mubr.bf16.mxu0 0
  %6611 = vmatmul.mubr.bf16.gmra.mrb[0].mxu0 %v6278
  %v6612 = vpop.f32.mrb[0].mxu0
  %v6613 = vadd.f32 0.0, %v6612
  %v6614 = vpop.f32.mrb[0].mxu0
  %v6615 = vpop.f32.mrb[0].mxu0
  %v6616 = vadd.f32 0.0, %v6615
  %v6617 = vpop.f32.mrb[0].mxu0
  %6618 = vmatprep.mubr.bf16.mxu0 0
  %6619 = vmatmul.mubr.bf16.gmra.mrb[0].mxu0 %v6279
  %v6620 = vpop.f32.mrb[0].mxu0
  %v6621 = vadd.f32 0.0, %v6620
  %v6622 = vpop.f32.mrb[0].mxu0
  %v6623 = vpop.f32.mrb[0].mxu0
  %v6624 = vadd.f32 0.0, %v6623
  %v6625 = vpop.f32.mrb[0].mxu0
  %6626 = vmatprep.mubr.bf16.mxu0 0
  %6627 = vmatmul.mubr.bf16.gmra.mrb[0].mxu0 %v6280
  %v6628 = vpop.f32.mrb[0].mxu0
  %v6629 = vadd.f32 0.0, %v6628
  %v6630 = vpop.f32.mrb[0].mxu0
  %v6631 = vpop.f32.mrb[0].mxu0
  %v6632 = vadd.f32 0.0, %v6631
  %v6633 = vpop.f32.mrb[0].mxu0
  %6634 = vdwg.mxu0
  %v6635 = vadd.f32 %v5931, %v6381
  %v6636 = vadd.f32 %v5934, %v6384
  %v6637 = vadd.f32 %v5939, %v6389
  %v6638 = vadd.f32 %v5942, %v6392
  %v6639 = vadd.f32 %v5947, %v6397
  %v6640 = vadd.f32 %v5950, %v6400
  %v6641 = vadd.f32 %v5955, %v6405
  %v6642 = vadd.f32 %v5958, %v6408
  %v6643 = vadd.f32 %v5963, %v6413
  %v6644 = vadd.f32 %v5966, %v6416
  %v6645 = vadd.f32 %v5971, %v6421
  %v6646 = vadd.f32 %v5974, %v6424
  %v6647 = vadd.f32 %v5979, %v6429
  %v6648 = vadd.f32 %v5982, %v6432
  %v6649 = vadd.f32 %v5987, %v6437
  %v6650 = vadd.f32 %v5990, %v6440
  %v6651 = vadd.f32 %v5995, %v6445
  %v6652 = vadd.f32 %v5998, %v6448
  %v6653 = vadd.f32 %v6003, %v6453
  %v6654 = vadd.f32 %v6006, %v6456
  %v6655 = vadd.f32 %v6011, %v6461
  %v6656 = vadd.f32 %v6014, %v6464
  %v6657 = vadd.f32 %v6019, %v6469
  %v6658 = vadd.f32 %v6022, %v6472
  %v6659 = vadd.f32 %v6027, %v6477
  %v6660 = vadd.f32 %v6030, %v6480
  %v6661 = vadd.f32 %v6035, %v6485
  %v6662 = vadd.f32 %v6038, %v6488
  %v6663 = vadd.f32 %v6043, %v6493
  %v6664 = vadd.f32 %v6046, %v6496
  %v6665 = vadd.f32 %v6051, %v6501
  %v6666 = vadd.f32 %v6054, %v6504
  %v6667 = vadd.f32 %v6059, %v6509
  %v6668 = vadd.f32 %v6062, %v6512
  %v6669 = vadd.f32 %v6067, %v6517
  %v6670 = vadd.f32 %v6070, %v6520
  %v6671 = vadd.f32 %v6075, %v6525
  %v6672 = vadd.f32 %v6078, %v6528
  %v6673 = vadd.f32 %v6083, %v6533
  %v6674 = vadd.f32 %v6086, %v6536
  %v6675 = vadd.f32 %v6091, %v6541
  %v6676 = vadd.f32 %v6094, %v6544
  %v6677 = vadd.f32 %v6099, %v6549
  %v6678 = vadd.f32 %v6102, %v6552
  %v6679 = vadd.f32 %v6107, %v6557
  %v6680 = vadd.f32 %v6110, %v6560
  %v6681 = vadd.f32 %v6115, %v6565
  %v6682 = vadd.f32 %v6118, %v6568
  %v6683 = vadd.f32 %v6123, %v6573
  %v6684 = vadd.f32 %v6126, %v6576
  %v6685 = vadd.f32 %v6131, %v6581
  %v6686 = vadd.f32 %v6134, %v6584
  %v6687 = vadd.f32 %v6139, %v6589
  %v6688 = vadd.f32 %v6142, %v6592
  %v6689 = vadd.f32 %v6147, %v6597
  %v6690 = vadd.f32 %v6150, %v6600
  %v6691 = vadd.f32 %v6155, %v6605
  %v6692 = vadd.f32 %v6158, %v6608
  %v6693 = vadd.f32 %v6163, %v6613
  %v6694 = vadd.f32 %v6166, %v6616
  %v6695 = vadd.f32 %v6171, %v6621
  %v6696 = vadd.f32 %v6174, %v6624
  %v6697 = vadd.f32 %v6179, %v6629
  %v6698 = vadd.f32 %v6182, %v6632
  %v6699 = vld [vmem:[%s180 + $0x7] sm:$0xff]
  %v6700 = vld [vmem:[%s180 + $0xf] sm:$0xff]
  %v6701 = vld [vmem:[%s180 + $0x27] sm:$0xff]
  %v6702 = vld [vmem:[%s180 + $0x2f] sm:$0xff]
  %v6703 = vld [vmem:[%s180 + $0x47] sm:$0xff]
  %v6704 = vld [vmem:[%s180 + $0x4f] sm:$0xff]
  %v6705 = vld [vmem:[%s180 + $0x67] sm:$0xff]
  %v6706 = vld [vmem:[%s180 + $0x6f] sm:$0xff]
  %v6707 = vld [vmem:[%s180 + $0x87] sm:$0xff]
  %v6708 = vld [vmem:[%s180 + $0x8f] sm:$0xff]
  %v6709 = vld [vmem:[%s180 + $0xa7] sm:$0xff]
  %v6710 = vld [vmem:[%s180 + $0xaf] sm:$0xff]
  %v6711 = vld [vmem:[%s180 + $0xc7] sm:$0xff]
  %v6712 = vld [vmem:[%s180 + $0xcf] sm:$0xff]
  %v6713 = vld [vmem:[%s180 + $0xe7] sm:$0xff]
  %v6714 = vld [vmem:[%s180 + $0xef] sm:$0xff]
  %v6715 = vld [vmem:[%s180 + $0x107] sm:$0xff]
  %v6716 = vld [vmem:[%s180 + $0x10f] sm:$0xff]
  %v6717 = vld [vmem:[%s180 + $0x127] sm:$0xff]
  %v6718 = vld [vmem:[%s180 + $0x12f] sm:$0xff]
  %v6719 = vld [vmem:[%s180 + $0x147] sm:$0xff]
  %v6720 = vld [vmem:[%s180 + $0x14f] sm:$0xff]
  %v6721 = vld [vmem:[%s180 + $0x167] sm:$0xff]
  %v6722 = vld [vmem:[%s180 + $0x16f] sm:$0xff]
  %v6723 = vld [vmem:[%s180 + $0x187] sm:$0xff]
  %v6724 = vld [vmem:[%s180 + $0x18f] sm:$0xff]
  %v6725 = vld [vmem:[%s180 + $0x1a7] sm:$0xff]
  %v6726 = vld [vmem:[%s180 + $0x1af] sm:$0xff]
  %v6727 = vld [vmem:[%s180 + $0x1c7] sm:$0xff]
  %v6728 = vld [vmem:[%s180 + $0x1cf] sm:$0xff]
  %v6729 = vld [vmem:[%s180 + $0x1e7] sm:$0xff]
  %v6730 = vld [vmem:[%s180 + $0x1ef] sm:$0xff]
  %v6731 = vld [vmem:[%s180 + $0x247] sm:$0xff]
  %v6732 = vld [vmem:[%s180 + $0x24f] sm:$0xff]
  %v6733 = vld [vmem:[%s180 + $0x267] sm:$0xff]
  %v6734 = vld [vmem:[%s180 + $0x26f] sm:$0xff]
  %v6735 = vld [vmem:[%s180 + $0x287] sm:$0xff]
  %v6736 = vld [vmem:[%s180 + $0x28f] sm:$0xff]
  %v6737 = vld [vmem:[%s180 + $0x2a7] sm:$0xff]
  %v6738 = vld [vmem:[%s180 + $0x2af] sm:$0xff]
  %v6739 = vld [vmem:[%s180 + $0x2c7] sm:$0xff]
  %v6740 = vld [vmem:[%s180 + $0x2cf] sm:$0xff]
  %v6741 = vld [vmem:[%s180 + $0x2e7] sm:$0xff]
  %v6742 = vld [vmem:[%s180 + $0x2ef] sm:$0xff]
  %v6743 = vld [vmem:[%s180 + $0x307] sm:$0xff]
  %v6744 = vld [vmem:[%s180 + $0x30f] sm:$0xff]
  %v6745 = vld [vmem:[%s180 + $0x327] sm:$0xff]
  %v6746 = vld [vmem:[%s180 + $0x32f] sm:$0xff]
  %v6747 = vld [vmem:[%s180 + $0x347] sm:$0xff]
  %v6748 = vld [vmem:[%s180 + $0x34f] sm:$0xff]
  %v6749 = vld [vmem:[%s180 + $0x367] sm:$0xff]
  %v6750 = vld [vmem:[%s180 + $0x36f] sm:$0xff]
  %v6751 = vld [vmem:[%s180 + $0x387] sm:$0xff]
  %v6752 = vld [vmem:[%s180 + $0x38f] sm:$0xff]
  %v6753 = vld [vmem:[%s180 + $0x3a7] sm:$0xff]
  %v6754 = vld [vmem:[%s180 + $0x3af] sm:$0xff]
  %v6755 = vld [vmem:[%s180 + $0x3c7] sm:$0xff]
  %v6756 = vld [vmem:[%s180 + $0x3cf] sm:$0xff]
  %v6757 = vld [vmem:[%s180 + $0x3e7] sm:$0xff]
  %v6758 = vld [vmem:[%s180 + $0x3ef] sm:$0xff]
  %v6759 = vld [vmem:[%s180 + $0x407] sm:$0xff]
  %v6760 = vld [vmem:[%s180 + $0x40f] sm:$0xff]
  %v6761 = vld [vmem:[%s180 + $0x427] sm:$0xff]
  %v6762 = vld [vmem:[%s180 + $0x42f] sm:$0xff]
  %v6763 = vpack.c.bf16 %v6700, %v6699
  %v6764 = vpack.c.bf16 %v6702, %v6701
  %v6765 = vpack.c.bf16 %v6704, %v6703
  %v6766 = vpack.c.bf16 %v6706, %v6705
  %v6767 = vpack.c.bf16 %v6708, %v6707
  %v6768 = vpack.c.bf16 %v6710, %v6709
  %v6769 = vpack.c.bf16 %v6712, %v6711
  %v6770 = vpack.c.bf16 %v6714, %v6713
  %v6771 = vpack.c.bf16 %v6716, %v6715
  %v6772 = vpack.c.bf16 %v6718, %v6717
  %v6773 = vpack.c.bf16 %v6720, %v6719
  %v6774 = vpack.c.bf16 %v6722, %v6721
  %v6775 = vpack.c.bf16 %v6724, %v6723
  %v6776 = vpack.c.bf16 %v6726, %v6725
  %v6777 = vpack.c.bf16 %v6728, %v6727
  %v6778 = vpack.c.bf16 %v6730, %v6729
  %v6779 = vpack.c.bf16 %v6732, %v6731
  %v6780 = vpack.c.bf16 %v6734, %v6733
  %v6781 = vpack.c.bf16 %v6736, %v6735
  %v6782 = vpack.c.bf16 %v6738, %v6737
  %v6783 = vpack.c.bf16 %v6740, %v6739
  %v6784 = vpack.c.bf16 %v6742, %v6741
  %v6785 = vpack.c.bf16 %v6744, %v6743
  %v6786 = vpack.c.bf16 %v6746, %v6745
  %v6787 = vpack.c.bf16 %v6748, %v6747
  %v6788 = vpack.c.bf16 %v6750, %v6749
  %v6789 = vpack.c.bf16 %v6752, %v6751
  %v6790 = vpack.c.bf16 %v6754, %v6753
  %v6791 = vpack.c.bf16 %v6756, %v6755
  %v6792 = vpack.c.bf16 %v6758, %v6757
  %v6793 = vpack.c.bf16 %v6760, %v6759
  %v6794 = vpack.c.bf16 %v6762, %v6761
  %s6795 = scalar_lea.vmem %s4, 192
  %v6796 = vld [vmem:[%s6795] sm:$0xf]
  %v6797 = vld [vmem:[%s6795 + $0x4] sm:$0xf]
  %v6798 = vld [vmem:[%s6795 + $0x8] sm:$0xf]
  %v6799 = vld [vmem:[%s6795 + $0xc] sm:$0xf]
  %v6800 = vld [vmem:[%s6795 + $0x10] sm:$0xf]
  %v6801 = vld [vmem:[%s6795 + $0x14] sm:$0xf]
  %v6802 = vld [vmem:[%s6795 + $0x18] sm:$0xf]
  %v6803 = vld [vmem:[%s6795 + $0x1c] sm:$0xf]
  %v6804 = vld [vmem:[%s6795 + $0x20] sm:$0xf]
  %v6805 = vld [vmem:[%s6795 + $0x24] sm:$0xf]
  %v6806 = vld [vmem:[%s6795 + $0x28] sm:$0xf]
  %v6807 = vld [vmem:[%s6795 + $0x2c] sm:$0xf]
  %v6808 = vld [vmem:[%s6795 + $0x30] sm:$0xf]
  %v6809 = vld [vmem:[%s6795 + $0x34] sm:$0xf]
  %v6810 = vld [vmem:[%s6795 + $0x38] sm:$0xf]
  %v6811 = vld [vmem:[%s6795 + $0x3c] sm:$0xf]
  %v6828 = vunpack.c.l.b16 %v6796
  %v6829 = vunpack.c.l.b16 %v6797
  %v6830 = vunpack.c.l.b16 %v6798
  %v6831 = vunpack.c.l.b16 %v6799
  %v6832 = vunpack.c.l.b16 %v6800
  %v6833 = vunpack.c.l.b16 %v6801
  %v6834 = vunpack.c.l.b16 %v6802
  %v6835 = vunpack.c.l.b16 %v6803
  %v6836 = vunpack.c.l.b16 %v6804
  %v6837 = vunpack.c.l.b16 %v6805
  %v6838 = vunpack.c.l.b16 %v6806
  %v6839 = vunpack.c.l.b16 %v6807
  %v6840 = vunpack.c.l.b16 %v6808
  %v6841 = vunpack.c.l.b16 %v6809
  %v6842 = vunpack.c.l.b16 %v6810
  %v6843 = vunpack.c.l.b16 %v6811
  %v6844 = vpack.c.b16 %v6829, %v6828
  %v6845 = vpack.c.b16 %v6831, %v6830
  %v6846 = vpack.c.b16 %v6833, %v6832
  %v6847 = vpack.c.b16 %v6835, %v6834
  %v6848 = vpack.c.b16 %v6837, %v6836
  %v6849 = vpack.c.b16 %v6839, %v6838
  %v6850 = vpack.c.b16 %v6841, %v6840
  %v6851 = vpack.c.b16 %v6843, %v6842
  %6860 = vmatprep.subr.bf16.mxu0 0
  %6861 = vmatpush1.bf16.msra.mxu0 %v6844
  %6862 = vmatprep.subr.bf16.mxu0 0
  %6863 = vmatpush1.bf16.msra.mxu0 %v6845
  %6864 = vmatprep.subr.bf16.mxu0 0
  %6865 = vmatpush1.bf16.msra.mxu0 %v6846
  %6866 = vmatprep.subr.bf16.mxu0 0
  %6867 = vmatpush1.bf16.msra.mxu0 %v6847
  %6868 = vmatprep.subr.bf16.mxu0 0
  %6869 = vmatpush1.bf16.msra.mxu0 %v6848
  %6870 = vmatprep.subr.bf16.mxu0 0
  %6871 = vmatpush1.bf16.msra.mxu0 %v6849
  %6872 = vmatprep.subr.bf16.mxu0 0
  %6873 = vmatpush1.bf16.msra.mxu0 %v6850
  %6874 = vmatprep.subr.bf16.mxu0 0
  %6875 = vmatpush1.bf16.msra.mxu0 %v6851
  %6876 = vmatprep.subr.bf16.mxu0 0
  %6877 = vmatpush1.bf16.msra.mxu0 0
  %6878 = vmatprep.subr.bf16.mxu0 0
  %6879 = vmatpush1.bf16.msra.mxu0 0
  %6880 = vmatprep.subr.bf16.mxu0 0
  %6881 = vmatpush1.bf16.msra.mxu0 0
  %6882 = vmatprep.subr.bf16.mxu0 0
  %6883 = vmatpush1.bf16.msra.mxu0 0
  %6884 = vmatprep.subr.bf16.mxu0 0
  %6885 = vmatpush1.bf16.msra.mxu0 0
  %6886 = vmatprep.subr.bf16.mxu0 0
  %6887 = vmatpush1.bf16.msra.mxu0 0
  %6888 = vmatprep.subr.bf16.mxu0 0
  %6889 = vmatpush1.bf16.msra.mxu0 0
  %6890 = vmatprep.subr.bf16.mxu0 0
  %6891 = vmatpush1.bf16.msra.mxu0 0
  %6892 = vmatprep.mubr.bf16.mxu0 0
  %6893 = vmatmul.mubr.bf16.gmra.mrb[0].mxu0 %v6763
  %v6894 = vpop.f32.mrb[0].mxu0
  %v6895 = vadd.f32 0.0, %v6894
  %v6896 = vpop.f32.mrb[0].mxu0
  %v6897 = vpop.f32.mrb[0].mxu0
  %v6898 = vadd.f32 0.0, %v6897
  %v6899 = vpop.f32.mrb[0].mxu0
  %6900 = vmatprep.mubr.bf16.mxu0 0
  %6901 = vmatmul.mubr.bf16.gmra.mrb[0].mxu0 %v6764
  %v6902 = vpop.f32.mrb[0].mxu0
  %v6903 = vadd.f32 0.0, %v6902
  %v6904 = vpop.f32.mrb[0].mxu0
  %v6905 = vpop.f32.mrb[0].mxu0
  %v6906 = vadd.f32 0.0, %v6905
  %v6907 = vpop.f32.mrb[0].mxu0
  %6908 = vmatprep.mubr.bf16.mxu0 0
  %6909 = vmatmul.mubr.bf16.gmra.mrb[0].mxu0 %v6765
  %v6910 = vpop.f32.mrb[0].mxu0
  %v6911 = vadd.f32 0.0, %v6910
  %v6912 = vpop.f32.mrb[0].mxu0
  %v6913 = vpop.f32.mrb[0].mxu0
  %v6914 = vadd.f32 0.0, %v6913
  %v6915 = vpop.f32.mrb[0].mxu0
  %6916 = vmatprep.mubr.bf16.mxu0 0
  %6917 = vmatmul.mubr.bf16.gmra.mrb[0].mxu0 %v6766
  %v6918 = vpop.f32.mrb[0].mxu0
  %v6919 = vadd.f32 0.0, %v6918
  %v6920 = vpop.f32.mrb[0].mxu0
  %v6921 = vpop.f32.mrb[0].mxu0
  %v6922 = vadd.f32 0.0, %v6921
  %v6923 = vpop.f32.mrb[0].mxu0
  %6924 = vmatprep.mubr.bf16.mxu0 0
  %6925 = vmatmul.mubr.bf16.gmra.mrb[0].mxu0 %v6767
  %v6926 = vpop.f32.mrb[0].mxu0
  %v6927 = vadd.f32 0.0, %v6926
  %v6928 = vpop.f32.mrb[0].mxu0
  %v6929 = vpop.f32.mrb[0].mxu0
  %v6930 = vadd.f32 0.0, %v6929
  %v6931 = vpop.f32.mrb[0].mxu0
  %6932 = vmatprep.mubr.bf16.mxu0 0
  %6933 = vmatmul.mubr.bf16.gmra.mrb[0].mxu0 %v6768
  %v6934 = vpop.f32.mrb[0].mxu0
  %v6935 = vadd.f32 0.0, %v6934
  %v6936 = vpop.f32.mrb[0].mxu0
  %v6937 = vpop.f32.mrb[0].mxu0
  %v6938 = vadd.f32 0.0, %v6937
  %v6939 = vpop.f32.mrb[0].mxu0
  %6940 = vmatprep.mubr.bf16.mxu0 0
  %6941 = vmatmul.mubr.bf16.gmra.mrb[0].mxu0 %v6769
  %v6942 = vpop.f32.mrb[0].mxu0
  %v6943 = vadd.f32 0.0, %v6942
  %v6944 = vpop.f32.mrb[0].mxu0
  %v6945 = vpop.f32.mrb[0].mxu0
  %v6946 = vadd.f32 0.0, %v6945
  %v6947 = vpop.f32.mrb[0].mxu0
  %6948 = vmatprep.mubr.bf16.mxu0 0
  %6949 = vmatmul.mubr.bf16.gmra.mrb[0].mxu0 %v6770
  %v6950 = vpop.f32.mrb[0].mxu0
  %v6951 = vadd.f32 0.0, %v6950
  %v6952 = vpop.f32.mrb[0].mxu0
  %v6953 = vpop.f32.mrb[0].mxu0
  %v6954 = vadd.f32 0.0, %v6953
  %v6955 = vpop.f32.mrb[0].mxu0
  %6956 = vmatprep.mubr.bf16.mxu0 0
  %6957 = vmatmul.mubr.bf16.gmra.mrb[0].mxu0 %v6771
  %v6958 = vpop.f32.mrb[0].mxu0
  %v6959 = vadd.f32 0.0, %v6958
  %v6960 = vpop.f32.mrb[0].mxu0
  %v6961 = vpop.f32.mrb[0].mxu0
  %v6962 = vadd.f32 0.0, %v6961
  %v6963 = vpop.f32.mrb[0].mxu0
  %6964 = vmatprep.mubr.bf16.mxu0 0
  %6965 = vmatmul.mubr.bf16.gmra.mrb[0].mxu0 %v6772
  %v6966 = vpop.f32.mrb[0].mxu0
  %v6967 = vadd.f32 0.0, %v6966
  %v6968 = vpop.f32.mrb[0].mxu0
  %v6969 = vpop.f32.mrb[0].mxu0
  %v6970 = vadd.f32 0.0, %v6969
  %v6971 = vpop.f32.mrb[0].mxu0
  %6972 = vmatprep.mubr.bf16.mxu0 0
  %6973 = vmatmul.mubr.bf16.gmra.mrb[0].mxu0 %v6773
  %v6974 = vpop.f32.mrb[0].mxu0
  %v6975 = vadd.f32 0.0, %v6974
  %v6976 = vpop.f32.mrb[0].mxu0
  %v6977 = vpop.f32.mrb[0].mxu0
  %v6978 = vadd.f32 0.0, %v6977
  %v6979 = vpop.f32.mrb[0].mxu0
  %6980 = vmatprep.mubr.bf16.mxu0 0
  %6981 = vmatmul.mubr.bf16.gmra.mrb[0].mxu0 %v6774
  %v6982 = vpop.f32.mrb[0].mxu0
  %v6983 = vadd.f32 0.0, %v6982
  %v6984 = vpop.f32.mrb[0].mxu0
  %v6985 = vpop.f32.mrb[0].mxu0
  %v6986 = vadd.f32 0.0, %v6985
  %v6987 = vpop.f32.mrb[0].mxu0
  %6988 = vmatprep.mubr.bf16.mxu0 0
  %6989 = vmatmul.mubr.bf16.gmra.mrb[0].mxu0 %v6775
  %v6990 = vpop.f32.mrb[0].mxu0
  %v6991 = vadd.f32 0.0, %v6990
  %v6992 = vpop.f32.mrb[0].mxu0
  %v6993 = vpop.f32.mrb[0].mxu0
  %v6994 = vadd.f32 0.0, %v6993
  %v6995 = vpop.f32.mrb[0].mxu0
  %6996 = vmatprep.mubr.bf16.mxu0 0
  %6997 = vmatmul.mubr.bf16.gmra.mrb[0].mxu0 %v6776
  %v6998 = vpop.f32.mrb[0].mxu0
  %v6999 = vadd.f32 0.0, %v6998
  %v7000 = vpop.f32.mrb[0].mxu0
  %v7001 = vpop.f32.mrb[0].mxu0
  %v7002 = vadd.f32 0.0, %v7001
  %v7003 = vpop.f32.mrb[0].mxu0
  %7004 = vmatprep.mubr.bf16.mxu0 0
  %7005 = vmatmul.mubr.bf16.gmra.mrb[0].mxu0 %v6777
  %v7006 = vpop.f32.mrb[0].mxu0
  %v7007 = vadd.f32 0.0, %v7006
  %v7008 = vpop.f32.mrb[0].mxu0
  %v7009 = vpop.f32.mrb[0].mxu0
  %v7010 = vadd.f32 0.0, %v7009
  %v7011 = vpop.f32.mrb[0].mxu0
  %7012 = vmatprep.mubr.bf16.mxu0 0
  %7013 = vmatmul.mubr.bf16.gmra.mrb[0].mxu0 %v6778
  %v7014 = vpop.f32.mrb[0].mxu0
  %v7015 = vadd.f32 0.0, %v7014
  %v7016 = vpop.f32.mrb[0].mxu0
  %v7017 = vpop.f32.mrb[0].mxu0
  %v7018 = vadd.f32 0.0, %v7017
  %v7019 = vpop.f32.mrb[0].mxu0
  %7020 = vmatprep.mubr.bf16.mxu0 0
  %7021 = vmatmul.mubr.bf16.gmra.mrb[0].mxu0 %v6779
  %v7022 = vpop.f32.mrb[0].mxu0
  %v7023 = vadd.f32 0.0, %v7022
  %v7024 = vpop.f32.mrb[0].mxu0
  %v7025 = vpop.f32.mrb[0].mxu0
  %v7026 = vadd.f32 0.0, %v7025
  %v7027 = vpop.f32.mrb[0].mxu0
  %7028 = vmatprep.mubr.bf16.mxu0 0
  %7029 = vmatmul.mubr.bf16.gmra.mrb[0].mxu0 %v6780
  %v7030 = vpop.f32.mrb[0].mxu0
  %v7031 = vadd.f32 0.0, %v7030
  %v7032 = vpop.f32.mrb[0].mxu0
  %v7033 = vpop.f32.mrb[0].mxu0
  %v7034 = vadd.f32 0.0, %v7033
  %v7035 = vpop.f32.mrb[0].mxu0
  %7036 = vmatprep.mubr.bf16.mxu0 0
  %7037 = vmatmul.mubr.bf16.gmra.mrb[0].mxu0 %v6781
  %v7038 = vpop.f32.mrb[0].mxu0
  %v7039 = vadd.f32 0.0, %v7038
  %v7040 = vpop.f32.mrb[0].mxu0
  %v7041 = vpop.f32.mrb[0].mxu0
  %v7042 = vadd.f32 0.0, %v7041
  %v7043 = vpop.f32.mrb[0].mxu0
  %7044 = vmatprep.mubr.bf16.mxu0 0
  %7045 = vmatmul.mubr.bf16.gmra.mrb[0].mxu0 %v6782
  %v7046 = vpop.f32.mrb[0].mxu0
  %v7047 = vadd.f32 0.0, %v7046
  %v7048 = vpop.f32.mrb[0].mxu0
  %v7049 = vpop.f32.mrb[0].mxu0
  %v7050 = vadd.f32 0.0, %v7049
  %v7051 = vpop.f32.mrb[0].mxu0
  %7052 = vmatprep.mubr.bf16.mxu0 0
  %7053 = vmatmul.mubr.bf16.gmra.mrb[0].mxu0 %v6783
  %v7054 = vpop.f32.mrb[0].mxu0
  %v7055 = vadd.f32 0.0, %v7054
  %v7056 = vpop.f32.mrb[0].mxu0
  %v7057 = vpop.f32.mrb[0].mxu0
  %v7058 = vadd.f32 0.0, %v7057
  %v7059 = vpop.f32.mrb[0].mxu0
  %7060 = vmatprep.mubr.bf16.mxu0 0
  %7061 = vmatmul.mubr.bf16.gmra.mrb[0].mxu0 %v6784
  %v7062 = vpop.f32.mrb[0].mxu0
  %v7063 = vadd.f32 0.0, %v7062
  %v7064 = vpop.f32.mrb[0].mxu0
  %v7065 = vpop.f32.mrb[0].mxu0
  %v7066 = vadd.f32 0.0, %v7065
  %v7067 = vpop.f32.mrb[0].mxu0
  %7068 = vmatprep.mubr.bf16.mxu0 0
  %7069 = vmatmul.mubr.bf16.gmra.mrb[0].mxu0 %v6785
  %v7070 = vpop.f32.mrb[0].mxu0
  %v7071 = vadd.f32 0.0, %v7070
  %v7072 = vpop.f32.mrb[0].mxu0
  %v7073 = vpop.f32.mrb[0].mxu0
  %v7074 = vadd.f32 0.0, %v7073
  %v7075 = vpop.f32.mrb[0].mxu0
  %7076 = vmatprep.mubr.bf16.mxu0 0
  %7077 = vmatmul.mubr.bf16.gmra.mrb[0].mxu0 %v6786
  %v7078 = vpop.f32.mrb[0].mxu0
  %v7079 = vadd.f32 0.0, %v7078
  %v7080 = vpop.f32.mrb[0].mxu0
  %v7081 = vpop.f32.mrb[0].mxu0
  %v7082 = vadd.f32 0.0, %v7081
  %v7083 = vpop.f32.mrb[0].mxu0
  %7084 = vmatprep.mubr.bf16.mxu0 0
  %7085 = vmatmul.mubr.bf16.gmra.mrb[0].mxu0 %v6787
  %v7086 = vpop.f32.mrb[0].mxu0
  %v7087 = vadd.f32 0.0, %v7086
  %v7088 = vpop.f32.mrb[0].mxu0
  %v7089 = vpop.f32.mrb[0].mxu0
  %v7090 = vadd.f32 0.0, %v7089
  %v7091 = vpop.f32.mrb[0].mxu0
  %7092 = vmatprep.mubr.bf16.mxu0 0
  %7093 = vmatmul.mubr.bf16.gmra.mrb[0].mxu0 %v6788
  %v7094 = vpop.f32.mrb[0].mxu0
  %v7095 = vadd.f32 0.0, %v7094
  %v7096 = vpop.f32.mrb[0].mxu0
  %v7097 = vpop.f32.mrb[0].mxu0
  %v7098 = vadd.f32 0.0, %v7097
  %v7099 = vpop.f32.mrb[0].mxu0
  %7100 = vmatprep.mubr.bf16.mxu0 0
  %7101 = vmatmul.mubr.bf16.gmra.mrb[0].mxu0 %v6789
  %v7102 = vpop.f32.mrb[0].mxu0
  %v7103 = vadd.f32 0.0, %v7102
  %v7104 = vpop.f32.mrb[0].mxu0
  %v7105 = vpop.f32.mrb[0].mxu0
  %v7106 = vadd.f32 0.0, %v7105
  %v7107 = vpop.f32.mrb[0].mxu0
  %7108 = vmatprep.mubr.bf16.mxu0 0
  %7109 = vmatmul.mubr.bf16.gmra.mrb[0].mxu0 %v6790
  %v7110 = vpop.f32.mrb[0].mxu0
  %v7111 = vadd.f32 0.0, %v7110
  %v7112 = vpop.f32.mrb[0].mxu0
  %v7113 = vpop.f32.mrb[0].mxu0
  %v7114 = vadd.f32 0.0, %v7113
  %v7115 = vpop.f32.mrb[0].mxu0
  %7116 = vmatprep.mubr.bf16.mxu0 0
  %7117 = vmatmul.mubr.bf16.gmra.mrb[0].mxu0 %v6791
  %v7118 = vpop.f32.mrb[0].mxu0
  %v7119 = vadd.f32 0.0, %v7118
  %v7120 = vpop.f32.mrb[0].mxu0
  %v7121 = vpop.f32.mrb[0].mxu0
  %v7122 = vadd.f32 0.0, %v7121
  %v7123 = vpop.f32.mrb[0].mxu0
  %7124 = vmatprep.mubr.bf16.mxu0 0
  %7125 = vmatmul.mubr.bf16.gmra.mrb[0].mxu0 %v6792
  %v7126 = vpop.f32.mrb[0].mxu0
  %v7127 = vadd.f32 0.0, %v7126
  %v7128 = vpop.f32.mrb[0].mxu0
  %v7129 = vpop.f32.mrb[0].mxu0
  %v7130 = vadd.f32 0.0, %v7129
  %v7131 = vpop.f32.mrb[0].mxu0
  %7132 = vmatprep.mubr.bf16.mxu0 0
  %7133 = vmatmul.mubr.bf16.gmra.mrb[0].mxu0 %v6793
  %v7134 = vpop.f32.mrb[0].mxu0
  %v7135 = vadd.f32 0.0, %v7134
  %v7136 = vpop.f32.mrb[0].mxu0
  %v7137 = vpop.f32.mrb[0].mxu0
  %v7138 = vadd.f32 0.0, %v7137
  %v7139 = vpop.f32.mrb[0].mxu0
  %7140 = vmatprep.mubr.bf16.mxu0 0
  %7141 = vmatmul.mubr.bf16.gmra.mrb[0].mxu0 %v6794
  %v7142 = vpop.f32.mrb[0].mxu0
  %v7143 = vadd.f32 0.0, %v7142
  %v7144 = vpop.f32.mrb[0].mxu0
  %v7145 = vpop.f32.mrb[0].mxu0
  %v7146 = vadd.f32 0.0, %v7145
  %v7147 = vpop.f32.mrb[0].mxu0
  %7148 = vdwg.mxu0
  %v7149 = vadd.f32 %v6635, %v6895
  %v7150 = vadd.f32 %v6636, %v6898
  %v7151 = vadd.f32 %v6637, %v6903
  %v7152 = vadd.f32 %v6638, %v6906
  %v7153 = vadd.f32 %v6639, %v6911
  %v7154 = vadd.f32 %v6640, %v6914
  %v7155 = vadd.f32 %v6641, %v6919
  %v7156 = vadd.f32 %v6642, %v6922
  %v7157 = vadd.f32 %v6643, %v6927
  %v7158 = vadd.f32 %v6644, %v6930
  %v7159 = vadd.f32 %v6645, %v6935
  %v7160 = vadd.f32 %v6646, %v6938
  %v7161 = vadd.f32 %v6647, %v6943
  %v7162 = vadd.f32 %v6648, %v6946
  %v7163 = vadd.f32 %v6649, %v6951
  %v7164 = vadd.f32 %v6650, %v6954
  %v7165 = vadd.f32 %v6651, %v6959
  %v7166 = vadd.f32 %v6652, %v6962
  %v7167 = vadd.f32 %v6653, %v6967
  %v7168 = vadd.f32 %v6654, %v6970
  %v7169 = vadd.f32 %v6655, %v6975
  %v7170 = vadd.f32 %v6656, %v6978
  %v7171 = vadd.f32 %v6657, %v6983
  %v7172 = vadd.f32 %v6658, %v6986
  %v7173 = vadd.f32 %v6659, %v6991
  %v7174 = vadd.f32 %v6660, %v6994
  %v7175 = vadd.f32 %v6661, %v6999
  %v7176 = vadd.f32 %v6662, %v7002
  %v7177 = vadd.f32 %v6663, %v7007
  %v7178 = vadd.f32 %v6664, %v7010
  %v7179 = vadd.f32 %v6665, %v7015
  %v7180 = vadd.f32 %v6666, %v7018
  %v7181 = vadd.f32 %v6667, %v7023
  %v7182 = vadd.f32 %v6668, %v7026
  %v7183 = vadd.f32 %v6669, %v7031
  %v7184 = vadd.f32 %v6670, %v7034
  %v7185 = vadd.f32 %v6671, %v7039
  %v7186 = vadd.f32 %v6672, %v7042
  %v7187 = vadd.f32 %v6673, %v7047
  %v7188 = vadd.f32 %v6674, %v7050
  %v7189 = vadd.f32 %v6675, %v7055
  %v7190 = vadd.f32 %v6676, %v7058
  %v7191 = vadd.f32 %v6677, %v7063
  %v7192 = vadd.f32 %v6678, %v7066
  %v7193 = vadd.f32 %v6679, %v7071
  %v7194 = vadd.f32 %v6680, %v7074
  %v7195 = vadd.f32 %v6681, %v7079
  %v7196 = vadd.f32 %v6682, %v7082
  %v7197 = vadd.f32 %v6683, %v7087
  %v7198 = vadd.f32 %v6684, %v7090
  %v7199 = vadd.f32 %v6685, %v7095
  %v7200 = vadd.f32 %v6686, %v7098
  %v7201 = vadd.f32 %v6687, %v7103
  %v7202 = vadd.f32 %v6688, %v7106
  %v7203 = vadd.f32 %v6689, %v7111
  %v7204 = vadd.f32 %v6690, %v7114
  %v7205 = vadd.f32 %v6691, %v7119
  %v7206 = vadd.f32 %v6692, %v7122
  %v7207 = vadd.f32 %v6693, %v7127
  %v7208 = vadd.f32 %v6694, %v7130
  %v7209 = vadd.f32 %v6695, %v7135
  %v7210 = vadd.f32 %v6696, %v7138
  %v7211 = vadd.f32 %v6697, %v7143
  %v7212 = vadd.f32 %v6698, %v7146
  %v7213 = vld [vmem:[%s180 + $0x8] sm:$0xff]
  %v7214 = vld [vmem:[%s180 + $0x10] sm:$0xff]
  %v7215 = vld [vmem:[%s180 + $0x28] sm:$0xff]
  %v7216 = vld [vmem:[%s180 + $0x30] sm:$0xff]
  %v7217 = vld [vmem:[%s180 + $0x48] sm:$0xff]
  %v7218 = vld [vmem:[%s180 + $0x50] sm:$0xff]
  %v7219 = vld [vmem:[%s180 + $0x68] sm:$0xff]
  %v7220 = vld [vmem:[%s180 + $0x70] sm:$0xff]
  %v7221 = vld [vmem:[%s180 + $0x88] sm:$0xff]
  %v7222 = vld [vmem:[%s180 + $0x90] sm:$0xff]
  %v7223 = vld [vmem:[%s180 + $0xa8] sm:$0xff]
  %v7224 = vld [vmem:[%s180 + $0xb0] sm:$0xff]
  %v7225 = vld [vmem:[%s180 + $0xc8] sm:$0xff]
  %v7226 = vld [vmem:[%s180 + $0xd0] sm:$0xff]
  %v7227 = vld [vmem:[%s180 + $0xe8] sm:$0xff]
  %v7228 = vld [vmem:[%s180 + $0xf0] sm:$0xff]
  %v7229 = vld [vmem:[%s180 + $0x108] sm:$0xff]
  %v7230 = vld [vmem:[%s180 + $0x110] sm:$0xff]
  %v7231 = vld [vmem:[%s180 + $0x128] sm:$0xff]
  %v7232 = vld [vmem:[%s180 + $0x130] sm:$0xff]
  %v7233 = vld [vmem:[%s180 + $0x148] sm:$0xff]
  %v7234 = vld [vmem:[%s180 + $0x150] sm:$0xff]
  %v7235 = vld [vmem:[%s180 + $0x168] sm:$0xff]
  %v7236 = vld [vmem:[%s180 + $0x170] sm:$0xff]
  %v7237 = vld [vmem:[%s180 + $0x188] sm:$0xff]
  %v7238 = vld [vmem:[%s180 + $0x190] sm:$0xff]
  %v7239 = vld [vmem:[%s180 + $0x1a8] sm:$0xff]
  %v7240 = vld [vmem:[%s180 + $0x1b0] sm:$0xff]
  %v7241 = vld [vmem:[%s180 + $0x1c8] sm:$0xff]
  %v7242 = vld [vmem:[%s180 + $0x1d0] sm:$0xff]
  %v7243 = vld [vmem:[%s180 + $0x1e8] sm:$0xff]
  %v7244 = vld [vmem:[%s180 + $0x1f0] sm:$0xff]
  %v7245 = vld [vmem:[%s180 + $0x248] sm:$0xff]
  %v7246 = vld [vmem:[%s180 + $0x250] sm:$0xff]
  %v7247 = vld [vmem:[%s180 + $0x268] sm:$0xff]
  %v7248 = vld [vmem:[%s180 + $0x270] sm:$0xff]
  %v7249 = vld [vmem:[%s180 + $0x288] sm:$0xff]
  %v7250 = vld [vmem:[%s180 + $0x290] sm:$0xff]
  %v7251 = vld [vmem:[%s180 + $0x2a8] sm:$0xff]
  %v7252 = vld [vmem:[%s180 + $0x2b0] sm:$0xff]
  %v7253 = vld [vmem:[%s180 + $0x2c8] sm:$0xff]
  %v7254 = vld [vmem:[%s180 + $0x2d0] sm:$0xff]
  %v7255 = vld [vmem:[%s180 + $0x2e8] sm:$0xff]
  %v7256 = vld [vmem:[%s180 + $0x2f0] sm:$0xff]
  %v7257 = vld [vmem:[%s180 + $0x308] sm:$0xff]
  %v7258 = vld [vmem:[%s180 + $0x310] sm:$0xff]
  %v7259 = vld [vmem:[%s180 + $0x328] sm:$0xff]
  %v7260 = vld [vmem:[%s180 + $0x330] sm:$0xff]
  %v7261 = vld [vmem:[%s180 + $0x348] sm:$0xff]
  %v7262 = vld [vmem:[%s180 + $0x350] sm:$0xff]
  %v7263 = vld [vmem:[%s180 + $0x368] sm:$0xff]
  %v7264 = vld [vmem:[%s180 + $0x370] sm:$0xff]
  %v7265 = vld [vmem:[%s180 + $0x388] sm:$0xff]
  %v7266 = vld [vmem:[%s180 + $0x390] sm:$0xff]
  %v7267 = vld [vmem:[%s180 + $0x3a8] sm:$0xff]
  %v7268 = vld [vmem:[%s180 + $0x3b0] sm:$0xff]
  %v7269 = vld [vmem:[%s180 + $0x3c8] sm:$0xff]
  %v7270 = vld [vmem:[%s180 + $0x3d0] sm:$0xff]
  %v7271 = vld [vmem:[%s180 + $0x3e8] sm:$0xff]
  %v7272 = vld [vmem:[%s180 + $0x3f0] sm:$0xff]
  %v7273 = vld [vmem:[%s180 + $0x408] sm:$0xff]
  %v7274 = vld [vmem:[%s180 + $0x410] sm:$0xff]
  %v7275 = vld [vmem:[%s180 + $0x428] sm:$0xff]
  %v7276 = vld [vmem:[%s180 + $0x430] sm:$0xff]
  %v7277 = vpack.c.bf16 %v7214, %v7213
  %v7278 = vpack.c.bf16 %v7216, %v7215
  %v7279 = vpack.c.bf16 %v7218, %v7217
  %v7280 = vpack.c.bf16 %v7220, %v7219
  %v7281 = vpack.c.bf16 %v7222, %v7221
  %v7282 = vpack.c.bf16 %v7224, %v7223
  %v7283 = vpack.c.bf16 %v7226, %v7225
  %v7284 = vpack.c.bf16 %v7228, %v7227
  %v7285 = vpack.c.bf16 %v7230, %v7229
  %v7286 = vpack.c.bf16 %v7232, %v7231
  %v7287 = vpack.c.bf16 %v7234, %v7233
  %v7288 = vpack.c.bf16 %v7236, %v7235
  %v7289 = vpack.c.bf16 %v7238, %v7237
  %v7290 = vpack.c.bf16 %v7240, %v7239
  %v7291 = vpack.c.bf16 %v7242, %v7241
  %v7292 = vpack.c.bf16 %v7244, %v7243
  %v7293 = vpack.c.bf16 %v7246, %v7245
  %v7294 = vpack.c.bf16 %v7248, %v7247
  %v7295 = vpack.c.bf16 %v7250, %v7249
  %v7296 = vpack.c.bf16 %v7252, %v7251
  %v7297 = vpack.c.bf16 %v7254, %v7253
  %v7298 = vpack.c.bf16 %v7256, %v7255
  %v7299 = vpack.c.bf16 %v7258, %v7257
  %v7300 = vpack.c.bf16 %v7260, %v7259
  %v7301 = vpack.c.bf16 %v7262, %v7261
  %v7302 = vpack.c.bf16 %v7264, %v7263
  %v7303 = vpack.c.bf16 %v7266, %v7265
  %v7304 = vpack.c.bf16 %v7268, %v7267
  %v7305 = vpack.c.bf16 %v7270, %v7269
  %v7306 = vpack.c.bf16 %v7272, %v7271
  %v7307 = vpack.c.bf16 %v7274, %v7273
  %v7308 = vpack.c.bf16 %v7276, %v7275
  %s7309 = scalar_lea.vmem %s4, 256
  %v7310 = vld [vmem:[%s7309] sm:$0xf]
  %v7311 = vld [vmem:[%s7309 + $0x4] sm:$0xf]
  %v7312 = vld [vmem:[%s7309 + $0x8] sm:$0xf]
  %v7313 = vld [vmem:[%s7309 + $0xc] sm:$0xf]
  %v7314 = vld [vmem:[%s7309 + $0x10] sm:$0xf]
  %v7315 = vld [vmem:[%s7309 + $0x14] sm:$0xf]
  %v7316 = vld [vmem:[%s7309 + $0x18] sm:$0xf]
  %v7317 = vld [vmem:[%s7309 + $0x1c] sm:$0xf]
  %v7318 = vld [vmem:[%s7309 + $0x20] sm:$0xf]
  %v7319 = vld [vmem:[%s7309 + $0x24] sm:$0xf]
  %v7320 = vld [vmem:[%s7309 + $0x28] sm:$0xf]
  %v7321 = vld [vmem:[%s7309 + $0x2c] sm:$0xf]
  %v7322 = vld [vmem:[%s7309 + $0x30] sm:$0xf]
  %v7323 = vld [vmem:[%s7309 + $0x34] sm:$0xf]
  %v7324 = vld [vmem:[%s7309 + $0x38] sm:$0xf]
  %v7325 = vld [vmem:[%s7309 + $0x3c] sm:$0xf]
  %v7342 = vunpack.c.l.b16 %v7310
  %v7343 = vunpack.c.l.b16 %v7311
  %v7344 = vunpack.c.l.b16 %v7312
  %v7345 = vunpack.c.l.b16 %v7313
  %v7346 = vunpack.c.l.b16 %v7314
  %v7347 = vunpack.c.l.b16 %v7315
  %v7348 = vunpack.c.l.b16 %v7316
  %v7349 = vunpack.c.l.b16 %v7317
  %v7350 = vunpack.c.l.b16 %v7318
  %v7351 = vunpack.c.l.b16 %v7319
  %v7352 = vunpack.c.l.b16 %v7320
  %v7353 = vunpack.c.l.b16 %v7321
  %v7354 = vunpack.c.l.b16 %v7322
  %v7355 = vunpack.c.l.b16 %v7323
  %v7356 = vunpack.c.l.b16 %v7324
  %v7357 = vunpack.c.l.b16 %v7325
  %v7358 = vpack.c.b16 %v7343, %v7342
  %v7359 = vpack.c.b16 %v7345, %v7344
  %v7360 = vpack.c.b16 %v7347, %v7346
  %v7361 = vpack.c.b16 %v7349, %v7348
  %v7362 = vpack.c.b16 %v7351, %v7350
  %v7363 = vpack.c.b16 %v7353, %v7352
  %v7364 = vpack.c.b16 %v7355, %v7354
  %v7365 = vpack.c.b16 %v7357, %v7356
  %7374 = vmatprep.subr.bf16.mxu0 0
  %7375 = vmatpush1.bf16.msra.mxu0 %v7358
  %7376 = vmatprep.subr.bf16.mxu0 0
  %7377 = vmatpush1.bf16.msra.mxu0 %v7359
  %7378 = vmatprep.subr.bf16.mxu0 0
  %7379 = vmatpush1.bf16.msra.mxu0 %v7360
  %7380 = vmatprep.subr.bf16.mxu0 0
  %7381 = vmatpush1.bf16.msra.mxu0 %v7361
  %7382 = vmatprep.subr.bf16.mxu0 0
  %7383 = vmatpush1.bf16.msra.mxu0 %v7362
  %7384 = vmatprep.subr.bf16.mxu0 0
  %7385 = vmatpush1.bf16.msra.mxu0 %v7363
  %7386 = vmatprep.subr.bf16.mxu0 0
  %7387 = vmatpush1.bf16.msra.mxu0 %v7364
  %7388 = vmatprep.subr.bf16.mxu0 0
  %7389 = vmatpush1.bf16.msra.mxu0 %v7365
  %7390 = vmatprep.subr.bf16.mxu0 0
  %7391 = vmatpush1.bf16.msra.mxu0 0
  %7392 = vmatprep.subr.bf16.mxu0 0
  %7393 = vmatpush1.bf16.msra.mxu0 0
  %7394 = vmatprep.subr.bf16.mxu0 0
  %7395 = vmatpush1.bf16.msra.mxu0 0
  %7396 = vmatprep.subr.bf16.mxu0 0
  %7397 = vmatpush1.bf16.msra.mxu0 0
  %7398 = vmatprep.subr.bf16.mxu0 0
  %7399 = vmatpush1.bf16.msra.mxu0 0
  %7400 = vmatprep.subr.bf16.mxu0 0
  %7401 = vmatpush1.bf16.msra.mxu0 0
  %7402 = vmatprep.subr.bf16.mxu0 0
  %7403 = vmatpush1.bf16.msra.mxu0 0
  %7404 = vmatprep.subr.bf16.mxu0 0
  %7405 = vmatpush1.bf16.msra.mxu0 0
  %7406 = vmatprep.mubr.bf16.mxu0 0
  %7407 = vmatmul.mubr.bf16.gmra.mrb[0].mxu0 %v7277
  %v7408 = vpop.f32.mrb[0].mxu0
  %v7409 = vadd.f32 0.0, %v7408
  %v7410 = vpop.f32.mrb[0].mxu0
  %v7411 = vpop.f32.mrb[0].mxu0
  %v7412 = vadd.f32 0.0, %v7411
  %v7413 = vpop.f32.mrb[0].mxu0
  %7414 = vmatprep.mubr.bf16.mxu0 0
  %7415 = vmatmul.mubr.bf16.gmra.mrb[0].mxu0 %v7278
  %v7416 = vpop.f32.mrb[0].mxu0
  %v7417 = vadd.f32 0.0, %v7416
  %v7418 = vpop.f32.mrb[0].mxu0
  %v7419 = vpop.f32.mrb[0].mxu0
  %v7420 = vadd.f32 0.0, %v7419
  %v7421 = vpop.f32.mrb[0].mxu0
  %7422 = vmatprep.mubr.bf16.mxu0 0
  %7423 = vmatmul.mubr.bf16.gmra.mrb[0].mxu0 %v7279
  %v7424 = vpop.f32.mrb[0].mxu0
  %v7425 = vadd.f32 0.0, %v7424
  %v7426 = vpop.f32.mrb[0].mxu0
  %v7427 = vpop.f32.mrb[0].mxu0
  %v7428 = vadd.f32 0.0, %v7427
  %v7429 = vpop.f32.mrb[0].mxu0
  %7430 = vmatprep.mubr.bf16.mxu0 0
  %7431 = vmatmul.mubr.bf16.gmra.mrb[0].mxu0 %v7280
  %v7432 = vpop.f32.mrb[0].mxu0
  %v7433 = vadd.f32 0.0, %v7432
  %v7434 = vpop.f32.mrb[0].mxu0
  %v7435 = vpop.f32.mrb[0].mxu0
  %v7436 = vadd.f32 0.0, %v7435
  %v7437 = vpop.f32.mrb[0].mxu0
  %7438 = vmatprep.mubr.bf16.mxu0 0
  %7439 = vmatmul.mubr.bf16.gmra.mrb[0].mxu0 %v7281
  %v7440 = vpop.f32.mrb[0].mxu0
  %v7441 = vadd.f32 0.0, %v7440
  %v7442 = vpop.f32.mrb[0].mxu0
  %v7443 = vpop.f32.mrb[0].mxu0
  %v7444 = vadd.f32 0.0, %v7443
  %v7445 = vpop.f32.mrb[0].mxu0
  %7446 = vmatprep.mubr.bf16.mxu0 0
  %7447 = vmatmul.mubr.bf16.gmra.mrb[0].mxu0 %v7282
  %v7448 = vpop.f32.mrb[0].mxu0
  %v7449 = vadd.f32 0.0, %v7448
  %v7450 = vpop.f32.mrb[0].mxu0
  %v7451 = vpop.f32.mrb[0].mxu0
  %v7452 = vadd.f32 0.0, %v7451
  %v7453 = vpop.f32.mrb[0].mxu0
  %7454 = vmatprep.mubr.bf16.mxu0 0
  %7455 = vmatmul.mubr.bf16.gmra.mrb[0].mxu0 %v7283
  %v7456 = vpop.f32.mrb[0].mxu0
  %v7457 = vadd.f32 0.0, %v7456
  %v7458 = vpop.f32.mrb[0].mxu0
  %v7459 = vpop.f32.mrb[0].mxu0
  %v7460 = vadd.f32 0.0, %v7459
  %v7461 = vpop.f32.mrb[0].mxu0
  %7462 = vmatprep.mubr.bf16.mxu0 0
  %7463 = vmatmul.mubr.bf16.gmra.mrb[0].mxu0 %v7284
  %v7464 = vpop.f32.mrb[0].mxu0
  %v7465 = vadd.f32 0.0, %v7464
  %v7466 = vpop.f32.mrb[0].mxu0
  %v7467 = vpop.f32.mrb[0].mxu0
  %v7468 = vadd.f32 0.0, %v7467
  %v7469 = vpop.f32.mrb[0].mxu0
  %7470 = vmatprep.mubr.bf16.mxu0 0
  %7471 = vmatmul.mubr.bf16.gmra.mrb[0].mxu0 %v7285
  %v7472 = vpop.f32.mrb[0].mxu0
  %v7473 = vadd.f32 0.0, %v7472
  %v7474 = vpop.f32.mrb[0].mxu0
  %v7475 = vpop.f32.mrb[0].mxu0
  %v7476 = vadd.f32 0.0, %v7475
  %v7477 = vpop.f32.mrb[0].mxu0
  %7478 = vmatprep.mubr.bf16.mxu0 0
  %7479 = vmatmul.mubr.bf16.gmra.mrb[0].mxu0 %v7286
  %v7480 = vpop.f32.mrb[0].mxu0
  %v7481 = vadd.f32 0.0, %v7480
  %v7482 = vpop.f32.mrb[0].mxu0
  %v7483 = vpop.f32.mrb[0].mxu0
  %v7484 = vadd.f32 0.0, %v7483
  %v7485 = vpop.f32.mrb[0].mxu0
  %7486 = vmatprep.mubr.bf16.mxu0 0
  %7487 = vmatmul.mubr.bf16.gmra.mrb[0].mxu0 %v7287
  %v7488 = vpop.f32.mrb[0].mxu0
  %v7489 = vadd.f32 0.0, %v7488
  %v7490 = vpop.f32.mrb[0].mxu0
  %v7491 = vpop.f32.mrb[0].mxu0
  %v7492 = vadd.f32 0.0, %v7491
  %v7493 = vpop.f32.mrb[0].mxu0
  %7494 = vmatprep.mubr.bf16.mxu0 0
  %7495 = vmatmul.mubr.bf16.gmra.mrb[0].mxu0 %v7288
  %v7496 = vpop.f32.mrb[0].mxu0
  %v7497 = vadd.f32 0.0, %v7496
  %v7498 = vpop.f32.mrb[0].mxu0
  %v7499 = vpop.f32.mrb[0].mxu0
  %v7500 = vadd.f32 0.0, %v7499
  %v7501 = vpop.f32.mrb[0].mxu0
  %7502 = vmatprep.mubr.bf16.mxu0 0
  %7503 = vmatmul.mubr.bf16.gmra.mrb[0].mxu0 %v7289
  %v7504 = vpop.f32.mrb[0].mxu0
  %v7505 = vadd.f32 0.0, %v7504
  %v7506 = vpop.f32.mrb[0].mxu0
  %v7507 = vpop.f32.mrb[0].mxu0
  %v7508 = vadd.f32 0.0, %v7507
  %v7509 = vpop.f32.mrb[0].mxu0
  %7510 = vmatprep.mubr.bf16.mxu0 0
  %7511 = vmatmul.mubr.bf16.gmra.mrb[0].mxu0 %v7290
  %v7512 = vpop.f32.mrb[0].mxu0
  %v7513 = vadd.f32 0.0, %v7512
  %v7514 = vpop.f32.mrb[0].mxu0
  %v7515 = vpop.f32.mrb[0].mxu0
  %v7516 = vadd.f32 0.0, %v7515
  %v7517 = vpop.f32.mrb[0].mxu0
  %7518 = vmatprep.mubr.bf16.mxu0 0
  %7519 = vmatmul.mubr.bf16.gmra.mrb[0].mxu0 %v7291
  %v7520 = vpop.f32.mrb[0].mxu0
  %v7521 = vadd.f32 0.0, %v7520
  %v7522 = vpop.f32.mrb[0].mxu0
  %v7523 = vpop.f32.mrb[0].mxu0
  %v7524 = vadd.f32 0.0, %v7523
  %v7525 = vpop.f32.mrb[0].mxu0
  %7526 = vmatprep.mubr.bf16.mxu0 0
  %7527 = vmatmul.mubr.bf16.gmra.mrb[0].mxu0 %v7292
  %v7528 = vpop.f32.mrb[0].mxu0
  %v7529 = vadd.f32 0.0, %v7528
  %v7530 = vpop.f32.mrb[0].mxu0
  %v7531 = vpop.f32.mrb[0].mxu0
  %v7532 = vadd.f32 0.0, %v7531
  %v7533 = vpop.f32.mrb[0].mxu0
  %7534 = vmatprep.mubr.bf16.mxu0 0
  %7535 = vmatmul.mubr.bf16.gmra.mrb[0].mxu0 %v7293
  %v7536 = vpop.f32.mrb[0].mxu0
  %v7537 = vadd.f32 0.0, %v7536
  %v7538 = vpop.f32.mrb[0].mxu0
  %v7539 = vpop.f32.mrb[0].mxu0
  %v7540 = vadd.f32 0.0, %v7539
  %v7541 = vpop.f32.mrb[0].mxu0
  %7542 = vmatprep.mubr.bf16.mxu0 0
  %7543 = vmatmul.mubr.bf16.gmra.mrb[0].mxu0 %v7294
  %v7544 = vpop.f32.mrb[0].mxu0
  %v7545 = vadd.f32 0.0, %v7544
  %v7546 = vpop.f32.mrb[0].mxu0
  %v7547 = vpop.f32.mrb[0].mxu0
  %v7548 = vadd.f32 0.0, %v7547
  %v7549 = vpop.f32.mrb[0].mxu0
  %7550 = vmatprep.mubr.bf16.mxu0 0
  %7551 = vmatmul.mubr.bf16.gmra.mrb[0].mxu0 %v7295
  %v7552 = vpop.f32.mrb[0].mxu0
  %v7553 = vadd.f32 0.0, %v7552
  %v7554 = vpop.f32.mrb[0].mxu0
  %v7555 = vpop.f32.mrb[0].mxu0
  %v7556 = vadd.f32 0.0, %v7555
  %v7557 = vpop.f32.mrb[0].mxu0
  %7558 = vmatprep.mubr.bf16.mxu0 0
  %7559 = vmatmul.mubr.bf16.gmra.mrb[0].mxu0 %v7296
  %v7560 = vpop.f32.mrb[0].mxu0
  %v7561 = vadd.f32 0.0, %v7560
  %v7562 = vpop.f32.mrb[0].mxu0
  %v7563 = vpop.f32.mrb[0].mxu0
  %v7564 = vadd.f32 0.0, %v7563
  %v7565 = vpop.f32.mrb[0].mxu0
  %7566 = vmatprep.mubr.bf16.mxu0 0
  %7567 = vmatmul.mubr.bf16.gmra.mrb[0].mxu0 %v7297
  %v7568 = vpop.f32.mrb[0].mxu0
  %v7569 = vadd.f32 0.0, %v7568
  %v7570 = vpop.f32.mrb[0].mxu0
  %v7571 = vpop.f32.mrb[0].mxu0
  %v7572 = vadd.f32 0.0, %v7571
  %v7573 = vpop.f32.mrb[0].mxu0
  %7574 = vmatprep.mubr.bf16.mxu0 0
  %7575 = vmatmul.mubr.bf16.gmra.mrb[0].mxu0 %v7298
  %v7576 = vpop.f32.mrb[0].mxu0
  %v7577 = vadd.f32 0.0, %v7576
  %v7578 = vpop.f32.mrb[0].mxu0
  %v7579 = vpop.f32.mrb[0].mxu0
  %v7580 = vadd.f32 0.0, %v7579
  %v7581 = vpop.f32.mrb[0].mxu0
  %7582 = vmatprep.mubr.bf16.mxu0 0
  %7583 = vmatmul.mubr.bf16.gmra.mrb[0].mxu0 %v7299
  %v7584 = vpop.f32.mrb[0].mxu0
  %v7585 = vadd.f32 0.0, %v7584
  %v7586 = vpop.f32.mrb[0].mxu0
  %v7587 = vpop.f32.mrb[0].mxu0
  %v7588 = vadd.f32 0.0, %v7587
  %v7589 = vpop.f32.mrb[0].mxu0
  %7590 = vmatprep.mubr.bf16.mxu0 0
  %7591 = vmatmul.mubr.bf16.gmra.mrb[0].mxu0 %v7300
  %v7592 = vpop.f32.mrb[0].mxu0
  %v7593 = vadd.f32 0.0, %v7592
  %v7594 = vpop.f32.mrb[0].mxu0
  %v7595 = vpop.f32.mrb[0].mxu0
  %v7596 = vadd.f32 0.0, %v7595
  %v7597 = vpop.f32.mrb[0].mxu0
  %7598 = vmatprep.mubr.bf16.mxu0 0
  %7599 = vmatmul.mubr.bf16.gmra.mrb[0].mxu0 %v7301
  %v7600 = vpop.f32.mrb[0].mxu0
  %v7601 = vadd.f32 0.0, %v7600
  %v7602 = vpop.f32.mrb[0].mxu0
  %v7603 = vpop.f32.mrb[0].mxu0
  %v7604 = vadd.f32 0.0, %v7603
  %v7605 = vpop.f32.mrb[0].mxu0
  %7606 = vmatprep.mubr.bf16.mxu0 0
  %7607 = vmatmul.mubr.bf16.gmra.mrb[0].mxu0 %v7302
  %v7608 = vpop.f32.mrb[0].mxu0
  %v7609 = vadd.f32 0.0, %v7608
  %v7610 = vpop.f32.mrb[0].mxu0
  %v7611 = vpop.f32.mrb[0].mxu0
  %v7612 = vadd.f32 0.0, %v7611
  %v7613 = vpop.f32.mrb[0].mxu0
  %7614 = vmatprep.mubr.bf16.mxu0 0
  %7615 = vmatmul.mubr.bf16.gmra.mrb[0].mxu0 %v7303
  %v7616 = vpop.f32.mrb[0].mxu0
  %v7617 = vadd.f32 0.0, %v7616
  %v7618 = vpop.f32.mrb[0].mxu0
  %v7619 = vpop.f32.mrb[0].mxu0
  %v7620 = vadd.f32 0.0, %v7619
  %v7621 = vpop.f32.mrb[0].mxu0
  %7622 = vmatprep.mubr.bf16.mxu0 0
  %7623 = vmatmul.mubr.bf16.gmra.mrb[0].mxu0 %v7304
  %v7624 = vpop.f32.mrb[0].mxu0
  %v7625 = vadd.f32 0.0, %v7624
  %v7626 = vpop.f32.mrb[0].mxu0
  %v7627 = vpop.f32.mrb[0].mxu0
  %v7628 = vadd.f32 0.0, %v7627
  %v7629 = vpop.f32.mrb[0].mxu0
  %7630 = vmatprep.mubr.bf16.mxu0 0
  %7631 = vmatmul.mubr.bf16.gmra.mrb[0].mxu0 %v7305
  %v7632 = vpop.f32.mrb[0].mxu0
  %v7633 = vadd.f32 0.0, %v7632
  %v7634 = vpop.f32.mrb[0].mxu0
  %v7635 = vpop.f32.mrb[0].mxu0
  %v7636 = vadd.f32 0.0, %v7635
  %v7637 = vpop.f32.mrb[0].mxu0
  %7638 = vmatprep.mubr.bf16.mxu0 0
  %7639 = vmatmul.mubr.bf16.gmra.mrb[0].mxu0 %v7306
  %v7640 = vpop.f32.mrb[0].mxu0
  %v7641 = vadd.f32 0.0, %v7640
  %v7642 = vpop.f32.mrb[0].mxu0
  %v7643 = vpop.f32.mrb[0].mxu0
  %v7644 = vadd.f32 0.0, %v7643
  %v7645 = vpop.f32.mrb[0].mxu0
  %7646 = vmatprep.mubr.bf16.mxu0 0
  %7647 = vmatmul.mubr.bf16.gmra.mrb[0].mxu0 %v7307
  %v7648 = vpop.f32.mrb[0].mxu0
  %v7649 = vadd.f32 0.0, %v7648
  %v7650 = vpop.f32.mrb[0].mxu0
  %v7651 = vpop.f32.mrb[0].mxu0
  %v7652 = vadd.f32 0.0, %v7651
  %v7653 = vpop.f32.mrb[0].mxu0
  %7654 = vmatprep.mubr.bf16.mxu0 0
  %7655 = vmatmul.mubr.bf16.gmra.mrb[0].mxu0 %v7308
  %v7656 = vpop.f32.mrb[0].mxu0
  %v7657 = vadd.f32 0.0, %v7656
  %v7658 = vpop.f32.mrb[0].mxu0
  %v7659 = vpop.f32.mrb[0].mxu0
  %v7660 = vadd.f32 0.0, %v7659
  %v7661 = vpop.f32.mrb[0].mxu0
  %7662 = vdwg.mxu0
  %v7663 = vadd.f32 %v7149, %v7409
  %v7664 = vadd.f32 %v7150, %v7412
  %v7665 = vadd.f32 %v7151, %v7417
  %v7666 = vadd.f32 %v7152, %v7420
  %v7667 = vadd.f32 %v7153, %v7425
  %v7668 = vadd.f32 %v7154, %v7428
  %v7669 = vadd.f32 %v7155, %v7433
  %v7670 = vadd.f32 %v7156, %v7436
  %v7671 = vadd.f32 %v7157, %v7441
  %v7672 = vadd.f32 %v7158, %v7444
  %v7673 = vadd.f32 %v7159, %v7449
  %v7674 = vadd.f32 %v7160, %v7452
  %v7675 = vadd.f32 %v7161, %v7457
  %v7676 = vadd.f32 %v7162, %v7460
  %v7677 = vadd.f32 %v7163, %v7465
  %v7678 = vadd.f32 %v7164, %v7468
  %v7679 = vadd.f32 %v7165, %v7473
  %v7680 = vadd.f32 %v7166, %v7476
  %v7681 = vadd.f32 %v7167, %v7481
  %v7682 = vadd.f32 %v7168, %v7484
  %v7683 = vadd.f32 %v7169, %v7489
  %v7684 = vadd.f32 %v7170, %v7492
  %v7685 = vadd.f32 %v7171, %v7497
  %v7686 = vadd.f32 %v7172, %v7500
  %v7687 = vadd.f32 %v7173, %v7505
  %v7688 = vadd.f32 %v7174, %v7508
  %v7689 = vadd.f32 %v7175, %v7513
  %v7690 = vadd.f32 %v7176, %v7516
  %v7691 = vadd.f32 %v7177, %v7521
  %v7692 = vadd.f32 %v7178, %v7524
  %v7693 = vadd.f32 %v7179, %v7529
  %v7694 = vadd.f32 %v7180, %v7532
  %v7695 = vadd.f32 %v7181, %v7537
  %v7696 = vadd.f32 %v7182, %v7540
  %v7697 = vadd.f32 %v7183, %v7545
  %v7698 = vadd.f32 %v7184, %v7548
  %v7699 = vadd.f32 %v7185, %v7553
  %v7700 = vadd.f32 %v7186, %v7556
  %v7701 = vadd.f32 %v7187, %v7561
  %v7702 = vadd.f32 %v7188, %v7564
  %v7703 = vadd.f32 %v7189, %v7569
  %v7704 = vadd.f32 %v7190, %v7572
  %v7705 = vadd.f32 %v7191, %v7577
  %v7706 = vadd.f32 %v7192, %v7580
  %v7707 = vadd.f32 %v7193, %v7585
  %v7708 = vadd.f32 %v7194, %v7588
  %v7709 = vadd.f32 %v7195, %v7593
  %v7710 = vadd.f32 %v7196, %v7596
  %v7711 = vadd.f32 %v7197, %v7601
  %v7712 = vadd.f32 %v7198, %v7604
  %v7713 = vadd.f32 %v7199, %v7609
  %v7714 = vadd.f32 %v7200, %v7612
  %v7715 = vadd.f32 %v7201, %v7617
  %v7716 = vadd.f32 %v7202, %v7620
  %v7717 = vadd.f32 %v7203, %v7625
  %v7718 = vadd.f32 %v7204, %v7628
  %v7719 = vadd.f32 %v7205, %v7633
  %v7720 = vadd.f32 %v7206, %v7636
  %v7721 = vadd.f32 %v7207, %v7641
  %v7722 = vadd.f32 %v7208, %v7644
  %v7723 = vadd.f32 %v7209, %v7649
  %v7724 = vadd.f32 %v7210, %v7652
  %v7725 = vadd.f32 %v7211, %v7657
  %v7726 = vadd.f32 %v7212, %v7660
  %v7727 = vld [vmem:[%s180 + $0x9] sm:$0xff]
  %v7728 = vld [vmem:[%s180 + $0x11] sm:$0xff]
  %v7729 = vld [vmem:[%s180 + $0x29] sm:$0xff]
  %v7730 = vld [vmem:[%s180 + $0x31] sm:$0xff]
  %v7731 = vld [vmem:[%s180 + $0x49] sm:$0xff]
  %v7732 = vld [vmem:[%s180 + $0x51] sm:$0xff]
  %v7733 = vld [vmem:[%s180 + $0x69] sm:$0xff]
  %v7734 = vld [vmem:[%s180 + $0x71] sm:$0xff]
  %v7735 = vld [vmem:[%s180 + $0x89] sm:$0xff]
  %v7736 = vld [vmem:[%s180 + $0x91] sm:$0xff]
  %v7737 = vld [vmem:[%s180 + $0xa9] sm:$0xff]
  %v7738 = vld [vmem:[%s180 + $0xb1] sm:$0xff]
  %v7739 = vld [vmem:[%s180 + $0xc9] sm:$0xff]
  %v7740 = vld [vmem:[%s180 + $0xd1] sm:$0xff]
  %v7741 = vld [vmem:[%s180 + $0xe9] sm:$0xff]
  %v7742 = vld [vmem:[%s180 + $0xf1] sm:$0xff]
  %v7743 = vld [vmem:[%s180 + $0x109] sm:$0xff]
  %v7744 = vld [vmem:[%s180 + $0x111] sm:$0xff]
  %v7745 = vld [vmem:[%s180 + $0x129] sm:$0xff]
  %v7746 = vld [vmem:[%s180 + $0x131] sm:$0xff]
  %v7747 = vld [vmem:[%s180 + $0x149] sm:$0xff]
  %v7748 = vld [vmem:[%s180 + $0x151] sm:$0xff]
  %v7749 = vld [vmem:[%s180 + $0x169] sm:$0xff]
  %v7750 = vld [vmem:[%s180 + $0x171] sm:$0xff]
  %v7751 = vld [vmem:[%s180 + $0x189] sm:$0xff]
  %v7752 = vld [vmem:[%s180 + $0x191] sm:$0xff]
  %v7753 = vld [vmem:[%s180 + $0x1a9] sm:$0xff]
  %v7754 = vld [vmem:[%s180 + $0x1b1] sm:$0xff]
  %v7755 = vld [vmem:[%s180 + $0x1c9] sm:$0xff]
  %v7756 = vld [vmem:[%s180 + $0x1d1] sm:$0xff]
  %v7757 = vld [vmem:[%s180 + $0x1e9] sm:$0xff]
  %v7758 = vld [vmem:[%s180 + $0x1f1] sm:$0xff]
  %v7759 = vld [vmem:[%s180 + $0x249] sm:$0xff]
  %v7760 = vld [vmem:[%s180 + $0x251] sm:$0xff]
  %v7761 = vld [vmem:[%s180 + $0x269] sm:$0xff]
  %v7762 = vld [vmem:[%s180 + $0x271] sm:$0xff]
  %v7763 = vld [vmem:[%s180 + $0x289] sm:$0xff]
  %v7764 = vld [vmem:[%s180 + $0x291] sm:$0xff]
  %v7765 = vld [vmem:[%s180 + $0x2a9] sm:$0xff]
  %v7766 = vld [vmem:[%s180 + $0x2b1] sm:$0xff]
  %v7767 = vld [vmem:[%s180 + $0x2c9] sm:$0xff]
  %v7768 = vld [vmem:[%s180 + $0x2d1] sm:$0xff]
  %v7769 = vld [vmem:[%s180 + $0x2e9] sm:$0xff]
  %v7770 = vld [vmem:[%s180 + $0x2f1] sm:$0xff]
  %v7771 = vld [vmem:[%s180 + $0x309] sm:$0xff]
  %v7772 = vld [vmem:[%s180 + $0x311] sm:$0xff]
  %v7773 = vld [vmem:[%s180 + $0x329] sm:$0xff]
  %v7774 = vld [vmem:[%s180 + $0x331] sm:$0xff]
  %v7775 = vld [vmem:[%s180 + $0x349] sm:$0xff]
  %v7776 = vld [vmem:[%s180 + $0x351] sm:$0xff]
  %v7777 = vld [vmem:[%s180 + $0x369] sm:$0xff]
  %v7778 = vld [vmem:[%s180 + $0x371] sm:$0xff]
  %v7779 = vld [vmem:[%s180 + $0x389] sm:$0xff]
  %v7780 = vld [vmem:[%s180 + $0x391] sm:$0xff]
  %v7781 = vld [vmem:[%s180 + $0x3a9] sm:$0xff]
  %v7782 = vld [vmem:[%s180 + $0x3b1] sm:$0xff]
  %v7783 = vld [vmem:[%s180 + $0x3c9] sm:$0xff]
  %v7784 = vld [vmem:[%s180 + $0x3d1] sm:$0xff]
  %v7785 = vld [vmem:[%s180 + $0x3e9] sm:$0xff]
  %v7786 = vld [vmem:[%s180 + $0x3f1] sm:$0xff]
  %v7787 = vld [vmem:[%s180 + $0x409] sm:$0xff]
  %v7788 = vld [vmem:[%s180 + $0x411] sm:$0xff]
  %v7789 = vld [vmem:[%s180 + $0x429] sm:$0xff]
  %v7790 = vld [vmem:[%s180 + $0x431] sm:$0xff]
  %v7791 = vpack.c.bf16 %v7728, %v7727
  %v7792 = vpack.c.bf16 %v7730, %v7729
  %v7793 = vpack.c.bf16 %v7732, %v7731
  %v7794 = vpack.c.bf16 %v7734, %v7733
  %v7795 = vpack.c.bf16 %v7736, %v7735
  %v7796 = vpack.c.bf16 %v7738, %v7737
  %v7797 = vpack.c.bf16 %v7740, %v7739
  %v7798 = vpack.c.bf16 %v7742, %v7741
  %v7799 = vpack.c.bf16 %v7744, %v7743
  %v7800 = vpack.c.bf16 %v7746, %v7745
  %v7801 = vpack.c.bf16 %v7748, %v7747
  %v7802 = vpack.c.bf16 %v7750, %v7749
  %v7803 = vpack.c.bf16 %v7752, %v7751
  %v7804 = vpack.c.bf16 %v7754, %v7753
  %v7805 = vpack.c.bf16 %v7756, %v7755
  %v7806 = vpack.c.bf16 %v7758, %v7757
  %v7807 = vpack.c.bf16 %v7760, %v7759
  %v7808 = vpack.c.bf16 %v7762, %v7761
  %v7809 = vpack.c.bf16 %v7764, %v7763
  %v7810 = vpack.c.bf16 %v7766, %v7765
  %v7811 = vpack.c.bf16 %v7768, %v7767
  %v7812 = vpack.c.bf16 %v7770, %v7769
  %v7813 = vpack.c.bf16 %v7772, %v7771
  %v7814 = vpack.c.bf16 %v7774, %v7773
  %v7815 = vpack.c.bf16 %v7776, %v7775
  %v7816 = vpack.c.bf16 %v7778, %v7777
  %v7817 = vpack.c.bf16 %v7780, %v7779
  %v7818 = vpack.c.bf16 %v7782, %v7781
  %v7819 = vpack.c.bf16 %v7784, %v7783
  %v7820 = vpack.c.bf16 %v7786, %v7785
  %v7821 = vpack.c.bf16 %v7788, %v7787
  %v7822 = vpack.c.bf16 %v7790, %v7789
  %s7823 = scalar_lea.vmem %s4, 320
  %v7824 = vld [vmem:[%s7823] sm:$0xf]
  %v7825 = vld [vmem:[%s7823 + $0x4] sm:$0xf]
  %v7826 = vld [vmem:[%s7823 + $0x8] sm:$0xf]
  %v7827 = vld [vmem:[%s7823 + $0xc] sm:$0xf]
  %v7828 = vld [vmem:[%s7823 + $0x10] sm:$0xf]
  %v7829 = vld [vmem:[%s7823 + $0x14] sm:$0xf]
  %v7830 = vld [vmem:[%s7823 + $0x18] sm:$0xf]
  %v7831 = vld [vmem:[%s7823 + $0x1c] sm:$0xf]
  %v7832 = vld [vmem:[%s7823 + $0x20] sm:$0xf]
  %v7833 = vld [vmem:[%s7823 + $0x24] sm:$0xf]
  %v7834 = vld [vmem:[%s7823 + $0x28] sm:$0xf]
  %v7835 = vld [vmem:[%s7823 + $0x2c] sm:$0xf]
  %v7836 = vld [vmem:[%s7823 + $0x30] sm:$0xf]
  %v7837 = vld [vmem:[%s7823 + $0x34] sm:$0xf]
  %v7838 = vld [vmem:[%s7823 + $0x38] sm:$0xf]
  %v7839 = vld [vmem:[%s7823 + $0x3c] sm:$0xf]
  %v7856 = vunpack.c.l.b16 %v7824
  %v7857 = vunpack.c.l.b16 %v7825
  %v7858 = vunpack.c.l.b16 %v7826
  %v7859 = vunpack.c.l.b16 %v7827
  %v7860 = vunpack.c.l.b16 %v7828
  %v7861 = vunpack.c.l.b16 %v7829
  %v7862 = vunpack.c.l.b16 %v7830
  %v7863 = vunpack.c.l.b16 %v7831
  %v7864 = vunpack.c.l.b16 %v7832
  %v7865 = vunpack.c.l.b16 %v7833
  %v7866 = vunpack.c.l.b16 %v7834
  %v7867 = vunpack.c.l.b16 %v7835
  %v7868 = vunpack.c.l.b16 %v7836
  %v7869 = vunpack.c.l.b16 %v7837
  %v7870 = vunpack.c.l.b16 %v7838
  %v7871 = vunpack.c.l.b16 %v7839
  %v7872 = vpack.c.b16 %v7857, %v7856
  %v7873 = vpack.c.b16 %v7859, %v7858
  %v7874 = vpack.c.b16 %v7861, %v7860
  %v7875 = vpack.c.b16 %v7863, %v7862
  %v7876 = vpack.c.b16 %v7865, %v7864
  %v7877 = vpack.c.b16 %v7867, %v7866
  %v7878 = vpack.c.b16 %v7869, %v7868
  %v7879 = vpack.c.b16 %v7871, %v7870
  %7888 = vmatprep.subr.bf16.mxu0 0
  %7889 = vmatpush1.bf16.msra.mxu0 %v7872
  %7890 = vmatprep.subr.bf16.mxu0 0
  %7891 = vmatpush1.bf16.msra.mxu0 %v7873
  %7892 = vmatprep.subr.bf16.mxu0 0
  %7893 = vmatpush1.bf16.msra.mxu0 %v7874
  %7894 = vmatprep.subr.bf16.mxu0 0
  %7895 = vmatpush1.bf16.msra.mxu0 %v7875
  %7896 = vmatprep.subr.bf16.mxu0 0
  %7897 = vmatpush1.bf16.msra.mxu0 %v7876
  %7898 = vmatprep.subr.bf16.mxu0 0
  %7899 = vmatpush1.bf16.msra.mxu0 %v7877
  %7900 = vmatprep.subr.bf16.mxu0 0
  %7901 = vmatpush1.bf16.msra.mxu0 %v7878
  %7902 = vmatprep.subr.bf16.mxu0 0
  %7903 = vmatpush1.bf16.msra.mxu0 %v7879
  %7904 = vmatprep.subr.bf16.mxu0 0
  %7905 = vmatpush1.bf16.msra.mxu0 0
  %7906 = vmatprep.subr.bf16.mxu0 0
  %7907 = vmatpush1.bf16.msra.mxu0 0
  %7908 = vmatprep.subr.bf16.mxu0 0
  %7909 = vmatpush1.bf16.msra.mxu0 0
  %7910 = vmatprep.subr.bf16.mxu0 0
  %7911 = vmatpush1.bf16.msra.mxu0 0
  %7912 = vmatprep.subr.bf16.mxu0 0
  %7913 = vmatpush1.bf16.msra.mxu0 0
  %7914 = vmatprep.subr.bf16.mxu0 0
  %7915 = vmatpush1.bf16.msra.mxu0 0
  %7916 = vmatprep.subr.bf16.mxu0 0
  %7917 = vmatpush1.bf16.msra.mxu0 0
  %7918 = vmatprep.subr.bf16.mxu0 0
  %7919 = vmatpush1.bf16.msra.mxu0 0
  %7920 = vmatprep.mubr.bf16.mxu0 0
  %7921 = vmatmul.mubr.bf16.gmra.mrb[0].mxu0 %v7791
  %v7922 = vpop.f32.mrb[0].mxu0
  %v7923 = vadd.f32 0.0, %v7922
  %v7924 = vpop.f32.mrb[0].mxu0
  %v7925 = vpop.f32.mrb[0].mxu0
  %v7926 = vadd.f32 0.0, %v7925
  %v7927 = vpop.f32.mrb[0].mxu0
  %7928 = vmatprep.mubr.bf16.mxu0 0
  %7929 = vmatmul.mubr.bf16.gmra.mrb[0].mxu0 %v7792
  %v7930 = vpop.f32.mrb[0].mxu0
  %v7931 = vadd.f32 0.0, %v7930
  %v7932 = vpop.f32.mrb[0].mxu0
  %v7933 = vpop.f32.mrb[0].mxu0
  %v7934 = vadd.f32 0.0, %v7933
  %v7935 = vpop.f32.mrb[0].mxu0
  %7936 = vmatprep.mubr.bf16.mxu0 0
  %7937 = vmatmul.mubr.bf16.gmra.mrb[0].mxu0 %v7793
  %v7938 = vpop.f32.mrb[0].mxu0
  %v7939 = vadd.f32 0.0, %v7938
  %v7940 = vpop.f32.mrb[0].mxu0
  %v7941 = vpop.f32.mrb[0].mxu0
  %v7942 = vadd.f32 0.0, %v7941
  %v7943 = vpop.f32.mrb[0].mxu0
  %7944 = vmatprep.mubr.bf16.mxu0 0
  %7945 = vmatmul.mubr.bf16.gmra.mrb[0].mxu0 %v7794
  %v7946 = vpop.f32.mrb[0].mxu0
  %v7947 = vadd.f32 0.0, %v7946
  %v7948 = vpop.f32.mrb[0].mxu0
  %v7949 = vpop.f32.mrb[0].mxu0
  %v7950 = vadd.f32 0.0, %v7949
  %v7951 = vpop.f32.mrb[0].mxu0
  %7952 = vmatprep.mubr.bf16.mxu0 0
  %7953 = vmatmul.mubr.bf16.gmra.mrb[0].mxu0 %v7795
  %v7954 = vpop.f32.mrb[0].mxu0
  %v7955 = vadd.f32 0.0, %v7954
  %v7956 = vpop.f32.mrb[0].mxu0
  %v7957 = vpop.f32.mrb[0].mxu0
  %v7958 = vadd.f32 0.0, %v7957
  %v7959 = vpop.f32.mrb[0].mxu0
  %7960 = vmatprep.mubr.bf16.mxu0 0
  %7961 = vmatmul.mubr.bf16.gmra.mrb[0].mxu0 %v7796
  %v7962 = vpop.f32.mrb[0].mxu0
  %v7963 = vadd.f32 0.0, %v7962
  %v7964 = vpop.f32.mrb[0].mxu0
  %v7965 = vpop.f32.mrb[0].mxu0
  %v7966 = vadd.f32 0.0, %v7965
  %v7967 = vpop.f32.mrb[0].mxu0
  %7968 = vmatprep.mubr.bf16.mxu0 0
  %7969 = vmatmul.mubr.bf16.gmra.mrb[0].mxu0 %v7797
  %v7970 = vpop.f32.mrb[0].mxu0
  %v7971 = vadd.f32 0.0, %v7970
  %v7972 = vpop.f32.mrb[0].mxu0
  %v7973 = vpop.f32.mrb[0].mxu0
  %v7974 = vadd.f32 0.0, %v7973
  %v7975 = vpop.f32.mrb[0].mxu0
  %7976 = vmatprep.mubr.bf16.mxu0 0
  %7977 = vmatmul.mubr.bf16.gmra.mrb[0].mxu0 %v7798
  %v7978 = vpop.f32.mrb[0].mxu0
  %v7979 = vadd.f32 0.0, %v7978
  %v7980 = vpop.f32.mrb[0].mxu0
  %v7981 = vpop.f32.mrb[0].mxu0
  %v7982 = vadd.f32 0.0, %v7981
  %v7983 = vpop.f32.mrb[0].mxu0
  %7984 = vmatprep.mubr.bf16.mxu0 0
  %7985 = vmatmul.mubr.bf16.gmra.mrb[0].mxu0 %v7799
  %v7986 = vpop.f32.mrb[0].mxu0
  %v7987 = vadd.f32 0.0, %v7986
  %v7988 = vpop.f32.mrb[0].mxu0
  %v7989 = vpop.f32.mrb[0].mxu0
  %v7990 = vadd.f32 0.0, %v7989
  %v7991 = vpop.f32.mrb[0].mxu0
  %7992 = vmatprep.mubr.bf16.mxu0 0
  %7993 = vmatmul.mubr.bf16.gmra.mrb[0].mxu0 %v7800
  %v7994 = vpop.f32.mrb[0].mxu0
  %v7995 = vadd.f32 0.0, %v7994
  %v7996 = vpop.f32.mrb[0].mxu0
  %v7997 = vpop.f32.mrb[0].mxu0
  %v7998 = vadd.f32 0.0, %v7997
  %v7999 = vpop.f32.mrb[0].mxu0
  %8000 = vmatprep.mubr.bf16.mxu0 0
  %8001 = vmatmul.mubr.bf16.gmra.mrb[0].mxu0 %v7801
  %v8002 = vpop.f32.mrb[0].mxu0
  %v8003 = vadd.f32 0.0, %v8002
  %v8004 = vpop.f32.mrb[0].mxu0
  %v8005 = vpop.f32.mrb[0].mxu0
  %v8006 = vadd.f32 0.0, %v8005
  %v8007 = vpop.f32.mrb[0].mxu0
  %8008 = vmatprep.mubr.bf16.mxu0 0
  %8009 = vmatmul.mubr.bf16.gmra.mrb[0].mxu0 %v7802
  %v8010 = vpop.f32.mrb[0].mxu0
  %v8011 = vadd.f32 0.0, %v8010
  %v8012 = vpop.f32.mrb[0].mxu0
  %v8013 = vpop.f32.mrb[0].mxu0
  %v8014 = vadd.f32 0.0, %v8013
  %v8015 = vpop.f32.mrb[0].mxu0
  %8016 = vmatprep.mubr.bf16.mxu0 0
  %8017 = vmatmul.mubr.bf16.gmra.mrb[0].mxu0 %v7803
  %v8018 = vpop.f32.mrb[0].mxu0
  %v8019 = vadd.f32 0.0, %v8018
  %v8020 = vpop.f32.mrb[0].mxu0
  %v8021 = vpop.f32.mrb[0].mxu0
  %v8022 = vadd.f32 0.0, %v8021
  %v8023 = vpop.f32.mrb[0].mxu0
  %8024 = vmatprep.mubr.bf16.mxu0 0
  %8025 = vmatmul.mubr.bf16.gmra.mrb[0].mxu0 %v7804
  %v8026 = vpop.f32.mrb[0].mxu0
  %v8027 = vadd.f32 0.0, %v8026
  %v8028 = vpop.f32.mrb[0].mxu0
  %v8029 = vpop.f32.mrb[0].mxu0
  %v8030 = vadd.f32 0.0, %v8029
  %v8031 = vpop.f32.mrb[0].mxu0
  %8032 = vmatprep.mubr.bf16.mxu0 0
  %8033 = vmatmul.mubr.bf16.gmra.mrb[0].mxu0 %v7805
  %v8034 = vpop.f32.mrb[0].mxu0
  %v8035 = vadd.f32 0.0, %v8034
  %v8036 = vpop.f32.mrb[0].mxu0
  %v8037 = vpop.f32.mrb[0].mxu0
  %v8038 = vadd.f32 0.0, %v8037
  %v8039 = vpop.f32.mrb[0].mxu0
  %8040 = vmatprep.mubr.bf16.mxu0 0
  %8041 = vmatmul.mubr.bf16.gmra.mrb[0].mxu0 %v7806
  %v8042 = vpop.f32.mrb[0].mxu0
  %v8043 = vadd.f32 0.0, %v8042
  %v8044 = vpop.f32.mrb[0].mxu0
  %v8045 = vpop.f32.mrb[0].mxu0
  %v8046 = vadd.f32 0.0, %v8045
  %v8047 = vpop.f32.mrb[0].mxu0
  %8048 = vmatprep.mubr.bf16.mxu0 0
  %8049 = vmatmul.mubr.bf16.gmra.mrb[0].mxu0 %v7807
  %v8050 = vpop.f32.mrb[0].mxu0
  %v8051 = vadd.f32 0.0, %v8050
  %v8052 = vpop.f32.mrb[0].mxu0
  %v8053 = vpop.f32.mrb[0].mxu0
  %v8054 = vadd.f32 0.0, %v8053
  %v8055 = vpop.f32.mrb[0].mxu0
  %8056 = vmatprep.mubr.bf16.mxu0 0
  %8057 = vmatmul.mubr.bf16.gmra.mrb[0].mxu0 %v7808
  %v8058 = vpop.f32.mrb[0].mxu0
  %v8059 = vadd.f32 0.0, %v8058
  %v8060 = vpop.f32.mrb[0].mxu0
  %v8061 = vpop.f32.mrb[0].mxu0
  %v8062 = vadd.f32 0.0, %v8061
  %v8063 = vpop.f32.mrb[0].mxu0
  %8064 = vmatprep.mubr.bf16.mxu0 0
  %8065 = vmatmul.mubr.bf16.gmra.mrb[0].mxu0 %v7809
  %v8066 = vpop.f32.mrb[0].mxu0
  %v8067 = vadd.f32 0.0, %v8066
  %v8068 = vpop.f32.mrb[0].mxu0
  %v8069 = vpop.f32.mrb[0].mxu0
  %v8070 = vadd.f32 0.0, %v8069
  %v8071 = vpop.f32.mrb[0].mxu0
  %8072 = vmatprep.mubr.bf16.mxu0 0
  %8073 = vmatmul.mubr.bf16.gmra.mrb[0].mxu0 %v7810
  %v8074 = vpop.f32.mrb[0].mxu0
  %v8075 = vadd.f32 0.0, %v8074
  %v8076 = vpop.f32.mrb[0].mxu0
  %v8077 = vpop.f32.mrb[0].mxu0
  %v8078 = vadd.f32 0.0, %v8077
  %v8079 = vpop.f32.mrb[0].mxu0
  %8080 = vmatprep.mubr.bf16.mxu0 0
  %8081 = vmatmul.mubr.bf16.gmra.mrb[0].mxu0 %v7811
  %v8082 = vpop.f32.mrb[0].mxu0
  %v8083 = vadd.f32 0.0, %v8082
  %v8084 = vpop.f32.mrb[0].mxu0
  %v8085 = vpop.f32.mrb[0].mxu0
  %v8086 = vadd.f32 0.0, %v8085
  %v8087 = vpop.f32.mrb[0].mxu0
  %8088 = vmatprep.mubr.bf16.mxu0 0
  %8089 = vmatmul.mubr.bf16.gmra.mrb[0].mxu0 %v7812
  %v8090 = vpop.f32.mrb[0].mxu0
  %v8091 = vadd.f32 0.0, %v8090
  %v8092 = vpop.f32.mrb[0].mxu0
  %v8093 = vpop.f32.mrb[0].mxu0
  %v8094 = vadd.f32 0.0, %v8093
  %v8095 = vpop.f32.mrb[0].mxu0
  %8096 = vmatprep.mubr.bf16.mxu0 0
  %8097 = vmatmul.mubr.bf16.gmra.mrb[0].mxu0 %v7813
  %v8098 = vpop.f32.mrb[0].mxu0
  %v8099 = vadd.f32 0.0, %v8098
  %v8100 = vpop.f32.mrb[0].mxu0
  %v8101 = vpop.f32.mrb[0].mxu0
  %v8102 = vadd.f32 0.0, %v8101
  %v8103 = vpop.f32.mrb[0].mxu0
  %8104 = vmatprep.mubr.bf16.mxu0 0
  %8105 = vmatmul.mubr.bf16.gmra.mrb[0].mxu0 %v7814
  %v8106 = vpop.f32.mrb[0].mxu0
  %v8107 = vadd.f32 0.0, %v8106
  %v8108 = vpop.f32.mrb[0].mxu0
  %v8109 = vpop.f32.mrb[0].mxu0
  %v8110 = vadd.f32 0.0, %v8109
  %v8111 = vpop.f32.mrb[0].mxu0
  %8112 = vmatprep.mubr.bf16.mxu0 0
  %8113 = vmatmul.mubr.bf16.gmra.mrb[0].mxu0 %v7815
  %v8114 = vpop.f32.mrb[0].mxu0
  %v8115 = vadd.f32 0.0, %v8114
  %v8116 = vpop.f32.mrb[0].mxu0
  %v8117 = vpop.f32.mrb[0].mxu0
  %v8118 = vadd.f32 0.0, %v8117
  %v8119 = vpop.f32.mrb[0].mxu0
  %8120 = vmatprep.mubr.bf16.mxu0 0
  %8121 = vmatmul.mubr.bf16.gmra.mrb[0].mxu0 %v7816
  %v8122 = vpop.f32.mrb[0].mxu0
  %v8123 = vadd.f32 0.0, %v8122
  %v8124 = vpop.f32.mrb[0].mxu0
  %v8125 = vpop.f32.mrb[0].mxu0
  %v8126 = vadd.f32 0.0, %v8125
  %v8127 = vpop.f32.mrb[0].mxu0
  %8128 = vmatprep.mubr.bf16.mxu0 0
  %8129 = vmatmul.mubr.bf16.gmra.mrb[0].mxu0 %v7817
  %v8130 = vpop.f32.mrb[0].mxu0
  %v8131 = vadd.f32 0.0, %v8130
  %v8132 = vpop.f32.mrb[0].mxu0
  %v8133 = vpop.f32.mrb[0].mxu0
  %v8134 = vadd.f32 0.0, %v8133
  %v8135 = vpop.f32.mrb[0].mxu0
  %8136 = vmatprep.mubr.bf16.mxu0 0
  %8137 = vmatmul.mubr.bf16.gmra.mrb[0].mxu0 %v7818
  %v8138 = vpop.f32.mrb[0].mxu0
  %v8139 = vadd.f32 0.0, %v8138
  %v8140 = vpop.f32.mrb[0].mxu0
  %v8141 = vpop.f32.mrb[0].mxu0
  %v8142 = vadd.f32 0.0, %v8141
  %v8143 = vpop.f32.mrb[0].mxu0
  %8144 = vmatprep.mubr.bf16.mxu0 0
  %8145 = vmatmul.mubr.bf16.gmra.mrb[0].mxu0 %v7819
  %v8146 = vpop.f32.mrb[0].mxu0
  %v8147 = vadd.f32 0.0, %v8146
  %v8148 = vpop.f32.mrb[0].mxu0
  %v8149 = vpop.f32.mrb[0].mxu0
  %v8150 = vadd.f32 0.0, %v8149
  %v8151 = vpop.f32.mrb[0].mxu0
  %8152 = vmatprep.mubr.bf16.mxu0 0
  %8153 = vmatmul.mubr.bf16.gmra.mrb[0].mxu0 %v7820
  %v8154 = vpop.f32.mrb[0].mxu0
  %v8155 = vadd.f32 0.0, %v8154
  %v8156 = vpop.f32.mrb[0].mxu0
  %v8157 = vpop.f32.mrb[0].mxu0
  %v8158 = vadd.f32 0.0, %v8157
  %v8159 = vpop.f32.mrb[0].mxu0
  %8160 = vmatprep.mubr.bf16.mxu0 0
  %8161 = vmatmul.mubr.bf16.gmra.mrb[0].mxu0 %v7821
  %v8162 = vpop.f32.mrb[0].mxu0
  %v8163 = vadd.f32 0.0, %v8162
  %v8164 = vpop.f32.mrb[0].mxu0
  %v8165 = vpop.f32.mrb[0].mxu0
  %v8166 = vadd.f32 0.0, %v8165
  %v8167 = vpop.f32.mrb[0].mxu0
  %8168 = vmatprep.mubr.bf16.mxu0 0
  %8169 = vmatmul.mubr.bf16.gmra.mrb[0].mxu0 %v7822
  %v8170 = vpop.f32.mrb[0].mxu0
  %v8171 = vadd.f32 0.0, %v8170
  %v8172 = vpop.f32.mrb[0].mxu0
  %v8173 = vpop.f32.mrb[0].mxu0
  %v8174 = vadd.f32 0.0, %v8173
  %v8175 = vpop.f32.mrb[0].mxu0
  %8176 = vdwg.mxu0
  %v8177 = vadd.f32 %v7663, %v7923
  %v8178 = vadd.f32 %v7664, %v7926
  %v8179 = vadd.f32 %v7665, %v7931
  %v8180 = vadd.f32 %v7666, %v7934
  %v8181 = vadd.f32 %v7667, %v7939
  %v8182 = vadd.f32 %v7668, %v7942
  %v8183 = vadd.f32 %v7669, %v7947
  %v8184 = vadd.f32 %v7670, %v7950
  %v8185 = vadd.f32 %v7671, %v7955
  %v8186 = vadd.f32 %v7672, %v7958
  %v8187 = vadd.f32 %v7673, %v7963
  %v8188 = vadd.f32 %v7674, %v7966
  %v8189 = vadd.f32 %v7675, %v7971
  %v8190 = vadd.f32 %v7676, %v7974
  %v8191 = vadd.f32 %v7677, %v7979
  %v8192 = vadd.f32 %v7678, %v7982
  %v8193 = vadd.f32 %v7679, %v7987
  %v8194 = vadd.f32 %v7680, %v7990
  %v8195 = vadd.f32 %v7681, %v7995
  %v8196 = vadd.f32 %v7682, %v7998
  %v8197 = vadd.f32 %v7683, %v8003
  %v8198 = vadd.f32 %v7684, %v8006
  %v8199 = vadd.f32 %v7685, %v8011
  %v8200 = vadd.f32 %v7686, %v8014
  %v8201 = vadd.f32 %v7687, %v8019
  %v8202 = vadd.f32 %v7688, %v8022
  %v8203 = vadd.f32 %v7689, %v8027
  %v8204 = vadd.f32 %v7690, %v8030
  %v8205 = vadd.f32 %v7691, %v8035
  %v8206 = vadd.f32 %v7692, %v8038
  %v8207 = vadd.f32 %v7693, %v8043
  %v8208 = vadd.f32 %v7694, %v8046
  %v8209 = vadd.f32 %v7695, %v8051
  %v8210 = vadd.f32 %v7696, %v8054
  %v8211 = vadd.f32 %v7697, %v8059
  %v8212 = vadd.f32 %v7698, %v8062
  %v8213 = vadd.f32 %v7699, %v8067
  %v8214 = vadd.f32 %v7700, %v8070
  %v8215 = vadd.f32 %v7701, %v8075
  %v8216 = vadd.f32 %v7702, %v8078
  %v8217 = vadd.f32 %v7703, %v8083
  %v8218 = vadd.f32 %v7704, %v8086
  %v8219 = vadd.f32 %v7705, %v8091
  %v8220 = vadd.f32 %v7706, %v8094
  %v8221 = vadd.f32 %v7707, %v8099
  %v8222 = vadd.f32 %v7708, %v8102
  %v8223 = vadd.f32 %v7709, %v8107
  %v8224 = vadd.f32 %v7710, %v8110
  %v8225 = vadd.f32 %v7711, %v8115
  %v8226 = vadd.f32 %v7712, %v8118
  %v8227 = vadd.f32 %v7713, %v8123
  %v8228 = vadd.f32 %v7714, %v8126
  %v8229 = vadd.f32 %v7715, %v8131
  %v8230 = vadd.f32 %v7716, %v8134
  %v8231 = vadd.f32 %v7717, %v8139
  %v8232 = vadd.f32 %v7718, %v8142
  %v8233 = vadd.f32 %v7719, %v8147
  %v8234 = vadd.f32 %v7720, %v8150
  %v8235 = vadd.f32 %v7721, %v8155
  %v8236 = vadd.f32 %v7722, %v8158
  %v8237 = vadd.f32 %v7723, %v8163
  %v8238 = vadd.f32 %v7724, %v8166
  %v8239 = vadd.f32 %v7725, %v8171
  %v8240 = vadd.f32 %v7726, %v8174
  %v8241 = vld [vmem:[%s3200 + $0x7] sm:$0xff]
  %v8242 = vld [vmem:[%s3200 + $0xf] sm:$0xff]
  %v8243 = vld [vmem:[%s3200 + $0x27] sm:$0xff]
  %v8244 = vld [vmem:[%s3200 + $0x2f] sm:$0xff]
  %v8245 = vld [vmem:[%s3200 + $0x47] sm:$0xff]
  %v8246 = vld [vmem:[%s3200 + $0x4f] sm:$0xff]
  %v8247 = vld [vmem:[%s3200 + $0x67] sm:$0xff]
  %v8248 = vld [vmem:[%s3200 + $0x6f] sm:$0xff]
  %v8249 = vld [vmem:[%s3200 + $0x87] sm:$0xff]
  %v8250 = vld [vmem:[%s3200 + $0x8f] sm:$0xff]
  %v8251 = vld [vmem:[%s3200 + $0xa7] sm:$0xff]
  %v8252 = vld [vmem:[%s3200 + $0xaf] sm:$0xff]
  %v8253 = vld [vmem:[%s3200 + $0xc7] sm:$0xff]
  %v8254 = vld [vmem:[%s3200 + $0xcf] sm:$0xff]
  %v8255 = vld [vmem:[%s3200 + $0xe7] sm:$0xff]
  %v8256 = vld [vmem:[%s3200 + $0xef] sm:$0xff]
  %v8257 = vld [vmem:[%s3200 + $0x107] sm:$0xff]
  %v8258 = vld [vmem:[%s3200 + $0x10f] sm:$0xff]
  %v8259 = vld [vmem:[%s3200 + $0x127] sm:$0xff]
  %v8260 = vld [vmem:[%s3200 + $0x12f] sm:$0xff]
  %v8261 = vld [vmem:[%s3200 + $0x147] sm:$0xff]
  %v8262 = vld [vmem:[%s3200 + $0x14f] sm:$0xff]
  %v8263 = vld [vmem:[%s3200 + $0x167] sm:$0xff]
  %v8264 = vld [vmem:[%s3200 + $0x16f] sm:$0xff]
  %v8265 = vld [vmem:[%s3200 + $0x187] sm:$0xff]
  %v8266 = vld [vmem:[%s3200 + $0x18f] sm:$0xff]
  %v8267 = vld [vmem:[%s3200 + $0x1a7] sm:$0xff]
  %v8268 = vld [vmem:[%s3200 + $0x1af] sm:$0xff]
  %v8269 = vld [vmem:[%s3200 + $0x1c7] sm:$0xff]
  %v8270 = vld [vmem:[%s3200 + $0x1cf] sm:$0xff]
  %v8271 = vld [vmem:[%s3200 + $0x1e7] sm:$0xff]
  %v8272 = vld [vmem:[%s3200 + $0x1ef] sm:$0xff]
  %v8273 = vld [vmem:[%s3200 + $0x247] sm:$0xff]
  %v8274 = vld [vmem:[%s3200 + $0x24f] sm:$0xff]
  %v8275 = vld [vmem:[%s3200 + $0x267] sm:$0xff]
  %v8276 = vld [vmem:[%s3200 + $0x26f] sm:$0xff]
  %v8277 = vld [vmem:[%s3200 + $0x287] sm:$0xff]
  %v8278 = vld [vmem:[%s3200 + $0x28f] sm:$0xff]
  %v8279 = vld [vmem:[%s3200 + $0x2a7] sm:$0xff]
  %v8280 = vld [vmem:[%s3200 + $0x2af] sm:$0xff]
  %v8281 = vld [vmem:[%s3200 + $0x2c7] sm:$0xff]
  %v8282 = vld [vmem:[%s3200 + $0x2cf] sm:$0xff]
  %v8283 = vld [vmem:[%s3200 + $0x2e7] sm:$0xff]
  %v8284 = vld [vmem:[%s3200 + $0x2ef] sm:$0xff]
  %v8285 = vld [vmem:[%s3200 + $0x307] sm:$0xff]
  %v8286 = vld [vmem:[%s3200 + $0x30f] sm:$0xff]
  %v8287 = vld [vmem:[%s3200 + $0x327] sm:$0xff]
  %v8288 = vld [vmem:[%s3200 + $0x32f] sm:$0xff]
  %v8289 = vld [vmem:[%s3200 + $0x347] sm:$0xff]
  %v8290 = vld [vmem:[%s3200 + $0x34f] sm:$0xff]
  %v8291 = vld [vmem:[%s3200 + $0x367] sm:$0xff]
  %v8292 = vld [vmem:[%s3200 + $0x36f] sm:$0xff]
  %v8293 = vld [vmem:[%s3200 + $0x387] sm:$0xff]
  %v8294 = vld [vmem:[%s3200 + $0x38f] sm:$0xff]
  %v8295 = vld [vmem:[%s3200 + $0x3a7] sm:$0xff]
  %v8296 = vld [vmem:[%s3200 + $0x3af] sm:$0xff]
  %v8297 = vld [vmem:[%s3200 + $0x3c7] sm:$0xff]
  %v8298 = vld [vmem:[%s3200 + $0x3cf] sm:$0xff]
  %v8299 = vld [vmem:[%s3200 + $0x3e7] sm:$0xff]
  %v8300 = vld [vmem:[%s3200 + $0x3ef] sm:$0xff]
  %v8301 = vld [vmem:[%s3200 + $0x407] sm:$0xff]
  %v8302 = vld [vmem:[%s3200 + $0x40f] sm:$0xff]
  %v8303 = vld [vmem:[%s3200 + $0x427] sm:$0xff]
  %v8304 = vld [vmem:[%s3200 + $0x42f] sm:$0xff]
  %v8305 = vpack.c.bf16 %v8242, %v8241
  %v8306 = vpack.c.bf16 %v8244, %v8243
  %v8307 = vpack.c.bf16 %v8246, %v8245
  %v8308 = vpack.c.bf16 %v8248, %v8247
  %v8309 = vpack.c.bf16 %v8250, %v8249
  %v8310 = vpack.c.bf16 %v8252, %v8251
  %v8311 = vpack.c.bf16 %v8254, %v8253
  %v8312 = vpack.c.bf16 %v8256, %v8255
  %v8313 = vpack.c.bf16 %v8258, %v8257
  %v8314 = vpack.c.bf16 %v8260, %v8259
  %v8315 = vpack.c.bf16 %v8262, %v8261
  %v8316 = vpack.c.bf16 %v8264, %v8263
  %v8317 = vpack.c.bf16 %v8266, %v8265
  %v8318 = vpack.c.bf16 %v8268, %v8267
  %v8319 = vpack.c.bf16 %v8270, %v8269
  %v8320 = vpack.c.bf16 %v8272, %v8271
  %v8321 = vpack.c.bf16 %v8274, %v8273
  %v8322 = vpack.c.bf16 %v8276, %v8275
  %v8323 = vpack.c.bf16 %v8278, %v8277
  %v8324 = vpack.c.bf16 %v8280, %v8279
  %v8325 = vpack.c.bf16 %v8282, %v8281
  %v8326 = vpack.c.bf16 %v8284, %v8283
  %v8327 = vpack.c.bf16 %v8286, %v8285
  %v8328 = vpack.c.bf16 %v8288, %v8287
  %v8329 = vpack.c.bf16 %v8290, %v8289
  %v8330 = vpack.c.bf16 %v8292, %v8291
  %v8331 = vpack.c.bf16 %v8294, %v8293
  %v8332 = vpack.c.bf16 %v8296, %v8295
  %v8333 = vpack.c.bf16 %v8298, %v8297
  %v8334 = vpack.c.bf16 %v8300, %v8299
  %v8335 = vpack.c.bf16 %v8302, %v8301
  %v8336 = vpack.c.bf16 %v8304, %v8303
  %s8337 = scalar_lea.vmem %s4, 384
  %v8338 = vld [vmem:[%s8337] sm:$0xf]
  %v8339 = vld [vmem:[%s8337 + $0x4] sm:$0xf]
  %v8340 = vld [vmem:[%s8337 + $0x8] sm:$0xf]
  %v8341 = vld [vmem:[%s8337 + $0xc] sm:$0xf]
  %v8342 = vld [vmem:[%s8337 + $0x10] sm:$0xf]
  %v8343 = vld [vmem:[%s8337 + $0x14] sm:$0xf]
  %v8344 = vld [vmem:[%s8337 + $0x18] sm:$0xf]
  %v8345 = vld [vmem:[%s8337 + $0x1c] sm:$0xf]
  %v8346 = vld [vmem:[%s8337 + $0x20] sm:$0xf]
  %v8347 = vld [vmem:[%s8337 + $0x24] sm:$0xf]
  %v8348 = vld [vmem:[%s8337 + $0x28] sm:$0xf]
  %v8349 = vld [vmem:[%s8337 + $0x2c] sm:$0xf]
  %v8350 = vld [vmem:[%s8337 + $0x30] sm:$0xf]
  %v8351 = vld [vmem:[%s8337 + $0x34] sm:$0xf]
  %v8352 = vld [vmem:[%s8337 + $0x38] sm:$0xf]
  %v8353 = vld [vmem:[%s8337 + $0x3c] sm:$0xf]
  %v8370 = vunpack.c.l.b16 %v8338
  %v8371 = vunpack.c.l.b16 %v8339
  %v8372 = vunpack.c.l.b16 %v8340
  %v8373 = vunpack.c.l.b16 %v8341
  %v8374 = vunpack.c.l.b16 %v8342
  %v8375 = vunpack.c.l.b16 %v8343
  %v8376 = vunpack.c.l.b16 %v8344
  %v8377 = vunpack.c.l.b16 %v8345
  %v8378 = vunpack.c.l.b16 %v8346
  %v8379 = vunpack.c.l.b16 %v8347
  %v8380 = vunpack.c.l.b16 %v8348
  %v8381 = vunpack.c.l.b16 %v8349
  %v8382 = vunpack.c.l.b16 %v8350
  %v8383 = vunpack.c.l.b16 %v8351
  %v8384 = vunpack.c.l.b16 %v8352
  %v8385 = vunpack.c.l.b16 %v8353
  %v8386 = vpack.c.b16 %v8371, %v8370
  %v8387 = vpack.c.b16 %v8373, %v8372
  %v8388 = vpack.c.b16 %v8375, %v8374
  %v8389 = vpack.c.b16 %v8377, %v8376
  %v8390 = vpack.c.b16 %v8379, %v8378
  %v8391 = vpack.c.b16 %v8381, %v8380
  %v8392 = vpack.c.b16 %v8383, %v8382
  %v8393 = vpack.c.b16 %v8385, %v8384
  %8402 = vmatprep.subr.bf16.mxu0 0
  %8403 = vmatpush1.bf16.msra.mxu0 %v8386
  %8404 = vmatprep.subr.bf16.mxu0 0
  %8405 = vmatpush1.bf16.msra.mxu0 %v8387
  %8406 = vmatprep.subr.bf16.mxu0 0
  %8407 = vmatpush1.bf16.msra.mxu0 %v8388
  %8408 = vmatprep.subr.bf16.mxu0 0
  %8409 = vmatpush1.bf16.msra.mxu0 %v8389
  %8410 = vmatprep.subr.bf16.mxu0 0
  %8411 = vmatpush1.bf16.msra.mxu0 %v8390
  %8412 = vmatprep.subr.bf16.mxu0 0
  %8413 = vmatpush1.bf16.msra.mxu0 %v8391
  %8414 = vmatprep.subr.bf16.mxu0 0
  %8415 = vmatpush1.bf16.msra.mxu0 %v8392
  %8416 = vmatprep.subr.bf16.mxu0 0
  %8417 = vmatpush1.bf16.msra.mxu0 %v8393
  %8418 = vmatprep.subr.bf16.mxu0 0
  %8419 = vmatpush1.bf16.msra.mxu0 0
  %8420 = vmatprep.subr.bf16.mxu0 0
  %8421 = vmatpush1.bf16.msra.mxu0 0
  %8422 = vmatprep.subr.bf16.mxu0 0
  %8423 = vmatpush1.bf16.msra.mxu0 0
  %8424 = vmatprep.subr.bf16.mxu0 0
  %8425 = vmatpush1.bf16.msra.mxu0 0
  %8426 = vmatprep.subr.bf16.mxu0 0
  %8427 = vmatpush1.bf16.msra.mxu0 0
  %8428 = vmatprep.subr.bf16.mxu0 0
  %8429 = vmatpush1.bf16.msra.mxu0 0
  %8430 = vmatprep.subr.bf16.mxu0 0
  %8431 = vmatpush1.bf16.msra.mxu0 0
  %8432 = vmatprep.subr.bf16.mxu0 0
  %8433 = vmatpush1.bf16.msra.mxu0 0
  %8434 = vmatprep.mubr.bf16.mxu0 0
  %8435 = vmatmul.mubr.bf16.gmra.mrb[0].mxu0 %v8305
  %v8436 = vpop.f32.mrb[0].mxu0
  %v8437 = vadd.f32 0.0, %v8436
  %v8438 = vpop.f32.mrb[0].mxu0
  %v8439 = vpop.f32.mrb[0].mxu0
  %v8440 = vadd.f32 0.0, %v8439
  %v8441 = vpop.f32.mrb[0].mxu0
  %8442 = vmatprep.mubr.bf16.mxu0 0
  %8443 = vmatmul.mubr.bf16.gmra.mrb[0].mxu0 %v8306
  %v8444 = vpop.f32.mrb[0].mxu0
  %v8445 = vadd.f32 0.0, %v8444
  %v8446 = vpop.f32.mrb[0].mxu0
  %v8447 = vpop.f32.mrb[0].mxu0
  %v8448 = vadd.f32 0.0, %v8447
  %v8449 = vpop.f32.mrb[0].mxu0
  %8450 = vmatprep.mubr.bf16.mxu0 0
  %8451 = vmatmul.mubr.bf16.gmra.mrb[0].mxu0 %v8307
  %v8452 = vpop.f32.mrb[0].mxu0
  %v8453 = vadd.f32 0.0, %v8452
  %v8454 = vpop.f32.mrb[0].mxu0
  %v8455 = vpop.f32.mrb[0].mxu0
  %v8456 = vadd.f32 0.0, %v8455
  %v8457 = vpop.f32.mrb[0].mxu0
  %8458 = vmatprep.mubr.bf16.mxu0 0
  %8459 = vmatmul.mubr.bf16.gmra.mrb[0].mxu0 %v8308
  %v8460 = vpop.f32.mrb[0].mxu0
  %v8461 = vadd.f32 0.0, %v8460
  %v8462 = vpop.f32.mrb[0].mxu0
  %v8463 = vpop.f32.mrb[0].mxu0
  %v8464 = vadd.f32 0.0, %v8463
  %v8465 = vpop.f32.mrb[0].mxu0
  %8466 = vmatprep.mubr.bf16.mxu0 0
  %8467 = vmatmul.mubr.bf16.gmra.mrb[0].mxu0 %v8309
  %v8468 = vpop.f32.mrb[0].mxu0
  %v8469 = vadd.f32 0.0, %v8468
  %v8470 = vpop.f32.mrb[0].mxu0
  %v8471 = vpop.f32.mrb[0].mxu0
  %v8472 = vadd.f32 0.0, %v8471
  %v8473 = vpop.f32.mrb[0].mxu0
  %8474 = vmatprep.mubr.bf16.mxu0 0
  %8475 = vmatmul.mubr.bf16.gmra.mrb[0].mxu0 %v8310
  %v8476 = vpop.f32.mrb[0].mxu0
  %v8477 = vadd.f32 0.0, %v8476
  %v8478 = vpop.f32.mrb[0].mxu0
  %v8479 = vpop.f32.mrb[0].mxu0
  %v8480 = vadd.f32 0.0, %v8479
  %v8481 = vpop.f32.mrb[0].mxu0
  %8482 = vmatprep.mubr.bf16.mxu0 0
  %8483 = vmatmul.mubr.bf16.gmra.mrb[0].mxu0 %v8311
  %v8484 = vpop.f32.mrb[0].mxu0
  %v8485 = vadd.f32 0.0, %v8484
  %v8486 = vpop.f32.mrb[0].mxu0
  %v8487 = vpop.f32.mrb[0].mxu0
  %v8488 = vadd.f32 0.0, %v8487
  %v8489 = vpop.f32.mrb[0].mxu0
  %8490 = vmatprep.mubr.bf16.mxu0 0
  %8491 = vmatmul.mubr.bf16.gmra.mrb[0].mxu0 %v8312
  %v8492 = vpop.f32.mrb[0].mxu0
  %v8493 = vadd.f32 0.0, %v8492
  %v8494 = vpop.f32.mrb[0].mxu0
  %v8495 = vpop.f32.mrb[0].mxu0
  %v8496 = vadd.f32 0.0, %v8495
  %v8497 = vpop.f32.mrb[0].mxu0
  %8498 = vmatprep.mubr.bf16.mxu0 0
  %8499 = vmatmul.mubr.bf16.gmra.mrb[0].mxu0 %v8313
  %v8500 = vpop.f32.mrb[0].mxu0
  %v8501 = vadd.f32 0.0, %v8500
  %v8502 = vpop.f32.mrb[0].mxu0
  %v8503 = vpop.f32.mrb[0].mxu0
  %v8504 = vadd.f32 0.0, %v8503
  %v8505 = vpop.f32.mrb[0].mxu0
  %8506 = vmatprep.mubr.bf16.mxu0 0
  %8507 = vmatmul.mubr.bf16.gmra.mrb[0].mxu0 %v8314
  %v8508 = vpop.f32.mrb[0].mxu0
  %v8509 = vadd.f32 0.0, %v8508
  %v8510 = vpop.f32.mrb[0].mxu0
  %v8511 = vpop.f32.mrb[0].mxu0
  %v8512 = vadd.f32 0.0, %v8511
  %v8513 = vpop.f32.mrb[0].mxu0
  %8514 = vmatprep.mubr.bf16.mxu0 0
  %8515 = vmatmul.mubr.bf16.gmra.mrb[0].mxu0 %v8315
  %v8516 = vpop.f32.mrb[0].mxu0
  %v8517 = vadd.f32 0.0, %v8516
  %v8518 = vpop.f32.mrb[0].mxu0
  %v8519 = vpop.f32.mrb[0].mxu0
  %v8520 = vadd.f32 0.0, %v8519
  %v8521 = vpop.f32.mrb[0].mxu0
  %8522 = vmatprep.mubr.bf16.mxu0 0
  %8523 = vmatmul.mubr.bf16.gmra.mrb[0].mxu0 %v8316
  %v8524 = vpop.f32.mrb[0].mxu0
  %v8525 = vadd.f32 0.0, %v8524
  %v8526 = vpop.f32.mrb[0].mxu0
  %v8527 = vpop.f32.mrb[0].mxu0
  %v8528 = vadd.f32 0.0, %v8527
  %v8529 = vpop.f32.mrb[0].mxu0
  %8530 = vmatprep.mubr.bf16.mxu0 0
  %8531 = vmatmul.mubr.bf16.gmra.mrb[0].mxu0 %v8317
  %v8532 = vpop.f32.mrb[0].mxu0
  %v8533 = vadd.f32 0.0, %v8532
  %v8534 = vpop.f32.mrb[0].mxu0
  %v8535 = vpop.f32.mrb[0].mxu0
  %v8536 = vadd.f32 0.0, %v8535
  %v8537 = vpop.f32.mrb[0].mxu0
  %8538 = vmatprep.mubr.bf16.mxu0 0
  %8539 = vmatmul.mubr.bf16.gmra.mrb[0].mxu0 %v8318
  %v8540 = vpop.f32.mrb[0].mxu0
  %v8541 = vadd.f32 0.0, %v8540
  %v8542 = vpop.f32.mrb[0].mxu0
  %v8543 = vpop.f32.mrb[0].mxu0
  %v8544 = vadd.f32 0.0, %v8543
  %v8545 = vpop.f32.mrb[0].mxu0
  %8546 = vmatprep.mubr.bf16.mxu0 0
  %8547 = vmatmul.mubr.bf16.gmra.mrb[0].mxu0 %v8319
  %v8548 = vpop.f32.mrb[0].mxu0
  %v8549 = vadd.f32 0.0, %v8548
  %v8550 = vpop.f32.mrb[0].mxu0
  %v8551 = vpop.f32.mrb[0].mxu0
  %v8552 = vadd.f32 0.0, %v8551
  %v8553 = vpop.f32.mrb[0].mxu0
  %8554 = vmatprep.mubr.bf16.mxu0 0
  %8555 = vmatmul.mubr.bf16.gmra.mrb[0].mxu0 %v8320
  %v8556 = vpop.f32.mrb[0].mxu0
  %v8557 = vadd.f32 0.0, %v8556
  %v8558 = vpop.f32.mrb[0].mxu0
  %v8559 = vpop.f32.mrb[0].mxu0
  %v8560 = vadd.f32 0.0, %v8559
  %v8561 = vpop.f32.mrb[0].mxu0
  %8562 = vmatprep.mubr.bf16.mxu0 0
  %8563 = vmatmul.mubr.bf16.gmra.mrb[0].mxu0 %v8321
  %v8564 = vpop.f32.mrb[0].mxu0
  %v8565 = vadd.f32 0.0, %v8564
  %v8566 = vpop.f32.mrb[0].mxu0
  %v8567 = vpop.f32.mrb[0].mxu0
  %v8568 = vadd.f32 0.0, %v8567
  %v8569 = vpop.f32.mrb[0].mxu0
  %8570 = vmatprep.mubr.bf16.mxu0 0
  %8571 = vmatmul.mubr.bf16.gmra.mrb[0].mxu0 %v8322
  %v8572 = vpop.f32.mrb[0].mxu0
  %v8573 = vadd.f32 0.0, %v8572
  %v8574 = vpop.f32.mrb[0].mxu0
  %v8575 = vpop.f32.mrb[0].mxu0
  %v8576 = vadd.f32 0.0, %v8575
  %v8577 = vpop.f32.mrb[0].mxu0
  %8578 = vmatprep.mubr.bf16.mxu0 0
  %8579 = vmatmul.mubr.bf16.gmra.mrb[0].mxu0 %v8323
  %v8580 = vpop.f32.mrb[0].mxu0
  %v8581 = vadd.f32 0.0, %v8580
  %v8582 = vpop.f32.mrb[0].mxu0
  %v8583 = vpop.f32.mrb[0].mxu0
  %v8584 = vadd.f32 0.0, %v8583
  %v8585 = vpop.f32.mrb[0].mxu0
  %8586 = vmatprep.mubr.bf16.mxu0 0
  %8587 = vmatmul.mubr.bf16.gmra.mrb[0].mxu0 %v8324
  %v8588 = vpop.f32.mrb[0].mxu0
  %v8589 = vadd.f32 0.0, %v8588
  %v8590 = vpop.f32.mrb[0].mxu0
  %v8591 = vpop.f32.mrb[0].mxu0
  %v8592 = vadd.f32 0.0, %v8591
  %v8593 = vpop.f32.mrb[0].mxu0
  %8594 = vmatprep.mubr.bf16.mxu0 0
  %8595 = vmatmul.mubr.bf16.gmra.mrb[0].mxu0 %v8325
  %v8596 = vpop.f32.mrb[0].mxu0
  %v8597 = vadd.f32 0.0, %v8596
  %v8598 = vpop.f32.mrb[0].mxu0
  %v8599 = vpop.f32.mrb[0].mxu0
  %v8600 = vadd.f32 0.0, %v8599
  %v8601 = vpop.f32.mrb[0].mxu0
  %8602 = vmatprep.mubr.bf16.mxu0 0
  %8603 = vmatmul.mubr.bf16.gmra.mrb[0].mxu0 %v8326
  %v8604 = vpop.f32.mrb[0].mxu0
  %v8605 = vadd.f32 0.0, %v8604
  %v8606 = vpop.f32.mrb[0].mxu0
  %v8607 = vpop.f32.mrb[0].mxu0
  %v8608 = vadd.f32 0.0, %v8607
  %v8609 = vpop.f32.mrb[0].mxu0
  %8610 = vmatprep.mubr.bf16.mxu0 0
  %8611 = vmatmul.mubr.bf16.gmra.mrb[0].mxu0 %v8327
  %v8612 = vpop.f32.mrb[0].mxu0
  %v8613 = vadd.f32 0.0, %v8612
  %v8614 = vpop.f32.mrb[0].mxu0
  %v8615 = vpop.f32.mrb[0].mxu0
  %v8616 = vadd.f32 0.0, %v8615
  %v8617 = vpop.f32.mrb[0].mxu0
  %8618 = vmatprep.mubr.bf16.mxu0 0
  %8619 = vmatmul.mubr.bf16.gmra.mrb[0].mxu0 %v8328
  %v8620 = vpop.f32.mrb[0].mxu0
  %v8621 = vadd.f32 0.0, %v8620
  %v8622 = vpop.f32.mrb[0].mxu0
  %v8623 = vpop.f32.mrb[0].mxu0
  %v8624 = vadd.f32 0.0, %v8623
  %v8625 = vpop.f32.mrb[0].mxu0
  %8626 = vmatprep.mubr.bf16.mxu0 0
  %8627 = vmatmul.mubr.bf16.gmra.mrb[0].mxu0 %v8329
  %v8628 = vpop.f32.mrb[0].mxu0
  %v8629 = vadd.f32 0.0, %v8628
  %v8630 = vpop.f32.mrb[0].mxu0
  %v8631 = vpop.f32.mrb[0].mxu0
  %v8632 = vadd.f32 0.0, %v8631
  %v8633 = vpop.f32.mrb[0].mxu0
  %8634 = vmatprep.mubr.bf16.mxu0 0
  %8635 = vmatmul.mubr.bf16.gmra.mrb[0].mxu0 %v8330
  %v8636 = vpop.f32.mrb[0].mxu0
  %v8637 = vadd.f32 0.0, %v8636
  %v8638 = vpop.f32.mrb[0].mxu0
  %v8639 = vpop.f32.mrb[0].mxu0
  %v8640 = vadd.f32 0.0, %v8639
  %v8641 = vpop.f32.mrb[0].mxu0
  %8642 = vmatprep.mubr.bf16.mxu0 0
  %8643 = vmatmul.mubr.bf16.gmra.mrb[0].mxu0 %v8331
  %v8644 = vpop.f32.mrb[0].mxu0
  %v8645 = vadd.f32 0.0, %v8644
  %v8646 = vpop.f32.mrb[0].mxu0
  %v8647 = vpop.f32.mrb[0].mxu0
  %v8648 = vadd.f32 0.0, %v8647
  %v8649 = vpop.f32.mrb[0].mxu0
  %8650 = vmatprep.mubr.bf16.mxu0 0
  %8651 = vmatmul.mubr.bf16.gmra.mrb[0].mxu0 %v8332
  %v8652 = vpop.f32.mrb[0].mxu0
  %v8653 = vadd.f32 0.0, %v8652
  %v8654 = vpop.f32.mrb[0].mxu0
  %v8655 = vpop.f32.mrb[0].mxu0
  %v8656 = vadd.f32 0.0, %v8655
  %v8657 = vpop.f32.mrb[0].mxu0
  %8658 = vmatprep.mubr.bf16.mxu0 0
  %8659 = vmatmul.mubr.bf16.gmra.mrb[0].mxu0 %v8333
  %v8660 = vpop.f32.mrb[0].mxu0
  %v8661 = vadd.f32 0.0, %v8660
  %v8662 = vpop.f32.mrb[0].mxu0
  %v8663 = vpop.f32.mrb[0].mxu0
  %v8664 = vadd.f32 0.0, %v8663
  %v8665 = vpop.f32.mrb[0].mxu0
  %8666 = vmatprep.mubr.bf16.mxu0 0
  %8667 = vmatmul.mubr.bf16.gmra.mrb[0].mxu0 %v8334
  %v8668 = vpop.f32.mrb[0].mxu0
  %v8669 = vadd.f32 0.0, %v8668
  %v8670 = vpop.f32.mrb[0].mxu0
  %v8671 = vpop.f32.mrb[0].mxu0
  %v8672 = vadd.f32 0.0, %v8671
  %v8673 = vpop.f32.mrb[0].mxu0
  %8674 = vmatprep.mubr.bf16.mxu0 0
  %8675 = vmatmul.mubr.bf16.gmra.mrb[0].mxu0 %v8335
  %v8676 = vpop.f32.mrb[0].mxu0
  %v8677 = vadd.f32 0.0, %v8676
  %v8678 = vpop.f32.mrb[0].mxu0
  %v8679 = vpop.f32.mrb[0].mxu0
  %v8680 = vadd.f32 0.0, %v8679
  %v8681 = vpop.f32.mrb[0].mxu0
  %8682 = vmatprep.mubr.bf16.mxu0 0
  %8683 = vmatmul.mubr.bf16.gmra.mrb[0].mxu0 %v8336
  %v8684 = vpop.f32.mrb[0].mxu0
  %v8685 = vadd.f32 0.0, %v8684
  %v8686 = vpop.f32.mrb[0].mxu0
  %v8687 = vpop.f32.mrb[0].mxu0
  %v8688 = vadd.f32 0.0, %v8687
  %v8689 = vpop.f32.mrb[0].mxu0
  %8690 = vdwg.mxu0
  %v8691 = vadd.f32 %v8177, %v8437
  %v8692 = vadd.f32 %v8178, %v8440
  %v8693 = vadd.f32 %v8179, %v8445
  %v8694 = vadd.f32 %v8180, %v8448
  %v8695 = vadd.f32 %v8181, %v8453
  %v8696 = vadd.f32 %v8182, %v8456
  %v8697 = vadd.f32 %v8183, %v8461
  %v8698 = vadd.f32 %v8184, %v8464
  %v8699 = vadd.f32 %v8185, %v8469
  %v8700 = vadd.f32 %v8186, %v8472
  %v8701 = vadd.f32 %v8187, %v8477
  %v8702 = vadd.f32 %v8188, %v8480
  %v8703 = vadd.f32 %v8189, %v8485
  %v8704 = vadd.f32 %v8190, %v8488
  %v8705 = vadd.f32 %v8191, %v8493
  %v8706 = vadd.f32 %v8192, %v8496
  %v8707 = vadd.f32 %v8193, %v8501
  %v8708 = vadd.f32 %v8194, %v8504
  %v8709 = vadd.f32 %v8195, %v8509
  %v8710 = vadd.f32 %v8196, %v8512
  %v8711 = vadd.f32 %v8197, %v8517
  %v8712 = vadd.f32 %v8198, %v8520
  %v8713 = vadd.f32 %v8199, %v8525
  %v8714 = vadd.f32 %v8200, %v8528
  %v8715 = vadd.f32 %v8201, %v8533
  %v8716 = vadd.f32 %v8202, %v8536
  %v8717 = vadd.f32 %v8203, %v8541
  %v8718 = vadd.f32 %v8204, %v8544
  %v8719 = vadd.f32 %v8205, %v8549
  %v8720 = vadd.f32 %v8206, %v8552
  %v8721 = vadd.f32 %v8207, %v8557
  %v8722 = vadd.f32 %v8208, %v8560
  %v8723 = vadd.f32 %v8209, %v8565
  %v8724 = vadd.f32 %v8210, %v8568
  %v8725 = vadd.f32 %v8211, %v8573
  %v8726 = vadd.f32 %v8212, %v8576
  %v8727 = vadd.f32 %v8213, %v8581
  %v8728 = vadd.f32 %v8214, %v8584
  %v8729 = vadd.f32 %v8215, %v8589
  %v8730 = vadd.f32 %v8216, %v8592
  %v8731 = vadd.f32 %v8217, %v8597
  %v8732 = vadd.f32 %v8218, %v8600
  %v8733 = vadd.f32 %v8219, %v8605
  %v8734 = vadd.f32 %v8220, %v8608
  %v8735 = vadd.f32 %v8221, %v8613
  %v8736 = vadd.f32 %v8222, %v8616
  %v8737 = vadd.f32 %v8223, %v8621
  %v8738 = vadd.f32 %v8224, %v8624
  %v8739 = vadd.f32 %v8225, %v8629
  %v8740 = vadd.f32 %v8226, %v8632
  %v8741 = vadd.f32 %v8227, %v8637
  %v8742 = vadd.f32 %v8228, %v8640
  %v8743 = vadd.f32 %v8229, %v8645
  %v8744 = vadd.f32 %v8230, %v8648
  %v8745 = vadd.f32 %v8231, %v8653
  %v8746 = vadd.f32 %v8232, %v8656
  %v8747 = vadd.f32 %v8233, %v8661
  %v8748 = vadd.f32 %v8234, %v8664
  %v8749 = vadd.f32 %v8235, %v8669
  %v8750 = vadd.f32 %v8236, %v8672
  %v8751 = vadd.f32 %v8237, %v8677
  %v8752 = vadd.f32 %v8238, %v8680
  %v8753 = vadd.f32 %v8239, %v8685
  %v8754 = vadd.f32 %v8240, %v8688
  %v8755 = vld [vmem:[%s3200 + $0x8] sm:$0xff]
  %v8756 = vld [vmem:[%s3200 + $0x10] sm:$0xff]
  %v8757 = vld [vmem:[%s3200 + $0x28] sm:$0xff]
  %v8758 = vld [vmem:[%s3200 + $0x30] sm:$0xff]
  %v8759 = vld [vmem:[%s3200 + $0x48] sm:$0xff]
  %v8760 = vld [vmem:[%s3200 + $0x50] sm:$0xff]
  %v8761 = vld [vmem:[%s3200 + $0x68] sm:$0xff]
  %v8762 = vld [vmem:[%s3200 + $0x70] sm:$0xff]
  %v8763 = vld [vmem:[%s3200 + $0x88] sm:$0xff]
  %v8764 = vld [vmem:[%s3200 + $0x90] sm:$0xff]
  %v8765 = vld [vmem:[%s3200 + $0xa8] sm:$0xff]
  %v8766 = vld [vmem:[%s3200 + $0xb0] sm:$0xff]
  %v8767 = vld [vmem:[%s3200 + $0xc8] sm:$0xff]
  %v8768 = vld [vmem:[%s3200 + $0xd0] sm:$0xff]
  %v8769 = vld [vmem:[%s3200 + $0xe8] sm:$0xff]
  %v8770 = vld [vmem:[%s3200 + $0xf0] sm:$0xff]
  %v8771 = vld [vmem:[%s3200 + $0x108] sm:$0xff]
  %v8772 = vld [vmem:[%s3200 + $0x110] sm:$0xff]
  %v8773 = vld [vmem:[%s3200 + $0x128] sm:$0xff]
  %v8774 = vld [vmem:[%s3200 + $0x130] sm:$0xff]
  %v8775 = vld [vmem:[%s3200 + $0x148] sm:$0xff]
  %v8776 = vld [vmem:[%s3200 + $0x150] sm:$0xff]
  %v8777 = vld [vmem:[%s3200 + $0x168] sm:$0xff]
  %v8778 = vld [vmem:[%s3200 + $0x170] sm:$0xff]
  %v8779 = vld [vmem:[%s3200 + $0x188] sm:$0xff]
  %v8780 = vld [vmem:[%s3200 + $0x190] sm:$0xff]
  %v8781 = vld [vmem:[%s3200 + $0x1a8] sm:$0xff]
  %v8782 = vld [vmem:[%s3200 + $0x1b0] sm:$0xff]
  %v8783 = vld [vmem:[%s3200 + $0x1c8] sm:$0xff]
  %v8784 = vld [vmem:[%s3200 + $0x1d0] sm:$0xff]
  %v8785 = vld [vmem:[%s3200 + $0x1e8] sm:$0xff]
  %v8786 = vld [vmem:[%s3200 + $0x1f0] sm:$0xff]
  %v8787 = vld [vmem:[%s3200 + $0x248] sm:$0xff]
  %v8788 = vld [vmem:[%s3200 + $0x250] sm:$0xff]
  %v8789 = vld [vmem:[%s3200 + $0x268] sm:$0xff]
  %v8790 = vld [vmem:[%s3200 + $0x270] sm:$0xff]
  %v8791 = vld [vmem:[%s3200 + $0x288] sm:$0xff]
  %v8792 = vld [vmem:[%s3200 + $0x290] sm:$0xff]
  %v8793 = vld [vmem:[%s3200 + $0x2a8] sm:$0xff]
  %v8794 = vld [vmem:[%s3200 + $0x2b0] sm:$0xff]
  %v8795 = vld [vmem:[%s3200 + $0x2c8] sm:$0xff]
  %v8796 = vld [vmem:[%s3200 + $0x2d0] sm:$0xff]
  %v8797 = vld [vmem:[%s3200 + $0x2e8] sm:$0xff]
  %v8798 = vld [vmem:[%s3200 + $0x2f0] sm:$0xff]
  %v8799 = vld [vmem:[%s3200 + $0x308] sm:$0xff]
  %v8800 = vld [vmem:[%s3200 + $0x310] sm:$0xff]
  %v8801 = vld [vmem:[%s3200 + $0x328] sm:$0xff]
  %v8802 = vld [vmem:[%s3200 + $0x330] sm:$0xff]
  %v8803 = vld [vmem:[%s3200 + $0x348] sm:$0xff]
  %v8804 = vld [vmem:[%s3200 + $0x350] sm:$0xff]
  %v8805 = vld [vmem:[%s3200 + $0x368] sm:$0xff]
  %v8806 = vld [vmem:[%s3200 + $0x370] sm:$0xff]
  %v8807 = vld [vmem:[%s3200 + $0x388] sm:$0xff]
  %v8808 = vld [vmem:[%s3200 + $0x390] sm:$0xff]
  %v8809 = vld [vmem:[%s3200 + $0x3a8] sm:$0xff]
  %v8810 = vld [vmem:[%s3200 + $0x3b0] sm:$0xff]
  %v8811 = vld [vmem:[%s3200 + $0x3c8] sm:$0xff]
  %v8812 = vld [vmem:[%s3200 + $0x3d0] sm:$0xff]
  %v8813 = vld [vmem:[%s3200 + $0x3e8] sm:$0xff]
  %v8814 = vld [vmem:[%s3200 + $0x3f0] sm:$0xff]
  %v8815 = vld [vmem:[%s3200 + $0x408] sm:$0xff]
  %v8816 = vld [vmem:[%s3200 + $0x410] sm:$0xff]
  %v8817 = vld [vmem:[%s3200 + $0x428] sm:$0xff]
  %v8818 = vld [vmem:[%s3200 + $0x430] sm:$0xff]
  %v8819 = vpack.c.bf16 %v8756, %v8755
  %v8820 = vpack.c.bf16 %v8758, %v8757
  %v8821 = vpack.c.bf16 %v8760, %v8759
  %v8822 = vpack.c.bf16 %v8762, %v8761
  %v8823 = vpack.c.bf16 %v8764, %v8763
  %v8824 = vpack.c.bf16 %v8766, %v8765
  %v8825 = vpack.c.bf16 %v8768, %v8767
  %v8826 = vpack.c.bf16 %v8770, %v8769
  %v8827 = vpack.c.bf16 %v8772, %v8771
  %v8828 = vpack.c.bf16 %v8774, %v8773
  %v8829 = vpack.c.bf16 %v8776, %v8775
  %v8830 = vpack.c.bf16 %v8778, %v8777
  %v8831 = vpack.c.bf16 %v8780, %v8779
  %v8832 = vpack.c.bf16 %v8782, %v8781
  %v8833 = vpack.c.bf16 %v8784, %v8783
  %v8834 = vpack.c.bf16 %v8786, %v8785
  %v8835 = vpack.c.bf16 %v8788, %v8787
  %v8836 = vpack.c.bf16 %v8790, %v8789
  %v8837 = vpack.c.bf16 %v8792, %v8791
  %v8838 = vpack.c.bf16 %v8794, %v8793
  %v8839 = vpack.c.bf16 %v8796, %v8795
  %v8840 = vpack.c.bf16 %v8798, %v8797
  %v8841 = vpack.c.bf16 %v8800, %v8799
  %v8842 = vpack.c.bf16 %v8802, %v8801
  %v8843 = vpack.c.bf16 %v8804, %v8803
  %v8844 = vpack.c.bf16 %v8806, %v8805
  %v8845 = vpack.c.bf16 %v8808, %v8807
  %v8846 = vpack.c.bf16 %v8810, %v8809
  %v8847 = vpack.c.bf16 %v8812, %v8811
  %v8848 = vpack.c.bf16 %v8814, %v8813
  %v8849 = vpack.c.bf16 %v8816, %v8815
  %v8850 = vpack.c.bf16 %v8818, %v8817
  %s8851 = scalar_lea.vmem %s4, 448
  %v8852 = vld [vmem:[%s8851] sm:$0xf]
  %v8853 = vld [vmem:[%s8851 + $0x4] sm:$0xf]
  %v8854 = vld [vmem:[%s8851 + $0x8] sm:$0xf]
  %v8855 = vld [vmem:[%s8851 + $0xc] sm:$0xf]
  %v8856 = vld [vmem:[%s8851 + $0x10] sm:$0xf]
  %v8857 = vld [vmem:[%s8851 + $0x14] sm:$0xf]
  %v8858 = vld [vmem:[%s8851 + $0x18] sm:$0xf]
  %v8859 = vld [vmem:[%s8851 + $0x1c] sm:$0xf]
  %v8860 = vld [vmem:[%s8851 + $0x20] sm:$0xf]
  %v8861 = vld [vmem:[%s8851 + $0x24] sm:$0xf]
  %v8862 = vld [vmem:[%s8851 + $0x28] sm:$0xf]
  %v8863 = vld [vmem:[%s8851 + $0x2c] sm:$0xf]
  %v8864 = vld [vmem:[%s8851 + $0x30] sm:$0xf]
  %v8865 = vld [vmem:[%s8851 + $0x34] sm:$0xf]
  %v8866 = vld [vmem:[%s8851 + $0x38] sm:$0xf]
  %v8867 = vld [vmem:[%s8851 + $0x3c] sm:$0xf]
  %v8884 = vunpack.c.l.b16 %v8852
  %v8885 = vunpack.c.l.b16 %v8853
  %v8886 = vunpack.c.l.b16 %v8854
  %v8887 = vunpack.c.l.b16 %v8855
  %v8888 = vunpack.c.l.b16 %v8856
  %v8889 = vunpack.c.l.b16 %v8857
  %v8890 = vunpack.c.l.b16 %v8858
  %v8891 = vunpack.c.l.b16 %v8859
  %v8892 = vunpack.c.l.b16 %v8860
  %v8893 = vunpack.c.l.b16 %v8861
  %v8894 = vunpack.c.l.b16 %v8862
  %v8895 = vunpack.c.l.b16 %v8863
  %v8896 = vunpack.c.l.b16 %v8864
  %v8897 = vunpack.c.l.b16 %v8865
  %v8898 = vunpack.c.l.b16 %v8866
  %v8899 = vunpack.c.l.b16 %v8867
  %v8900 = vpack.c.b16 %v8885, %v8884
  %v8901 = vpack.c.b16 %v8887, %v8886
  %v8902 = vpack.c.b16 %v8889, %v8888
  %v8903 = vpack.c.b16 %v8891, %v8890
  %v8904 = vpack.c.b16 %v8893, %v8892
  %v8905 = vpack.c.b16 %v8895, %v8894
  %v8906 = vpack.c.b16 %v8897, %v8896
  %v8907 = vpack.c.b16 %v8899, %v8898
  %8916 = vmatprep.subr.bf16.mxu0 0
  %8917 = vmatpush1.bf16.msra.mxu0 %v8900
  %8918 = vmatprep.subr.bf16.mxu0 0
  %8919 = vmatpush1.bf16.msra.mxu0 %v8901
  %8920 = vmatprep.subr.bf16.mxu0 0
  %8921 = vmatpush1.bf16.msra.mxu0 %v8902
  %8922 = vmatprep.subr.bf16.mxu0 0
  %8923 = vmatpush1.bf16.msra.mxu0 %v8903
  %8924 = vmatprep.subr.bf16.mxu0 0
  %8925 = vmatpush1.bf16.msra.mxu0 %v8904
  %8926 = vmatprep.subr.bf16.mxu0 0
  %8927 = vmatpush1.bf16.msra.mxu0 %v8905
  %8928 = vmatprep.subr.bf16.mxu0 0
  %8929 = vmatpush1.bf16.msra.mxu0 %v8906
  %8930 = vmatprep.subr.bf16.mxu0 0
  %8931 = vmatpush1.bf16.msra.mxu0 %v8907
  %8932 = vmatprep.subr.bf16.mxu0 0
  %8933 = vmatpush1.bf16.msra.mxu0 0
  %8934 = vmatprep.subr.bf16.mxu0 0
  %8935 = vmatpush1.bf16.msra.mxu0 0
  %8936 = vmatprep.subr.bf16.mxu0 0
  %8937 = vmatpush1.bf16.msra.mxu0 0
  %8938 = vmatprep.subr.bf16.mxu0 0
  %8939 = vmatpush1.bf16.msra.mxu0 0
  %8940 = vmatprep.subr.bf16.mxu0 0
  %8941 = vmatpush1.bf16.msra.mxu0 0
  %8942 = vmatprep.subr.bf16.mxu0 0
  %8943 = vmatpush1.bf16.msra.mxu0 0
  %8944 = vmatprep.subr.bf16.mxu0 0
  %8945 = vmatpush1.bf16.msra.mxu0 0
  %8946 = vmatprep.subr.bf16.mxu0 0
  %8947 = vmatpush1.bf16.msra.mxu0 0
  %8948 = vmatprep.mubr.bf16.mxu0 0
  %8949 = vmatmul.mubr.bf16.gmra.mrb[0].mxu0 %v8819
  %v8950 = vpop.f32.mrb[0].mxu0
  %v8951 = vadd.f32 0.0, %v8950
  %v8952 = vpop.f32.mrb[0].mxu0
  %v8953 = vpop.f32.mrb[0].mxu0
  %v8954 = vadd.f32 0.0, %v8953
  %v8955 = vpop.f32.mrb[0].mxu0
  %8956 = vmatprep.mubr.bf16.mxu0 0
  %8957 = vmatmul.mubr.bf16.gmra.mrb[0].mxu0 %v8820
  %v8958 = vpop.f32.mrb[0].mxu0
  %v8959 = vadd.f32 0.0, %v8958
  %v8960 = vpop.f32.mrb[0].mxu0
  %v8961 = vpop.f32.mrb[0].mxu0
  %v8962 = vadd.f32 0.0, %v8961
  %v8963 = vpop.f32.mrb[0].mxu0
  %8964 = vmatprep.mubr.bf16.mxu0 0
  %8965 = vmatmul.mubr.bf16.gmra.mrb[0].mxu0 %v8821
  %v8966 = vpop.f32.mrb[0].mxu0
  %v8967 = vadd.f32 0.0, %v8966
  %v8968 = vpop.f32.mrb[0].mxu0
  %v8969 = vpop.f32.mrb[0].mxu0
  %v8970 = vadd.f32 0.0, %v8969
  %v8971 = vpop.f32.mrb[0].mxu0
  %8972 = vmatprep.mubr.bf16.mxu0 0
  %8973 = vmatmul.mubr.bf16.gmra.mrb[0].mxu0 %v8822
  %v8974 = vpop.f32.mrb[0].mxu0
  %v8975 = vadd.f32 0.0, %v8974
  %v8976 = vpop.f32.mrb[0].mxu0
  %v8977 = vpop.f32.mrb[0].mxu0
  %v8978 = vadd.f32 0.0, %v8977
  %v8979 = vpop.f32.mrb[0].mxu0
  %8980 = vmatprep.mubr.bf16.mxu0 0
  %8981 = vmatmul.mubr.bf16.gmra.mrb[0].mxu0 %v8823
  %v8982 = vpop.f32.mrb[0].mxu0
  %v8983 = vadd.f32 0.0, %v8982
  %v8984 = vpop.f32.mrb[0].mxu0
  %v8985 = vpop.f32.mrb[0].mxu0
  %v8986 = vadd.f32 0.0, %v8985
  %v8987 = vpop.f32.mrb[0].mxu0
  %8988 = vmatprep.mubr.bf16.mxu0 0
  %8989 = vmatmul.mubr.bf16.gmra.mrb[0].mxu0 %v8824
  %v8990 = vpop.f32.mrb[0].mxu0
  %v8991 = vadd.f32 0.0, %v8990
  %v8992 = vpop.f32.mrb[0].mxu0
  %v8993 = vpop.f32.mrb[0].mxu0
  %v8994 = vadd.f32 0.0, %v8993
  %v8995 = vpop.f32.mrb[0].mxu0
  %8996 = vmatprep.mubr.bf16.mxu0 0
  %8997 = vmatmul.mubr.bf16.gmra.mrb[0].mxu0 %v8825
  %v8998 = vpop.f32.mrb[0].mxu0
  %v8999 = vadd.f32 0.0, %v8998
  %v9000 = vpop.f32.mrb[0].mxu0
  %v9001 = vpop.f32.mrb[0].mxu0
  %v9002 = vadd.f32 0.0, %v9001
  %v9003 = vpop.f32.mrb[0].mxu0
  %9004 = vmatprep.mubr.bf16.mxu0 0
  %9005 = vmatmul.mubr.bf16.gmra.mrb[0].mxu0 %v8826
  %v9006 = vpop.f32.mrb[0].mxu0
  %v9007 = vadd.f32 0.0, %v9006
  %v9008 = vpop.f32.mrb[0].mxu0
  %v9009 = vpop.f32.mrb[0].mxu0
  %v9010 = vadd.f32 0.0, %v9009
  %v9011 = vpop.f32.mrb[0].mxu0
  %9012 = vmatprep.mubr.bf16.mxu0 0
  %9013 = vmatmul.mubr.bf16.gmra.mrb[0].mxu0 %v8827
  %v9014 = vpop.f32.mrb[0].mxu0
  %v9015 = vadd.f32 0.0, %v9014
  %v9016 = vpop.f32.mrb[0].mxu0
  %v9017 = vpop.f32.mrb[0].mxu0
  %v9018 = vadd.f32 0.0, %v9017
  %v9019 = vpop.f32.mrb[0].mxu0
  %9020 = vmatprep.mubr.bf16.mxu0 0
  %9021 = vmatmul.mubr.bf16.gmra.mrb[0].mxu0 %v8828
  %v9022 = vpop.f32.mrb[0].mxu0
  %v9023 = vadd.f32 0.0, %v9022
  %v9024 = vpop.f32.mrb[0].mxu0
  %v9025 = vpop.f32.mrb[0].mxu0
  %v9026 = vadd.f32 0.0, %v9025
  %v9027 = vpop.f32.mrb[0].mxu0
  %9028 = vmatprep.mubr.bf16.mxu0 0
  %9029 = vmatmul.mubr.bf16.gmra.mrb[0].mxu0 %v8829
  %v9030 = vpop.f32.mrb[0].mxu0
  %v9031 = vadd.f32 0.0, %v9030
  %v9032 = vpop.f32.mrb[0].mxu0
  %v9033 = vpop.f32.mrb[0].mxu0
  %v9034 = vadd.f32 0.0, %v9033
  %v9035 = vpop.f32.mrb[0].mxu0
  %9036 = vmatprep.mubr.bf16.mxu0 0
  %9037 = vmatmul.mubr.bf16.gmra.mrb[0].mxu0 %v8830
  %v9038 = vpop.f32.mrb[0].mxu0
  %v9039 = vadd.f32 0.0, %v9038
  %v9040 = vpop.f32.mrb[0].mxu0
  %v9041 = vpop.f32.mrb[0].mxu0
  %v9042 = vadd.f32 0.0, %v9041
  %v9043 = vpop.f32.mrb[0].mxu0
  %9044 = vmatprep.mubr.bf16.mxu0 0
  %9045 = vmatmul.mubr.bf16.gmra.mrb[0].mxu0 %v8831
  %v9046 = vpop.f32.mrb[0].mxu0
  %v9047 = vadd.f32 0.0, %v9046
  %v9048 = vpop.f32.mrb[0].mxu0
  %v9049 = vpop.f32.mrb[0].mxu0
  %v9050 = vadd.f32 0.0, %v9049
  %v9051 = vpop.f32.mrb[0].mxu0
  %9052 = vmatprep.mubr.bf16.mxu0 0
  %9053 = vmatmul.mubr.bf16.gmra.mrb[0].mxu0 %v8832
  %v9054 = vpop.f32.mrb[0].mxu0
  %v9055 = vadd.f32 0.0, %v9054
  %v9056 = vpop.f32.mrb[0].mxu0
  %v9057 = vpop.f32.mrb[0].mxu0
  %v9058 = vadd.f32 0.0, %v9057
  %v9059 = vpop.f32.mrb[0].mxu0
  %9060 = vmatprep.mubr.bf16.mxu0 0
  %9061 = vmatmul.mubr.bf16.gmra.mrb[0].mxu0 %v8833
  %v9062 = vpop.f32.mrb[0].mxu0
  %v9063 = vadd.f32 0.0, %v9062
  %v9064 = vpop.f32.mrb[0].mxu0
  %v9065 = vpop.f32.mrb[0].mxu0
  %v9066 = vadd.f32 0.0, %v9065
  %v9067 = vpop.f32.mrb[0].mxu0
  %9068 = vmatprep.mubr.bf16.mxu0 0
  %9069 = vmatmul.mubr.bf16.gmra.mrb[0].mxu0 %v8834
  %v9070 = vpop.f32.mrb[0].mxu0
  %v9071 = vadd.f32 0.0, %v9070
  %v9072 = vpop.f32.mrb[0].mxu0
  %v9073 = vpop.f32.mrb[0].mxu0
  %v9074 = vadd.f32 0.0, %v9073
  %v9075 = vpop.f32.mrb[0].mxu0
  %9076 = vmatprep.mubr.bf16.mxu0 0
  %9077 = vmatmul.mubr.bf16.gmra.mrb[0].mxu0 %v8835
  %v9078 = vpop.f32.mrb[0].mxu0
  %v9079 = vadd.f32 0.0, %v9078
  %v9080 = vpop.f32.mrb[0].mxu0
  %v9081 = vpop.f32.mrb[0].mxu0
  %v9082 = vadd.f32 0.0, %v9081
  %v9083 = vpop.f32.mrb[0].mxu0
  %9084 = vmatprep.mubr.bf16.mxu0 0
  %9085 = vmatmul.mubr.bf16.gmra.mrb[0].mxu0 %v8836
  %v9086 = vpop.f32.mrb[0].mxu0
  %v9087 = vadd.f32 0.0, %v9086
  %v9088 = vpop.f32.mrb[0].mxu0
  %v9089 = vpop.f32.mrb[0].mxu0
  %v9090 = vadd.f32 0.0, %v9089
  %v9091 = vpop.f32.mrb[0].mxu0
  %9092 = vmatprep.mubr.bf16.mxu0 0
  %9093 = vmatmul.mubr.bf16.gmra.mrb[0].mxu0 %v8837
  %v9094 = vpop.f32.mrb[0].mxu0
  %v9095 = vadd.f32 0.0, %v9094
  %v9096 = vpop.f32.mrb[0].mxu0
  %v9097 = vpop.f32.mrb[0].mxu0
  %v9098 = vadd.f32 0.0, %v9097
  %v9099 = vpop.f32.mrb[0].mxu0
  %9100 = vmatprep.mubr.bf16.mxu0 0
  %9101 = vmatmul.mubr.bf16.gmra.mrb[0].mxu0 %v8838
  %v9102 = vpop.f32.mrb[0].mxu0
  %v9103 = vadd.f32 0.0, %v9102
  %v9104 = vpop.f32.mrb[0].mxu0
  %v9105 = vpop.f32.mrb[0].mxu0
  %v9106 = vadd.f32 0.0, %v9105
  %v9107 = vpop.f32.mrb[0].mxu0
  %9108 = vmatprep.mubr.bf16.mxu0 0
  %9109 = vmatmul.mubr.bf16.gmra.mrb[0].mxu0 %v8839
  %v9110 = vpop.f32.mrb[0].mxu0
  %v9111 = vadd.f32 0.0, %v9110
  %v9112 = vpop.f32.mrb[0].mxu0
  %v9113 = vpop.f32.mrb[0].mxu0
  %v9114 = vadd.f32 0.0, %v9113
  %v9115 = vpop.f32.mrb[0].mxu0
  %9116 = vmatprep.mubr.bf16.mxu0 0
  %9117 = vmatmul.mubr.bf16.gmra.mrb[0].mxu0 %v8840
  %v9118 = vpop.f32.mrb[0].mxu0
  %v9119 = vadd.f32 0.0, %v9118
  %v9120 = vpop.f32.mrb[0].mxu0
  %v9121 = vpop.f32.mrb[0].mxu0
  %v9122 = vadd.f32 0.0, %v9121
  %v9123 = vpop.f32.mrb[0].mxu0
  %9124 = vmatprep.mubr.bf16.mxu0 0
  %9125 = vmatmul.mubr.bf16.gmra.mrb[0].mxu0 %v8841
  %v9126 = vpop.f32.mrb[0].mxu0
  %v9127 = vadd.f32 0.0, %v9126
  %v9128 = vpop.f32.mrb[0].mxu0
  %v9129 = vpop.f32.mrb[0].mxu0
  %v9130 = vadd.f32 0.0, %v9129
  %v9131 = vpop.f32.mrb[0].mxu0
  %9132 = vmatprep.mubr.bf16.mxu0 0
  %9133 = vmatmul.mubr.bf16.gmra.mrb[0].mxu0 %v8842
  %v9134 = vpop.f32.mrb[0].mxu0
  %v9135 = vadd.f32 0.0, %v9134
  %v9136 = vpop.f32.mrb[0].mxu0
  %v9137 = vpop.f32.mrb[0].mxu0
  %v9138 = vadd.f32 0.0, %v9137
  %v9139 = vpop.f32.mrb[0].mxu0
  %9140 = vmatprep.mubr.bf16.mxu0 0
  %9141 = vmatmul.mubr.bf16.gmra.mrb[0].mxu0 %v8843
  %v9142 = vpop.f32.mrb[0].mxu0
  %v9143 = vadd.f32 0.0, %v9142
  %v9144 = vpop.f32.mrb[0].mxu0
  %v9145 = vpop.f32.mrb[0].mxu0
  %v9146 = vadd.f32 0.0, %v9145
  %v9147 = vpop.f32.mrb[0].mxu0
  %9148 = vmatprep.mubr.bf16.mxu0 0
  %9149 = vmatmul.mubr.bf16.gmra.mrb[0].mxu0 %v8844
  %v9150 = vpop.f32.mrb[0].mxu0
  %v9151 = vadd.f32 0.0, %v9150
  %v9152 = vpop.f32.mrb[0].mxu0
  %v9153 = vpop.f32.mrb[0].mxu0
  %v9154 = vadd.f32 0.0, %v9153
  %v9155 = vpop.f32.mrb[0].mxu0
  %9156 = vmatprep.mubr.bf16.mxu0 0
  %9157 = vmatmul.mubr.bf16.gmra.mrb[0].mxu0 %v8845
  %v9158 = vpop.f32.mrb[0].mxu0
  %v9159 = vadd.f32 0.0, %v9158
  %v9160 = vpop.f32.mrb[0].mxu0
  %v9161 = vpop.f32.mrb[0].mxu0
  %v9162 = vadd.f32 0.0, %v9161
  %v9163 = vpop.f32.mrb[0].mxu0
  %9164 = vmatprep.mubr.bf16.mxu0 0
  %9165 = vmatmul.mubr.bf16.gmra.mrb[0].mxu0 %v8846
  %v9166 = vpop.f32.mrb[0].mxu0
  %v9167 = vadd.f32 0.0, %v9166
  %v9168 = vpop.f32.mrb[0].mxu0
  %v9169 = vpop.f32.mrb[0].mxu0
  %v9170 = vadd.f32 0.0, %v9169
  %v9171 = vpop.f32.mrb[0].mxu0
  %9172 = vmatprep.mubr.bf16.mxu0 0
  %9173 = vmatmul.mubr.bf16.gmra.mrb[0].mxu0 %v8847
  %v9174 = vpop.f32.mrb[0].mxu0
  %v9175 = vadd.f32 0.0, %v9174
  %v9176 = vpop.f32.mrb[0].mxu0
  %v9177 = vpop.f32.mrb[0].mxu0
  %v9178 = vadd.f32 0.0, %v9177
  %v9179 = vpop.f32.mrb[0].mxu0
  %9180 = vmatprep.mubr.bf16.mxu0 0
  %9181 = vmatmul.mubr.bf16.gmra.mrb[0].mxu0 %v8848
  %v9182 = vpop.f32.mrb[0].mxu0
  %v9183 = vadd.f32 0.0, %v9182
  %v9184 = vpop.f32.mrb[0].mxu0
  %v9185 = vpop.f32.mrb[0].mxu0
  %v9186 = vadd.f32 0.0, %v9185
  %v9187 = vpop.f32.mrb[0].mxu0
  %9188 = vmatprep.mubr.bf16.mxu0 0
  %9189 = vmatmul.mubr.bf16.gmra.mrb[0].mxu0 %v8849
  %v9190 = vpop.f32.mrb[0].mxu0
  %v9191 = vadd.f32 0.0, %v9190
  %v9192 = vpop.f32.mrb[0].mxu0
  %v9193 = vpop.f32.mrb[0].mxu0
  %v9194 = vadd.f32 0.0, %v9193
  %v9195 = vpop.f32.mrb[0].mxu0
  %9196 = vmatprep.mubr.bf16.mxu0 0
  %9197 = vmatmul.mubr.bf16.gmra.mrb[0].mxu0 %v8850
  %v9198 = vpop.f32.mrb[0].mxu0
  %v9199 = vadd.f32 0.0, %v9198
  %v9200 = vpop.f32.mrb[0].mxu0
  %v9201 = vpop.f32.mrb[0].mxu0
  %v9202 = vadd.f32 0.0, %v9201
  %v9203 = vpop.f32.mrb[0].mxu0
  %9204 = vdwg.mxu0
  %v9205 = vadd.f32 %v8691, %v8951
  %v9206 = vadd.f32 %v8692, %v8954
  %v9207 = vadd.f32 %v8693, %v8959
  %v9208 = vadd.f32 %v8694, %v8962
  %v9209 = vadd.f32 %v8695, %v8967
  %v9210 = vadd.f32 %v8696, %v8970
  %v9211 = vadd.f32 %v8697, %v8975
  %v9212 = vadd.f32 %v8698, %v8978
  %v9213 = vadd.f32 %v8699, %v8983
  %v9214 = vadd.f32 %v8700, %v8986
  %v9215 = vadd.f32 %v8701, %v8991
  %v9216 = vadd.f32 %v8702, %v8994
  %v9217 = vadd.f32 %v8703, %v8999
  %v9218 = vadd.f32 %v8704, %v9002
  %v9219 = vadd.f32 %v8705, %v9007
  %v9220 = vadd.f32 %v8706, %v9010
  %v9221 = vadd.f32 %v8707, %v9015
  %v9222 = vadd.f32 %v8708, %v9018
  %v9223 = vadd.f32 %v8709, %v9023
  %v9224 = vadd.f32 %v8710, %v9026
  %v9225 = vadd.f32 %v8711, %v9031
  %v9226 = vadd.f32 %v8712, %v9034
  %v9227 = vadd.f32 %v8713, %v9039
  %v9228 = vadd.f32 %v8714, %v9042
  %v9229 = vadd.f32 %v8715, %v9047
  %v9230 = vadd.f32 %v8716, %v9050
  %v9231 = vadd.f32 %v8717, %v9055
  %v9232 = vadd.f32 %v8718, %v9058
  %v9233 = vadd.f32 %v8719, %v9063
  %v9234 = vadd.f32 %v8720, %v9066
  %v9235 = vadd.f32 %v8721, %v9071
  %v9236 = vadd.f32 %v8722, %v9074
  %v9237 = vadd.f32 %v8723, %v9079
  %v9238 = vadd.f32 %v8724, %v9082
  %v9239 = vadd.f32 %v8725, %v9087
  %v9240 = vadd.f32 %v8726, %v9090
  %v9241 = vadd.f32 %v8727, %v9095
  %v9242 = vadd.f32 %v8728, %v9098
  %v9243 = vadd.f32 %v8729, %v9103
  %v9244 = vadd.f32 %v8730, %v9106
  %v9245 = vadd.f32 %v8731, %v9111
  %v9246 = vadd.f32 %v8732, %v9114
  %v9247 = vadd.f32 %v8733, %v9119
  %v9248 = vadd.f32 %v8734, %v9122
  %v9249 = vadd.f32 %v8735, %v9127
  %v9250 = vadd.f32 %v8736, %v9130
  %v9251 = vadd.f32 %v8737, %v9135
  %v9252 = vadd.f32 %v8738, %v9138
  %v9253 = vadd.f32 %v8739, %v9143
  %v9254 = vadd.f32 %v8740, %v9146
  %v9255 = vadd.f32 %v8741, %v9151
  %v9256 = vadd.f32 %v8742, %v9154
  %v9257 = vadd.f32 %v8743, %v9159
  %v9258 = vadd.f32 %v8744, %v9162
  %v9259 = vadd.f32 %v8745, %v9167
  %v9260 = vadd.f32 %v8746, %v9170
  %v9261 = vadd.f32 %v8747, %v9175
  %v9262 = vadd.f32 %v8748, %v9178
  %v9263 = vadd.f32 %v8749, %v9183
  %v9264 = vadd.f32 %v8750, %v9186
  %v9265 = vadd.f32 %v8751, %v9191
  %v9266 = vadd.f32 %v8752, %v9194
  %v9267 = vadd.f32 %v8753, %v9199
  %v9268 = vadd.f32 %v8754, %v9202
  %v9269 = vld [vmem:[%s3200 + $0x9] sm:$0xff]
  %v9270 = vld [vmem:[%s3200 + $0x11] sm:$0xff]
  %v9271 = vld [vmem:[%s3200 + $0x29] sm:$0xff]
  %v9272 = vld [vmem:[%s3200 + $0x31] sm:$0xff]
  %v9273 = vld [vmem:[%s3200 + $0x49] sm:$0xff]
  %v9274 = vld [vmem:[%s3200 + $0x51] sm:$0xff]
  %v9275 = vld [vmem:[%s3200 + $0x69] sm:$0xff]
  %v9276 = vld [vmem:[%s3200 + $0x71] sm:$0xff]
  %v9277 = vld [vmem:[%s3200 + $0x89] sm:$0xff]
  %v9278 = vld [vmem:[%s3200 + $0x91] sm:$0xff]
  %v9279 = vld [vmem:[%s3200 + $0xa9] sm:$0xff]
  %v9280 = vld [vmem:[%s3200 + $0xb1] sm:$0xff]
  %v9281 = vld [vmem:[%s3200 + $0xc9] sm:$0xff]
  %v9282 = vld [vmem:[%s3200 + $0xd1] sm:$0xff]
  %v9283 = vld [vmem:[%s3200 + $0xe9] sm:$0xff]
  %v9284 = vld [vmem:[%s3200 + $0xf1] sm:$0xff]
  %v9285 = vld [vmem:[%s3200 + $0x109] sm:$0xff]
  %v9286 = vld [vmem:[%s3200 + $0x111] sm:$0xff]
  %v9287 = vld [vmem:[%s3200 + $0x129] sm:$0xff]
  %v9288 = vld [vmem:[%s3200 + $0x131] sm:$0xff]
  %v9289 = vld [vmem:[%s3200 + $0x149] sm:$0xff]
  %v9290 = vld [vmem:[%s3200 + $0x151] sm:$0xff]
  %v9291 = vld [vmem:[%s3200 + $0x169] sm:$0xff]
  %v9292 = vld [vmem:[%s3200 + $0x171] sm:$0xff]
  %v9293 = vld [vmem:[%s3200 + $0x189] sm:$0xff]
  %v9294 = vld [vmem:[%s3200 + $0x191] sm:$0xff]
  %v9295 = vld [vmem:[%s3200 + $0x1a9] sm:$0xff]
  %v9296 = vld [vmem:[%s3200 + $0x1b1] sm:$0xff]
  %v9297 = vld [vmem:[%s3200 + $0x1c9] sm:$0xff]
  %v9298 = vld [vmem:[%s3200 + $0x1d1] sm:$0xff]
  %v9299 = vld [vmem:[%s3200 + $0x1e9] sm:$0xff]
  %v9300 = vld [vmem:[%s3200 + $0x1f1] sm:$0xff]
  %v9301 = vld [vmem:[%s3200 + $0x249] sm:$0xff]
  %v9302 = vld [vmem:[%s3200 + $0x251] sm:$0xff]
  %v9303 = vld [vmem:[%s3200 + $0x269] sm:$0xff]
  %v9304 = vld [vmem:[%s3200 + $0x271] sm:$0xff]
  %v9305 = vld [vmem:[%s3200 + $0x289] sm:$0xff]
  %v9306 = vld [vmem:[%s3200 + $0x291] sm:$0xff]
  %v9307 = vld [vmem:[%s3200 + $0x2a9] sm:$0xff]
  %v9308 = vld [vmem:[%s3200 + $0x2b1] sm:$0xff]
  %v9309 = vld [vmem:[%s3200 + $0x2c9] sm:$0xff]
  %v9310 = vld [vmem:[%s3200 + $0x2d1] sm:$0xff]
  %v9311 = vld [vmem:[%s3200 + $0x2e9] sm:$0xff]
  %v9312 = vld [vmem:[%s3200 + $0x2f1] sm:$0xff]
  %v9313 = vld [vmem:[%s3200 + $0x309] sm:$0xff]
  %v9314 = vld [vmem:[%s3200 + $0x311] sm:$0xff]
  %v9315 = vld [vmem:[%s3200 + $0x329] sm:$0xff]
  %v9316 = vld [vmem:[%s3200 + $0x331] sm:$0xff]
  %v9317 = vld [vmem:[%s3200 + $0x349] sm:$0xff]
  %v9318 = vld [vmem:[%s3200 + $0x351] sm:$0xff]
  %v9319 = vld [vmem:[%s3200 + $0x369] sm:$0xff]
  %v9320 = vld [vmem:[%s3200 + $0x371] sm:$0xff]
  %v9321 = vld [vmem:[%s3200 + $0x389] sm:$0xff]
  %v9322 = vld [vmem:[%s3200 + $0x391] sm:$0xff]
  %v9323 = vld [vmem:[%s3200 + $0x3a9] sm:$0xff]
  %v9324 = vld [vmem:[%s3200 + $0x3b1] sm:$0xff]
  %v9325 = vld [vmem:[%s3200 + $0x3c9] sm:$0xff]
  %v9326 = vld [vmem:[%s3200 + $0x3d1] sm:$0xff]
  %v9327 = vld [vmem:[%s3200 + $0x3e9] sm:$0xff]
  %v9328 = vld [vmem:[%s3200 + $0x3f1] sm:$0xff]
  %v9329 = vld [vmem:[%s3200 + $0x409] sm:$0xff]
  %v9330 = vld [vmem:[%s3200 + $0x411] sm:$0xff]
  %v9331 = vld [vmem:[%s3200 + $0x429] sm:$0xff]
  %v9332 = vld [vmem:[%s3200 + $0x431] sm:$0xff]
  %v9333 = vpack.c.bf16 %v9270, %v9269
  %v9334 = vpack.c.bf16 %v9272, %v9271
  %v9335 = vpack.c.bf16 %v9274, %v9273
  %v9336 = vpack.c.bf16 %v9276, %v9275
  %v9337 = vpack.c.bf16 %v9278, %v9277
  %v9338 = vpack.c.bf16 %v9280, %v9279
  %v9339 = vpack.c.bf16 %v9282, %v9281
  %v9340 = vpack.c.bf16 %v9284, %v9283
  %v9341 = vpack.c.bf16 %v9286, %v9285
  %v9342 = vpack.c.bf16 %v9288, %v9287
  %v9343 = vpack.c.bf16 %v9290, %v9289
  %v9344 = vpack.c.bf16 %v9292, %v9291
  %v9345 = vpack.c.bf16 %v9294, %v9293
  %v9346 = vpack.c.bf16 %v9296, %v9295
  %v9347 = vpack.c.bf16 %v9298, %v9297
  %v9348 = vpack.c.bf16 %v9300, %v9299
  %v9349 = vpack.c.bf16 %v9302, %v9301
  %v9350 = vpack.c.bf16 %v9304, %v9303
  %v9351 = vpack.c.bf16 %v9306, %v9305
  %v9352 = vpack.c.bf16 %v9308, %v9307
  %v9353 = vpack.c.bf16 %v9310, %v9309
  %v9354 = vpack.c.bf16 %v9312, %v9311
  %v9355 = vpack.c.bf16 %v9314, %v9313
  %v9356 = vpack.c.bf16 %v9316, %v9315
  %v9357 = vpack.c.bf16 %v9318, %v9317
  %v9358 = vpack.c.bf16 %v9320, %v9319
  %v9359 = vpack.c.bf16 %v9322, %v9321
  %v9360 = vpack.c.bf16 %v9324, %v9323
  %v9361 = vpack.c.bf16 %v9326, %v9325
  %v9362 = vpack.c.bf16 %v9328, %v9327
  %v9363 = vpack.c.bf16 %v9330, %v9329
  %v9364 = vpack.c.bf16 %v9332, %v9331
  %s9365 = scalar_lea.vmem %s4, 512
  %v9366 = vld [vmem:[%s9365] sm:$0xf]
  %v9367 = vld [vmem:[%s9365 + $0x4] sm:$0xf]
  %v9368 = vld [vmem:[%s9365 + $0x8] sm:$0xf]
  %v9369 = vld [vmem:[%s9365 + $0xc] sm:$0xf]
  %v9370 = vld [vmem:[%s9365 + $0x10] sm:$0xf]
  %v9371 = vld [vmem:[%s9365 + $0x14] sm:$0xf]
  %v9372 = vld [vmem:[%s9365 + $0x18] sm:$0xf]
  %v9373 = vld [vmem:[%s9365 + $0x1c] sm:$0xf]
  %v9374 = vld [vmem:[%s9365 + $0x20] sm:$0xf]
  %v9375 = vld [vmem:[%s9365 + $0x24] sm:$0xf]
  %v9376 = vld [vmem:[%s9365 + $0x28] sm:$0xf]
  %v9377 = vld [vmem:[%s9365 + $0x2c] sm:$0xf]
  %v9378 = vld [vmem:[%s9365 + $0x30] sm:$0xf]
  %v9379 = vld [vmem:[%s9365 + $0x34] sm:$0xf]
  %v9380 = vld [vmem:[%s9365 + $0x38] sm:$0xf]
  %v9381 = vld [vmem:[%s9365 + $0x3c] sm:$0xf]
  %v9398 = vunpack.c.l.b16 %v9366
  %v9399 = vunpack.c.l.b16 %v9367
  %v9400 = vunpack.c.l.b16 %v9368
  %v9401 = vunpack.c.l.b16 %v9369
  %v9402 = vunpack.c.l.b16 %v9370
  %v9403 = vunpack.c.l.b16 %v9371
  %v9404 = vunpack.c.l.b16 %v9372
  %v9405 = vunpack.c.l.b16 %v9373
  %v9406 = vunpack.c.l.b16 %v9374
  %v9407 = vunpack.c.l.b16 %v9375
  %v9408 = vunpack.c.l.b16 %v9376
  %v9409 = vunpack.c.l.b16 %v9377
  %v9410 = vunpack.c.l.b16 %v9378
  %v9411 = vunpack.c.l.b16 %v9379
  %v9412 = vunpack.c.l.b16 %v9380
  %v9413 = vunpack.c.l.b16 %v9381
  %v9414 = vpack.c.b16 %v9399, %v9398
  %v9415 = vpack.c.b16 %v9401, %v9400
  %v9416 = vpack.c.b16 %v9403, %v9402
  %v9417 = vpack.c.b16 %v9405, %v9404
  %v9418 = vpack.c.b16 %v9407, %v9406
  %v9419 = vpack.c.b16 %v9409, %v9408
  %v9420 = vpack.c.b16 %v9411, %v9410
  %v9421 = vpack.c.b16 %v9413, %v9412
  %9430 = vmatprep.subr.bf16.mxu0 0
  %9431 = vmatpush1.bf16.msra.mxu0 %v9414
  %9432 = vmatprep.subr.bf16.mxu0 0
  %9433 = vmatpush1.bf16.msra.mxu0 %v9415
  %9434 = vmatprep.subr.bf16.mxu0 0
  %9435 = vmatpush1.bf16.msra.mxu0 %v9416
  %9436 = vmatprep.subr.bf16.mxu0 0
  %9437 = vmatpush1.bf16.msra.mxu0 %v9417
  %9438 = vmatprep.subr.bf16.mxu0 0
  %9439 = vmatpush1.bf16.msra.mxu0 %v9418
  %9440 = vmatprep.subr.bf16.mxu0 0
  %9441 = vmatpush1.bf16.msra.mxu0 %v9419
  %9442 = vmatprep.subr.bf16.mxu0 0
  %9443 = vmatpush1.bf16.msra.mxu0 %v9420
  %9444 = vmatprep.subr.bf16.mxu0 0
  %9445 = vmatpush1.bf16.msra.mxu0 %v9421
  %9446 = vmatprep.subr.bf16.mxu0 0
  %9447 = vmatpush1.bf16.msra.mxu0 0
  %9448 = vmatprep.subr.bf16.mxu0 0
  %9449 = vmatpush1.bf16.msra.mxu0 0
  %9450 = vmatprep.subr.bf16.mxu0 0
  %9451 = vmatpush1.bf16.msra.mxu0 0
  %9452 = vmatprep.subr.bf16.mxu0 0
  %9453 = vmatpush1.bf16.msra.mxu0 0
  %9454 = vmatprep.subr.bf16.mxu0 0
  %9455 = vmatpush1.bf16.msra.mxu0 0
  %9456 = vmatprep.subr.bf16.mxu0 0
  %9457 = vmatpush1.bf16.msra.mxu0 0
  %9458 = vmatprep.subr.bf16.mxu0 0
  %9459 = vmatpush1.bf16.msra.mxu0 0
  %9460 = vmatprep.subr.bf16.mxu0 0
  %9461 = vmatpush1.bf16.msra.mxu0 0
  %9462 = vmatprep.mubr.bf16.mxu0 0
  %9463 = vmatmul.mubr.bf16.gmra.mrb[0].mxu0 %v9333
  %v9464 = vpop.f32.mrb[0].mxu0
  %v9465 = vadd.f32 0.0, %v9464
  %v9466 = vpop.f32.mrb[0].mxu0
  %v9467 = vpop.f32.mrb[0].mxu0
  %v9468 = vadd.f32 0.0, %v9467
  %v9469 = vpop.f32.mrb[0].mxu0
  %9470 = vmatprep.mubr.bf16.mxu0 0
  %9471 = vmatmul.mubr.bf16.gmra.mrb[0].mxu0 %v9334
  %v9472 = vpop.f32.mrb[0].mxu0
  %v9473 = vadd.f32 0.0, %v9472
  %v9474 = vpop.f32.mrb[0].mxu0
  %v9475 = vpop.f32.mrb[0].mxu0
  %v9476 = vadd.f32 0.0, %v9475
  %v9477 = vpop.f32.mrb[0].mxu0
  %9478 = vmatprep.mubr.bf16.mxu0 0
  %9479 = vmatmul.mubr.bf16.gmra.mrb[0].mxu0 %v9335
  %v9480 = vpop.f32.mrb[0].mxu0
  %v9481 = vadd.f32 0.0, %v9480
  %v9482 = vpop.f32.mrb[0].mxu0
  %v9483 = vpop.f32.mrb[0].mxu0
  %v9484 = vadd.f32 0.0, %v9483
  %v9485 = vpop.f32.mrb[0].mxu0
  %9486 = vmatprep.mubr.bf16.mxu0 0
  %9487 = vmatmul.mubr.bf16.gmra.mrb[0].mxu0 %v9336
  %v9488 = vpop.f32.mrb[0].mxu0
  %v9489 = vadd.f32 0.0, %v9488
  %v9490 = vpop.f32.mrb[0].mxu0
  %v9491 = vpop.f32.mrb[0].mxu0
  %v9492 = vadd.f32 0.0, %v9491
  %v9493 = vpop.f32.mrb[0].mxu0
  %9494 = vmatprep.mubr.bf16.mxu0 0
  %9495 = vmatmul.mubr.bf16.gmra.mrb[0].mxu0 %v9337
  %v9496 = vpop.f32.mrb[0].mxu0
  %v9497 = vadd.f32 0.0, %v9496
  %v9498 = vpop.f32.mrb[0].mxu0
  %v9499 = vpop.f32.mrb[0].mxu0
  %v9500 = vadd.f32 0.0, %v9499
  %v9501 = vpop.f32.mrb[0].mxu0
  %9502 = vmatprep.mubr.bf16.mxu0 0
  %9503 = vmatmul.mubr.bf16.gmra.mrb[0].mxu0 %v9338
  %v9504 = vpop.f32.mrb[0].mxu0
  %v9505 = vadd.f32 0.0, %v9504
  %v9506 = vpop.f32.mrb[0].mxu0
  %v9507 = vpop.f32.mrb[0].mxu0
  %v9508 = vadd.f32 0.0, %v9507
  %v9509 = vpop.f32.mrb[0].mxu0
  %9510 = vmatprep.mubr.bf16.mxu0 0
  %9511 = vmatmul.mubr.bf16.gmra.mrb[0].mxu0 %v9339
  %v9512 = vpop.f32.mrb[0].mxu0
  %v9513 = vadd.f32 0.0, %v9512
  %v9514 = vpop.f32.mrb[0].mxu0
  %v9515 = vpop.f32.mrb[0].mxu0
  %v9516 = vadd.f32 0.0, %v9515
  %v9517 = vpop.f32.mrb[0].mxu0
  %9518 = vmatprep.mubr.bf16.mxu0 0
  %9519 = vmatmul.mubr.bf16.gmra.mrb[0].mxu0 %v9340
  %v9520 = vpop.f32.mrb[0].mxu0
  %v9521 = vadd.f32 0.0, %v9520
  %v9522 = vpop.f32.mrb[0].mxu0
  %v9523 = vpop.f32.mrb[0].mxu0
  %v9524 = vadd.f32 0.0, %v9523
  %v9525 = vpop.f32.mrb[0].mxu0
  %9526 = vmatprep.mubr.bf16.mxu0 0
  %9527 = vmatmul.mubr.bf16.gmra.mrb[0].mxu0 %v9341
  %v9528 = vpop.f32.mrb[0].mxu0
  %v9529 = vadd.f32 0.0, %v9528
  %v9530 = vpop.f32.mrb[0].mxu0
  %v9531 = vpop.f32.mrb[0].mxu0
  %v9532 = vadd.f32 0.0, %v9531
  %v9533 = vpop.f32.mrb[0].mxu0
  %9534 = vmatprep.mubr.bf16.mxu0 0
  %9535 = vmatmul.mubr.bf16.gmra.mrb[0].mxu0 %v9342
  %v9536 = vpop.f32.mrb[0].mxu0
  %v9537 = vadd.f32 0.0, %v9536
  %v9538 = vpop.f32.mrb[0].mxu0
  %v9539 = vpop.f32.mrb[0].mxu0
  %v9540 = vadd.f32 0.0, %v9539
  %v9541 = vpop.f32.mrb[0].mxu0
  %9542 = vmatprep.mubr.bf16.mxu0 0
  %9543 = vmatmul.mubr.bf16.gmra.mrb[0].mxu0 %v9343
  %v9544 = vpop.f32.mrb[0].mxu0
  %v9545 = vadd.f32 0.0, %v9544
  %v9546 = vpop.f32.mrb[0].mxu0
  %v9547 = vpop.f32.mrb[0].mxu0
  %v9548 = vadd.f32 0.0, %v9547
  %v9549 = vpop.f32.mrb[0].mxu0
  %9550 = vmatprep.mubr.bf16.mxu0 0
  %9551 = vmatmul.mubr.bf16.gmra.mrb[0].mxu0 %v9344
  %v9552 = vpop.f32.mrb[0].mxu0
  %v9553 = vadd.f32 0.0, %v9552
  %v9554 = vpop.f32.mrb[0].mxu0
  %v9555 = vpop.f32.mrb[0].mxu0
  %v9556 = vadd.f32 0.0, %v9555
  %v9557 = vpop.f32.mrb[0].mxu0
  %9558 = vmatprep.mubr.bf16.mxu0 0
  %9559 = vmatmul.mubr.bf16.gmra.mrb[0].mxu0 %v9345
  %v9560 = vpop.f32.mrb[0].mxu0
  %v9561 = vadd.f32 0.0, %v9560
  %v9562 = vpop.f32.mrb[0].mxu0
  %v9563 = vpop.f32.mrb[0].mxu0
  %v9564 = vadd.f32 0.0, %v9563
  %v9565 = vpop.f32.mrb[0].mxu0
  %9566 = vmatprep.mubr.bf16.mxu0 0
  %9567 = vmatmul.mubr.bf16.gmra.mrb[0].mxu0 %v9346
  %v9568 = vpop.f32.mrb[0].mxu0
  %v9569 = vadd.f32 0.0, %v9568
  %v9570 = vpop.f32.mrb[0].mxu0
  %v9571 = vpop.f32.mrb[0].mxu0
  %v9572 = vadd.f32 0.0, %v9571
  %v9573 = vpop.f32.mrb[0].mxu0
  %9574 = vmatprep.mubr.bf16.mxu0 0
  %9575 = vmatmul.mubr.bf16.gmra.mrb[0].mxu0 %v9347
  %v9576 = vpop.f32.mrb[0].mxu0
  %v9577 = vadd.f32 0.0, %v9576
  %v9578 = vpop.f32.mrb[0].mxu0
  %v9579 = vpop.f32.mrb[0].mxu0
  %v9580 = vadd.f32 0.0, %v9579
  %v9581 = vpop.f32.mrb[0].mxu0
  %9582 = vmatprep.mubr.bf16.mxu0 0
  %9583 = vmatmul.mubr.bf16.gmra.mrb[0].mxu0 %v9348
  %v9584 = vpop.f32.mrb[0].mxu0
  %v9585 = vadd.f32 0.0, %v9584
  %v9586 = vpop.f32.mrb[0].mxu0
  %v9587 = vpop.f32.mrb[0].mxu0
  %v9588 = vadd.f32 0.0, %v9587
  %v9589 = vpop.f32.mrb[0].mxu0
  %9590 = vmatprep.mubr.bf16.mxu0 0
  %9591 = vmatmul.mubr.bf16.gmra.mrb[0].mxu0 %v9349
  %v9592 = vpop.f32.mrb[0].mxu0
  %v9593 = vadd.f32 0.0, %v9592
  %v9594 = vpop.f32.mrb[0].mxu0
  %v9595 = vpop.f32.mrb[0].mxu0
  %v9596 = vadd.f32 0.0, %v9595
  %v9597 = vpop.f32.mrb[0].mxu0
  %9598 = vmatprep.mubr.bf16.mxu0 0
  %9599 = vmatmul.mubr.bf16.gmra.mrb[0].mxu0 %v9350
  %v9600 = vpop.f32.mrb[0].mxu0
  %v9601 = vadd.f32 0.0, %v9600
  %v9602 = vpop.f32.mrb[0].mxu0
  %v9603 = vpop.f32.mrb[0].mxu0
  %v9604 = vadd.f32 0.0, %v9603
  %v9605 = vpop.f32.mrb[0].mxu0
  %9606 = vmatprep.mubr.bf16.mxu0 0
  %9607 = vmatmul.mubr.bf16.gmra.mrb[0].mxu0 %v9351
  %v9608 = vpop.f32.mrb[0].mxu0
  %v9609 = vadd.f32 0.0, %v9608
  %v9610 = vpop.f32.mrb[0].mxu0
  %v9611 = vpop.f32.mrb[0].mxu0
  %v9612 = vadd.f32 0.0, %v9611
  %v9613 = vpop.f32.mrb[0].mxu0
  %9614 = vmatprep.mubr.bf16.mxu0 0
  %9615 = vmatmul.mubr.bf16.gmra.mrb[0].mxu0 %v9352
  %v9616 = vpop.f32.mrb[0].mxu0
  %v9617 = vadd.f32 0.0, %v9616
  %v9618 = vpop.f32.mrb[0].mxu0
  %v9619 = vpop.f32.mrb[0].mxu0
  %v9620 = vadd.f32 0.0, %v9619
  %v9621 = vpop.f32.mrb[0].mxu0
  %9622 = vmatprep.mubr.bf16.mxu0 0
  %9623 = vmatmul.mubr.bf16.gmra.mrb[0].mxu0 %v9353
  %v9624 = vpop.f32.mrb[0].mxu0
  %v9625 = vadd.f32 0.0, %v9624
  %v9626 = vpop.f32.mrb[0].mxu0
  %v9627 = vpop.f32.mrb[0].mxu0
  %v9628 = vadd.f32 0.0, %v9627
  %v9629 = vpop.f32.mrb[0].mxu0
  %9630 = vmatprep.mubr.bf16.mxu0 0
  %9631 = vmatmul.mubr.bf16.gmra.mrb[0].mxu0 %v9354
  %v9632 = vpop.f32.mrb[0].mxu0
  %v9633 = vadd.f32 0.0, %v9632
  %v9634 = vpop.f32.mrb[0].mxu0
  %v9635 = vpop.f32.mrb[0].mxu0
  %v9636 = vadd.f32 0.0, %v9635
  %v9637 = vpop.f32.mrb[0].mxu0
  %9638 = vmatprep.mubr.bf16.mxu0 0
  %9639 = vmatmul.mubr.bf16.gmra.mrb[0].mxu0 %v9355
  %v9640 = vpop.f32.mrb[0].mxu0
  %v9641 = vadd.f32 0.0, %v9640
  %v9642 = vpop.f32.mrb[0].mxu0
  %v9643 = vpop.f32.mrb[0].mxu0
  %v9644 = vadd.f32 0.0, %v9643
  %v9645 = vpop.f32.mrb[0].mxu0
  %9646 = vmatprep.mubr.bf16.mxu0 0
  %9647 = vmatmul.mubr.bf16.gmra.mrb[0].mxu0 %v9356
  %v9648 = vpop.f32.mrb[0].mxu0
  %v9649 = vadd.f32 0.0, %v9648
  %v9650 = vpop.f32.mrb[0].mxu0
  %v9651 = vpop.f32.mrb[0].mxu0
  %v9652 = vadd.f32 0.0, %v9651
  %v9653 = vpop.f32.mrb[0].mxu0
  %9654 = vmatprep.mubr.bf16.mxu0 0
  %9655 = vmatmul.mubr.bf16.gmra.mrb[0].mxu0 %v9357
  %v9656 = vpop.f32.mrb[0].mxu0
  %v9657 = vadd.f32 0.0, %v9656
  %v9658 = vpop.f32.mrb[0].mxu0
  %v9659 = vpop.f32.mrb[0].mxu0
  %v9660 = vadd.f32 0.0, %v9659
  %v9661 = vpop.f32.mrb[0].mxu0
  %9662 = vmatprep.mubr.bf16.mxu0 0
  %9663 = vmatmul.mubr.bf16.gmra.mrb[0].mxu0 %v9358
  %v9664 = vpop.f32.mrb[0].mxu0
  %v9665 = vadd.f32 0.0, %v9664
  %v9666 = vpop.f32.mrb[0].mxu0
  %v9667 = vpop.f32.mrb[0].mxu0
  %v9668 = vadd.f32 0.0, %v9667
  %v9669 = vpop.f32.mrb[0].mxu0
  %9670 = vmatprep.mubr.bf16.mxu0 0
  %9671 = vmatmul.mubr.bf16.gmra.mrb[0].mxu0 %v9359
  %v9672 = vpop.f32.mrb[0].mxu0
  %v9673 = vadd.f32 0.0, %v9672
  %v9674 = vpop.f32.mrb[0].mxu0
  %v9675 = vpop.f32.mrb[0].mxu0
  %v9676 = vadd.f32 0.0, %v9675
  %v9677 = vpop.f32.mrb[0].mxu0
  %9678 = vmatprep.mubr.bf16.mxu0 0
  %9679 = vmatmul.mubr.bf16.gmra.mrb[0].mxu0 %v9360
  %v9680 = vpop.f32.mrb[0].mxu0
  %v9681 = vadd.f32 0.0, %v9680
  %v9682 = vpop.f32.mrb[0].mxu0
  %v9683 = vpop.f32.mrb[0].mxu0
  %v9684 = vadd.f32 0.0, %v9683
  %v9685 = vpop.f32.mrb[0].mxu0
  %9686 = vmatprep.mubr.bf16.mxu0 0
  %9687 = vmatmul.mubr.bf16.gmra.mrb[0].mxu0 %v9361
  %v9688 = vpop.f32.mrb[0].mxu0
  %v9689 = vadd.f32 0.0, %v9688
  %v9690 = vpop.f32.mrb[0].mxu0
  %v9691 = vpop.f32.mrb[0].mxu0
  %v9692 = vadd.f32 0.0, %v9691
  %v9693 = vpop.f32.mrb[0].mxu0
  %9694 = vmatprep.mubr.bf16.mxu0 0
  %9695 = vmatmul.mubr.bf16.gmra.mrb[0].mxu0 %v9362
  %v9696 = vpop.f32.mrb[0].mxu0
  %v9697 = vadd.f32 0.0, %v9696
  %v9698 = vpop.f32.mrb[0].mxu0
  %v9699 = vpop.f32.mrb[0].mxu0
  %v9700 = vadd.f32 0.0, %v9699
  %v9701 = vpop.f32.mrb[0].mxu0
  %9702 = vmatprep.mubr.bf16.mxu0 0
  %9703 = vmatmul.mubr.bf16.gmra.mrb[0].mxu0 %v9363
  %v9704 = vpop.f32.mrb[0].mxu0
  %v9705 = vadd.f32 0.0, %v9704
  %v9706 = vpop.f32.mrb[0].mxu0
  %v9707 = vpop.f32.mrb[0].mxu0
  %v9708 = vadd.f32 0.0, %v9707
  %v9709 = vpop.f32.mrb[0].mxu0
  %9710 = vmatprep.mubr.bf16.mxu0 0
  %9711 = vmatmul.mubr.bf16.gmra.mrb[0].mxu0 %v9364
  %v9712 = vpop.f32.mrb[0].mxu0
  %v9713 = vadd.f32 0.0, %v9712
  %v9714 = vpop.f32.mrb[0].mxu0
  %v9715 = vpop.f32.mrb[0].mxu0
  %v9716 = vadd.f32 0.0, %v9715
  %v9717 = vpop.f32.mrb[0].mxu0
  %9718 = vdwg.mxu0
  %v9719 = vadd.f32 %v9205, %v9465
  %v9720 = vadd.f32 %v9206, %v9468
  %v9721 = vadd.f32 %v9207, %v9473
  %v9722 = vadd.f32 %v9208, %v9476
  %v9723 = vadd.f32 %v9209, %v9481
  %v9724 = vadd.f32 %v9210, %v9484
  %v9725 = vadd.f32 %v9211, %v9489
  %v9726 = vadd.f32 %v9212, %v9492
  %v9727 = vadd.f32 %v9213, %v9497
  %v9728 = vadd.f32 %v9214, %v9500
  %v9729 = vadd.f32 %v9215, %v9505
  %v9730 = vadd.f32 %v9216, %v9508
  %v9731 = vadd.f32 %v9217, %v9513
  %v9732 = vadd.f32 %v9218, %v9516
  %v9733 = vadd.f32 %v9219, %v9521
  %v9734 = vadd.f32 %v9220, %v9524
  %v9735 = vadd.f32 %v9221, %v9529
  %v9736 = vadd.f32 %v9222, %v9532
  %v9737 = vadd.f32 %v9223, %v9537
  %v9738 = vadd.f32 %v9224, %v9540
  %v9739 = vadd.f32 %v9225, %v9545
  %v9740 = vadd.f32 %v9226, %v9548
  %v9741 = vadd.f32 %v9227, %v9553
  %v9742 = vadd.f32 %v9228, %v9556
  %v9743 = vadd.f32 %v9229, %v9561
  %v9744 = vadd.f32 %v9230, %v9564
  %v9745 = vadd.f32 %v9231, %v9569
  %v9746 = vadd.f32 %v9232, %v9572
  %v9747 = vadd.f32 %v9233, %v9577
  %v9748 = vadd.f32 %v9234, %v9580
  %v9749 = vadd.f32 %v9235, %v9585
  %v9750 = vadd.f32 %v9236, %v9588
  %v9751 = vadd.f32 %v9237, %v9593
  %v9752 = vadd.f32 %v9238, %v9596
  %v9753 = vadd.f32 %v9239, %v9601
  %v9754 = vadd.f32 %v9240, %v9604
  %v9755 = vadd.f32 %v9241, %v9609
  %v9756 = vadd.f32 %v9242, %v9612
  %v9757 = vadd.f32 %v9243, %v9617
  %v9758 = vadd.f32 %v9244, %v9620
  %v9759 = vadd.f32 %v9245, %v9625
  %v9760 = vadd.f32 %v9246, %v9628
  %v9761 = vadd.f32 %v9247, %v9633
  %v9762 = vadd.f32 %v9248, %v9636
  %v9763 = vadd.f32 %v9249, %v9641
  %v9764 = vadd.f32 %v9250, %v9644
  %v9765 = vadd.f32 %v9251, %v9649
  %v9766 = vadd.f32 %v9252, %v9652
  %v9767 = vadd.f32 %v9253, %v9657
  %v9768 = vadd.f32 %v9254, %v9660
  %v9769 = vadd.f32 %v9255, %v9665
  %v9770 = vadd.f32 %v9256, %v9668
  %v9771 = vadd.f32 %v9257, %v9673
  %v9772 = vadd.f32 %v9258, %v9676
  %v9773 = vadd.f32 %v9259, %v9681
  %v9774 = vadd.f32 %v9260, %v9684
  %v9775 = vadd.f32 %v9261, %v9689
  %v9776 = vadd.f32 %v9262, %v9692
  %v9777 = vadd.f32 %v9263, %v9697
  %v9778 = vadd.f32 %v9264, %v9700
  %v9779 = vadd.f32 %v9265, %v9705
  %v9780 = vadd.f32 %v9266, %v9708
  %v9781 = vadd.f32 %v9267, %v9713
  %v9782 = vadd.f32 %v9268, %v9716
  %v9783 = vld [vmem:[%s5] sm:$0x1]
  %v9784 = vld [vmem:[%s6] sm:$0x1]
  %v9785 = vadd.f32 %v9719, %v9720
  %v9786 = vadd.f32 %v9785, %v9721
  %v9787 = vadd.f32 %v9786, %v9722
  %v9788 = vadd.f32 %v9787, %v9723
  %v9789 = vadd.f32 %v9788, %v9724
  %v9790 = vadd.f32 %v9789, %v9725
  %v9791 = vadd.f32 %v9790, %v9726
  %v9792 = vadd.f32 %v9791, %v9727
  %v9793 = vadd.f32 %v9792, %v9728
  %v9794 = vadd.f32 %v9793, %v9729
  %v9795 = vadd.f32 %v9794, %v9730
  %v9796 = vadd.f32 %v9795, %v9731
  %v9797 = vadd.f32 %v9796, %v9732
  %v9798 = vadd.f32 %v9797, %v9733
  %v9799 = vadd.f32 %v9798, %v9734
  %v9800 = vadd.f32 %v9799, %v9735
  %v9801 = vadd.f32 %v9800, %v9736
  %v9802 = vadd.f32 %v9801, %v9737
  %v9803 = vadd.f32 %v9802, %v9738
  %v9804 = vadd.f32 %v9803, %v9739
  %v9805 = vadd.f32 %v9804, %v9740
  %v9806 = vadd.f32 %v9805, %v9741
  %v9807 = vadd.f32 %v9806, %v9742
  %v9808 = vadd.f32 %v9807, %v9743
  %v9809 = vadd.f32 %v9808, %v9744
  %v9810 = vadd.f32 %v9809, %v9745
  %v9811 = vadd.f32 %v9810, %v9746
  %v9812 = vadd.f32 %v9811, %v9747
  %v9813 = vadd.f32 %v9812, %v9748
  %v9814 = vadd.f32 %v9813, %v9749
  %v9815 = vadd.f32 %v9814, %v9750
  %v9816 = vadd.f32 %v9815, %v9751
  %v9817 = vadd.f32 %v9816, %v9752
  %v9818 = vadd.f32 %v9817, %v9753
  %v9819 = vadd.f32 %v9818, %v9754
  %v9820 = vadd.f32 %v9819, %v9755
  %v9821 = vadd.f32 %v9820, %v9756
  %v9822 = vadd.f32 %v9821, %v9757
  %v9823 = vadd.f32 %v9822, %v9758
  %v9824 = vadd.f32 %v9823, %v9759
  %v9825 = vadd.f32 %v9824, %v9760
  %v9826 = vadd.f32 %v9825, %v9761
  %v9827 = vadd.f32 %v9826, %v9762
  %v9828 = vadd.f32 %v9827, %v9763
  %v9829 = vadd.f32 %v9828, %v9764
  %v9830 = vadd.f32 %v9829, %v9765
  %v9831 = vadd.f32 %v9830, %v9766
  %v9832 = vadd.f32 %v9831, %v9767
  %v9833 = vadd.f32 %v9832, %v9768
  %v9834 = vadd.f32 %v9833, %v9769
  %v9835 = vadd.f32 %v9834, %v9770
  %v9836 = vadd.f32 %v9835, %v9771
  %v9837 = vadd.f32 %v9836, %v9772
  %v9838 = vadd.f32 %v9837, %v9773
  %v9839 = vadd.f32 %v9838, %v9774
  %v9840 = vadd.f32 %v9839, %v9775
  %v9841 = vadd.f32 %v9840, %v9776
  %v9842 = vadd.f32 %v9841, %v9777
  %v9843 = vadd.f32 %v9842, %v9778
  %v9844 = vadd.f32 %v9843, %v9779
  %v9845 = vadd.f32 %v9844, %v9780
  %v9846 = vadd.f32 %v9845, %v9781
  %v9847 = vadd.f32 %v9846, %v9782
  %v9848 = vrot.slane %v9847, 4
  %v9849 = vadd.f32 %v9847, %v9848
  %v9850 = vrot.slane %v9849, 2
  %v9851 = vadd.f32 %v9849, %v9850
  %v9852 = vrot.slane %v9851, 1
  %v9853 = vadd.f32 %v9851, %v9852
  %v9854 = vmul.f32 %v9853, 0.001953125
  %v9855 = vsub.f32 %v9719, %v9854
  %v9856 = vsub.f32 %v9720, %v9854
  %v9857 = vsub.f32 %v9721, %v9854
  %v9858 = vsub.f32 %v9722, %v9854
  %v9859 = vsub.f32 %v9723, %v9854
  %v9860 = vsub.f32 %v9724, %v9854
  %v9861 = vsub.f32 %v9725, %v9854
  %v9862 = vsub.f32 %v9726, %v9854
  %v9863 = vsub.f32 %v9727, %v9854
  %v9864 = vsub.f32 %v9728, %v9854
  %v9865 = vsub.f32 %v9729, %v9854
  %v9866 = vsub.f32 %v9730, %v9854
  %v9867 = vsub.f32 %v9731, %v9854
  %v9868 = vsub.f32 %v9732, %v9854
  %v9869 = vsub.f32 %v9733, %v9854
  %v9870 = vsub.f32 %v9734, %v9854
  %v9871 = vsub.f32 %v9735, %v9854
  %v9872 = vsub.f32 %v9736, %v9854
  %v9873 = vsub.f32 %v9737, %v9854
  %v9874 = vsub.f32 %v9738, %v9854
  %v9875 = vsub.f32 %v9739, %v9854
  %v9876 = vsub.f32 %v9740, %v9854
  %v9877 = vsub.f32 %v9741, %v9854
  %v9878 = vsub.f32 %v9742, %v9854
  %v9879 = vsub.f32 %v9743, %v9854
  %v9880 = vsub.f32 %v9744, %v9854
  %v9881 = vsub.f32 %v9745, %v9854
  %v9882 = vsub.f32 %v9746, %v9854
  %v9883 = vsub.f32 %v9747, %v9854
  %v9884 = vsub.f32 %v9748, %v9854
  %v9885 = vsub.f32 %v9749, %v9854
  %v9886 = vsub.f32 %v9750, %v9854
  %v9887 = vsub.f32 %v9751, %v9854
  %v9888 = vsub.f32 %v9752, %v9854
  %v9889 = vsub.f32 %v9753, %v9854
  %v9890 = vsub.f32 %v9754, %v9854
  %v9891 = vsub.f32 %v9755, %v9854
  %v9892 = vsub.f32 %v9756, %v9854
  %v9893 = vsub.f32 %v9757, %v9854
  %v9894 = vsub.f32 %v9758, %v9854
  %v9895 = vsub.f32 %v9759, %v9854
  %v9896 = vsub.f32 %v9760, %v9854
  %v9897 = vsub.f32 %v9761, %v9854
  %v9898 = vsub.f32 %v9762, %v9854
  %v9899 = vsub.f32 %v9763, %v9854
  %v9900 = vsub.f32 %v9764, %v9854
  %v9901 = vsub.f32 %v9765, %v9854
  %v9902 = vsub.f32 %v9766, %v9854
  %v9903 = vsub.f32 %v9767, %v9854
  %v9904 = vsub.f32 %v9768, %v9854
  %v9905 = vsub.f32 %v9769, %v9854
  %v9906 = vsub.f32 %v9770, %v9854
  %v9907 = vsub.f32 %v9771, %v9854
  %v9908 = vsub.f32 %v9772, %v9854
  %v9909 = vsub.f32 %v9773, %v9854
  %v9910 = vsub.f32 %v9774, %v9854
  %v9911 = vsub.f32 %v9775, %v9854
  %v9912 = vsub.f32 %v9776, %v9854
  %v9913 = vsub.f32 %v9777, %v9854
  %v9914 = vsub.f32 %v9778, %v9854
  %v9915 = vsub.f32 %v9779, %v9854
  %v9916 = vsub.f32 %v9780, %v9854
  %v9917 = vsub.f32 %v9781, %v9854
  %v9918 = vsub.f32 %v9782, %v9854
  %v9919 = vmul.f32 %v9855, %v9855
  %v9920 = vmul.f32 %v9856, %v9856
  %v9921 = vmul.f32 %v9857, %v9857
  %v9922 = vmul.f32 %v9858, %v9858
  %v9923 = vmul.f32 %v9859, %v9859
  %v9924 = vmul.f32 %v9860, %v9860
  %v9925 = vmul.f32 %v9861, %v9861
  %v9926 = vmul.f32 %v9862, %v9862
  %v9927 = vmul.f32 %v9863, %v9863
  %v9928 = vmul.f32 %v9864, %v9864
  %v9929 = vmul.f32 %v9865, %v9865
  %v9930 = vmul.f32 %v9866, %v9866
  %v9931 = vmul.f32 %v9867, %v9867
  %v9932 = vmul.f32 %v9868, %v9868
  %v9933 = vmul.f32 %v9869, %v9869
  %v9934 = vmul.f32 %v9870, %v9870
  %v9935 = vmul.f32 %v9871, %v9871
  %v9936 = vmul.f32 %v9872, %v9872
  %v9937 = vmul.f32 %v9873, %v9873
  %v9938 = vmul.f32 %v9874, %v9874
  %v9939 = vmul.f32 %v9875, %v9875
  %v9940 = vmul.f32 %v9876, %v9876
  %v9941 = vmul.f32 %v9877, %v9877
  %v9942 = vmul.f32 %v9878, %v9878
  %v9943 = vmul.f32 %v9879, %v9879
  %v9944 = vmul.f32 %v9880, %v9880
  %v9945 = vmul.f32 %v9881, %v9881
  %v9946 = vmul.f32 %v9882, %v9882
  %v9947 = vmul.f32 %v9883, %v9883
  %v9948 = vmul.f32 %v9884, %v9884
  %v9949 = vmul.f32 %v9885, %v9885
  %v9950 = vmul.f32 %v9886, %v9886
  %v9951 = vmul.f32 %v9887, %v9887
  %v9952 = vmul.f32 %v9888, %v9888
  %v9953 = vmul.f32 %v9889, %v9889
  %v9954 = vmul.f32 %v9890, %v9890
  %v9955 = vmul.f32 %v9891, %v9891
  %v9956 = vmul.f32 %v9892, %v9892
  %v9957 = vmul.f32 %v9893, %v9893
  %v9958 = vmul.f32 %v9894, %v9894
  %v9959 = vmul.f32 %v9895, %v9895
  %v9960 = vmul.f32 %v9896, %v9896
  %v9961 = vmul.f32 %v9897, %v9897
  %v9962 = vmul.f32 %v9898, %v9898
  %v9963 = vmul.f32 %v9899, %v9899
  %v9964 = vmul.f32 %v9900, %v9900
  %v9965 = vmul.f32 %v9901, %v9901
  %v9966 = vmul.f32 %v9902, %v9902
  %v9967 = vmul.f32 %v9903, %v9903
  %v9968 = vmul.f32 %v9904, %v9904
  %v9969 = vmul.f32 %v9905, %v9905
  %v9970 = vmul.f32 %v9906, %v9906
  %v9971 = vmul.f32 %v9907, %v9907
  %v9972 = vmul.f32 %v9908, %v9908
  %v9973 = vmul.f32 %v9909, %v9909
  %v9974 = vmul.f32 %v9910, %v9910
  %v9975 = vmul.f32 %v9911, %v9911
  %v9976 = vmul.f32 %v9912, %v9912
  %v9977 = vmul.f32 %v9913, %v9913
  %v9978 = vmul.f32 %v9914, %v9914
  %v9979 = vmul.f32 %v9915, %v9915
  %v9980 = vmul.f32 %v9916, %v9916
  %v9981 = vmul.f32 %v9917, %v9917
  %v9982 = vmul.f32 %v9918, %v9918
  %v9983 = vadd.f32 %v9919, %v9920
  %v9984 = vadd.f32 %v9983, %v9921
  %v9985 = vadd.f32 %v9984, %v9922
  %v9986 = vadd.f32 %v9985, %v9923
  %v9987 = vadd.f32 %v9986, %v9924
  %v9988 = vadd.f32 %v9987, %v9925
  %v9989 = vadd.f32 %v9988, %v9926
  %v9990 = vadd.f32 %v9989, %v9927
  %v9991 = vadd.f32 %v9990, %v9928
  %v9992 = vadd.f32 %v9991, %v9929
  %v9993 = vadd.f32 %v9992, %v9930
  %v9994 = vadd.f32 %v9993, %v9931
  %v9995 = vadd.f32 %v9994, %v9932
  %v9996 = vadd.f32 %v9995, %v9933
  %v9997 = vadd.f32 %v9996, %v9934
  %v9998 = vadd.f32 %v9997, %v9935
  %v9999 = vadd.f32 %v9998, %v9936
  %v10000 = vadd.f32 %v9999, %v9937
  %v10001 = vadd.f32 %v10000, %v9938
  %v10002 = vadd.f32 %v10001, %v9939
  %v10003 = vadd.f32 %v10002, %v9940
  %v10004 = vadd.f32 %v10003, %v9941
  %v10005 = vadd.f32 %v10004, %v9942
  %v10006 = vadd.f32 %v10005, %v9943
  %v10007 = vadd.f32 %v10006, %v9944
  %v10008 = vadd.f32 %v10007, %v9945
  %v10009 = vadd.f32 %v10008, %v9946
  %v10010 = vadd.f32 %v10009, %v9947
  %v10011 = vadd.f32 %v10010, %v9948
  %v10012 = vadd.f32 %v10011, %v9949
  %v10013 = vadd.f32 %v10012, %v9950
  %v10014 = vadd.f32 %v10013, %v9951
  %v10015 = vadd.f32 %v10014, %v9952
  %v10016 = vadd.f32 %v10015, %v9953
  %v10017 = vadd.f32 %v10016, %v9954
  %v10018 = vadd.f32 %v10017, %v9955
  %v10019 = vadd.f32 %v10018, %v9956
  %v10020 = vadd.f32 %v10019, %v9957
  %v10021 = vadd.f32 %v10020, %v9958
  %v10022 = vadd.f32 %v10021, %v9959
  %v10023 = vadd.f32 %v10022, %v9960
  %v10024 = vadd.f32 %v10023, %v9961
  %v10025 = vadd.f32 %v10024, %v9962
  %v10026 = vadd.f32 %v10025, %v9963
  %v10027 = vadd.f32 %v10026, %v9964
  %v10028 = vadd.f32 %v10027, %v9965
  %v10029 = vadd.f32 %v10028, %v9966
  %v10030 = vadd.f32 %v10029, %v9967
  %v10031 = vadd.f32 %v10030, %v9968
  %v10032 = vadd.f32 %v10031, %v9969
  %v10033 = vadd.f32 %v10032, %v9970
  %v10034 = vadd.f32 %v10033, %v9971
  %v10035 = vadd.f32 %v10034, %v9972
  %v10036 = vadd.f32 %v10035, %v9973
  %v10037 = vadd.f32 %v10036, %v9974
  %v10038 = vadd.f32 %v10037, %v9975
  %v10039 = vadd.f32 %v10038, %v9976
  %v10040 = vadd.f32 %v10039, %v9977
  %v10041 = vadd.f32 %v10040, %v9978
  %v10042 = vadd.f32 %v10041, %v9979
  %v10043 = vadd.f32 %v10042, %v9980
  %v10044 = vadd.f32 %v10043, %v9981
  %v10045 = vadd.f32 %v10044, %v9982
  %v10046 = vrot.slane %v10045, 4
  %v10047 = vadd.f32 %v10045, %v10046
  %v10048 = vrot.slane %v10047, 2
  %v10049 = vadd.f32 %v10047, %v10048
  %v10050 = vrot.slane %v10049, 1
  %v10051 = vadd.f32 %v10049, %v10050
  %v10052 = vmul.f32 %v10051, 0.001953125
  %v10053 = vadd.f32 %v10052, 1e-05
  %v10054 = vrsqrt.pop %v10053
  %v10055 = vmul.f32 %v9783, %v10054
  %v10056 = vmul.f32 %v9854, %v10055
  %v10057 = vsub.f32 %v9784, %v10056
  %v10059 = vlaneseq
  %v10060 = vshrl.u32 %v10059, 7
  %v10061 = vsub.s32 0, %v10060
  %v10062 = vrot.slane %v10055, %v10061
  %v10064 = vmul.f32 %v9719, %v10062
  %v10065 = vmul.f32 %v9720, %v10062
  %v10066 = vmul.f32 %v9721, %v10062
  %v10067 = vmul.f32 %v9722, %v10062
  %v10068 = vmul.f32 %v9723, %v10062
  %v10069 = vmul.f32 %v9724, %v10062
  %v10070 = vmul.f32 %v9725, %v10062
  %v10071 = vmul.f32 %v9726, %v10062
  %v10072 = vmul.f32 %v9727, %v10062
  %v10073 = vmul.f32 %v9728, %v10062
  %v10074 = vmul.f32 %v9729, %v10062
  %v10075 = vmul.f32 %v9730, %v10062
  %v10076 = vmul.f32 %v9731, %v10062
  %v10077 = vmul.f32 %v9732, %v10062
  %v10078 = vmul.f32 %v9733, %v10062
  %v10079 = vmul.f32 %v9734, %v10062
  %v10080 = vmul.f32 %v9735, %v10062
  %v10081 = vmul.f32 %v9736, %v10062
  %v10082 = vmul.f32 %v9737, %v10062
  %v10083 = vmul.f32 %v9738, %v10062
  %v10084 = vmul.f32 %v9739, %v10062
  %v10085 = vmul.f32 %v9740, %v10062
  %v10086 = vmul.f32 %v9741, %v10062
  %v10087 = vmul.f32 %v9742, %v10062
  %v10088 = vmul.f32 %v9743, %v10062
  %v10089 = vmul.f32 %v9744, %v10062
  %v10090 = vmul.f32 %v9745, %v10062
  %v10091 = vmul.f32 %v9746, %v10062
  %v10092 = vmul.f32 %v9747, %v10062
  %v10093 = vmul.f32 %v9748, %v10062
  %v10094 = vmul.f32 %v9749, %v10062
  %v10095 = vmul.f32 %v9750, %v10062
  %v10096 = vmul.f32 %v9751, %v10062
  %v10097 = vmul.f32 %v9752, %v10062
  %v10098 = vmul.f32 %v9753, %v10062
  %v10099 = vmul.f32 %v9754, %v10062
  %v10100 = vmul.f32 %v9755, %v10062
  %v10101 = vmul.f32 %v9756, %v10062
  %v10102 = vmul.f32 %v9757, %v10062
  %v10103 = vmul.f32 %v9758, %v10062
  %v10104 = vmul.f32 %v9759, %v10062
  %v10105 = vmul.f32 %v9760, %v10062
  %v10106 = vmul.f32 %v9761, %v10062
  %v10107 = vmul.f32 %v9762, %v10062
  %v10108 = vmul.f32 %v9763, %v10062
  %v10109 = vmul.f32 %v9764, %v10062
  %v10110 = vmul.f32 %v9765, %v10062
  %v10111 = vmul.f32 %v9766, %v10062
  %v10112 = vmul.f32 %v9767, %v10062
  %v10113 = vmul.f32 %v9768, %v10062
  %v10114 = vmul.f32 %v9769, %v10062
  %v10115 = vmul.f32 %v9770, %v10062
  %v10116 = vmul.f32 %v9771, %v10062
  %v10117 = vmul.f32 %v9772, %v10062
  %v10118 = vmul.f32 %v9773, %v10062
  %v10119 = vmul.f32 %v9774, %v10062
  %v10120 = vmul.f32 %v9775, %v10062
  %v10121 = vmul.f32 %v9776, %v10062
  %v10122 = vmul.f32 %v9777, %v10062
  %v10123 = vmul.f32 %v9778, %v10062
  %v10124 = vmul.f32 %v9779, %v10062
  %v10125 = vmul.f32 %v9780, %v10062
  %v10126 = vmul.f32 %v9781, %v10062
  %v10127 = vmul.f32 %v9782, %v10062
  %v10129 = vlaneseq
  %v10130 = vshrl.u32 %v10129, 7
  %v10131 = vsub.s32 0, %v10130
  %v10132 = vrot.slane %v10057, %v10131
  %v10134 = vadd.f32 %v10064, %v10132
  %v10135 = vadd.f32 %v10065, %v10132
  %v10136 = vadd.f32 %v10066, %v10132
  %v10137 = vadd.f32 %v10067, %v10132
  %v10138 = vadd.f32 %v10068, %v10132
  %v10139 = vadd.f32 %v10069, %v10132
  %v10140 = vadd.f32 %v10070, %v10132
  %v10141 = vadd.f32 %v10071, %v10132
  %v10142 = vadd.f32 %v10072, %v10132
  %v10143 = vadd.f32 %v10073, %v10132
  %v10144 = vadd.f32 %v10074, %v10132
  %v10145 = vadd.f32 %v10075, %v10132
  %v10146 = vadd.f32 %v10076, %v10132
  %v10147 = vadd.f32 %v10077, %v10132
  %v10148 = vadd.f32 %v10078, %v10132
  %v10149 = vadd.f32 %v10079, %v10132
  %v10150 = vadd.f32 %v10080, %v10132
  %v10151 = vadd.f32 %v10081, %v10132
  %v10152 = vadd.f32 %v10082, %v10132
  %v10153 = vadd.f32 %v10083, %v10132
  %v10154 = vadd.f32 %v10084, %v10132
  %v10155 = vadd.f32 %v10085, %v10132
  %v10156 = vadd.f32 %v10086, %v10132
  %v10157 = vadd.f32 %v10087, %v10132
  %v10158 = vadd.f32 %v10088, %v10132
  %v10159 = vadd.f32 %v10089, %v10132
  %v10160 = vadd.f32 %v10090, %v10132
  %v10161 = vadd.f32 %v10091, %v10132
  %v10162 = vadd.f32 %v10092, %v10132
  %v10163 = vadd.f32 %v10093, %v10132
  %v10164 = vadd.f32 %v10094, %v10132
  %v10165 = vadd.f32 %v10095, %v10132
  %v10166 = vadd.f32 %v10096, %v10132
  %v10167 = vadd.f32 %v10097, %v10132
  %v10168 = vadd.f32 %v10098, %v10132
  %v10169 = vadd.f32 %v10099, %v10132
  %v10170 = vadd.f32 %v10100, %v10132
  %v10171 = vadd.f32 %v10101, %v10132
  %v10172 = vadd.f32 %v10102, %v10132
  %v10173 = vadd.f32 %v10103, %v10132
  %v10174 = vadd.f32 %v10104, %v10132
  %v10175 = vadd.f32 %v10105, %v10132
  %v10176 = vadd.f32 %v10106, %v10132
  %v10177 = vadd.f32 %v10107, %v10132
  %v10178 = vadd.f32 %v10108, %v10132
  %v10179 = vadd.f32 %v10109, %v10132
  %v10180 = vadd.f32 %v10110, %v10132
  %v10181 = vadd.f32 %v10111, %v10132
  %v10182 = vadd.f32 %v10112, %v10132
  %v10183 = vadd.f32 %v10113, %v10132
  %v10184 = vadd.f32 %v10114, %v10132
  %v10185 = vadd.f32 %v10115, %v10132
  %v10186 = vadd.f32 %v10116, %v10132
  %v10187 = vadd.f32 %v10117, %v10132
  %v10188 = vadd.f32 %v10118, %v10132
  %v10189 = vadd.f32 %v10119, %v10132
  %v10190 = vadd.f32 %v10120, %v10132
  %v10191 = vadd.f32 %v10121, %v10132
  %v10192 = vadd.f32 %v10122, %v10132
  %v10193 = vadd.f32 %v10123, %v10132
  %v10194 = vadd.f32 %v10124, %v10132
  %v10195 = vadd.f32 %v10125, %v10132
  %v10196 = vadd.f32 %v10126, %v10132
  %v10197 = vadd.f32 %v10127, %v10132
  %v10198 = vld [vmem:[%s0] sm:$0xff]
  %v10199 = vld [vmem:[%s0 + $0x8] sm:$0xff]
  %v10200 = vld [vmem:[%s0 + $0x10] sm:$0xff]
  %v10201 = vld [vmem:[%s0 + $0x18] sm:$0xff]
  %v10202 = vld [vmem:[%s0 + $0x20] sm:$0xff]
  %v10203 = vld [vmem:[%s0 + $0x28] sm:$0xff]
  %v10204 = vld [vmem:[%s0 + $0x30] sm:$0xff]
  %v10205 = vld [vmem:[%s0 + $0x38] sm:$0xff]
  %v10206 = vld [vmem:[%s0 + $0x40] sm:$0xff]
  %v10207 = vld [vmem:[%s0 + $0x48] sm:$0xff]
  %v10208 = vld [vmem:[%s0 + $0x50] sm:$0xff]
  %v10209 = vld [vmem:[%s0 + $0x58] sm:$0xff]
  %v10210 = vld [vmem:[%s0 + $0x60] sm:$0xff]
  %v10211 = vld [vmem:[%s0 + $0x68] sm:$0xff]
  %v10212 = vld [vmem:[%s0 + $0x70] sm:$0xff]
  %v10213 = vld [vmem:[%s0 + $0x78] sm:$0xff]
  %v10214 = vld [vmem:[%s0 + $0x80] sm:$0xff]
  %v10215 = vld [vmem:[%s0 + $0x88] sm:$0xff]
  %v10216 = vld [vmem:[%s0 + $0x90] sm:$0xff]
  %v10217 = vld [vmem:[%s0 + $0x98] sm:$0xff]
  %v10218 = vld [vmem:[%s0 + $0xa0] sm:$0xff]
  %v10219 = vld [vmem:[%s0 + $0xa8] sm:$0xff]
  %v10220 = vld [vmem:[%s0 + $0xb0] sm:$0xff]
  %v10221 = vld [vmem:[%s0 + $0xb8] sm:$0xff]
  %v10222 = vld [vmem:[%s0 + $0xc0] sm:$0xff]
  %v10223 = vld [vmem:[%s0 + $0xc8] sm:$0xff]
  %v10224 = vld [vmem:[%s0 + $0xd0] sm:$0xff]
  %v10225 = vld [vmem:[%s0 + $0xd8] sm:$0xff]
  %v10226 = vld [vmem:[%s0 + $0xe0] sm:$0xff]
  %v10227 = vld [vmem:[%s0 + $0xe8] sm:$0xff]
  %v10228 = vld [vmem:[%s0 + $0xf0] sm:$0xff]
  %v10229 = vld [vmem:[%s0 + $0xf8] sm:$0xff]
  %v10230 = vld [vmem:[%s0 + $0x100] sm:$0xff]
  %v10231 = vld [vmem:[%s0 + $0x108] sm:$0xff]
  %v10232 = vld [vmem:[%s0 + $0x110] sm:$0xff]
  %v10233 = vld [vmem:[%s0 + $0x118] sm:$0xff]
  %v10234 = vld [vmem:[%s0 + $0x120] sm:$0xff]
  %v10235 = vld [vmem:[%s0 + $0x128] sm:$0xff]
  %v10236 = vld [vmem:[%s0 + $0x130] sm:$0xff]
  %v10237 = vld [vmem:[%s0 + $0x138] sm:$0xff]
  %v10238 = vld [vmem:[%s0 + $0x140] sm:$0xff]
  %v10239 = vld [vmem:[%s0 + $0x148] sm:$0xff]
  %v10240 = vld [vmem:[%s0 + $0x150] sm:$0xff]
  %v10241 = vld [vmem:[%s0 + $0x158] sm:$0xff]
  %v10242 = vld [vmem:[%s0 + $0x160] sm:$0xff]
  %v10243 = vld [vmem:[%s0 + $0x168] sm:$0xff]
  %v10244 = vld [vmem:[%s0 + $0x170] sm:$0xff]
  %v10245 = vld [vmem:[%s0 + $0x178] sm:$0xff]
  %v10246 = vld [vmem:[%s0 + $0x180] sm:$0xff]
  %v10247 = vld [vmem:[%s0 + $0x188] sm:$0xff]
  %v10248 = vld [vmem:[%s0 + $0x190] sm:$0xff]
  %v10249 = vld [vmem:[%s0 + $0x198] sm:$0xff]
  %v10250 = vld [vmem:[%s0 + $0x1a0] sm:$0xff]
  %v10251 = vld [vmem:[%s0 + $0x1a8] sm:$0xff]
  %v10252 = vld [vmem:[%s0 + $0x1b0] sm:$0xff]
  %v10253 = vld [vmem:[%s0 + $0x1b8] sm:$0xff]
  %v10254 = vld [vmem:[%s0 + $0x1c0] sm:$0xff]
  %v10255 = vld [vmem:[%s0 + $0x1c8] sm:$0xff]
  %v10256 = vld [vmem:[%s0 + $0x1d0] sm:$0xff]
  %v10257 = vld [vmem:[%s0 + $0x1d8] sm:$0xff]
  %v10258 = vld [vmem:[%s0 + $0x1e0] sm:$0xff]
  %v10259 = vld [vmem:[%s0 + $0x1e8] sm:$0xff]
  %v10260 = vld [vmem:[%s0 + $0x1f0] sm:$0xff]
  %v10261 = vld [vmem:[%s0 + $0x1f8] sm:$0xff]
  %v10262 = vadd.f32 %v10134, %v10198
  %v10263 = vadd.f32 %v10135, %v10199
  %v10264 = vadd.f32 %v10136, %v10200
  %v10265 = vadd.f32 %v10137, %v10201
  %v10266 = vadd.f32 %v10138, %v10202
  %v10267 = vadd.f32 %v10139, %v10203
  %v10268 = vadd.f32 %v10140, %v10204
  %v10269 = vadd.f32 %v10141, %v10205
  %v10270 = vadd.f32 %v10142, %v10206
  %v10271 = vadd.f32 %v10143, %v10207
  %v10272 = vadd.f32 %v10144, %v10208
  %v10273 = vadd.f32 %v10145, %v10209
  %v10274 = vadd.f32 %v10146, %v10210
  %v10275 = vadd.f32 %v10147, %v10211
  %v10276 = vadd.f32 %v10148, %v10212
  %v10277 = vadd.f32 %v10149, %v10213
  %v10278 = vadd.f32 %v10150, %v10214
  %v10279 = vadd.f32 %v10151, %v10215
  %v10280 = vadd.f32 %v10152, %v10216
  %v10281 = vadd.f32 %v10153, %v10217
  %v10282 = vadd.f32 %v10154, %v10218
  %v10283 = vadd.f32 %v10155, %v10219
  %v10284 = vadd.f32 %v10156, %v10220
  %v10285 = vadd.f32 %v10157, %v10221
  %v10286 = vadd.f32 %v10158, %v10222
  %v10287 = vadd.f32 %v10159, %v10223
  %v10288 = vadd.f32 %v10160, %v10224
  %v10289 = vadd.f32 %v10161, %v10225
  %v10290 = vadd.f32 %v10162, %v10226
  %v10291 = vadd.f32 %v10163, %v10227
  %v10292 = vadd.f32 %v10164, %v10228
  %v10293 = vadd.f32 %v10165, %v10229
  %v10294 = vadd.f32 %v10166, %v10230
  %v10295 = vadd.f32 %v10167, %v10231
  %v10296 = vadd.f32 %v10168, %v10232
  %v10297 = vadd.f32 %v10169, %v10233
  %v10298 = vadd.f32 %v10170, %v10234
  %v10299 = vadd.f32 %v10171, %v10235
  %v10300 = vadd.f32 %v10172, %v10236
  %v10301 = vadd.f32 %v10173, %v10237
  %v10302 = vadd.f32 %v10174, %v10238
  %v10303 = vadd.f32 %v10175, %v10239
  %v10304 = vadd.f32 %v10176, %v10240
  %v10305 = vadd.f32 %v10177, %v10241
  %v10306 = vadd.f32 %v10178, %v10242
  %v10307 = vadd.f32 %v10179, %v10243
  %v10308 = vadd.f32 %v10180, %v10244
  %v10309 = vadd.f32 %v10181, %v10245
  %v10310 = vadd.f32 %v10182, %v10246
  %v10311 = vadd.f32 %v10183, %v10247
  %v10312 = vadd.f32 %v10184, %v10248
  %v10313 = vadd.f32 %v10185, %v10249
  %v10314 = vadd.f32 %v10186, %v10250
  %v10315 = vadd.f32 %v10187, %v10251
  %v10316 = vadd.f32 %v10188, %v10252
  %v10317 = vadd.f32 %v10189, %v10253
  %v10318 = vadd.f32 %v10190, %v10254
  %v10319 = vadd.f32 %v10191, %v10255
  %v10320 = vadd.f32 %v10192, %v10256
  %v10321 = vadd.f32 %v10193, %v10257
  %v10322 = vadd.f32 %v10194, %v10258
  %v10323 = vadd.f32 %v10195, %v10259
  %v10324 = vadd.f32 %v10196, %v10260
  %v10325 = vadd.f32 %v10197, %v10261
  %v10326 = vmax.f32 %v10262, 0.0
  %v10327 = vmax.f32 %v10263, 0.0
  %v10328 = vmax.f32 %v10264, 0.0
  %v10329 = vmax.f32 %v10265, 0.0
  %v10330 = vmax.f32 %v10266, 0.0
  %v10331 = vmax.f32 %v10267, 0.0
  %v10332 = vmax.f32 %v10268, 0.0
  %v10333 = vmax.f32 %v10269, 0.0
  %v10334 = vmax.f32 %v10270, 0.0
  %v10335 = vmax.f32 %v10271, 0.0
  %v10336 = vmax.f32 %v10272, 0.0
  %v10337 = vmax.f32 %v10273, 0.0
  %v10338 = vmax.f32 %v10274, 0.0
  %v10339 = vmax.f32 %v10275, 0.0
  %v10340 = vmax.f32 %v10276, 0.0
  %v10341 = vmax.f32 %v10277, 0.0
  %v10342 = vmax.f32 %v10278, 0.0
  %v10343 = vmax.f32 %v10279, 0.0
  %v10344 = vmax.f32 %v10280, 0.0
  %v10345 = vmax.f32 %v10281, 0.0
  %v10346 = vmax.f32 %v10282, 0.0
  %v10347 = vmax.f32 %v10283, 0.0
  %v10348 = vmax.f32 %v10284, 0.0
  %v10349 = vmax.f32 %v10285, 0.0
  %v10350 = vmax.f32 %v10286, 0.0
  %v10351 = vmax.f32 %v10287, 0.0
  %v10352 = vmax.f32 %v10288, 0.0
  %v10353 = vmax.f32 %v10289, 0.0
  %v10354 = vmax.f32 %v10290, 0.0
  %v10355 = vmax.f32 %v10291, 0.0
  %v10356 = vmax.f32 %v10292, 0.0
  %v10357 = vmax.f32 %v10293, 0.0
  %v10358 = vmax.f32 %v10294, 0.0
  %v10359 = vmax.f32 %v10295, 0.0
  %v10360 = vmax.f32 %v10296, 0.0
  %v10361 = vmax.f32 %v10297, 0.0
  %v10362 = vmax.f32 %v10298, 0.0
  %v10363 = vmax.f32 %v10299, 0.0
  %v10364 = vmax.f32 %v10300, 0.0
  %v10365 = vmax.f32 %v10301, 0.0
  %v10366 = vmax.f32 %v10302, 0.0
  %v10367 = vmax.f32 %v10303, 0.0
  %v10368 = vmax.f32 %v10304, 0.0
  %v10369 = vmax.f32 %v10305, 0.0
  %v10370 = vmax.f32 %v10306, 0.0
  %v10371 = vmax.f32 %v10307, 0.0
  %v10372 = vmax.f32 %v10308, 0.0
  %v10373 = vmax.f32 %v10309, 0.0
  %v10374 = vmax.f32 %v10310, 0.0
  %v10375 = vmax.f32 %v10311, 0.0
  %v10376 = vmax.f32 %v10312, 0.0
  %v10377 = vmax.f32 %v10313, 0.0
  %v10378 = vmax.f32 %v10314, 0.0
  %v10379 = vmax.f32 %v10315, 0.0
  %v10380 = vmax.f32 %v10316, 0.0
  %v10381 = vmax.f32 %v10317, 0.0
  %v10382 = vmax.f32 %v10318, 0.0
  %v10383 = vmax.f32 %v10319, 0.0
  %v10384 = vmax.f32 %v10320, 0.0
  %v10385 = vmax.f32 %v10321, 0.0
  %v10386 = vmax.f32 %v10322, 0.0
  %v10387 = vmax.f32 %v10323, 0.0
  %v10388 = vmax.f32 %v10324, 0.0
  %v10389 = vmax.f32 %v10325, 0.0
  %10390 = vst [vmem:[%s7] sm:$0xff] %v10326
  %10391 = vst [vmem:[%s7 + $0x8] sm:$0xff] %v10327
  %10392 = vst [vmem:[%s7 + $0x10] sm:$0xff] %v10328
  %10393 = vst [vmem:[%s7 + $0x18] sm:$0xff] %v10329
  %10394 = vst [vmem:[%s7 + $0x20] sm:$0xff] %v10330
  %10395 = vst [vmem:[%s7 + $0x28] sm:$0xff] %v10331
  %10396 = vst [vmem:[%s7 + $0x30] sm:$0xff] %v10332
  %10397 = vst [vmem:[%s7 + $0x38] sm:$0xff] %v10333
  %10398 = vst [vmem:[%s7 + $0x40] sm:$0xff] %v10334
  %10399 = vst [vmem:[%s7 + $0x48] sm:$0xff] %v10335
  %10400 = vst [vmem:[%s7 + $0x50] sm:$0xff] %v10336
  %10401 = vst [vmem:[%s7 + $0x58] sm:$0xff] %v10337
  %10402 = vst [vmem:[%s7 + $0x60] sm:$0xff] %v10338
  %10403 = vst [vmem:[%s7 + $0x68] sm:$0xff] %v10339
  %10404 = vst [vmem:[%s7 + $0x70] sm:$0xff] %v10340
  %10405 = vst [vmem:[%s7 + $0x78] sm:$0xff] %v10341
  %10406 = vst [vmem:[%s7 + $0x80] sm:$0xff] %v10342
  %10407 = vst [vmem:[%s7 + $0x88] sm:$0xff] %v10343
  %10408 = vst [vmem:[%s7 + $0x90] sm:$0xff] %v10344
  %10409 = vst [vmem:[%s7 + $0x98] sm:$0xff] %v10345
  %10410 = vst [vmem:[%s7 + $0xa0] sm:$0xff] %v10346
  %10411 = vst [vmem:[%s7 + $0xa8] sm:$0xff] %v10347
  %10412 = vst [vmem:[%s7 + $0xb0] sm:$0xff] %v10348
  %10413 = vst [vmem:[%s7 + $0xb8] sm:$0xff] %v10349
  %10414 = vst [vmem:[%s7 + $0xc0] sm:$0xff] %v10350
  %10415 = vst [vmem:[%s7 + $0xc8] sm:$0xff] %v10351
  %10416 = vst [vmem:[%s7 + $0xd0] sm:$0xff] %v10352
  %10417 = vst [vmem:[%s7 + $0xd8] sm:$0xff] %v10353
  %10418 = vst [vmem:[%s7 + $0xe0] sm:$0xff] %v10354
  %10419 = vst [vmem:[%s7 + $0xe8] sm:$0xff] %v10355
  %10420 = vst [vmem:[%s7 + $0xf0] sm:$0xff] %v10356
  %10421 = vst [vmem:[%s7 + $0xf8] sm:$0xff] %v10357
  %10422 = vst [vmem:[%s7 + $0x100] sm:$0xff] %v10358
  %10423 = vst [vmem:[%s7 + $0x108] sm:$0xff] %v10359
  %10424 = vst [vmem:[%s7 + $0x110] sm:$0xff] %v10360
  %10425 = vst [vmem:[%s7 + $0x118] sm:$0xff] %v10361
  %10426 = vst [vmem:[%s7 + $0x120] sm:$0xff] %v10362
  %10427 = vst [vmem:[%s7 + $0x128] sm:$0xff] %v10363
  %10428 = vst [vmem:[%s7 + $0x130] sm:$0xff] %v10364
  %10429 = vst [vmem:[%s7 + $0x138] sm:$0xff] %v10365
  %10430 = vst [vmem:[%s7 + $0x140] sm:$0xff] %v10366
  %10431 = vst [vmem:[%s7 + $0x148] sm:$0xff] %v10367
  %10432 = vst [vmem:[%s7 + $0x150] sm:$0xff] %v10368
  %10433 = vst [vmem:[%s7 + $0x158] sm:$0xff] %v10369
  %10434 = vst [vmem:[%s7 + $0x160] sm:$0xff] %v10370
  %10435 = vst [vmem:[%s7 + $0x168] sm:$0xff] %v10371
  %10436 = vst [vmem:[%s7 + $0x170] sm:$0xff] %v10372
  %10437 = vst [vmem:[%s7 + $0x178] sm:$0xff] %v10373
  %10438 = vst [vmem:[%s7 + $0x180] sm:$0xff] %v10374
  %10439 = vst [vmem:[%s7 + $0x188] sm:$0xff] %v10375
  %10440 = vst [vmem:[%s7 + $0x190] sm:$0xff] %v10376
  %10441 = vst [vmem:[%s7 + $0x198] sm:$0xff] %v10377
  %10442 = vst [vmem:[%s7 + $0x1a0] sm:$0xff] %v10378
  %10443 = vst [vmem:[%s7 + $0x1a8] sm:$0xff] %v10379
  %10444 = vst [vmem:[%s7 + $0x1b0] sm:$0xff] %v10380
  %10445 = vst [vmem:[%s7 + $0x1b8] sm:$0xff] %v10381
  %10446 = vst [vmem:[%s7 + $0x1c0] sm:$0xff] %v10382
  %10447 = vst [vmem:[%s7 + $0x1c8] sm:$0xff] %v10383
  %10448 = vst [vmem:[%s7 + $0x1d0] sm:$0xff] %v10384
  %10449 = vst [vmem:[%s7 + $0x1d8] sm:$0xff] %v10385
  %10450 = vst [vmem:[%s7 + $0x1e0] sm:$0xff] %v10386
  %10451 = vst [vmem:[%s7 + $0x1e8] sm:$0xff] %v10387
  %10452 = vst [vmem:[%s7 + $0x1f0] sm:$0xff] %v10388
  %10453 = vst [vmem:[%s7 + $0x1f8] sm:$0xff] %v10389
  // Predicated region
  $region30: #{residual_block.1} parent=0 // pred_check
    _
  $region31: #{residual_block.1} parent=0 // pred_check_branch
    %10455 = sbr.rel (0) target = $region33
  $region32: #{residual_block.1} parent=0 // pred_region
    _
  $region33: #{residual_block.1} parent=0 // pred_fallthru
    _
  // Predicated region
  $region34: #{residual_block.1} parent=0 // pred_check
    _
  $region35: #{residual_block.1} parent=0 // pred_check_branch
    %10457 = sbr.rel (0) target = $region37
  $region36: #{residual_block.1} parent=0 // pred_region
    _
  $region37: #{residual_block.1} parent=0 // pred_fallthru
    _

</llo_original>
